<compile_context>
chip_gen: v7x
topology: tpu7x:2x2x1
jax: 0.10.0
libtpu: 0.0.40
codegen_flags: <defaults>
</compile_context>

<pallas_src>
import functools

import jax
import jax.numpy as jnp
import numpy as np
from jax import lax
from jax.experimental import pallas as pl
from jax.experimental.pallas import tpu as pltpu

_BN_EPS = 1e-5
_VMEM_LIMIT = 32 * 1024 * 1024  # modest explicit budget; fits v5e/v6e/v7x


# ----------------------------------------------------------------------------
# In-kernel helpers (all indexing is static: python ints / slices only).
#
# The padded spatial map hp (1-pixel zero border) is stored "stride-split":
#   pad_ref has shape (H+2, stride, W//stride + 2, C) and represents
#   hp[r, stride*c + p, :] == pad_ref[r, p, c, :]
# so a 3x3 tap at offset (dh, dw) with stride s is a *contiguous* slice.
# The wrapper pre-groups input columns by residue (mod stride) so the fill
# below is also contiguous.
# ----------------------------------------------------------------------------
def _fill_padded(pad_ref, get_group_row, H, W, stride):
    """Scatter an (H*W, C) activation (columns grouped by residue mod stride)
    into the zero-initialised stride-split padded scratch."""
    Wg = W // stride
    for r in range(H):
        for p in range(stride):
            src = get_group_row(r, p)                    # (Wg, C)
            # original col k = stride*c + p maps to hp col k+1
            if p + 1 < stride:
                pad_ref[1 + r, p + 1, 0:Wg, :] = src
            else:
                pad_ref[1 + r, 0, 1:Wg + 1, :] = src


def _tap(pad_ref, i, dh, dw, stride, Wo):
    """hp[stride*i + dh, stride*j + dw, :] for j in [0, Wo)  ->  (Wo, C)."""
    c0 = dw // stride
    return pad_ref[stride * i + dh, dw % stride, c0:c0 + Wo, :]


# ----------------------------------------------------------------------------
# Pallas kernels (one image per grid step)
# ----------------------------------------------------------------------------
def _stem_kernel(x_ref, w_ref, b_ref, o_ref, xpad_ref, *, H, W, stride):
    """Fused 3x3 conv (pad 1) + folded BN + ReLU.

    x_ref   : (1, H*W, Cin)   input, columns grouped by residue mod stride
    w_ref   : (9, Cin, Cout)  conv weight * bn_scale, tap-major (dh*3+dw)
    b_ref   : (1, Cout)       folded bias
    o_ref   : (1, Ho*Wo, Cout)
    xpad_ref: (H+2, stride, W//stride + 2, Cin) VMEM scratch
    """
    Ho, Wo = H // stride, W // stride
    Wg = W // stride
    Cout = w_ref.shape[2]

    xpad_ref[...] = jnp.zeros_like(xpad_ref)

    def get_group_row(r, p):
        lo = r * W + p * Wg
        return x_ref[0, lo:lo + Wg, :]

    _fill_padded(xpad_ref, get_group_row, H, W, stride)

    # hoist the 9 per-tap weight loads out of the row loop
    w_taps = [w_ref[t] for t in range(9)]                 # each (Cin, Cout)
    b = b_ref[...]                                        # (1, Cout)

    for i in range(Ho):
        acc = jnp.zeros((Wo, Cout), jnp.float32)
        for dh in range(3):
            for dw in range(3):
                tap = _tap(xpad_ref, i, dh, dw, stride, Wo)   # (Wo, Cin)
                acc = acc + jnp.dot(tap, w_taps[3 * dh + dw],
                                    preferred_element_type=jnp.float32)
        row = jnp.maximum(acc + b, 0.0)
        o_ref[0, i * Wo:(i + 1) * Wo, :] = row.astype(o_ref.dtype)


def _ir_kernel(*refs, H, W, stride, has_expand, use_res):
    """Fused FBNet ir_k3_eX block:
       [1x1 expand + BN + ReLU] -> dw3x3 + BN + ReLU -> 1x1 project + BN
       (+ residual).  The expanded activation never leaves VMEM.
    """
    if has_expand:
        (x_ref, w1_ref, b1_ref, wdw_ref, b2_ref, w3_ref, b3_ref,
         o_ref, hpad_ref, hdw_ref) = refs
    else:
        (x_ref, wdw_ref, b2_ref, w3_ref, b3_ref,
         o_ref, hpad_ref, hdw_ref) = refs
        w1_ref = b1_ref = None

    Ho, Wo = H // stride, W // stride
    Wg = W // stride
    Cmid = wdw_ref.shape[1]

    # ---- 1x1 expand (matmul) + BN + ReLU ------------------------------------
    x2d = x_ref[0]                                        # (H*W, Cin)
    if has_expand:
        h = jnp.dot(x2d, w1_ref[...], preferred_element_type=jnp.float32)
        h = jnp.maximum(h + b1_ref[...], 0.0)             # (H*W, Cmid)
    else:
        h = x2d                                           # Cmid == Cin

    # ---- scatter into zero-padded, stride-split VMEM scratch ----------------
    hpad_ref[...] = jnp.zeros_like(hpad_ref)

    def get_group_row(r, p):
        lo = r * W + p * Wg
        return h[lo:lo + Wg, :]

    _fill_padded(hpad_ref, get_group_row, H, W, stride)

    # ---- depthwise 3x3 + BN + ReLU ------------------------------------------
    wdw = wdw_ref[...]                                    # (9, Cmid)
    # hoist per-tap weight broadcasts out of the row loop
    wrow = [jnp.broadcast_to(wdw[t:t + 1, :], (Wo, Cmid)) for t in range(9)]
    b2 = jnp.broadcast_to(b2_ref[...], (Wo, Cmid))
    for i in range(Ho):
        acc = jnp.zeros((Wo, Cmid), jnp.float32)
        for dh in range(3):
            for dw in range(3):
                acc = acc + _tap(hpad_ref, i, dh, dw, stride, Wo) * \
                    wrow[3 * dh + dw]
        hdw_ref[i * Wo:(i + 1) * Wo, :] = jnp.maximum(acc + b2, 0.0)

    # ---- 1x1 project (matmul) + BN (+ residual), no ReLU --------------------
    y = jnp.dot(hdw_ref[...], w3_ref[...], preferred_element_type=jnp.float32)
    y = y + b3_ref[...]
    if use_res:
        y = y + x2d
    o_ref[0] = y.astype(o_ref.dtype)


# ----------------------------------------------------------------------------
# Wrappers (plain-JAX glue: layout permutation + pallas_call setup)
# ----------------------------------------------------------------------------
def _group_cols(x_nhwc, stride):
    """Reorder W axis into residue groups [0::s, 1::s, ...] (identity if s==1)."""
    if stride == 1:
        return x_nhwc
    return jnp.concatenate([x_nhwc[:, :, p::stride, :] for p in range(stride)],
                           axis=2)


def stem_forward(x_nhwc, p):
    N, H, W, Cin = x_nhwc.shape
    stride, Cout = p["stride"], p["cout"]
    assert H % stride == 0 and W % stride == 0, "spatial dims must divide stride"
    Ho, Wo = H // stride, W // stride
    xg = _group_cols(x_nhwc, stride).reshape(N, H * W, Cin)

    kernel = functools.partial(_stem_kernel, H=H, W=W, stride=stride)
    out = pl.pallas_call(
        kernel,
        out_shape=jax.ShapeDtypeStruct((N, Ho * Wo, Cout), jnp.float32),
        grid=(N,),
        in_specs=[
            pl.BlockSpec((1, H * W, Cin), lambda n: (n, 0, 0)),
            pl.BlockSpec((9, Cin, Cout), lambda n: (0, 0, 0)),
            pl.BlockSpec((1, Cout), lambda n: (0, 0)),
        ],
        out_specs=pl.BlockSpec((1, Ho * Wo, Cout), lambda n: (n, 0, 0)),
        scratch_shapes=[
            pltpu.VMEM((H + 2, stride, W // stride + 2, Cin), jnp.float32),
        ],
        compiler_params=pltpu.CompilerParams(
            dimension_semantics=("parallel",), vmem_limit_bytes=_VMEM_LIMIT),
    )(xg, p["w_folded"], p["b_folded"])
    return out.reshape(N, Ho, Wo, Cout)


def ir_block_forward(x_nhwc, p):
    N, H, W, Cin = x_nhwc.shape
    stride, Cout, e = p["stride"], p["cout"], p["expand"]
    assert H % stride == 0 and W % stride == 0, "spatial dims must divide stride"
    Ho, Wo = H // stride, W // stride
    Cmid = Cin * e
    has_expand = e != 1
    use_res = (stride == 1) and (Cin == Cout)

    xg = _group_cols(x_nhwc, stride).reshape(N, H * W, Cin)

    args = [xg]
    in_specs = [pl.BlockSpec((1, H * W, Cin), lambda n: (n, 0, 0))]
    if has_expand:
        args += [p["w1_folded"], p["b1_folded"]]
        in_specs += [pl.BlockSpec((Cin, Cmid), lambda n: (0, 0)),
                     pl.BlockSpec((1, Cmid), lambda n: (0, 0))]
    args += [p["wdw_folded"], p["b2_folded"], p["w3_folded"], p["b3_folded"]]
    in_specs += [pl.BlockSpec((9, Cmid), lambda n: (0, 0)),
                 pl.BlockSpec((1, Cmid), lambda n: (0, 0)),
                 pl.BlockSpec((Cmid, Cout), lambda n: (0, 0)),
                 pl.BlockSpec((1, Cout), lambda n: (0, 0))]

    kernel = functools.partial(_ir_kernel, H=H, W=W, stride=stride,
                               has_expand=has_expand, use_res=use_res)
    out = pl.pallas_call(
        kernel,
        out_shape=jax.ShapeDtypeStruct((N, Ho * Wo, Cout), jnp.float32),
        grid=(N,),
        in_specs=in_specs,
        out_specs=pl.BlockSpec((1, Ho * Wo, Cout), lambda n: (n, 0, 0)),
        scratch_shapes=[
            pltpu.VMEM((H + 2, stride, W // stride + 2, Cmid), jnp.float32),
            pltpu.VMEM((Ho * Wo, Cmid), jnp.float32),
        ],
        compiler_params=pltpu.CompilerParams(
            dimension_semantics=("parallel",), vmem_limit_bytes=_VMEM_LIMIT),
    )(*args)
    return out.reshape(N, Ho, Wo, Cout)


# ----------------------------------------------------------------------------
# Parameter construction: raw (PyTorch-style) params + BN folded once.
# ----------------------------------------------------------------------------
def _fold_scale_bias(gamma, beta, mean, var):
    s = gamma / jnp.sqrt(var + _BN_EPS)
    return s, beta - mean * s


def _bn_init(key, c):
    k1, k2, k3, k4 = jax.random.split(key, 4)
    gamma = 1.0 + 0.1 * jax.random.normal(k1, (c,), jnp.float32)
    beta = 0.1 * jax.random.normal(k2, (c,), jnp.float32)
    mean = 0.05 * jax.random.normal(k3, (c,), jnp.float32)
    var = 1.0 + 0.1 * jnp.abs(jax.random.normal(k4, (c,), jnp.float32))
    return gamma, beta, mean, var


class FBNetPallas:
    def __init__(self, out_indices=(1, 3, 5), key=None):
        # Small FBNet-style arch: ConvBNReLU stem + ir_k3_eX blocks.
        self.genotypes = ["conv3", "ir_k3_e1", "ir_k3_e6", "ir_k3_e6",
                          "ir_k3_e6", "ir_k3_e6"]
        self.strides = [2, 1, 2, 1, 2, 1]
        self.out_channels = [8, 8, 16, 16, 24, 24]
        self.out_indices = out_indices
        key = jax.random.PRNGKey(0) if key is None else key
        self.raw_params = self._build_raw_params(key)
        # BN folded into weights once (not per forward call).
        self.params = [self._fold_layer(g, rp)
                       for g, rp in zip(self.genotypes, self.raw_params)]

    def _build_raw_params(self, key):
        params = []
        keys = jax.random.split(key, len(self.genotypes))
        in_ch = 3
        for i, (g, s, c) in enumerate(zip(self.genotypes, self.strides,
                                          self.out_channels)):
            k = jax.random.split(keys[i], 8)
            if g == "conv3":
                p = {"stride": s, "cout": c,
                     "w": 0.1 * jax.random.normal(k[0], (3, 3, in_ch, c),
                                                  jnp.float32),
                     "bias": 0.01 * jax.random.normal(k[1], (c,), jnp.float32),
                     "bn": _bn_init(k[2], c)}
            else:
                e = int(g.split("_e")[-1])
                cmid = in_ch * e
                p = {"stride": s, "cout": c, "expand": e}
                if e != 1:
                    p["w1"] = 0.1 * jax.random.normal(k[0], (in_ch, cmid),
                                                      jnp.float32)
                    p["bn1"] = _bn_init(k[1], cmid)
                p["w_dw"] = 0.1 * jax.random.normal(k[2], (3, 3, cmid),
                                                    jnp.float32)
                p["bn2"] = _bn_init(k[3], cmid)
                p["w3"] = 0.1 * jax.random.normal(k[4], (cmid, c), jnp.float32)
                p["bn3"] = _bn_init(k[5], c)
            params.append(p)
            in_ch = c
        return params

    @staticmethod
    def _fold_layer(genotype, rp):
        if genotype == "conv3":
            cout = rp["cout"]
            cin = rp["w"].shape[2]
            s, b = _fold_scale_bias(*rp["bn"])
            return {"stride": rp["stride"], "cout": cout,
                    "w_folded": (rp["w"] * s).reshape(9, cin, cout),
                    "b_folded": (b + rp["bias"] * s).reshape(1, cout)}
        p = {"stride": rp["stride"], "cout": rp["cout"], "expand": rp["expand"]}
        if rp["expand"] != 1:
            s1, b1 = _fold_scale_bias(*rp["bn1"])
            p["w1_folded"] = rp["w1"] * s1
            p["b1_folded"] = b1.reshape(1, -1)
        s2, b2 = _fold_scale_bias(*rp["bn2"])
        cmid = rp["w_dw"].shape[2]
        p["wdw_folded"] = (rp["w_dw"] * s2).reshape(9, cmid)
        p["b2_folded"] = b2.reshape(1, cmid)
        s3, b3 = _fold_scale_bias(*rp["bn3"])
        p["w3_folded"] = rp["w3"] * s3
        p["b3_folded"] = b3.reshape(1, rp["cout"])
        return p

    def __call__(self, x_nchw):
        # NCHW (PyTorch) -> NHWC internally -> NCHW outputs.
        x = jnp.transpose(x_nchw, (0, 2, 3, 1)).astype(jnp.float32)
        outs = []
        for i, (g, p) in enumerate(zip(self.genotypes, self.params)):
            if g == "conv3":
                x = stem_forward(x, p)
            else:
                x = ir_block_forward(x, p)
            if i in self.out_indices:
                outs.append(jnp.transpose(x, (0, 3, 1, 2)))
        return outs


# ----------------------------------------------------------------------------
# Plain-JAX reference (uses the raw / unfolded params) for correctness check.
# ----------------------------------------------------------------------------
def _bn_ref(x, bn):
    gamma, beta, mean, var = bn
    return (x - mean) / jnp.sqrt(var + _BN_EPS) * gamma + beta


def fbnet_reference(model, x_nchw):
    hi = lax.Precision.HIGHEST
    x = jnp.transpose(x_nchw, (0, 2, 3, 1)).astype(jnp.float32)
    outs = []
    for i, (g, rp) in enumerate(zip(model.genotypes, model.raw_params)):
        if g == "conv3":
            y = lax.conv_general_dilated(
                x, rp["w"], (rp["stride"],) * 2, ((1, 1), (1, 1)),
                dimension_numbers=("NHWC", "HWIO", "NHWC"), precision=hi)
            x = jnp.maximum(_bn_ref(y + rp["bias"], rp["bn"]), 0.0)
        else:
            cin = x.shape[-1]
            e, stride = rp["expand"], rp["stride"]
            cmid = cin * e
            h = x
            if e != 1:
                h = jnp.maximum(
                    _bn_ref(jnp.einsum("nhwc,cd->nhwd", h, rp["w1"],
                                       precision=hi), rp["bn1"]), 0.0)
            dw = lax.conv_general_dilated(
                h, rp["w_dw"].reshape(3, 3, 1, cmid), (stride, stride),
                ((1, 1), (1, 1)), dimension_numbers=("NHWC", "HWIO", "NHWC"),
                feature_group_count=cmid, precision=hi)
            h = jnp.maximum(_bn_ref(dw, rp["bn2"]), 0.0)
            y = _bn_ref(jnp.einsum("nhwc,cd->nhwd", h, rp["w3"], precision=hi),
                        rp["bn3"])
            if stride == 1 and cin == rp["cout"]:
                y = y + x
            x = y
        if i in model.out_indices:
            outs.append(jnp.transpose(x, (0, 3, 1, 2)))
    return outs


# ----------------------------------------------------------------------------
if __name__ == "__main__":
    key = jax.random.PRNGKey(0)
    x = jax.random.normal(key, (2, 3, 16, 16), jnp.float32)   # NCHW like PyTorch

    model = FBNetPallas(out_indices=(1, 3, 5), key=jax.random.PRNGKey(0))
    outs = model(x)
    for o in outs:
        jax.block_until_ready(o)

    # shape sanity (NCHW feature maps from the synthetic arch)
    expected = [(2, 8, 8, 8), (2, 16, 4, 4), (2, 24, 2, 2)]
    assert [tuple(o.shape) for o in outs] == expected, \
        [tuple(o.shape) for o in outs]

    # numerical sanity vs. plain-JAX reference (loose tol: MXU f32 path may
    # differ slightly from XLA's conv/einsum accumulation)
    refs = fbnet_reference(model, x)
    for o, r in zip(outs, refs):
        np.testing.assert_allclose(np.asarray(o), np.asarray(r),
                                   rtol=2e-2, atol=2e-2)

    print("KERNEL_OK")
</pallas_src>

<mosaic_0001>
module attributes {stable_mosaic.version = 11 : i64} {
  func.func @_stem_kernel(%arg0: i32, %arg1: memref<1x256x3xf32, #tpu.memory_space<vmem>>, %arg2: memref<9x3x8xf32, #tpu.memory_space<vmem>>, %arg3: memref<1x8xf32, #tpu.memory_space<vmem>>, %arg4: memref<1x64x8xf32, #tpu.memory_space<vmem>>, %arg5: memref<18x2x10x3xf32, #tpu.memory_space<vmem>>) attributes {dimension_semantics = [#tpu.dimension_semantics<parallel>], iteration_bounds = array<i64: 2>, scalar_prefetch = 0 : i64, scratch_operands = 1 : i64, tpu.core_type = #tpu.core_type<tc>, window_params = [{transform_indices = @transform_0, window_bounds = array<i64: 1, 256, 3>}, {pipeline_mode = #tpu.pipeline_mode<synchronous>, transform_indices = @transform_1, window_bounds = array<i64: 9, 3, 8>}, {pipeline_mode = #tpu.pipeline_mode<synchronous>, transform_indices = @transform_2, window_bounds = array<i64: 1, 8>}, {transform_indices = @transform_3, window_bounds = array<i64: 1, 64, 8>}]} {
    %cst = arith.constant 0.000000e+00 : f32
    %0 = vector.broadcast %cst : f32 to vector<18x2x10x3xf32>
    %c0 = arith.constant 0 : index
    %c0_0 = arith.constant 0 : index
    %c0_1 = arith.constant 0 : index
    %c0_2 = arith.constant 0 : index
    %1 = vector.load %arg5[%c0, %c0_0, %c0_1, %c0_2] : memref<18x2x10x3xf32, #tpu.memory_space<vmem>>, vector<18x2x10x3xf32>
    tpu.vector_store %arg5[%c0, %c0_0, %c0_1, %c0_2], %0 {strides = array<i32>} : memref<18x2x10x3xf32, #tpu.memory_space<vmem>>, vector<18x2x10x3xf32>,
    %c0_3 = arith.constant 0 : index
    %c0_4 = arith.constant 0 : index
    %c0_5 = arith.constant 0 : index
    %2 = vector.load %arg1[%c0_3, %c0_4, %c0_5] : memref<1x256x3xf32, #tpu.memory_space<vmem>>, vector<1x8x3xf32>
    %3 = vector.shape_cast %2 : vector<1x8x3xf32> to vector<8x3xf32>
    %c1 = arith.constant 1 : index
    %c1_6 = arith.constant 1 : index
    %c0_7 = arith.constant 0 : index
    %c0_8 = arith.constant 0 : index
    %4 = vector.load %arg5[%c1, %c1_6, %c0_7, %c0_8] : memref<18x2x10x3xf32, #tpu.memory_space<vmem>>, vector<1x1x8x3xf32>
    %5 = vector.shape_cast %4 : vector<1x1x8x3xf32> to vector<8x3xf32>
    %6 = vector.shape_cast %3 : vector<8x3xf32> to vector<1x1x8x3xf32>
    tpu.vector_store %arg5[%c1, %c1_6, %c0_7, %c0_8], %6 {strides = array<i32>} : memref<18x2x10x3xf32, #tpu.memory_space<vmem>>, vector<1x1x8x3xf32>,
    %c0_9 = arith.constant 0 : index
    %c8 = arith.constant 8 : index
    %c0_10 = arith.constant 0 : index
    %7 = vector.load %arg1[%c0_9, %c8, %c0_10] : memref<1x256x3xf32, #tpu.memory_space<vmem>>, vector<1x8x3xf32>
    %8 = vector.shape_cast %7 : vector<1x8x3xf32> to vector<8x3xf32>
    %c1_11 = arith.constant 1 : index
    %c0_12 = arith.constant 0 : index
    %c1_13 = arith.constant 1 : index
    %c0_14 = arith.constant 0 : index
    %9 = vector.load %arg5[%c1_11, %c0_12, %c1_13, %c0_14] : memref<18x2x10x3xf32, #tpu.memory_space<vmem>>, vector<1x1x8x3xf32>
    %10 = vector.shape_cast %9 : vector<1x1x8x3xf32> to vector<8x3xf32>
    %11 = vector.shape_cast %8 : vector<8x3xf32> to vector<1x1x8x3xf32>
    tpu.vector_store %arg5[%c1_11, %c0_12, %c1_13, %c0_14], %11 {strides = array<i32>} : memref<18x2x10x3xf32, #tpu.memory_space<vmem>>, vector<1x1x8x3xf32>,
    %c0_15 = arith.constant 0 : index
    %c16 = arith.constant 16 : index
    %c0_16 = arith.constant 0 : index
    %12 = vector.load %arg1[%c0_15, %c16, %c0_16] : memref<1x256x3xf32, #tpu.memory_space<vmem>>, vector<1x8x3xf32>
    %13 = vector.shape_cast %12 : vector<1x8x3xf32> to vector<8x3xf32>
    %c2 = arith.constant 2 : index
    %c1_17 = arith.constant 1 : index
    %c0_18 = arith.constant 0 : index
    %c0_19 = arith.constant 0 : index
    %14 = vector.load %arg5[%c2, %c1_17, %c0_18, %c0_19] : memref<18x2x10x3xf32, #tpu.memory_space<vmem>>, vector<1x1x8x3xf32>
    %15 = vector.shape_cast %14 : vector<1x1x8x3xf32> to vector<8x3xf32>
    %16 = vector.shape_cast %13 : vector<8x3xf32> to vector<1x1x8x3xf32>
    tpu.vector_store %arg5[%c2, %c1_17, %c0_18, %c0_19], %16 {strides = array<i32>} : memref<18x2x10x3xf32, #tpu.memory_space<vmem>>, vector<1x1x8x3xf32>,
    %c0_20 = arith.constant 0 : index
    %c24 = arith.constant 24 : index
    %c0_21 = arith.constant 0 : index
    %17 = vector.load %arg1[%c0_20, %c24, %c0_21] : memref<1x256x3xf32, #tpu.memory_space<vmem>>, vector<1x8x3xf32>
    %18 = vector.shape_cast %17 : vector<1x8x3xf32> to vector<8x3xf32>
    %c2_22 = arith.constant 2 : index
    %c0_23 = arith.constant 0 : index
    %c1_24 = arith.constant 1 : index
    %c0_25 = arith.constant 0 : index
    %19 = vector.load %arg5[%c2_22, %c0_23, %c1_24, %c0_25] : memref<18x2x10x3xf32, #tpu.memory_space<vmem>>, vector<1x1x8x3xf32>
    %20 = vector.shape_cast %19 : vector<1x1x8x3xf32> to vector<8x3xf32>
    %21 = vector.shape_cast %18 : vector<8x3xf32> to vector<1x1x8x3xf32>
    tpu.vector_store %arg5[%c2_22, %c0_23, %c1_24, %c0_25], %21 {strides = array<i32>} : memref<18x2x10x3xf32, #tpu.memory_space<vmem>>, vector<1x1x8x3xf32>,
    %c0_26 = arith.constant 0 : index
    %c32 = arith.constant 32 : index
    %c0_27 = arith.constant 0 : index
    %22 = vector.load %arg1[%c0_26, %c32, %c0_27] : memref<1x256x3xf32, #tpu.memory_space<vmem>>, vector<1x8x3xf32>
    %23 = vector.shape_cast %22 : vector<1x8x3xf32> to vector<8x3xf32>
    %c3 = arith.constant 3 : index
    %c1_28 = arith.constant 1 : index
    %c0_29 = arith.constant 0 : index
    %c0_30 = arith.constant 0 : index
    %24 = vector.load %arg5[%c3, %c1_28, %c0_29, %c0_30] : memref<18x2x10x3xf32, #tpu.memory_space<vmem>>, vector<1x1x8x3xf32>
    %25 = vector.shape_cast %24 : vector<1x1x8x3xf32> to vector<8x3xf32>
    %26 = vector.shape_cast %23 : vector<8x3xf32> to vector<1x1x8x3xf32>
    tpu.vector_store %arg5[%c3, %c1_28, %c0_29, %c0_30], %26 {strides = array<i32>} : memref<18x2x10x3xf32, #tpu.memory_space<vmem>>, vector<1x1x8x3xf32>,
    %c0_31 = arith.constant 0 : index
    %c40 = arith.constant 40 : index
    %c0_32 = arith.constant 0 : index
    %27 = vector.load %arg1[%c0_31, %c40, %c0_32] : memref<1x256x3xf32, #tpu.memory_space<vmem>>, vector<1x8x3xf32>
    %28 = vector.shape_cast %27 : vector<1x8x3xf32> to vector<8x3xf32>
    %c3_33 = arith.constant 3 : index
    %c0_34 = arith.constant 0 : index
    %c1_35 = arith.constant 1 : index
    %c0_36 = arith.constant 0 : index
    %29 = vector.load %arg5[%c3_33, %c0_34, %c1_35, %c0_36] : memref<18x2x10x3xf32, #tpu.memory_space<vmem>>, vector<1x1x8x3xf32>
    %30 = vector.shape_cast %29 : vector<1x1x8x3xf32> to vector<8x3xf32>
    %31 = vector.shape_cast %28 : vector<8x3xf32> to vector<1x1x8x3xf32>
    tpu.vector_store %arg5[%c3_33, %c0_34, %c1_35, %c0_36], %31 {strides = array<i32>} : memref<18x2x10x3xf32, #tpu.memory_space<vmem>>, vector<1x1x8x3xf32>,
    %c0_37 = arith.constant 0 : index
    %c48 = arith.constant 48 : index
    %c0_38 = arith.constant 0 : index
    %32 = vector.load %arg1[%c0_37, %c48, %c0_38] : memref<1x256x3xf32, #tpu.memory_space<vmem>>, vector<1x8x3xf32>
    %33 = vector.shape_cast %32 : vector<1x8x3xf32> to vector<8x3xf32>
    %c4 = arith.constant 4 : index
    %c1_39 = arith.constant 1 : index
    %c0_40 = arith.constant 0 : index
    %c0_41 = arith.constant 0 : index
    %34 = vector.load %arg5[%c4, %c1_39, %c0_40, %c0_41] : memref<18x2x10x3xf32, #tpu.memory_space<vmem>>, vector<1x1x8x3xf32>
    %35 = vector.shape_cast %34 : vector<1x1x8x3xf32> to vector<8x3xf32>
    %36 = vector.shape_cast %33 : vector<8x3xf32> to vector<1x1x8x3xf32>
    tpu.vector_store %arg5[%c4, %c1_39, %c0_40, %c0_41], %36 {strides = array<i32>} : memref<18x2x10x3xf32, #tpu.memory_space<vmem>>, vector<1x1x8x3xf32>,
    %c0_42 = arith.constant 0 : index
    %c56 = arith.constant 56 : index
    %c0_43 = arith.constant 0 : index
    %37 = vector.load %arg1[%c0_42, %c56, %c0_43] : memref<1x256x3xf32, #tpu.memory_space<vmem>>, vector<1x8x3xf32>
    %38 = vector.shape_cast %37 : vector<1x8x3xf32> to vector<8x3xf32>
    %c4_44 = arith.constant 4 : index
    %c0_45 = arith.constant 0 : index
    %c1_46 = arith.constant 1 : index
    %c0_47 = arith.constant 0 : index
    %39 = vector.load %arg5[%c4_44, %c0_45, %c1_46, %c0_47] : memref<18x2x10x3xf32, #tpu.memory_space<vmem>>, vector<1x1x8x3xf32>
    %40 = vector.shape_cast %39 : vector<1x1x8x3xf32> to vector<8x3xf32>
    %41 = vector.shape_cast %38 : vector<8x3xf32> to vector<1x1x8x3xf32>
    tpu.vector_store %arg5[%c4_44, %c0_45, %c1_46, %c0_47], %41 {strides = array<i32>} : memref<18x2x10x3xf32, #tpu.memory_space<vmem>>, vector<1x1x8x3xf32>,
    %c0_48 = arith.constant 0 : index
    %c64 = arith.constant 64 : index
    %c0_49 = arith.constant 0 : index
    %42 = vector.load %arg1[%c0_48, %c64, %c0_49] : memref<1x256x3xf32, #tpu.memory_space<vmem>>, vector<1x8x3xf32>
    %43 = vector.shape_cast %42 : vector<1x8x3xf32> to vector<8x3xf32>
    %c5 = arith.constant 5 : index
    %c1_50 = arith.constant 1 : index
    %c0_51 = arith.constant 0 : index
    %c0_52 = arith.constant 0 : index
    %44 = vector.load %arg5[%c5, %c1_50, %c0_51, %c0_52] : memref<18x2x10x3xf32, #tpu.memory_space<vmem>>, vector<1x1x8x3xf32>
    %45 = vector.shape_cast %44 : vector<1x1x8x3xf32> to vector<8x3xf32>
    %46 = vector.shape_cast %43 : vector<8x3xf32> to vector<1x1x8x3xf32>
    tpu.vector_store %arg5[%c5, %c1_50, %c0_51, %c0_52], %46 {strides = array<i32>} : memref<18x2x10x3xf32, #tpu.memory_space<vmem>>, vector<1x1x8x3xf32>,
    %c0_53 = arith.constant 0 : index
    %c72 = arith.constant 72 : index
    %c0_54 = arith.constant 0 : index
    %47 = vector.load %arg1[%c0_53, %c72, %c0_54] : memref<1x256x3xf32, #tpu.memory_space<vmem>>, vector<1x8x3xf32>
    %48 = vector.shape_cast %47 : vector<1x8x3xf32> to vector<8x3xf32>
    %c5_55 = arith.constant 5 : index
    %c0_56 = arith.constant 0 : index
    %c1_57 = arith.constant 1 : index
    %c0_58 = arith.constant 0 : index
    %49 = vector.load %arg5[%c5_55, %c0_56, %c1_57, %c0_58] : memref<18x2x10x3xf32, #tpu.memory_space<vmem>>, vector<1x1x8x3xf32>
    %50 = vector.shape_cast %49 : vector<1x1x8x3xf32> to vector<8x3xf32>
    %51 = vector.shape_cast %48 : vector<8x3xf32> to vector<1x1x8x3xf32>
    tpu.vector_store %arg5[%c5_55, %c0_56, %c1_57, %c0_58], %51 {strides = array<i32>} : memref<18x2x10x3xf32, #tpu.memory_space<vmem>>, vector<1x1x8x3xf32>,
    %c0_59 = arith.constant 0 : index
    %c80 = arith.constant 80 : index
    %c0_60 = arith.constant 0 : index
    %52 = vector.load %arg1[%c0_59, %c80, %c0_60] : memref<1x256x3xf32, #tpu.memory_space<vmem>>, vector<1x8x3xf32>
    %53 = vector.shape_cast %52 : vector<1x8x3xf32> to vector<8x3xf32>
    %c6 = arith.constant 6 : index
    %c1_61 = arith.constant 1 : index
    %c0_62 = arith.constant 0 : index
    %c0_63 = arith.constant 0 : index
    %54 = vector.load %arg5[%c6, %c1_61, %c0_62, %c0_63] : memref<18x2x10x3xf32, #tpu.memory_space<vmem>>, vector<1x1x8x3xf32>
    %55 = vector.shape_cast %54 : vector<1x1x8x3xf32> to vector<8x3xf32>
    %56 = vector.shape_cast %53 : vector<8x3xf32> to vector<1x1x8x3xf32>
    tpu.vector_store %arg5[%c6, %c1_61, %c0_62, %c0_63], %56 {strides = array<i32>} : memref<18x2x10x3xf32, #tpu.memory_space<vmem>>, vector<1x1x8x3xf32>,
    %c0_64 = arith.constant 0 : index
    %c88 = arith.constant 88 : index
    %c0_65 = arith.constant 0 : index
    %57 = vector.load %arg1[%c0_64, %c88, %c0_65] : memref<1x256x3xf32, #tpu.memory_space<vmem>>, vector<1x8x3xf32>
    %58 = vector.shape_cast %57 : vector<1x8x3xf32> to vector<8x3xf32>
    %c6_66 = arith.constant 6 : index
    %c0_67 = arith.constant 0 : index
    %c1_68 = arith.constant 1 : index
    %c0_69 = arith.constant 0 : index
    %59 = vector.load %arg5[%c6_66, %c0_67, %c1_68, %c0_69] : memref<18x2x10x3xf32, #tpu.memory_space<vmem>>, vector<1x1x8x3xf32>
    %60 = vector.shape_cast %59 : vector<1x1x8x3xf32> to vector<8x3xf32>
    %61 = vector.shape_cast %58 : vector<8x3xf32> to vector<1x1x8x3xf32>
    tpu.vector_store %arg5[%c6_66, %c0_67, %c1_68, %c0_69], %61 {strides = array<i32>} : memref<18x2x10x3xf32, #tpu.memory_space<vmem>>, vector<1x1x8x3xf32>,
    %c0_70 = arith.constant 0 : index
    %c96 = arith.constant 96 : index
    %c0_71 = arith.constant 0 : index
    %62 = vector.load %arg1[%c0_70, %c96, %c0_71] : memref<1x256x3xf32, #tpu.memory_space<vmem>>, vector<1x8x3xf32>
    %63 = vector.shape_cast %62 : vector<1x8x3xf32> to vector<8x3xf32>
    %c7 = arith.constant 7 : index
    %c1_72 = arith.constant 1 : index
    %c0_73 = arith.constant 0 : index
    %c0_74 = arith.constant 0 : index
    %64 = vector.load %arg5[%c7, %c1_72, %c0_73, %c0_74] : memref<18x2x10x3xf32, #tpu.memory_space<vmem>>, vector<1x1x8x3xf32>
    %65 = vector.shape_cast %64 : vector<1x1x8x3xf32> to vector<8x3xf32>
    %66 = vector.shape_cast %63 : vector<8x3xf32> to vector<1x1x8x3xf32>
    tpu.vector_store %arg5[%c7, %c1_72, %c0_73, %c0_74], %66 {strides = array<i32>} : memref<18x2x10x3xf32, #tpu.memory_space<vmem>>, vector<1x1x8x3xf32>,
    %c0_75 = arith.constant 0 : index
    %c104 = arith.constant 104 : index
    %c0_76 = arith.constant 0 : index
    %67 = vector.load %arg1[%c0_75, %c104, %c0_76] : memref<1x256x3xf32, #tpu.memory_space<vmem>>, vector<1x8x3xf32>
    %68 = vector.shape_cast %67 : vector<1x8x3xf32> to vector<8x3xf32>
    %c7_77 = arith.constant 7 : index
    %c0_78 = arith.constant 0 : index
    %c1_79 = arith.constant 1 : index
    %c0_80 = arith.constant 0 : index
    %69 = vector.load %arg5[%c7_77, %c0_78, %c1_79, %c0_80] : memref<18x2x10x3xf32, #tpu.memory_space<vmem>>, vector<1x1x8x3xf32>
    %70 = vector.shape_cast %69 : vector<1x1x8x3xf32> to vector<8x3xf32>
    %71 = vector.shape_cast %68 : vector<8x3xf32> to vector<1x1x8x3xf32>
    tpu.vector_store %arg5[%c7_77, %c0_78, %c1_79, %c0_80], %71 {strides = array<i32>} : memref<18x2x10x3xf32, #tpu.memory_space<vmem>>, vector<1x1x8x3xf32>,
    %c0_81 = arith.constant 0 : index
    %c112 = arith.constant 112 : index
    %c0_82 = arith.constant 0 : index
    %72 = vector.load %arg1[%c0_81, %c112, %c0_82] : memref<1x256x3xf32, #tpu.memory_space<vmem>>, vector<1x8x3xf32>
    %73 = vector.shape_cast %72 : vector<1x8x3xf32> to vector<8x3xf32>
    %c8_83 = arith.constant 8 : index
    %c1_84 = arith.constant 1 : index
    %c0_85 = arith.constant 0 : index
    %c0_86 = arith.constant 0 : index
    %74 = vector.load %arg5[%c8_83, %c1_84, %c0_85, %c0_86] : memref<18x2x10x3xf32, #tpu.memory_space<vmem>>, vector<1x1x8x3xf32>
    %75 = vector.shape_cast %74 : vector<1x1x8x3xf32> to vector<8x3xf32>
    %76 = vector.shape_cast %73 : vector<8x3xf32> to vector<1x1x8x3xf32>
    tpu.vector_store %arg5[%c8_83, %c1_84, %c0_85, %c0_86], %76 {strides = array<i32>} : memref<18x2x10x3xf32, #tpu.memory_space<vmem>>, vector<1x1x8x3xf32>,
    %c0_87 = arith.constant 0 : index
    %c120 = arith.constant 120 : index
    %c0_88 = arith.constant 0 : index
    %77 = vector.load %arg1[%c0_87, %c120, %c0_88] : memref<1x256x3xf32, #tpu.memory_space<vmem>>, vector<1x8x3xf32>
    %78 = vector.shape_cast %77 : vector<1x8x3xf32> to vector<8x3xf32>
    %c8_89 = arith.constant 8 : index
    %c0_90 = arith.constant 0 : index
    %c1_91 = arith.constant 1 : index
    %c0_92 = arith.constant 0 : index
    %79 = vector.load %arg5[%c8_89, %c0_90, %c1_91, %c0_92] : memref<18x2x10x3xf32, #tpu.memory_space<vmem>>, vector<1x1x8x3xf32>
    %80 = vector.shape_cast %79 : vector<1x1x8x3xf32> to vector<8x3xf32>
    %81 = vector.shape_cast %78 : vector<8x3xf32> to vector<1x1x8x3xf32>
    tpu.vector_store %arg5[%c8_89, %c0_90, %c1_91, %c0_92], %81 {strides = array<i32>} : memref<18x2x10x3xf32, #tpu.memory_space<vmem>>, vector<1x1x8x3xf32>,
    %c0_93 = arith.constant 0 : index
    %c128 = arith.constant 128 : index
    %c0_94 = arith.constant 0 : index
    %82 = vector.load %arg1[%c0_93, %c128, %c0_94] : memref<1x256x3xf32, #tpu.memory_space<vmem>>, vector<1x8x3xf32>
    %83 = vector.shape_cast %82 : vector<1x8x3xf32> to vector<8x3xf32>
    %c9 = arith.constant 9 : index
    %c1_95 = arith.constant 1 : index
    %c0_96 = arith.constant 0 : index
    %c0_97 = arith.constant 0 : index
    %84 = vector.load %arg5[%c9, %c1_95, %c0_96, %c0_97] : memref<18x2x10x3xf32, #tpu.memory_space<vmem>>, vector<1x1x8x3xf32>
    %85 = vector.shape_cast %84 : vector<1x1x8x3xf32> to vector<8x3xf32>
    %86 = vector.shape_cast %83 : vector<8x3xf32> to vector<1x1x8x3xf32>
    tpu.vector_store %arg5[%c9, %c1_95, %c0_96, %c0_97], %86 {strides = array<i32>} : memref<18x2x10x3xf32, #tpu.memory_space<vmem>>, vector<1x1x8x3xf32>,
    %c0_98 = arith.constant 0 : index
    %c136 = arith.constant 136 : index
    %c0_99 = arith.constant 0 : index
    %87 = vector.load %arg1[%c0_98, %c136, %c0_99] : memref<1x256x3xf32, #tpu.memory_space<vmem>>, vector<1x8x3xf32>
    %88 = vector.shape_cast %87 : vector<1x8x3xf32> to vector<8x3xf32>
    %c9_100 = arith.constant 9 : index
    %c0_101 = arith.constant 0 : index
    %c1_102 = arith.constant 1 : index
    %c0_103 = arith.constant 0 : index
    %89 = vector.load %arg5[%c9_100, %c0_101, %c1_102, %c0_103] : memref<18x2x10x3xf32, #tpu.memory_space<vmem>>, vector<1x1x8x3xf32>
    %90 = vector.shape_cast %89 : vector<1x1x8x3xf32> to vector<8x3xf32>
    %91 = vector.shape_cast %88 : vector<8x3xf32> to vector<1x1x8x3xf32>
    tpu.vector_store %arg5[%c9_100, %c0_101, %c1_102, %c0_103], %91 {strides = array<i32>} : memref<18x2x10x3xf32, #tpu.memory_space<vmem>>, vector<1x1x8x3xf32>,
    %c0_104 = arith.constant 0 : index
    %c144 = arith.constant 144 : index
    %c0_105 = arith.constant 0 : index
    %92 = vector.load %arg1[%c0_104, %c144, %c0_105] : memref<1x256x3xf32, #tpu.memory_space<vmem>>, vector<1x8x3xf32>
    %93 = vector.shape_cast %92 : vector<1x8x3xf32> to vector<8x3xf32>
    %c10 = arith.constant 10 : index
    %c1_106 = arith.constant 1 : index
    %c0_107 = arith.constant 0 : index
    %c0_108 = arith.constant 0 : index
    %94 = vector.load %arg5[%c10, %c1_106, %c0_107, %c0_108] : memref<18x2x10x3xf32, #tpu.memory_space<vmem>>, vector<1x1x8x3xf32>
    %95 = vector.shape_cast %94 : vector<1x1x8x3xf32> to vector<8x3xf32>
    %96 = vector.shape_cast %93 : vector<8x3xf32> to vector<1x1x8x3xf32>
    tpu.vector_store %arg5[%c10, %c1_106, %c0_107, %c0_108], %96 {strides = array<i32>} : memref<18x2x10x3xf32, #tpu.memory_space<vmem>>, vector<1x1x8x3xf32>,
    %c0_109 = arith.constant 0 : index
    %c152 = arith.constant 152 : index
    %c0_110 = arith.constant 0 : index
    %97 = vector.load %arg1[%c0_109, %c152, %c0_110] : memref<1x256x3xf32, #tpu.memory_space<vmem>>, vector<1x8x3xf32>
    %98 = vector.shape_cast %97 : vector<1x8x3xf32> to vector<8x3xf32>
    %c10_111 = arith.constant 10 : index
    %c0_112 = arith.constant 0 : index
    %c1_113 = arith.constant 1 : index
    %c0_114 = arith.constant 0 : index
    %99 = vector.load %arg5[%c10_111, %c0_112, %c1_113, %c0_114] : memref<18x2x10x3xf32, #tpu.memory_space<vmem>>, vector<1x1x8x3xf32>
    %100 = vector.shape_cast %99 : vector<1x1x8x3xf32> to vector<8x3xf32>
    %101 = vector.shape_cast %98 : vector<8x3xf32> to vector<1x1x8x3xf32>
    tpu.vector_store %arg5[%c10_111, %c0_112, %c1_113, %c0_114], %101 {strides = array<i32>} : memref<18x2x10x3xf32, #tpu.memory_space<vmem>>, vector<1x1x8x3xf32>,
    %c0_115 = arith.constant 0 : index
    %c160 = arith.constant 160 : index
    %c0_116 = arith.constant 0 : index
    %102 = vector.load %arg1[%c0_115, %c160, %c0_116] : memref<1x256x3xf32, #tpu.memory_space<vmem>>, vector<1x8x3xf32>
    %103 = vector.shape_cast %102 : vector<1x8x3xf32> to vector<8x3xf32>
    %c11 = arith.constant 11 : index
    %c1_117 = arith.constant 1 : index
    %c0_118 = arith.constant 0 : index
    %c0_119 = arith.constant 0 : index
    %104 = vector.load %arg5[%c11, %c1_117, %c0_118, %c0_119] : memref<18x2x10x3xf32, #tpu.memory_space<vmem>>, vector<1x1x8x3xf32>
    %105 = vector.shape_cast %104 : vector<1x1x8x3xf32> to vector<8x3xf32>
    %106 = vector.shape_cast %103 : vector<8x3xf32> to vector<1x1x8x3xf32>
    tpu.vector_store %arg5[%c11, %c1_117, %c0_118, %c0_119], %106 {strides = array<i32>} : memref<18x2x10x3xf32, #tpu.memory_space<vmem>>, vector<1x1x8x3xf32>,
    %c0_120 = arith.constant 0 : index
    %c168 = arith.constant 168 : index
    %c0_121 = arith.constant 0 : index
    %107 = vector.load %arg1[%c0_120, %c168, %c0_121] : memref<1x256x3xf32, #tpu.memory_space<vmem>>, vector<1x8x3xf32>
    %108 = vector.shape_cast %107 : vector<1x8x3xf32> to vector<8x3xf32>
    %c11_122 = arith.constant 11 : index
    %c0_123 = arith.constant 0 : index
    %c1_124 = arith.constant 1 : index
    %c0_125 = arith.constant 0 : index
    %109 = vector.load %arg5[%c11_122, %c0_123, %c1_124, %c0_125] : memref<18x2x10x3xf32, #tpu.memory_space<vmem>>, vector<1x1x8x3xf32>
    %110 = vector.shape_cast %109 : vector<1x1x8x3xf32> to vector<8x3xf32>
    %111 = vector.shape_cast %108 : vector<8x3xf32> to vector<1x1x8x3xf32>
    tpu.vector_store %arg5[%c11_122, %c0_123, %c1_124, %c0_125], %111 {strides = array<i32>} : memref<18x2x10x3xf32, #tpu.memory_space<vmem>>, vector<1x1x8x3xf32>,
    %c0_126 = arith.constant 0 : index
    %c176 = arith.constant 176 : index
    %c0_127 = arith.constant 0 : index
    %112 = vector.load %arg1[%c0_126, %c176, %c0_127] : memref<1x256x3xf32, #tpu.memory_space<vmem>>, vector<1x8x3xf32>
    %113 = vector.shape_cast %112 : vector<1x8x3xf32> to vector<8x3xf32>
    %c12 = arith.constant 12 : index
    %c1_128 = arith.constant 1 : index
    %c0_129 = arith.constant 0 : index
    %c0_130 = arith.constant 0 : index
    %114 = vector.load %arg5[%c12, %c1_128, %c0_129, %c0_130] : memref<18x2x10x3xf32, #tpu.memory_space<vmem>>, vector<1x1x8x3xf32>
    %115 = vector.shape_cast %114 : vector<1x1x8x3xf32> to vector<8x3xf32>
    %116 = vector.shape_cast %113 : vector<8x3xf32> to vector<1x1x8x3xf32>
    tpu.vector_store %arg5[%c12, %c1_128, %c0_129, %c0_130], %116 {strides = array<i32>} : memref<18x2x10x3xf32, #tpu.memory_space<vmem>>, vector<1x1x8x3xf32>,
    %c0_131 = arith.constant 0 : index
    %c184 = arith.constant 184 : index
    %c0_132 = arith.constant 0 : index
    %117 = vector.load %arg1[%c0_131, %c184, %c0_132] : memref<1x256x3xf32, #tpu.memory_space<vmem>>, vector<1x8x3xf32>
    %118 = vector.shape_cast %117 : vector<1x8x3xf32> to vector<8x3xf32>
    %c12_133 = arith.constant 12 : index
    %c0_134 = arith.constant 0 : index
    %c1_135 = arith.constant 1 : index
    %c0_136 = arith.constant 0 : index
    %119 = vector.load %arg5[%c12_133, %c0_134, %c1_135, %c0_136] : memref<18x2x10x3xf32, #tpu.memory_space<vmem>>, vector<1x1x8x3xf32>
    %120 = vector.shape_cast %119 : vector<1x1x8x3xf32> to vector<8x3xf32>
    %121 = vector.shape_cast %118 : vector<8x3xf32> to vector<1x1x8x3xf32>
    tpu.vector_store %arg5[%c12_133, %c0_134, %c1_135, %c0_136], %121 {strides = array<i32>} : memref<18x2x10x3xf32, #tpu.memory_space<vmem>>, vector<1x1x8x3xf32>,
    %c0_137 = arith.constant 0 : index
    %c192 = arith.constant 192 : index
    %c0_138 = arith.constant 0 : index
    %122 = vector.load %arg1[%c0_137, %c192, %c0_138] : memref<1x256x3xf32, #tpu.memory_space<vmem>>, vector<1x8x3xf32>
    %123 = vector.shape_cast %122 : vector<1x8x3xf32> to vector<8x3xf32>
    %c13 = arith.constant 13 : index
    %c1_139 = arith.constant 1 : index
    %c0_140 = arith.constant 0 : index
    %c0_141 = arith.constant 0 : index
    %124 = vector.load %arg5[%c13, %c1_139, %c0_140, %c0_141] : memref<18x2x10x3xf32, #tpu.memory_space<vmem>>, vector<1x1x8x3xf32>
    %125 = vector.shape_cast %124 : vector<1x1x8x3xf32> to vector<8x3xf32>
    %126 = vector.shape_cast %123 : vector<8x3xf32> to vector<1x1x8x3xf32>
    tpu.vector_store %arg5[%c13, %c1_139, %c0_140, %c0_141], %126 {strides = array<i32>} : memref<18x2x10x3xf32, #tpu.memory_space<vmem>>, vector<1x1x8x3xf32>,
    %c0_142 = arith.constant 0 : index
    %c200 = arith.constant 200 : index
    %c0_143 = arith.constant 0 : index
    %127 = vector.load %arg1[%c0_142, %c200, %c0_143] : memref<1x256x3xf32, #tpu.memory_space<vmem>>, vector<1x8x3xf32>
    %128 = vector.shape_cast %127 : vector<1x8x3xf32> to vector<8x3xf32>
    %c13_144 = arith.constant 13 : index
    %c0_145 = arith.constant 0 : index
    %c1_146 = arith.constant 1 : index
    %c0_147 = arith.constant 0 : index
    %129 = vector.load %arg5[%c13_144, %c0_145, %c1_146, %c0_147] : memref<18x2x10x3xf32, #tpu.memory_space<vmem>>, vector<1x1x8x3xf32>
    %130 = vector.shape_cast %129 : vector<1x1x8x3xf32> to vector<8x3xf32>
    %131 = vector.shape_cast %128 : vector<8x3xf32> to vector<1x1x8x3xf32>
    tpu.vector_store %arg5[%c13_144, %c0_145, %c1_146, %c0_147], %131 {strides = array<i32>} : memref<18x2x10x3xf32, #tpu.memory_space<vmem>>, vector<1x1x8x3xf32>,
    %c0_148 = arith.constant 0 : index
    %c208 = arith.constant 208 : index
    %c0_149 = arith.constant 0 : index
    %132 = vector.load %arg1[%c0_148, %c208, %c0_149] : memref<1x256x3xf32, #tpu.memory_space<vmem>>, vector<1x8x3xf32>
    %133 = vector.shape_cast %132 : vector<1x8x3xf32> to vector<8x3xf32>
    %c14 = arith.constant 14 : index
    %c1_150 = arith.constant 1 : index
    %c0_151 = arith.constant 0 : index
    %c0_152 = arith.constant 0 : index
    %134 = vector.load %arg5[%c14, %c1_150, %c0_151, %c0_152] : memref<18x2x10x3xf32, #tpu.memory_space<vmem>>, vector<1x1x8x3xf32>
    %135 = vector.shape_cast %134 : vector<1x1x8x3xf32> to vector<8x3xf32>
    %136 = vector.shape_cast %133 : vector<8x3xf32> to vector<1x1x8x3xf32>
    tpu.vector_store %arg5[%c14, %c1_150, %c0_151, %c0_152], %136 {strides = array<i32>} : memref<18x2x10x3xf32, #tpu.memory_space<vmem>>, vector<1x1x8x3xf32>,
    %c0_153 = arith.constant 0 : index
    %c216 = arith.constant 216 : index
    %c0_154 = arith.constant 0 : index
    %137 = vector.load %arg1[%c0_153, %c216, %c0_154] : memref<1x256x3xf32, #tpu.memory_space<vmem>>, vector<1x8x3xf32>
    %138 = vector.shape_cast %137 : vector<1x8x3xf32> to vector<8x3xf32>
    %c14_155 = arith.constant 14 : index
    %c0_156 = arith.constant 0 : index
    %c1_157 = arith.constant 1 : index
    %c0_158 = arith.constant 0 : index
    %139 = vector.load %arg5[%c14_155, %c0_156, %c1_157, %c0_158] : memref<18x2x10x3xf32, #tpu.memory_space<vmem>>, vector<1x1x8x3xf32>
    %140 = vector.shape_cast %139 : vector<1x1x8x3xf32> to vector<8x3xf32>
    %141 = vector.shape_cast %138 : vector<8x3xf32> to vector<1x1x8x3xf32>
    tpu.vector_store %arg5[%c14_155, %c0_156, %c1_157, %c0_158], %141 {strides = array<i32>} : memref<18x2x10x3xf32, #tpu.memory_space<vmem>>, vector<1x1x8x3xf32>,
    %c0_159 = arith.constant 0 : index
    %c224 = arith.constant 224 : index
    %c0_160 = arith.constant 0 : index
    %142 = vector.load %arg1[%c0_159, %c224, %c0_160] : memref<1x256x3xf32, #tpu.memory_space<vmem>>, vector<1x8x3xf32>
    %143 = vector.shape_cast %142 : vector<1x8x3xf32> to vector<8x3xf32>
    %c15 = arith.constant 15 : index
    %c1_161 = arith.constant 1 : index
    %c0_162 = arith.constant 0 : index
    %c0_163 = arith.constant 0 : index
    %144 = vector.load %arg5[%c15, %c1_161, %c0_162, %c0_163] : memref<18x2x10x3xf32, #tpu.memory_space<vmem>>, vector<1x1x8x3xf32>
    %145 = vector.shape_cast %144 : vector<1x1x8x3xf32> to vector<8x3xf32>
    %146 = vector.shape_cast %143 : vector<8x3xf32> to vector<1x1x8x3xf32>
    tpu.vector_store %arg5[%c15, %c1_161, %c0_162, %c0_163], %146 {strides = array<i32>} : memref<18x2x10x3xf32, #tpu.memory_space<vmem>>, vector<1x1x8x3xf32>,
    %c0_164 = arith.constant 0 : index
    %c232 = arith.constant 232 : index
    %c0_165 = arith.constant 0 : index
    %147 = vector.load %arg1[%c0_164, %c232, %c0_165] : memref<1x256x3xf32, #tpu.memory_space<vmem>>, vector<1x8x3xf32>
    %148 = vector.shape_cast %147 : vector<1x8x3xf32> to vector<8x3xf32>
    %c15_166 = arith.constant 15 : index
    %c0_167 = arith.constant 0 : index
    %c1_168 = arith.constant 1 : index
    %c0_169 = arith.constant 0 : index
    %149 = vector.load %arg5[%c15_166, %c0_167, %c1_168, %c0_169] : memref<18x2x10x3xf32, #tpu.memory_space<vmem>>, vector<1x1x8x3xf32>
    %150 = vector.shape_cast %149 : vector<1x1x8x3xf32> to vector<8x3xf32>
    %151 = vector.shape_cast %148 : vector<8x3xf32> to vector<1x1x8x3xf32>
    tpu.vector_store %arg5[%c15_166, %c0_167, %c1_168, %c0_169], %151 {strides = array<i32>} : memref<18x2x10x3xf32, #tpu.memory_space<vmem>>, vector<1x1x8x3xf32>,
    %c0_170 = arith.constant 0 : index
    %c240 = arith.constant 240 : index
    %c0_171 = arith.constant 0 : index
    %152 = vector.load %arg1[%c0_170, %c240, %c0_171] : memref<1x256x3xf32, #tpu.memory_space<vmem>>, vector<1x8x3xf32>
    %153 = vector.shape_cast %152 : vector<1x8x3xf32> to vector<8x3xf32>
    %c16_172 = arith.constant 16 : index
    %c1_173 = arith.constant 1 : index
    %c0_174 = arith.constant 0 : index
    %c0_175 = arith.constant 0 : index
    %154 = vector.load %arg5[%c16_172, %c1_173, %c0_174, %c0_175] : memref<18x2x10x3xf32, #tpu.memory_space<vmem>>, vector<1x1x8x3xf32>
    %155 = vector.shape_cast %154 : vector<1x1x8x3xf32> to vector<8x3xf32>
    %156 = vector.shape_cast %153 : vector<8x3xf32> to vector<1x1x8x3xf32>
    tpu.vector_store %arg5[%c16_172, %c1_173, %c0_174, %c0_175], %156 {strides = array<i32>} : memref<18x2x10x3xf32, #tpu.memory_space<vmem>>, vector<1x1x8x3xf32>,
    %c0_176 = arith.constant 0 : index
    %c248 = arith.constant 248 : index
    %c0_177 = arith.constant 0 : index
    %157 = vector.load %arg1[%c0_176, %c248, %c0_177] : memref<1x256x3xf32, #tpu.memory_space<vmem>>, vector<1x8x3xf32>
    %158 = vector.shape_cast %157 : vector<1x8x3xf32> to vector<8x3xf32>
    %c16_178 = arith.constant 16 : index
    %c0_179 = arith.constant 0 : index
    %c1_180 = arith.constant 1 : index
    %c0_181 = arith.constant 0 : index
    %159 = vector.load %arg5[%c16_178, %c0_179, %c1_180, %c0_181] : memref<18x2x10x3xf32, #tpu.memory_space<vmem>>, vector<1x1x8x3xf32>
    %160 = vector.shape_cast %159 : vector<1x1x8x3xf32> to vector<8x3xf32>
    %161 = vector.shape_cast %158 : vector<8x3xf32> to vector<1x1x8x3xf32>
    tpu.vector_store %arg5[%c16_178, %c0_179, %c1_180, %c0_181], %161 {strides = array<i32>} : memref<18x2x10x3xf32, #tpu.memory_space<vmem>>, vector<1x1x8x3xf32>,
    %c0_182 = arith.constant 0 : index
    %c0_183 = arith.constant 0 : index
    %c0_184 = arith.constant 0 : index
    %162 = vector.load %arg2[%c0_182, %c0_183, %c0_184] : memref<9x3x8xf32, #tpu.memory_space<vmem>>, vector<1x3x8xf32>
    %163 = vector.shape_cast %162 : vector<1x3x8xf32> to vector<3x8xf32>
    %c1_185 = arith.constant 1 : index
    %c0_186 = arith.constant 0 : index
    %c0_187 = arith.constant 0 : index
    %164 = vector.load %arg2[%c1_185, %c0_186, %c0_187] : memref<9x3x8xf32, #tpu.memory_space<vmem>>, vector<1x3x8xf32>
    %165 = vector.shape_cast %164 : vector<1x3x8xf32> to vector<3x8xf32>
    %c2_188 = arith.constant 2 : index
    %c0_189 = arith.constant 0 : index
    %c0_190 = arith.constant 0 : index
    %166 = vector.load %arg2[%c2_188, %c0_189, %c0_190] : memref<9x3x8xf32, #tpu.memory_space<vmem>>, vector<1x3x8xf32>
    %167 = vector.shape_cast %166 : vector<1x3x8xf32> to vector<3x8xf32>
    %c3_191 = arith.constant 3 : index
    %c0_192 = arith.constant 0 : index
    %c0_193 = arith.constant 0 : index
    %168 = vector.load %arg2[%c3_191, %c0_192, %c0_193] : memref<9x3x8xf32, #tpu.memory_space<vmem>>, vector<1x3x8xf32>
    %169 = vector.shape_cast %168 : vector<1x3x8xf32> to vector<3x8xf32>
    %c4_194 = arith.constant 4 : index
    %c0_195 = arith.constant 0 : index
    %c0_196 = arith.constant 0 : index
    %170 = vector.load %arg2[%c4_194, %c0_195, %c0_196] : memref<9x3x8xf32, #tpu.memory_space<vmem>>, vector<1x3x8xf32>
    %171 = vector.shape_cast %170 : vector<1x3x8xf32> to vector<3x8xf32>
    %c5_197 = arith.constant 5 : index
    %c0_198 = arith.constant 0 : index
    %c0_199 = arith.constant 0 : index
    %172 = vector.load %arg2[%c5_197, %c0_198, %c0_199] : memref<9x3x8xf32, #tpu.memory_space<vmem>>, vector<1x3x8xf32>
    %173 = vector.shape_cast %172 : vector<1x3x8xf32> to vector<3x8xf32>
    %c6_200 = arith.constant 6 : index
    %c0_201 = arith.constant 0 : index
    %c0_202 = arith.constant 0 : index
    %174 = vector.load %arg2[%c6_200, %c0_201, %c0_202] : memref<9x3x8xf32, #tpu.memory_space<vmem>>, vector<1x3x8xf32>
    %175 = vector.shape_cast %174 : vector<1x3x8xf32> to vector<3x8xf32>
    %c7_203 = arith.constant 7 : index
    %c0_204 = arith.constant 0 : index
    %c0_205 = arith.constant 0 : index
    %176 = vector.load %arg2[%c7_203, %c0_204, %c0_205] : memref<9x3x8xf32, #tpu.memory_space<vmem>>, vector<1x3x8xf32>
    %177 = vector.shape_cast %176 : vector<1x3x8xf32> to vector<3x8xf32>
    %c8_206 = arith.constant 8 : index
    %c0_207 = arith.constant 0 : index
    %c0_208 = arith.constant 0 : index
    %178 = vector.load %arg2[%c8_206, %c0_207, %c0_208] : memref<9x3x8xf32, #tpu.memory_space<vmem>>, vector<1x3x8xf32>
    %179 = vector.shape_cast %178 : vector<1x3x8xf32> to vector<3x8xf32>
    %c0_209 = arith.constant 0 : index
    %c0_210 = arith.constant 0 : index
    %180 = vector.load %arg3[%c0_209, %c0_210] : memref<1x8xf32, #tpu.memory_space<vmem>>, vector<1x8xf32>
    %cst_211 = arith.constant 0.000000e+00 : f32
    %181 = vector.broadcast %cst_211 : f32 to vector<8x8xf32>
    %c0_212 = arith.constant 0 : index
    %c0_213 = arith.constant 0 : index
    %c0_214 = arith.constant 0 : index
    %c0_215 = arith.constant 0 : index
    %182 = vector.load %arg5[%c0_212, %c0_213, %c0_214, %c0_215] : memref<18x2x10x3xf32, #tpu.memory_space<vmem>>, vector<1x1x8x3xf32>
    %183 = vector.shape_cast %182 : vector<1x1x8x3xf32> to vector<8x3xf32>
    %cst_216 = arith.constant dense<0.000000e+00> : vector<8x8xf32>
    %184 = tpu.matmul %183, %163, %cst_216 {dimension_numbers = #tpu.dot_dimension_numbers<[1], [0], [0], [1], [0, 0, 1, 1], [], []>} : vector<8x3xf32>, vector<3x8xf32>, vector<8x8xf32> -> vector<8x8xf32>
    %185 = arith.addf %181, %184 : vector<8x8xf32>
    %c0_217 = arith.constant 0 : index
    %c1_218 = arith.constant 1 : index
    %c0_219 = arith.constant 0 : index
    %c0_220 = arith.constant 0 : index
    %186 = vector.load %arg5[%c0_217, %c1_218, %c0_219, %c0_220] : memref<18x2x10x3xf32, #tpu.memory_space<vmem>>, vector<1x1x8x3xf32>
    %187 = vector.shape_cast %186 : vector<1x1x8x3xf32> to vector<8x3xf32>
    %cst_221 = arith.constant dense<0.000000e+00> : vector<8x8xf32>
    %188 = tpu.matmul %187, %165, %cst_221 {dimension_numbers = #tpu.dot_dimension_numbers<[1], [0], [0], [1], [0, 0, 1, 1], [], []>} : vector<8x3xf32>, vector<3x8xf32>, vector<8x8xf32> -> vector<8x8xf32>
    %189 = arith.addf %185, %188 : vector<8x8xf32>
    %c0_222 = arith.constant 0 : index
    %c0_223 = arith.constant 0 : index
    %c1_224 = arith.constant 1 : index
    %c0_225 = arith.constant 0 : index
    %190 = vector.load %arg5[%c0_222, %c0_223, %c1_224, %c0_225] : memref<18x2x10x3xf32, #tpu.memory_space<vmem>>, vector<1x1x8x3xf32>
    %191 = vector.shape_cast %190 : vector<1x1x8x3xf32> to vector<8x3xf32>
    %cst_226 = arith.constant dense<0.000000e+00> : vector<8x8xf32>
    %192 = tpu.matmul %191, %167, %cst_226 {dimension_numbers = #tpu.dot_dimension_numbers<[1], [0], [0], [1], [0, 0, 1, 1], [], []>} : vector<8x3xf32>, vector<3x8xf32>, vector<8x8xf32> -> vector<8x8xf32>
    %193 = arith.addf %189, %192 : vector<8x8xf32>
    %c1_227 = arith.constant 1 : index
    %c0_228 = arith.constant 0 : index
    %c0_229 = arith.constant 0 : index
    %c0_230 = arith.constant 0 : index
    %194 = vector.load %arg5[%c1_227, %c0_228, %c0_229, %c0_230] : memref<18x2x10x3xf32, #tpu.memory_space<vmem>>, vector<1x1x8x3xf32>
    %195 = vector.shape_cast %194 : vector<1x1x8x3xf32> to vector<8x3xf32>
    %cst_231 = arith.constant dense<0.000000e+00> : vector<8x8xf32>
    %196 = tpu.matmul %195, %169, %cst_231 {dimension_numbers = #tpu.dot_dimension_numbers<[1], [0], [0], [1], [0, 0, 1, 1], [], []>} : vector<8x3xf32>, vector<3x8xf32>, vector<8x8xf32> -> vector<8x8xf32>
    %197 = arith.addf %193, %196 : vector<8x8xf32>
    %c1_232 = arith.constant 1 : index
    %c1_233 = arith.constant 1 : index
    %c0_234 = arith.constant 0 : index
    %c0_235 = arith.constant 0 : index
    %198 = vector.load %arg5[%c1_232, %c1_233, %c0_234, %c0_235] : memref<18x2x10x3xf32, #tpu.memory_space<vmem>>, vector<1x1x8x3xf32>
    %199 = vector.shape_cast %198 : vector<1x1x8x3xf32> to vector<8x3xf32>
    %cst_236 = arith.constant dense<0.000000e+00> : vector<8x8xf32>
    %200 = tpu.matmul %199, %171, %cst_236 {dimension_numbers = #tpu.dot_dimension_numbers<[1], [0], [0], [1], [0, 0, 1, 1], [], []>} : vector<8x3xf32>, vector<3x8xf32>, vector<8x8xf32> -> vector<8x8xf32>
    %201 = arith.addf %197, %200 : vector<8x8xf32>
    %c1_237 = arith.constant 1 : index
    %c0_238 = arith.constant 0 : index
    %c1_239 = arith.constant 1 : index
    %c0_240 = arith.constant 0 : index
    %202 = vector.load %arg5[%c1_237, %c0_238, %c1_239, %c0_240] : memref<18x2x10x3xf32, #tpu.memory_space<vmem>>, vector<1x1x8x3xf32>
    %203 = vector.shape_cast %202 : vector<1x1x8x3xf32> to vector<8x3xf32>
    %cst_241 = arith.constant dense<0.000000e+00> : vector<8x8xf32>
    %204 = tpu.matmul %203, %173, %cst_241 {dimension_numbers = #tpu.dot_dimension_numbers<[1], [0], [0], [1], [0, 0, 1, 1], [], []>} : vector<8x3xf32>, vector<3x8xf32>, vector<8x8xf32> -> vector<8x8xf32>
    %205 = arith.addf %201, %204 : vector<8x8xf32>
    %c2_242 = arith.constant 2 : index
    %c0_243 = arith.constant 0 : index
    %c0_244 = arith.constant 0 : index
    %c0_245 = arith.constant 0 : index
    %206 = vector.load %arg5[%c2_242, %c0_243, %c0_244, %c0_245] : memref<18x2x10x3xf32, #tpu.memory_space<vmem>>, vector<1x1x8x3xf32>
    %207 = vector.shape_cast %206 : vector<1x1x8x3xf32> to vector<8x3xf32>
    %cst_246 = arith.constant dense<0.000000e+00> : vector<8x8xf32>
    %208 = tpu.matmul %207, %175, %cst_246 {dimension_numbers = #tpu.dot_dimension_numbers<[1], [0], [0], [1], [0, 0, 1, 1], [], []>} : vector<8x3xf32>, vector<3x8xf32>, vector<8x8xf32> -> vector<8x8xf32>
    %209 = arith.addf %205, %208 : vector<8x8xf32>
    %c2_247 = arith.constant 2 : index
    %c1_248 = arith.constant 1 : index
    %c0_249 = arith.constant 0 : index
    %c0_250 = arith.constant 0 : index
    %210 = vector.load %arg5[%c2_247, %c1_248, %c0_249, %c0_250] : memref<18x2x10x3xf32, #tpu.memory_space<vmem>>, vector<1x1x8x3xf32>
    %211 = vector.shape_cast %210 : vector<1x1x8x3xf32> to vector<8x3xf32>
    %cst_251 = arith.constant dense<0.000000e+00> : vector<8x8xf32>
    %212 = tpu.matmul %211, %177, %cst_251 {dimension_numbers = #tpu.dot_dimension_numbers<[1], [0], [0], [1], [0, 0, 1, 1], [], []>} : vector<8x3xf32>, vector<3x8xf32>, vector<8x8xf32> -> vector<8x8xf32>
    %213 = arith.addf %209, %212 : vector<8x8xf32>
    %c2_252 = arith.constant 2 : index
    %c0_253 = arith.constant 0 : index
    %c1_254 = arith.constant 1 : index
    %c0_255 = arith.constant 0 : index
    %214 = vector.load %arg5[%c2_252, %c0_253, %c1_254, %c0_255] : memref<18x2x10x3xf32, #tpu.memory_space<vmem>>, vector<1x1x8x3xf32>
    %215 = vector.shape_cast %214 : vector<1x1x8x3xf32> to vector<8x3xf32>
    %cst_256 = arith.constant dense<0.000000e+00> : vector<8x8xf32>
    %216 = tpu.matmul %215, %179, %cst_256 {dimension_numbers = #tpu.dot_dimension_numbers<[1], [0], [0], [1], [0, 0, 1, 1], [], []>} : vector<8x3xf32>, vector<3x8xf32>, vector<8x8xf32> -> vector<8x8xf32>
    %217 = arith.addf %213, %216 : vector<8x8xf32>
    %218 = vector.broadcast %180 : vector<1x8xf32> to vector<8x8xf32>
    %219 = arith.addf %217, %218 : vector<8x8xf32>
    %cst_257 = arith.constant 0.000000e+00 : f32
    %220 = vector.broadcast %cst_257 : f32 to vector<8x8xf32>
    %221 = arith.maximumf %219, %220 : vector<8x8xf32>
    %c0_258 = arith.constant 0 : index
    %c0_259 = arith.constant 0 : index
    %c0_260 = arith.constant 0 : index
    %222 = vector.load %arg4[%c0_258, %c0_259, %c0_260] : memref<1x64x8xf32, #tpu.memory_space<vmem>>, vector<1x8x8xf32>
    %223 = vector.shape_cast %222 : vector<1x8x8xf32> to vector<8x8xf32>
    %224 = vector.shape_cast %221 : vector<8x8xf32> to vector<1x8x8xf32>
    tpu.vector_store %arg4[%c0_258, %c0_259, %c0_260], %224 {strides = array<i32>} : memref<1x64x8xf32, #tpu.memory_space<vmem>>, vector<1x8x8xf32>,
    %cst_261 = arith.constant 0.000000e+00 : f32
    %225 = vector.broadcast %cst_261 : f32 to vector<8x8xf32>
    %c2_262 = arith.constant 2 : index
    %c0_263 = arith.constant 0 : index
    %c0_264 = arith.constant 0 : index
    %c0_265 = arith.constant 0 : index
    %226 = vector.load %arg5[%c2_262, %c0_263, %c0_264, %c0_265] : memref<18x2x10x3xf32, #tpu.memory_space<vmem>>, vector<1x1x8x3xf32>
    %227 = vector.shape_cast %226 : vector<1x1x8x3xf32> to vector<8x3xf32>
    %cst_266 = arith.constant dense<0.000000e+00> : vector<8x8xf32>
    %228 = tpu.matmul %227, %163, %cst_266 {dimension_numbers = #tpu.dot_dimension_numbers<[1], [0], [0], [1], [0, 0, 1, 1], [], []>} : vector<8x3xf32>, vector<3x8xf32>, vector<8x8xf32> -> vector<8x8xf32>
    %229 = arith.addf %225, %228 : vector<8x8xf32>
    %c2_267 = arith.constant 2 : index
    %c1_268 = arith.constant 1 : index
    %c0_269 = arith.constant 0 : index
    %c0_270 = arith.constant 0 : index
    %230 = vector.load %arg5[%c2_267, %c1_268, %c0_269, %c0_270] : memref<18x2x10x3xf32, #tpu.memory_space<vmem>>, vector<1x1x8x3xf32>
    %231 = vector.shape_cast %230 : vector<1x1x8x3xf32> to vector<8x3xf32>
    %cst_271 = arith.constant dense<0.000000e+00> : vector<8x8xf32>
    %232 = tpu.matmul %231, %165, %cst_271 {dimension_numbers = #tpu.dot_dimension_numbers<[1], [0], [0], [1], [0, 0, 1, 1], [], []>} : vector<8x3xf32>, vector<3x8xf32>, vector<8x8xf32> -> vector<8x8xf32>
    %233 = arith.addf %229, %232 : vector<8x8xf32>
    %c2_272 = arith.constant 2 : index
    %c0_273 = arith.constant 0 : index
    %c1_274 = arith.constant 1 : index
    %c0_275 = arith.constant 0 : index
    %234 = vector.load %arg5[%c2_272, %c0_273, %c1_274, %c0_275] : memref<18x2x10x3xf32, #tpu.memory_space<vmem>>, vector<1x1x8x3xf32>
    %235 = vector.shape_cast %234 : vector<1x1x8x3xf32> to vector<8x3xf32>
    %cst_276 = arith.constant dense<0.000000e+00> : vector<8x8xf32>
    %236 = tpu.matmul %235, %167, %cst_276 {dimension_numbers = #tpu.dot_dimension_numbers<[1], [0], [0], [1], [0, 0, 1, 1], [], []>} : vector<8x3xf32>, vector<3x8xf32>, vector<8x8xf32> -> vector<8x8xf32>
    %237 = arith.addf %233, %236 : vector<8x8xf32>
    %c3_277 = arith.constant 3 : index
    %c0_278 = arith.constant 0 : index
    %c0_279 = arith.constant 0 : index
    %c0_280 = arith.constant 0 : index
    %238 = vector.load %arg5[%c3_277, %c0_278, %c0_279, %c0_280] : memref<18x2x10x3xf32, #tpu.memory_space<vmem>>, vector<1x1x8x3xf32>
    %239 = vector.shape_cast %238 : vector<1x1x8x3xf32> to vector<8x3xf32>
    %cst_281 = arith.constant dense<0.000000e+00> : vector<8x8xf32>
    %240 = tpu.matmul %239, %169, %cst_281 {dimension_numbers = #tpu.dot_dimension_numbers<[1], [0], [0], [1], [0, 0, 1, 1], [], []>} : vector<8x3xf32>, vector<3x8xf32>, vector<8x8xf32> -> vector<8x8xf32>
    %241 = arith.addf %237, %240 : vector<8x8xf32>
    %c3_282 = arith.constant 3 : index
    %c1_283 = arith.constant 1 : index
    %c0_284 = arith.constant 0 : index
    %c0_285 = arith.constant 0 : index
    %242 = vector.load %arg5[%c3_282, %c1_283, %c0_284, %c0_285] : memref<18x2x10x3xf32, #tpu.memory_space<vmem>>, vector<1x1x8x3xf32>
    %243 = vector.shape_cast %242 : vector<1x1x8x3xf32> to vector<8x3xf32>
    %cst_286 = arith.constant dense<0.000000e+00> : vector<8x8xf32>
    %244 = tpu.matmul %243, %171, %cst_286 {dimension_numbers = #tpu.dot_dimension_numbers<[1], [0], [0], [1], [0, 0, 1, 1], [], []>} : vector<8x3xf32>, vector<3x8xf32>, vector<8x8xf32> -> vector<8x8xf32>
    %245 = arith.addf %241, %244 : vector<8x8xf32>
    %c3_287 = arith.constant 3 : index
    %c0_288 = arith.constant 0 : index
    %c1_289 = arith.constant 1 : index
    %c0_290 = arith.constant 0 : index
    %246 = vector.load %arg5[%c3_287, %c0_288, %c1_289, %c0_290] : memref<18x2x10x3xf32, #tpu.memory_space<vmem>>, vector<1x1x8x3xf32>
    %247 = vector.shape_cast %246 : vector<1x1x8x3xf32> to vector<8x3xf32>
    %cst_291 = arith.constant dense<0.000000e+00> : vector<8x8xf32>
    %248 = tpu.matmul %247, %173, %cst_291 {dimension_numbers = #tpu.dot_dimension_numbers<[1], [0], [0], [1], [0, 0, 1, 1], [], []>} : vector<8x3xf32>, vector<3x8xf32>, vector<8x8xf32> -> vector<8x8xf32>
    %249 = arith.addf %245, %248 : vector<8x8xf32>
    %c4_292 = arith.constant 4 : index
    %c0_293 = arith.constant 0 : index
    %c0_294 = arith.constant 0 : index
    %c0_295 = arith.constant 0 : index
    %250 = vector.load %arg5[%c4_292, %c0_293, %c0_294, %c0_295] : memref<18x2x10x3xf32, #tpu.memory_space<vmem>>, vector<1x1x8x3xf32>
    %251 = vector.shape_cast %250 : vector<1x1x8x3xf32> to vector<8x3xf32>
    %cst_296 = arith.constant dense<0.000000e+00> : vector<8x8xf32>
    %252 = tpu.matmul %251, %175, %cst_296 {dimension_numbers = #tpu.dot_dimension_numbers<[1], [0], [0], [1], [0, 0, 1, 1], [], []>} : vector<8x3xf32>, vector<3x8xf32>, vector<8x8xf32> -> vector<8x8xf32>
    %253 = arith.addf %249, %252 : vector<8x8xf32>
    %c4_297 = arith.constant 4 : index
    %c1_298 = arith.constant 1 : index
    %c0_299 = arith.constant 0 : index
    %c0_300 = arith.constant 0 : index
    %254 = vector.load %arg5[%c4_297, %c1_298, %c0_299, %c0_300] : memref<18x2x10x3xf32, #tpu.memory_space<vmem>>, vector<1x1x8x3xf32>
    %255 = vector.shape_cast %254 : vector<1x1x8x3xf32> to vector<8x3xf32>
    %cst_301 = arith.constant dense<0.000000e+00> : vector<8x8xf32>
    %256 = tpu.matmul %255, %177, %cst_301 {dimension_numbers = #tpu.dot_dimension_numbers<[1], [0], [0], [1], [0, 0, 1, 1], [], []>} : vector<8x3xf32>, vector<3x8xf32>, vector<8x8xf32> -> vector<8x8xf32>
    %257 = arith.addf %253, %256 : vector<8x8xf32>
    %c4_302 = arith.constant 4 : index
    %c0_303 = arith.constant 0 : index
    %c1_304 = arith.constant 1 : index
    %c0_305 = arith.constant 0 : index
    %258 = vector.load %arg5[%c4_302, %c0_303, %c1_304, %c0_305] : memref<18x2x10x3xf32, #tpu.memory_space<vmem>>, vector<1x1x8x3xf32>
    %259 = vector.shape_cast %258 : vector<1x1x8x3xf32> to vector<8x3xf32>
    %cst_306 = arith.constant dense<0.000000e+00> : vector<8x8xf32>
    %260 = tpu.matmul %259, %179, %cst_306 {dimension_numbers = #tpu.dot_dimension_numbers<[1], [0], [0], [1], [0, 0, 1, 1], [], []>} : vector<8x3xf32>, vector<3x8xf32>, vector<8x8xf32> -> vector<8x8xf32>
    %261 = arith.addf %257, %260 : vector<8x8xf32>
    %262 = vector.broadcast %180 : vector<1x8xf32> to vector<8x8xf32>
    %263 = arith.addf %261, %262 : vector<8x8xf32>
    %cst_307 = arith.constant 0.000000e+00 : f32
    %264 = vector.broadcast %cst_307 : f32 to vector<8x8xf32>
    %265 = arith.maximumf %263, %264 : vector<8x8xf32>
    %c0_308 = arith.constant 0 : index
    %c8_309 = arith.constant 8 : index
    %c0_310 = arith.constant 0 : index
    %266 = vector.load %arg4[%c0_308, %c8_309, %c0_310] : memref<1x64x8xf32, #tpu.memory_space<vmem>>, vector<1x8x8xf32>
    %267 = vector.shape_cast %266 : vector<1x8x8xf32> to vector<8x8xf32>
    %268 = vector.shape_cast %265 : vector<8x8xf32> to vector<1x8x8xf32>
    tpu.vector_store %arg4[%c0_308, %c8_309, %c0_310], %268 {strides = array<i32>} : memref<1x64x8xf32, #tpu.memory_space<vmem>>, vector<1x8x8xf32>,
    %cst_311 = arith.constant 0.000000e+00 : f32
    %269 = vector.broadcast %cst_311 : f32 to vector<8x8xf32>
    %c4_312 = arith.constant 4 : index
    %c0_313 = arith.constant 0 : index
    %c0_314 = arith.constant 0 : index
    %c0_315 = arith.constant 0 : index
    %270 = vector.load %arg5[%c4_312, %c0_313, %c0_314, %c0_315] : memref<18x2x10x3xf32, #tpu.memory_space<vmem>>, vector<1x1x8x3xf32>
    %271 = vector.shape_cast %270 : vector<1x1x8x3xf32> to vector<8x3xf32>
    %cst_316 = arith.constant dense<0.000000e+00> : vector<8x8xf32>
    %272 = tpu.matmul %271, %163, %cst_316 {dimension_numbers = #tpu.dot_dimension_numbers<[1], [0], [0], [1], [0, 0, 1, 1], [], []>} : vector<8x3xf32>, vector<3x8xf32>, vector<8x8xf32> -> vector<8x8xf32>
    %273 = arith.addf %269, %272 : vector<8x8xf32>
    %c4_317 = arith.constant 4 : index
    %c1_318 = arith.constant 1 : index
    %c0_319 = arith.constant 0 : index
    %c0_320 = arith.constant 0 : index
    %274 = vector.load %arg5[%c4_317, %c1_318, %c0_319, %c0_320] : memref<18x2x10x3xf32, #tpu.memory_space<vmem>>, vector<1x1x8x3xf32>
    %275 = vector.shape_cast %274 : vector<1x1x8x3xf32> to vector<8x3xf32>
    %cst_321 = arith.constant dense<0.000000e+00> : vector<8x8xf32>
    %276 = tpu.matmul %275, %165, %cst_321 {dimension_numbers = #tpu.dot_dimension_numbers<[1], [0], [0], [1], [0, 0, 1, 1], [], []>} : vector<8x3xf32>, vector<3x8xf32>, vector<8x8xf32> -> vector<8x8xf32>
    %277 = arith.addf %273, %276 : vector<8x8xf32>
    %c4_322 = arith.constant 4 : index
    %c0_323 = arith.constant 0 : index
    %c1_324 = arith.constant 1 : index
    %c0_325 = arith.constant 0 : index
    %278 = vector.load %arg5[%c4_322, %c0_323, %c1_324, %c0_325] : memref<18x2x10x3xf32, #tpu.memory_space<vmem>>, vector<1x1x8x3xf32>
    %279 = vector.shape_cast %278 : vector<1x1x8x3xf32> to vector<8x3xf32>
    %cst_326 = arith.constant dense<0.000000e+00> : vector<8x8xf32>
    %280 = tpu.matmul %279, %167, %cst_326 {dimension_numbers = #tpu.dot_dimension_numbers<[1], [0], [0], [1], [0, 0, 1, 1], [], []>} : vector<8x3xf32>, vector<3x8xf32>, vector<8x8xf32> -> vector<8x8xf32>
    %281 = arith.addf %277, %280 : vector<8x8xf32>
    %c5_327 = arith.constant 5 : index
    %c0_328 = arith.constant 0 : index
    %c0_329 = arith.constant 0 : index
    %c0_330 = arith.constant 0 : index
    %282 = vector.load %arg5[%c5_327, %c0_328, %c0_329, %c0_330] : memref<18x2x10x3xf32, #tpu.memory_space<vmem>>, vector<1x1x8x3xf32>
    %283 = vector.shape_cast %282 : vector<1x1x8x3xf32> to vector<8x3xf32>
    %cst_331 = arith.constant dense<0.000000e+00> : vector<8x8xf32>
    %284 = tpu.matmul %283, %169, %cst_331 {dimension_numbers = #tpu.dot_dimension_numbers<[1], [0], [0], [1], [0, 0, 1, 1], [], []>} : vector<8x3xf32>, vector<3x8xf32>, vector<8x8xf32> -> vector<8x8xf32>
    %285 = arith.addf %281, %284 : vector<8x8xf32>
    %c5_332 = arith.constant 5 : index
    %c1_333 = arith.constant 1 : index
    %c0_334 = arith.constant 0 : index
    %c0_335 = arith.constant 0 : index
    %286 = vector.load %arg5[%c5_332, %c1_333, %c0_334, %c0_335] : memref<18x2x10x3xf32, #tpu.memory_space<vmem>>, vector<1x1x8x3xf32>
    %287 = vector.shape_cast %286 : vector<1x1x8x3xf32> to vector<8x3xf32>
    %cst_336 = arith.constant dense<0.000000e+00> : vector<8x8xf32>
    %288 = tpu.matmul %287, %171, %cst_336 {dimension_numbers = #tpu.dot_dimension_numbers<[1], [0], [0], [1], [0, 0, 1, 1], [], []>} : vector<8x3xf32>, vector<3x8xf32>, vector<8x8xf32> -> vector<8x8xf32>
    %289 = arith.addf %285, %288 : vector<8x8xf32>
    %c5_337 = arith.constant 5 : index
    %c0_338 = arith.constant 0 : index
    %c1_339 = arith.constant 1 : index
    %c0_340 = arith.constant 0 : index
    %290 = vector.load %arg5[%c5_337, %c0_338, %c1_339, %c0_340] : memref<18x2x10x3xf32, #tpu.memory_space<vmem>>, vector<1x1x8x3xf32>
    %291 = vector.shape_cast %290 : vector<1x1x8x3xf32> to vector<8x3xf32>
    %cst_341 = arith.constant dense<0.000000e+00> : vector<8x8xf32>
    %292 = tpu.matmul %291, %173, %cst_341 {dimension_numbers = #tpu.dot_dimension_numbers<[1], [0], [0], [1], [0, 0, 1, 1], [], []>} : vector<8x3xf32>, vector<3x8xf32>, vector<8x8xf32> -> vector<8x8xf32>
    %293 = arith.addf %289, %292 : vector<8x8xf32>
    %c6_342 = arith.constant 6 : index
    %c0_343 = arith.constant 0 : index
    %c0_344 = arith.constant 0 : index
    %c0_345 = arith.constant 0 : index
    %294 = vector.load %arg5[%c6_342, %c0_343, %c0_344, %c0_345] : memref<18x2x10x3xf32, #tpu.memory_space<vmem>>, vector<1x1x8x3xf32>
    %295 = vector.shape_cast %294 : vector<1x1x8x3xf32> to vector<8x3xf32>
    %cst_346 = arith.constant dense<0.000000e+00> : vector<8x8xf32>
    %296 = tpu.matmul %295, %175, %cst_346 {dimension_numbers = #tpu.dot_dimension_numbers<[1], [0], [0], [1], [0, 0, 1, 1], [], []>} : vector<8x3xf32>, vector<3x8xf32>, vector<8x8xf32> -> vector<8x8xf32>
    %297 = arith.addf %293, %296 : vector<8x8xf32>
    %c6_347 = arith.constant 6 : index
    %c1_348 = arith.constant 1 : index
    %c0_349 = arith.constant 0 : index
    %c0_350 = arith.constant 0 : index
    %298 = vector.load %arg5[%c6_347, %c1_348, %c0_349, %c0_350] : memref<18x2x10x3xf32, #tpu.memory_space<vmem>>, vector<1x1x8x3xf32>
    %299 = vector.shape_cast %298 : vector<1x1x8x3xf32> to vector<8x3xf32>
    %cst_351 = arith.constant dense<0.000000e+00> : vector<8x8xf32>
    %300 = tpu.matmul %299, %177, %cst_351 {dimension_numbers = #tpu.dot_dimension_numbers<[1], [0], [0], [1], [0, 0, 1, 1], [], []>} : vector<8x3xf32>, vector<3x8xf32>, vector<8x8xf32> -> vector<8x8xf32>
    %301 = arith.addf %297, %300 : vector<8x8xf32>
    %c6_352 = arith.constant 6 : index
    %c0_353 = arith.constant 0 : index
    %c1_354 = arith.constant 1 : index
    %c0_355 = arith.constant 0 : index
    %302 = vector.load %arg5[%c6_352, %c0_353, %c1_354, %c0_355] : memref<18x2x10x3xf32, #tpu.memory_space<vmem>>, vector<1x1x8x3xf32>
    %303 = vector.shape_cast %302 : vector<1x1x8x3xf32> to vector<8x3xf32>
    %cst_356 = arith.constant dense<0.000000e+00> : vector<8x8xf32>
    %304 = tpu.matmul %303, %179, %cst_356 {dimension_numbers = #tpu.dot_dimension_numbers<[1], [0], [0], [1], [0, 0, 1, 1], [], []>} : vector<8x3xf32>, vector<3x8xf32>, vector<8x8xf32> -> vector<8x8xf32>
    %305 = arith.addf %301, %304 : vector<8x8xf32>
    %306 = vector.broadcast %180 : vector<1x8xf32> to vector<8x8xf32>
    %307 = arith.addf %305, %306 : vector<8x8xf32>
    %cst_357 = arith.constant 0.000000e+00 : f32
    %308 = vector.broadcast %cst_357 : f32 to vector<8x8xf32>
    %309 = arith.maximumf %307, %308 : vector<8x8xf32>
    %c0_358 = arith.constant 0 : index
    %c16_359 = arith.constant 16 : index
    %c0_360 = arith.constant 0 : index
    %310 = vector.load %arg4[%c0_358, %c16_359, %c0_360] : memref<1x64x8xf32, #tpu.memory_space<vmem>>, vector<1x8x8xf32>
    %311 = vector.shape_cast %310 : vector<1x8x8xf32> to vector<8x8xf32>
    %312 = vector.shape_cast %309 : vector<8x8xf32> to vector<1x8x8xf32>
    tpu.vector_store %arg4[%c0_358, %c16_359, %c0_360], %312 {strides = array<i32>} : memref<1x64x8xf32, #tpu.memory_space<vmem>>, vector<1x8x8xf32>,
    %cst_361 = arith.constant 0.000000e+00 : f32
    %313 = vector.broadcast %cst_361 : f32 to vector<8x8xf32>
    %c6_362 = arith.constant 6 : index
    %c0_363 = arith.constant 0 : index
    %c0_364 = arith.constant 0 : index
    %c0_365 = arith.constant 0 : index
    %314 = vector.load %arg5[%c6_362, %c0_363, %c0_364, %c0_365] : memref<18x2x10x3xf32, #tpu.memory_space<vmem>>, vector<1x1x8x3xf32>
    %315 = vector.shape_cast %314 : vector<1x1x8x3xf32> to vector<8x3xf32>
    %cst_366 = arith.constant dense<0.000000e+00> : vector<8x8xf32>
    %316 = tpu.matmul %315, %163, %cst_366 {dimension_numbers = #tpu.dot_dimension_numbers<[1], [0], [0], [1], [0, 0, 1, 1], [], []>} : vector<8x3xf32>, vector<3x8xf32>, vector<8x8xf32> -> vector<8x8xf32>
    %317 = arith.addf %313, %316 : vector<8x8xf32>
    %c6_367 = arith.constant 6 : index
    %c1_368 = arith.constant 1 : index
    %c0_369 = arith.constant 0 : index
    %c0_370 = arith.constant 0 : index
    %318 = vector.load %arg5[%c6_367, %c1_368, %c0_369, %c0_370] : memref<18x2x10x3xf32, #tpu.memory_space<vmem>>, vector<1x1x8x3xf32>
    %319 = vector.shape_cast %318 : vector<1x1x8x3xf32> to vector<8x3xf32>
    %cst_371 = arith.constant dense<0.000000e+00> : vector<8x8xf32>
    %320 = tpu.matmul %319, %165, %cst_371 {dimension_numbers = #tpu.dot_dimension_numbers<[1], [0], [0], [1], [0, 0, 1, 1], [], []>} : vector<8x3xf32>, vector<3x8xf32>, vector<8x8xf32> -> vector<8x8xf32>
    %321 = arith.addf %317, %320 : vector<8x8xf32>
    %c6_372 = arith.constant 6 : index
    %c0_373 = arith.constant 0 : index
    %c1_374 = arith.constant 1 : index
    %c0_375 = arith.constant 0 : index
    %322 = vector.load %arg5[%c6_372, %c0_373, %c1_374, %c0_375] : memref<18x2x10x3xf32, #tpu.memory_space<vmem>>, vector<1x1x8x3xf32>
    %323 = vector.shape_cast %322 : vector<1x1x8x3xf32> to vector<8x3xf32>
    %cst_376 = arith.constant dense<0.000000e+00> : vector<8x8xf32>
    %324 = tpu.matmul %323, %167, %cst_376 {dimension_numbers = #tpu.dot_dimension_numbers<[1], [0], [0], [1], [0, 0, 1, 1], [], []>} : vector<8x3xf32>, vector<3x8xf32>, vector<8x8xf32> -> vector<8x8xf32>
    %325 = arith.addf %321, %324 : vector<8x8xf32>
    %c7_377 = arith.constant 7 : index
    %c0_378 = arith.constant 0 : index
    %c0_379 = arith.constant 0 : index
    %c0_380 = arith.constant 0 : index
    %326 = vector.load %arg5[%c7_377, %c0_378, %c0_379, %c0_380] : memref<18x2x10x3xf32, #tpu.memory_space<vmem>>, vector<1x1x8x3xf32>
    %327 = vector.shape_cast %326 : vector<1x1x8x3xf32> to vector<8x3xf32>
    %cst_381 = arith.constant dense<0.000000e+00> : vector<8x8xf32>
    %328 = tpu.matmul %327, %169, %cst_381 {dimension_numbers = #tpu.dot_dimension_numbers<[1], [0], [0], [1], [0, 0, 1, 1], [], []>} : vector<8x3xf32>, vector<3x8xf32>, vector<8x8xf32> -> vector<8x8xf32>
    %329 = arith.addf %325, %328 : vector<8x8xf32>
    %c7_382 = arith.constant 7 : index
    %c1_383 = arith.constant 1 : index
    %c0_384 = arith.constant 0 : index
    %c0_385 = arith.constant 0 : index
    %330 = vector.load %arg5[%c7_382, %c1_383, %c0_384, %c0_385] : memref<18x2x10x3xf32, #tpu.memory_space<vmem>>, vector<1x1x8x3xf32>
    %331 = vector.shape_cast %330 : vector<1x1x8x3xf32> to vector<8x3xf32>
    %cst_386 = arith.constant dense<0.000000e+00> : vector<8x8xf32>
    %332 = tpu.matmul %331, %171, %cst_386 {dimension_numbers = #tpu.dot_dimension_numbers<[1], [0], [0], [1], [0, 0, 1, 1], [], []>} : vector<8x3xf32>, vector<3x8xf32>, vector<8x8xf32> -> vector<8x8xf32>
    %333 = arith.addf %329, %332 : vector<8x8xf32>
    %c7_387 = arith.constant 7 : index
    %c0_388 = arith.constant 0 : index
    %c1_389 = arith.constant 1 : index
    %c0_390 = arith.constant 0 : index
    %334 = vector.load %arg5[%c7_387, %c0_388, %c1_389, %c0_390] : memref<18x2x10x3xf32, #tpu.memory_space<vmem>>, vector<1x1x8x3xf32>
    %335 = vector.shape_cast %334 : vector<1x1x8x3xf32> to vector<8x3xf32>
    %cst_391 = arith.constant dense<0.000000e+00> : vector<8x8xf32>
    %336 = tpu.matmul %335, %173, %cst_391 {dimension_numbers = #tpu.dot_dimension_numbers<[1], [0], [0], [1], [0, 0, 1, 1], [], []>} : vector<8x3xf32>, vector<3x8xf32>, vector<8x8xf32> -> vector<8x8xf32>
    %337 = arith.addf %333, %336 : vector<8x8xf32>
    %c8_392 = arith.constant 8 : index
    %c0_393 = arith.constant 0 : index
    %c0_394 = arith.constant 0 : index
    %c0_395 = arith.constant 0 : index
    %338 = vector.load %arg5[%c8_392, %c0_393, %c0_394, %c0_395] : memref<18x2x10x3xf32, #tpu.memory_space<vmem>>, vector<1x1x8x3xf32>
    %339 = vector.shape_cast %338 : vector<1x1x8x3xf32> to vector<8x3xf32>
    %cst_396 = arith.constant dense<0.000000e+00> : vector<8x8xf32>
    %340 = tpu.matmul %339, %175, %cst_396 {dimension_numbers = #tpu.dot_dimension_numbers<[1], [0], [0], [1], [0, 0, 1, 1], [], []>} : vector<8x3xf32>, vector<3x8xf32>, vector<8x8xf32> -> vector<8x8xf32>
    %341 = arith.addf %337, %340 : vector<8x8xf32>
    %c8_397 = arith.constant 8 : index
    %c1_398 = arith.constant 1 : index
    %c0_399 = arith.constant 0 : index
    %c0_400 = arith.constant 0 : index
    %342 = vector.load %arg5[%c8_397, %c1_398, %c0_399, %c0_400] : memref<18x2x10x3xf32, #tpu.memory_space<vmem>>, vector<1x1x8x3xf32>
    %343 = vector.shape_cast %342 : vector<1x1x8x3xf32> to vector<8x3xf32>
    %cst_401 = arith.constant dense<0.000000e+00> : vector<8x8xf32>
    %344 = tpu.matmul %343, %177, %cst_401 {dimension_numbers = #tpu.dot_dimension_numbers<[1], [0], [0], [1], [0, 0, 1, 1], [], []>} : vector<8x3xf32>, vector<3x8xf32>, vector<8x8xf32> -> vector<8x8xf32>
    %345 = arith.addf %341, %344 : vector<8x8xf32>
    %c8_402 = arith.constant 8 : index
    %c0_403 = arith.constant 0 : index
    %c1_404 = arith.constant 1 : index
    %c0_405 = arith.constant 0 : index
    %346 = vector.load %arg5[%c8_402, %c0_403, %c1_404, %c0_405] : memref<18x2x10x3xf32, #tpu.memory_space<vmem>>, vector<1x1x8x3xf32>
    %347 = vector.shape_cast %346 : vector<1x1x8x3xf32> to vector<8x3xf32>
    %cst_406 = arith.constant dense<0.000000e+00> : vector<8x8xf32>
    %348 = tpu.matmul %347, %179, %cst_406 {dimension_numbers = #tpu.dot_dimension_numbers<[1], [0], [0], [1], [0, 0, 1, 1], [], []>} : vector<8x3xf32>, vector<3x8xf32>, vector<8x8xf32> -> vector<8x8xf32>
    %349 = arith.addf %345, %348 : vector<8x8xf32>
    %350 = vector.broadcast %180 : vector<1x8xf32> to vector<8x8xf32>
    %351 = arith.addf %349, %350 : vector<8x8xf32>
    %cst_407 = arith.constant 0.000000e+00 : f32
    %352 = vector.broadcast %cst_407 : f32 to vector<8x8xf32>
    %353 = arith.maximumf %351, %352 : vector<8x8xf32>
    %c0_408 = arith.constant 0 : index
    %c24_409 = arith.constant 24 : index
    %c0_410 = arith.constant 0 : index
    %354 = vector.load %arg4[%c0_408, %c24_409, %c0_410] : memref<1x64x8xf32, #tpu.memory_space<vmem>>, vector<1x8x8xf32>
    %355 = vector.shape_cast %354 : vector<1x8x8xf32> to vector<8x8xf32>
    %356 = vector.shape_cast %353 : vector<8x8xf32> to vector<1x8x8xf32>
    tpu.vector_store %arg4[%c0_408, %c24_409, %c0_410], %356 {strides = array<i32>} : memref<1x64x8xf32, #tpu.memory_space<vmem>>, vector<1x8x8xf32>,
    %cst_411 = arith.constant 0.000000e+00 : f32
    %357 = vector.broadcast %cst_411 : f32 to vector<8x8xf32>
    %c8_412 = arith.constant 8 : index
    %c0_413 = arith.constant 0 : index
    %c0_414 = arith.constant 0 : index
    %c0_415 = arith.constant 0 : index
    %358 = vector.load %arg5[%c8_412, %c0_413, %c0_414, %c0_415] : memref<18x2x10x3xf32, #tpu.memory_space<vmem>>, vector<1x1x8x3xf32>
    %359 = vector.shape_cast %358 : vector<1x1x8x3xf32> to vector<8x3xf32>
    %cst_416 = arith.constant dense<0.000000e+00> : vector<8x8xf32>
    %360 = tpu.matmul %359, %163, %cst_416 {dimension_numbers = #tpu.dot_dimension_numbers<[1], [0], [0], [1], [0, 0, 1, 1], [], []>} : vector<8x3xf32>, vector<3x8xf32>, vector<8x8xf32> -> vector<8x8xf32>
    %361 = arith.addf %357, %360 : vector<8x8xf32>
    %c8_417 = arith.constant 8 : index
    %c1_418 = arith.constant 1 : index
    %c0_419 = arith.constant 0 : index
    %c0_420 = arith.constant 0 : index
    %362 = vector.load %arg5[%c8_417, %c1_418, %c0_419, %c0_420] : memref<18x2x10x3xf32, #tpu.memory_space<vmem>>, vector<1x1x8x3xf32>
    %363 = vector.shape_cast %362 : vector<1x1x8x3xf32> to vector<8x3xf32>
    %cst_421 = arith.constant dense<0.000000e+00> : vector<8x8xf32>
    %364 = tpu.matmul %363, %165, %cst_421 {dimension_numbers = #tpu.dot_dimension_numbers<[1], [0], [0], [1], [0, 0, 1, 1], [], []>} : vector<8x3xf32>, vector<3x8xf32>, vector<8x8xf32> -> vector<8x8xf32>
    %365 = arith.addf %361, %364 : vector<8x8xf32>
    %c8_422 = arith.constant 8 : index
    %c0_423 = arith.constant 0 : index
    %c1_424 = arith.constant 1 : index
    %c0_425 = arith.constant 0 : index
    %366 = vector.load %arg5[%c8_422, %c0_423, %c1_424, %c0_425] : memref<18x2x10x3xf32, #tpu.memory_space<vmem>>, vector<1x1x8x3xf32>
    %367 = vector.shape_cast %366 : vector<1x1x8x3xf32> to vector<8x3xf32>
    %cst_426 = arith.constant dense<0.000000e+00> : vector<8x8xf32>
    %368 = tpu.matmul %367, %167, %cst_426 {dimension_numbers = #tpu.dot_dimension_numbers<[1], [0], [0], [1], [0, 0, 1, 1], [], []>} : vector<8x3xf32>, vector<3x8xf32>, vector<8x8xf32> -> vector<8x8xf32>
    %369 = arith.addf %365, %368 : vector<8x8xf32>
    %c9_427 = arith.constant 9 : index
    %c0_428 = arith.constant 0 : index
    %c0_429 = arith.constant 0 : index
    %c0_430 = arith.constant 0 : index
    %370 = vector.load %arg5[%c9_427, %c0_428, %c0_429, %c0_430] : memref<18x2x10x3xf32, #tpu.memory_space<vmem>>, vector<1x1x8x3xf32>
    %371 = vector.shape_cast %370 : vector<1x1x8x3xf32> to vector<8x3xf32>
    %cst_431 = arith.constant dense<0.000000e+00> : vector<8x8xf32>
    %372 = tpu.matmul %371, %169, %cst_431 {dimension_numbers = #tpu.dot_dimension_numbers<[1], [0], [0], [1], [0, 0, 1, 1], [], []>} : vector<8x3xf32>, vector<3x8xf32>, vector<8x8xf32> -> vector<8x8xf32>
    %373 = arith.addf %369, %372 : vector<8x8xf32>
    %c9_432 = arith.constant 9 : index
    %c1_433 = arith.constant 1 : index
    %c0_434 = arith.constant 0 : index
    %c0_435 = arith.constant 0 : index
    %374 = vector.load %arg5[%c9_432, %c1_433, %c0_434, %c0_435] : memref<18x2x10x3xf32, #tpu.memory_space<vmem>>, vector<1x1x8x3xf32>
    %375 = vector.shape_cast %374 : vector<1x1x8x3xf32> to vector<8x3xf32>
    %cst_436 = arith.constant dense<0.000000e+00> : vector<8x8xf32>
    %376 = tpu.matmul %375, %171, %cst_436 {dimension_numbers = #tpu.dot_dimension_numbers<[1], [0], [0], [1], [0, 0, 1, 1], [], []>} : vector<8x3xf32>, vector<3x8xf32>, vector<8x8xf32> -> vector<8x8xf32>
    %377 = arith.addf %373, %376 : vector<8x8xf32>
    %c9_437 = arith.constant 9 : index
    %c0_438 = arith.constant 0 : index
    %c1_439 = arith.constant 1 : index
    %c0_440 = arith.constant 0 : index
    %378 = vector.load %arg5[%c9_437, %c0_438, %c1_439, %c0_440] : memref<18x2x10x3xf32, #tpu.memory_space<vmem>>, vector<1x1x8x3xf32>
    %379 = vector.shape_cast %378 : vector<1x1x8x3xf32> to vector<8x3xf32>
    %cst_441 = arith.constant dense<0.000000e+00> : vector<8x8xf32>
    %380 = tpu.matmul %379, %173, %cst_441 {dimension_numbers = #tpu.dot_dimension_numbers<[1], [0], [0], [1], [0, 0, 1, 1], [], []>} : vector<8x3xf32>, vector<3x8xf32>, vector<8x8xf32> -> vector<8x8xf32>
    %381 = arith.addf %377, %380 : vector<8x8xf32>
    %c10_442 = arith.constant 10 : index
    %c0_443 = arith.constant 0 : index
    %c0_444 = arith.constant 0 : index
    %c0_445 = arith.constant 0 : index
    %382 = vector.load %arg5[%c10_442, %c0_443, %c0_444, %c0_445] : memref<18x2x10x3xf32, #tpu.memory_space<vmem>>, vector<1x1x8x3xf32>
    %383 = vector.shape_cast %382 : vector<1x1x8x3xf32> to vector<8x3xf32>
    %cst_446 = arith.constant dense<0.000000e+00> : vector<8x8xf32>
    %384 = tpu.matmul %383, %175, %cst_446 {dimension_numbers = #tpu.dot_dimension_numbers<[1], [0], [0], [1], [0, 0, 1, 1], [], []>} : vector<8x3xf32>, vector<3x8xf32>, vector<8x8xf32> -> vector<8x8xf32>
    %385 = arith.addf %381, %384 : vector<8x8xf32>
    %c10_447 = arith.constant 10 : index
    %c1_448 = arith.constant 1 : index
    %c0_449 = arith.constant 0 : index
    %c0_450 = arith.constant 0 : index
    %386 = vector.load %arg5[%c10_447, %c1_448, %c0_449, %c0_450] : memref<18x2x10x3xf32, #tpu.memory_space<vmem>>, vector<1x1x8x3xf32>
    %387 = vector.shape_cast %386 : vector<1x1x8x3xf32> to vector<8x3xf32>
    %cst_451 = arith.constant dense<0.000000e+00> : vector<8x8xf32>
    %388 = tpu.matmul %387, %177, %cst_451 {dimension_numbers = #tpu.dot_dimension_numbers<[1], [0], [0], [1], [0, 0, 1, 1], [], []>} : vector<8x3xf32>, vector<3x8xf32>, vector<8x8xf32> -> vector<8x8xf32>
    %389 = arith.addf %385, %388 : vector<8x8xf32>
    %c10_452 = arith.constant 10 : index
    %c0_453 = arith.constant 0 : index
    %c1_454 = arith.constant 1 : index
    %c0_455 = arith.constant 0 : index
    %390 = vector.load %arg5[%c10_452, %c0_453, %c1_454, %c0_455] : memref<18x2x10x3xf32, #tpu.memory_space<vmem>>, vector<1x1x8x3xf32>
    %391 = vector.shape_cast %390 : vector<1x1x8x3xf32> to vector<8x3xf32>
    %cst_456 = arith.constant dense<0.000000e+00> : vector<8x8xf32>
    %392 = tpu.matmul %391, %179, %cst_456 {dimension_numbers = #tpu.dot_dimension_numbers<[1], [0], [0], [1], [0, 0, 1, 1], [], []>} : vector<8x3xf32>, vector<3x8xf32>, vector<8x8xf32> -> vector<8x8xf32>
    %393 = arith.addf %389, %392 : vector<8x8xf32>
    %394 = vector.broadcast %180 : vector<1x8xf32> to vector<8x8xf32>
    %395 = arith.addf %393, %394 : vector<8x8xf32>
    %cst_457 = arith.constant 0.000000e+00 : f32
    %396 = vector.broadcast %cst_457 : f32 to vector<8x8xf32>
    %397 = arith.maximumf %395, %396 : vector<8x8xf32>
    %c0_458 = arith.constant 0 : index
    %c32_459 = arith.constant 32 : index
    %c0_460 = arith.constant 0 : index
    %398 = vector.load %arg4[%c0_458, %c32_459, %c0_460] : memref<1x64x8xf32, #tpu.memory_space<vmem>>, vector<1x8x8xf32>
    %399 = vector.shape_cast %398 : vector<1x8x8xf32> to vector<8x8xf32>
    %400 = vector.shape_cast %397 : vector<8x8xf32> to vector<1x8x8xf32>
    tpu.vector_store %arg4[%c0_458, %c32_459, %c0_460], %400 {strides = array<i32>} : memref<1x64x8xf32, #tpu.memory_space<vmem>>, vector<1x8x8xf32>,
    %cst_461 = arith.constant 0.000000e+00 : f32
    %401 = vector.broadcast %cst_461 : f32 to vector<8x8xf32>
    %c10_462 = arith.constant 10 : index
    %c0_463 = arith.constant 0 : index
    %c0_464 = arith.constant 0 : index
    %c0_465 = arith.constant 0 : index
    %402 = vector.load %arg5[%c10_462, %c0_463, %c0_464, %c0_465] : memref<18x2x10x3xf32, #tpu.memory_space<vmem>>, vector<1x1x8x3xf32>
    %403 = vector.shape_cast %402 : vector<1x1x8x3xf32> to vector<8x3xf32>
    %cst_466 = arith.constant dense<0.000000e+00> : vector<8x8xf32>
    %404 = tpu.matmul %403, %163, %cst_466 {dimension_numbers = #tpu.dot_dimension_numbers<[1], [0], [0], [1], [0, 0, 1, 1], [], []>} : vector<8x3xf32>, vector<3x8xf32>, vector<8x8xf32> -> vector<8x8xf32>
    %405 = arith.addf %401, %404 : vector<8x8xf32>
    %c10_467 = arith.constant 10 : index
    %c1_468 = arith.constant 1 : index
    %c0_469 = arith.constant 0 : index
    %c0_470 = arith.constant 0 : index
    %406 = vector.load %arg5[%c10_467, %c1_468, %c0_469, %c0_470] : memref<18x2x10x3xf32, #tpu.memory_space<vmem>>, vector<1x1x8x3xf32>
    %407 = vector.shape_cast %406 : vector<1x1x8x3xf32> to vector<8x3xf32>
    %cst_471 = arith.constant dense<0.000000e+00> : vector<8x8xf32>
    %408 = tpu.matmul %407, %165, %cst_471 {dimension_numbers = #tpu.dot_dimension_numbers<[1], [0], [0], [1], [0, 0, 1, 1], [], []>} : vector<8x3xf32>, vector<3x8xf32>, vector<8x8xf32> -> vector<8x8xf32>
    %409 = arith.addf %405, %408 : vector<8x8xf32>
    %c10_472 = arith.constant 10 : index
    %c0_473 = arith.constant 0 : index
    %c1_474 = arith.constant 1 : index
    %c0_475 = arith.constant 0 : index
    %410 = vector.load %arg5[%c10_472, %c0_473, %c1_474, %c0_475] : memref<18x2x10x3xf32, #tpu.memory_space<vmem>>, vector<1x1x8x3xf32>
    %411 = vector.shape_cast %410 : vector<1x1x8x3xf32> to vector<8x3xf32>
    %cst_476 = arith.constant dense<0.000000e+00> : vector<8x8xf32>
    %412 = tpu.matmul %411, %167, %cst_476 {dimension_numbers = #tpu.dot_dimension_numbers<[1], [0], [0], [1], [0, 0, 1, 1], [], []>} : vector<8x3xf32>, vector<3x8xf32>, vector<8x8xf32> -> vector<8x8xf32>
    %413 = arith.addf %409, %412 : vector<8x8xf32>
    %c11_477 = arith.constant 11 : index
    %c0_478 = arith.constant 0 : index
    %c0_479 = arith.constant 0 : index
    %c0_480 = arith.constant 0 : index
    %414 = vector.load %arg5[%c11_477, %c0_478, %c0_479, %c0_480] : memref<18x2x10x3xf32, #tpu.memory_space<vmem>>, vector<1x1x8x3xf32>
    %415 = vector.shape_cast %414 : vector<1x1x8x3xf32> to vector<8x3xf32>
    %cst_481 = arith.constant dense<0.000000e+00> : vector<8x8xf32>
    %416 = tpu.matmul %415, %169, %cst_481 {dimension_numbers = #tpu.dot_dimension_numbers<[1], [0], [0], [1], [0, 0, 1, 1], [], []>} : vector<8x3xf32>, vector<3x8xf32>, vector<8x8xf32> -> vector<8x8xf32>
    %417 = arith.addf %413, %416 : vector<8x8xf32>
    %c11_482 = arith.constant 11 : index
    %c1_483 = arith.constant 1 : index
    %c0_484 = arith.constant 0 : index
    %c0_485 = arith.constant 0 : index
    %418 = vector.load %arg5[%c11_482, %c1_483, %c0_484, %c0_485] : memref<18x2x10x3xf32, #tpu.memory_space<vmem>>, vector<1x1x8x3xf32>
    %419 = vector.shape_cast %418 : vector<1x1x8x3xf32> to vector<8x3xf32>
    %cst_486 = arith.constant dense<0.000000e+00> : vector<8x8xf32>
    %420 = tpu.matmul %419, %171, %cst_486 {dimension_numbers = #tpu.dot_dimension_numbers<[1], [0], [0], [1], [0, 0, 1, 1], [], []>} : vector<8x3xf32>, vector<3x8xf32>, vector<8x8xf32> -> vector<8x8xf32>
    %421 = arith.addf %417, %420 : vector<8x8xf32>
    %c11_487 = arith.constant 11 : index
    %c0_488 = arith.constant 0 : index
    %c1_489 = arith.constant 1 : index
    %c0_490 = arith.constant 0 : index
    %422 = vector.load %arg5[%c11_487, %c0_488, %c1_489, %c0_490] : memref<18x2x10x3xf32, #tpu.memory_space<vmem>>, vector<1x1x8x3xf32>
    %423 = vector.shape_cast %422 : vector<1x1x8x3xf32> to vector<8x3xf32>
    %cst_491 = arith.constant dense<0.000000e+00> : vector<8x8xf32>
    %424 = tpu.matmul %423, %173, %cst_491 {dimension_numbers = #tpu.dot_dimension_numbers<[1], [0], [0], [1], [0, 0, 1, 1], [], []>} : vector<8x3xf32>, vector<3x8xf32>, vector<8x8xf32> -> vector<8x8xf32>
    %425 = arith.addf %421, %424 : vector<8x8xf32>
    %c12_492 = arith.constant 12 : index
    %c0_493 = arith.constant 0 : index
    %c0_494 = arith.constant 0 : index
    %c0_495 = arith.constant 0 : index
    %426 = vector.load %arg5[%c12_492, %c0_493, %c0_494, %c0_495] : memref<18x2x10x3xf32, #tpu.memory_space<vmem>>, vector<1x1x8x3xf32>
    %427 = vector.shape_cast %426 : vector<1x1x8x3xf32> to vector<8x3xf32>
    %cst_496 = arith.constant dense<0.000000e+00> : vector<8x8xf32>
    %428 = tpu.matmul %427, %175, %cst_496 {dimension_numbers = #tpu.dot_dimension_numbers<[1], [0], [0], [1], [0, 0, 1, 1], [], []>} : vector<8x3xf32>, vector<3x8xf32>, vector<8x8xf32> -> vector<8x8xf32>
    %429 = arith.addf %425, %428 : vector<8x8xf32>
    %c12_497 = arith.constant 12 : index
    %c1_498 = arith.constant 1 : index
    %c0_499 = arith.constant 0 : index
    %c0_500 = arith.constant 0 : index
    %430 = vector.load %arg5[%c12_497, %c1_498, %c0_499, %c0_500] : memref<18x2x10x3xf32, #tpu.memory_space<vmem>>, vector<1x1x8x3xf32>
    %431 = vector.shape_cast %430 : vector<1x1x8x3xf32> to vector<8x3xf32>
    %cst_501 = arith.constant dense<0.000000e+00> : vector<8x8xf32>
    %432 = tpu.matmul %431, %177, %cst_501 {dimension_numbers = #tpu.dot_dimension_numbers<[1], [0], [0], [1], [0, 0, 1, 1], [], []>} : vector<8x3xf32>, vector<3x8xf32>, vector<8x8xf32> -> vector<8x8xf32>
    %433 = arith.addf %429, %432 : vector<8x8xf32>
    %c12_502 = arith.constant 12 : index
    %c0_503 = arith.constant 0 : index
    %c1_504 = arith.constant 1 : index
    %c0_505 = arith.constant 0 : index
    %434 = vector.load %arg5[%c12_502, %c0_503, %c1_504, %c0_505] : memref<18x2x10x3xf32, #tpu.memory_space<vmem>>, vector<1x1x8x3xf32>
    %435 = vector.shape_cast %434 : vector<1x1x8x3xf32> to vector<8x3xf32>
    %cst_506 = arith.constant dense<0.000000e+00> : vector<8x8xf32>
    %436 = tpu.matmul %435, %179, %cst_506 {dimension_numbers = #tpu.dot_dimension_numbers<[1], [0], [0], [1], [0, 0, 1, 1], [], []>} : vector<8x3xf32>, vector<3x8xf32>, vector<8x8xf32> -> vector<8x8xf32>
    %437 = arith.addf %433, %436 : vector<8x8xf32>
    %438 = vector.broadcast %180 : vector<1x8xf32> to vector<8x8xf32>
    %439 = arith.addf %437, %438 : vector<8x8xf32>
    %cst_507 = arith.constant 0.000000e+00 : f32
    %440 = vector.broadcast %cst_507 : f32 to vector<8x8xf32>
    %441 = arith.maximumf %439, %440 : vector<8x8xf32>
    %c0_508 = arith.constant 0 : index
    %c40_509 = arith.constant 40 : index
    %c0_510 = arith.constant 0 : index
    %442 = vector.load %arg4[%c0_508, %c40_509, %c0_510] : memref<1x64x8xf32, #tpu.memory_space<vmem>>, vector<1x8x8xf32>
    %443 = vector.shape_cast %442 : vector<1x8x8xf32> to vector<8x8xf32>
    %444 = vector.shape_cast %441 : vector<8x8xf32> to vector<1x8x8xf32>
    tpu.vector_store %arg4[%c0_508, %c40_509, %c0_510], %444 {strides = array<i32>} : memref<1x64x8xf32, #tpu.memory_space<vmem>>, vector<1x8x8xf32>,
    %cst_511 = arith.constant 0.000000e+00 : f32
    %445 = vector.broadcast %cst_511 : f32 to vector<8x8xf32>
    %c12_512 = arith.constant 12 : index
    %c0_513 = arith.constant 0 : index
    %c0_514 = arith.constant 0 : index
    %c0_515 = arith.constant 0 : index
    %446 = vector.load %arg5[%c12_512, %c0_513, %c0_514, %c0_515] : memref<18x2x10x3xf32, #tpu.memory_space<vmem>>, vector<1x1x8x3xf32>
    %447 = vector.shape_cast %446 : vector<1x1x8x3xf32> to vector<8x3xf32>
    %cst_516 = arith.constant dense<0.000000e+00> : vector<8x8xf32>
    %448 = tpu.matmul %447, %163, %cst_516 {dimension_numbers = #tpu.dot_dimension_numbers<[1], [0], [0], [1], [0, 0, 1, 1], [], []>} : vector<8x3xf32>, vector<3x8xf32>, vector<8x8xf32> -> vector<8x8xf32>
    %449 = arith.addf %445, %448 : vector<8x8xf32>
    %c12_517 = arith.constant 12 : index
    %c1_518 = arith.constant 1 : index
    %c0_519 = arith.constant 0 : index
    %c0_520 = arith.constant 0 : index
    %450 = vector.load %arg5[%c12_517, %c1_518, %c0_519, %c0_520] : memref<18x2x10x3xf32, #tpu.memory_space<vmem>>, vector<1x1x8x3xf32>
    %451 = vector.shape_cast %450 : vector<1x1x8x3xf32> to vector<8x3xf32>
    %cst_521 = arith.constant dense<0.000000e+00> : vector<8x8xf32>
    %452 = tpu.matmul %451, %165, %cst_521 {dimension_numbers = #tpu.dot_dimension_numbers<[1], [0], [0], [1], [0, 0, 1, 1], [], []>} : vector<8x3xf32>, vector<3x8xf32>, vector<8x8xf32> -> vector<8x8xf32>
    %453 = arith.addf %449, %452 : vector<8x8xf32>
    %c12_522 = arith.constant 12 : index
    %c0_523 = arith.constant 0 : index
    %c1_524 = arith.constant 1 : index
    %c0_525 = arith.constant 0 : index
    %454 = vector.load %arg5[%c12_522, %c0_523, %c1_524, %c0_525] : memref<18x2x10x3xf32, #tpu.memory_space<vmem>>, vector<1x1x8x3xf32>
    %455 = vector.shape_cast %454 : vector<1x1x8x3xf32> to vector<8x3xf32>
    %cst_526 = arith.constant dense<0.000000e+00> : vector<8x8xf32>
    %456 = tpu.matmul %455, %167, %cst_526 {dimension_numbers = #tpu.dot_dimension_numbers<[1], [0], [0], [1], [0, 0, 1, 1], [], []>} : vector<8x3xf32>, vector<3x8xf32>, vector<8x8xf32> -> vector<8x8xf32>
    %457 = arith.addf %453, %456 : vector<8x8xf32>
    %c13_527 = arith.constant 13 : index
    %c0_528 = arith.constant 0 : index
    %c0_529 = arith.constant 0 : index
    %c0_530 = arith.constant 0 : index
    %458 = vector.load %arg5[%c13_527, %c0_528, %c0_529, %c0_530] : memref<18x2x10x3xf32, #tpu.memory_space<vmem>>, vector<1x1x8x3xf32>
    %459 = vector.shape_cast %458 : vector<1x1x8x3xf32> to vector<8x3xf32>
    %cst_531 = arith.constant dense<0.000000e+00> : vector<8x8xf32>
    %460 = tpu.matmul %459, %169, %cst_531 {dimension_numbers = #tpu.dot_dimension_numbers<[1], [0], [0], [1], [0, 0, 1, 1], [], []>} : vector<8x3xf32>, vector<3x8xf32>, vector<8x8xf32> -> vector<8x8xf32>
    %461 = arith.addf %457, %460 : vector<8x8xf32>
    %c13_532 = arith.constant 13 : index
    %c1_533 = arith.constant 1 : index
    %c0_534 = arith.constant 0 : index
    %c0_535 = arith.constant 0 : index
    %462 = vector.load %arg5[%c13_532, %c1_533, %c0_534, %c0_535] : memref<18x2x10x3xf32, #tpu.memory_space<vmem>>, vector<1x1x8x3xf32>
    %463 = vector.shape_cast %462 : vector<1x1x8x3xf32> to vector<8x3xf32>
    %cst_536 = arith.constant dense<0.000000e+00> : vector<8x8xf32>
    %464 = tpu.matmul %463, %171, %cst_536 {dimension_numbers = #tpu.dot_dimension_numbers<[1], [0], [0], [1], [0, 0, 1, 1], [], []>} : vector<8x3xf32>, vector<3x8xf32>, vector<8x8xf32> -> vector<8x8xf32>
    %465 = arith.addf %461, %464 : vector<8x8xf32>
    %c13_537 = arith.constant 13 : index
    %c0_538 = arith.constant 0 : index
    %c1_539 = arith.constant 1 : index
    %c0_540 = arith.constant 0 : index
    %466 = vector.load %arg5[%c13_537, %c0_538, %c1_539, %c0_540] : memref<18x2x10x3xf32, #tpu.memory_space<vmem>>, vector<1x1x8x3xf32>
    %467 = vector.shape_cast %466 : vector<1x1x8x3xf32> to vector<8x3xf32>
    %cst_541 = arith.constant dense<0.000000e+00> : vector<8x8xf32>
    %468 = tpu.matmul %467, %173, %cst_541 {dimension_numbers = #tpu.dot_dimension_numbers<[1], [0], [0], [1], [0, 0, 1, 1], [], []>} : vector<8x3xf32>, vector<3x8xf32>, vector<8x8xf32> -> vector<8x8xf32>
    %469 = arith.addf %465, %468 : vector<8x8xf32>
    %c14_542 = arith.constant 14 : index
    %c0_543 = arith.constant 0 : index
    %c0_544 = arith.constant 0 : index
    %c0_545 = arith.constant 0 : index
    %470 = vector.load %arg5[%c14_542, %c0_543, %c0_544, %c0_545] : memref<18x2x10x3xf32, #tpu.memory_space<vmem>>, vector<1x1x8x3xf32>
    %471 = vector.shape_cast %470 : vector<1x1x8x3xf32> to vector<8x3xf32>
    %cst_546 = arith.constant dense<0.000000e+00> : vector<8x8xf32>
    %472 = tpu.matmul %471, %175, %cst_546 {dimension_numbers = #tpu.dot_dimension_numbers<[1], [0], [0], [1], [0, 0, 1, 1], [], []>} : vector<8x3xf32>, vector<3x8xf32>, vector<8x8xf32> -> vector<8x8xf32>
    %473 = arith.addf %469, %472 : vector<8x8xf32>
    %c14_547 = arith.constant 14 : index
    %c1_548 = arith.constant 1 : index
    %c0_549 = arith.constant 0 : index
    %c0_550 = arith.constant 0 : index
    %474 = vector.load %arg5[%c14_547, %c1_548, %c0_549, %c0_550] : memref<18x2x10x3xf32, #tpu.memory_space<vmem>>, vector<1x1x8x3xf32>
    %475 = vector.shape_cast %474 : vector<1x1x8x3xf32> to vector<8x3xf32>
    %cst_551 = arith.constant dense<0.000000e+00> : vector<8x8xf32>
    %476 = tpu.matmul %475, %177, %cst_551 {dimension_numbers = #tpu.dot_dimension_numbers<[1], [0], [0], [1], [0, 0, 1, 1], [], []>} : vector<8x3xf32>, vector<3x8xf32>, vector<8x8xf32> -> vector<8x8xf32>
    %477 = arith.addf %473, %476 : vector<8x8xf32>
    %c14_552 = arith.constant 14 : index
    %c0_553 = arith.constant 0 : index
    %c1_554 = arith.constant 1 : index
    %c0_555 = arith.constant 0 : index
    %478 = vector.load %arg5[%c14_552, %c0_553, %c1_554, %c0_555] : memref<18x2x10x3xf32, #tpu.memory_space<vmem>>, vector<1x1x8x3xf32>
    %479 = vector.shape_cast %478 : vector<1x1x8x3xf32> to vector<8x3xf32>
    %cst_556 = arith.constant dense<0.000000e+00> : vector<8x8xf32>
    %480 = tpu.matmul %479, %179, %cst_556 {dimension_numbers = #tpu.dot_dimension_numbers<[1], [0], [0], [1], [0, 0, 1, 1], [], []>} : vector<8x3xf32>, vector<3x8xf32>, vector<8x8xf32> -> vector<8x8xf32>
    %481 = arith.addf %477, %480 : vector<8x8xf32>
    %482 = vector.broadcast %180 : vector<1x8xf32> to vector<8x8xf32>
    %483 = arith.addf %481, %482 : vector<8x8xf32>
    %cst_557 = arith.constant 0.000000e+00 : f32
    %484 = vector.broadcast %cst_557 : f32 to vector<8x8xf32>
    %485 = arith.maximumf %483, %484 : vector<8x8xf32>
    %c0_558 = arith.constant 0 : index
    %c48_559 = arith.constant 48 : index
    %c0_560 = arith.constant 0 : index
    %486 = vector.load %arg4[%c0_558, %c48_559, %c0_560] : memref<1x64x8xf32, #tpu.memory_space<vmem>>, vector<1x8x8xf32>
    %487 = vector.shape_cast %486 : vector<1x8x8xf32> to vector<8x8xf32>
    %488 = vector.shape_cast %485 : vector<8x8xf32> to vector<1x8x8xf32>
    tpu.vector_store %arg4[%c0_558, %c48_559, %c0_560], %488 {strides = array<i32>} : memref<1x64x8xf32, #tpu.memory_space<vmem>>, vector<1x8x8xf32>,
    %cst_561 = arith.constant 0.000000e+00 : f32
    %489 = vector.broadcast %cst_561 : f32 to vector<8x8xf32>
    %c14_562 = arith.constant 14 : index
    %c0_563 = arith.constant 0 : index
    %c0_564 = arith.constant 0 : index
    %c0_565 = arith.constant 0 : index
    %490 = vector.load %arg5[%c14_562, %c0_563, %c0_564, %c0_565] : memref<18x2x10x3xf32, #tpu.memory_space<vmem>>, vector<1x1x8x3xf32>
    %491 = vector.shape_cast %490 : vector<1x1x8x3xf32> to vector<8x3xf32>
    %cst_566 = arith.constant dense<0.000000e+00> : vector<8x8xf32>
    %492 = tpu.matmul %491, %163, %cst_566 {dimension_numbers = #tpu.dot_dimension_numbers<[1], [0], [0], [1], [0, 0, 1, 1], [], []>} : vector<8x3xf32>, vector<3x8xf32>, vector<8x8xf32> -> vector<8x8xf32>
    %493 = arith.addf %489, %492 : vector<8x8xf32>
    %c14_567 = arith.constant 14 : index
    %c1_568 = arith.constant 1 : index
    %c0_569 = arith.constant 0 : index
    %c0_570 = arith.constant 0 : index
    %494 = vector.load %arg5[%c14_567, %c1_568, %c0_569, %c0_570] : memref<18x2x10x3xf32, #tpu.memory_space<vmem>>, vector<1x1x8x3xf32>
    %495 = vector.shape_cast %494 : vector<1x1x8x3xf32> to vector<8x3xf32>
    %cst_571 = arith.constant dense<0.000000e+00> : vector<8x8xf32>
    %496 = tpu.matmul %495, %165, %cst_571 {dimension_numbers = #tpu.dot_dimension_numbers<[1], [0], [0], [1], [0, 0, 1, 1], [], []>} : vector<8x3xf32>, vector<3x8xf32>, vector<8x8xf32> -> vector<8x8xf32>
    %497 = arith.addf %493, %496 : vector<8x8xf32>
    %c14_572 = arith.constant 14 : index
    %c0_573 = arith.constant 0 : index
    %c1_574 = arith.constant 1 : index
    %c0_575 = arith.constant 0 : index
    %498 = vector.load %arg5[%c14_572, %c0_573, %c1_574, %c0_575] : memref<18x2x10x3xf32, #tpu.memory_space<vmem>>, vector<1x1x8x3xf32>
    %499 = vector.shape_cast %498 : vector<1x1x8x3xf32> to vector<8x3xf32>
    %cst_576 = arith.constant dense<0.000000e+00> : vector<8x8xf32>
    %500 = tpu.matmul %499, %167, %cst_576 {dimension_numbers = #tpu.dot_dimension_numbers<[1], [0], [0], [1], [0, 0, 1, 1], [], []>} : vector<8x3xf32>, vector<3x8xf32>, vector<8x8xf32> -> vector<8x8xf32>
    %501 = arith.addf %497, %500 : vector<8x8xf32>
    %c15_577 = arith.constant 15 : index
    %c0_578 = arith.constant 0 : index
    %c0_579 = arith.constant 0 : index
    %c0_580 = arith.constant 0 : index
    %502 = vector.load %arg5[%c15_577, %c0_578, %c0_579, %c0_580] : memref<18x2x10x3xf32, #tpu.memory_space<vmem>>, vector<1x1x8x3xf32>
    %503 = vector.shape_cast %502 : vector<1x1x8x3xf32> to vector<8x3xf32>
    %cst_581 = arith.constant dense<0.000000e+00> : vector<8x8xf32>
    %504 = tpu.matmul %503, %169, %cst_581 {dimension_numbers = #tpu.dot_dimension_numbers<[1], [0], [0], [1], [0, 0, 1, 1], [], []>} : vector<8x3xf32>, vector<3x8xf32>, vector<8x8xf32> -> vector<8x8xf32>
    %505 = arith.addf %501, %504 : vector<8x8xf32>
    %c15_582 = arith.constant 15 : index
    %c1_583 = arith.constant 1 : index
    %c0_584 = arith.constant 0 : index
    %c0_585 = arith.constant 0 : index
    %506 = vector.load %arg5[%c15_582, %c1_583, %c0_584, %c0_585] : memref<18x2x10x3xf32, #tpu.memory_space<vmem>>, vector<1x1x8x3xf32>
    %507 = vector.shape_cast %506 : vector<1x1x8x3xf32> to vector<8x3xf32>
    %cst_586 = arith.constant dense<0.000000e+00> : vector<8x8xf32>
    %508 = tpu.matmul %507, %171, %cst_586 {dimension_numbers = #tpu.dot_dimension_numbers<[1], [0], [0], [1], [0, 0, 1, 1], [], []>} : vector<8x3xf32>, vector<3x8xf32>, vector<8x8xf32> -> vector<8x8xf32>
    %509 = arith.addf %505, %508 : vector<8x8xf32>
    %c15_587 = arith.constant 15 : index
    %c0_588 = arith.constant 0 : index
    %c1_589 = arith.constant 1 : index
    %c0_590 = arith.constant 0 : index
    %510 = vector.load %arg5[%c15_587, %c0_588, %c1_589, %c0_590] : memref<18x2x10x3xf32, #tpu.memory_space<vmem>>, vector<1x1x8x3xf32>
    %511 = vector.shape_cast %510 : vector<1x1x8x3xf32> to vector<8x3xf32>
    %cst_591 = arith.constant dense<0.000000e+00> : vector<8x8xf32>
    %512 = tpu.matmul %511, %173, %cst_591 {dimension_numbers = #tpu.dot_dimension_numbers<[1], [0], [0], [1], [0, 0, 1, 1], [], []>} : vector<8x3xf32>, vector<3x8xf32>, vector<8x8xf32> -> vector<8x8xf32>
    %513 = arith.addf %509, %512 : vector<8x8xf32>
    %c16_592 = arith.constant 16 : index
    %c0_593 = arith.constant 0 : index
    %c0_594 = arith.constant 0 : index
    %c0_595 = arith.constant 0 : index
    %514 = vector.load %arg5[%c16_592, %c0_593, %c0_594, %c0_595] : memref<18x2x10x3xf32, #tpu.memory_space<vmem>>, vector<1x1x8x3xf32>
    %515 = vector.shape_cast %514 : vector<1x1x8x3xf32> to vector<8x3xf32>
    %cst_596 = arith.constant dense<0.000000e+00> : vector<8x8xf32>
    %516 = tpu.matmul %515, %175, %cst_596 {dimension_numbers = #tpu.dot_dimension_numbers<[1], [0], [0], [1], [0, 0, 1, 1], [], []>} : vector<8x3xf32>, vector<3x8xf32>, vector<8x8xf32> -> vector<8x8xf32>
    %517 = arith.addf %513, %516 : vector<8x8xf32>
    %c16_597 = arith.constant 16 : index
    %c1_598 = arith.constant 1 : index
    %c0_599 = arith.constant 0 : index
    %c0_600 = arith.constant 0 : index
    %518 = vector.load %arg5[%c16_597, %c1_598, %c0_599, %c0_600] : memref<18x2x10x3xf32, #tpu.memory_space<vmem>>, vector<1x1x8x3xf32>
    %519 = vector.shape_cast %518 : vector<1x1x8x3xf32> to vector<8x3xf32>
    %cst_601 = arith.constant dense<0.000000e+00> : vector<8x8xf32>
    %520 = tpu.matmul %519, %177, %cst_601 {dimension_numbers = #tpu.dot_dimension_numbers<[1], [0], [0], [1], [0, 0, 1, 1], [], []>} : vector<8x3xf32>, vector<3x8xf32>, vector<8x8xf32> -> vector<8x8xf32>
    %521 = arith.addf %517, %520 : vector<8x8xf32>
    %c16_602 = arith.constant 16 : index
    %c0_603 = arith.constant 0 : index
    %c1_604 = arith.constant 1 : index
    %c0_605 = arith.constant 0 : index
    %522 = vector.load %arg5[%c16_602, %c0_603, %c1_604, %c0_605] : memref<18x2x10x3xf32, #tpu.memory_space<vmem>>, vector<1x1x8x3xf32>
    %523 = vector.shape_cast %522 : vector<1x1x8x3xf32> to vector<8x3xf32>
    %cst_606 = arith.constant dense<0.000000e+00> : vector<8x8xf32>
    %524 = tpu.matmul %523, %179, %cst_606 {dimension_numbers = #tpu.dot_dimension_numbers<[1], [0], [0], [1], [0, 0, 1, 1], [], []>} : vector<8x3xf32>, vector<3x8xf32>, vector<8x8xf32> -> vector<8x8xf32>
    %525 = arith.addf %521, %524 : vector<8x8xf32>
    %526 = vector.broadcast %180 : vector<1x8xf32> to vector<8x8xf32>
    %527 = arith.addf %525, %526 : vector<8x8xf32>
    %cst_607 = arith.constant 0.000000e+00 : f32
    %528 = vector.broadcast %cst_607 : f32 to vector<8x8xf32>
    %529 = arith.maximumf %527, %528 : vector<8x8xf32>
    %c0_608 = arith.constant 0 : index
    %c56_609 = arith.constant 56 : index
    %c0_610 = arith.constant 0 : index
    %530 = vector.load %arg4[%c0_608, %c56_609, %c0_610] : memref<1x64x8xf32, #tpu.memory_space<vmem>>, vector<1x8x8xf32>
    %531 = vector.shape_cast %530 : vector<1x8x8xf32> to vector<8x8xf32>
    %532 = vector.shape_cast %529 : vector<8x8xf32> to vector<1x8x8xf32>
    tpu.vector_store %arg4[%c0_608, %c56_609, %c0_610], %532 {strides = array<i32>} : memref<1x64x8xf32, #tpu.memory_space<vmem>>, vector<1x8x8xf32>,
    return
  }
  func.func @transform_0(%arg0: i32) -> (i32, i32, i32) {
    %c0_i32 = arith.constant 0 : i32
    %c0_i32_0 = arith.constant 0 : i32
    %c0_i32_1 = arith.constant 0 : i32
    return %arg0, %c0_i32, %c0_i32_0 : i32, i32, i32
  }
  func.func @transform_1(%arg0: i32) -> (i32, i32, i32) {
    %c0_i32 = arith.constant 0 : i32
    %c0_i32_0 = arith.constant 0 : i32
    %c0_i32_1 = arith.constant 0 : i32
    %c0_i32_2 = arith.constant 0 : i32
    return %c0_i32, %c0_i32_0, %c0_i32_1 : i32, i32, i32
  }
  func.func @transform_2(%arg0: i32) -> (i32, i32) {
    %c0_i32 = arith.constant 0 : i32
    %c0_i32_0 = arith.constant 0 : i32
    %c0_i32_1 = arith.constant 0 : i32
    return %c0_i32, %c0_i32_0 : i32, i32
  }
  func.func @transform_3(%arg0: i32) -> (i32, i32, i32) {
    %c0_i32 = arith.constant 0 : i32
    %c0_i32_0 = arith.constant 0 : i32
    %c0_i32_1 = arith.constant 0 : i32
    return %arg0, %c0_i32, %c0_i32_0 : i32, i32, i32
  }
}

</mosaic_0001>

<llo_original>
// kernel: tpu_custom_call.1
$region0: #{tpu_custom_call.1}
  #allocation0 [shape = 'u32[]', space=smem, size = 0x4, offset = 0x4, fixed_abs, tag = 'smem constant byte address 0x4 - core index']
  #allocation1 [shape = 'u32[144,128]{1,0:T(1,128)}', space=vmem, size = 0x12000, scoped, tag = 'internal scratch']
  #allocation2 [shape = 'f32[18,2,10,3]{3,2,1,0:T(8,128)}', space=vmem, size = 0x48000, scoped, tag = 'scratch operand']
  %s0 = inlined_call_operand.vmem [shape: f32[2,256,3], index: 0, kind: input, shape index: {}]
  %s1 = inlined_call_operand.vmem [shape: f32[9,3,8], index: 1, kind: input, shape index: {}]
  %s2 = inlined_call_operand.vmem [shape: f32[1,8], index: 2, kind: input, shape index: {}]
  %s3 = inlined_call_operand.vmem [shape: f32[2,64,8], index: 3, kind: output, shape index: {}]
  %s4 = sld [smem:[#allocation0]]
  $region45: #{tpu_custom_call.1} parent=0
    _
  %s6 = ssub.s32 1, %s4
  %s7 = scalar_select 0, %s6, %s4
  loop: start=0, step=1, limit=4
  $region2: #{tpu_custom_call.1} parent=0 // loop_pre_header
    _
  $region3: #{tpu_custom_call.1} parent=0 // loop_header
    %s9 = sphi 0, %s13
    %p10 = scmp.ge.s32.totalorder %s9, 4
    %s19 = sphi 0, %s21
    %s22 = sphi 0, %s19
    %s23 = sphi 0, %s22
    %s39 = sphi 0, %s23
    %s43 = sphi 0, %s43
    %s45 = sphi 0, %s43
    %s46 = sphi 0, %s45
    %s60 = sphi 0, %s46
    %s64 = sphi 0, %s64
    %s66 = sphi 0, %s64
    %s67 = sphi 0, %s66
    %s81 = sphi 0, %s67
    %s87 = sphi 0, %s89
    %s90 = sphi 0, %s87
    %s91 = sphi 0, %s90
    %s107 = sphi 0, %s91
  $region4: #{tpu_custom_call.1} parent=0 // loop_header_branch
    %12 = sbr.rel (%p10) target = $region8
  $region5: #{tpu_custom_call.1} parent=0 // loop_body
    %s14 = ssub.s32 %s9, 1
    %s15 = ssub.s32 %s9, 2
    %s16 = sadd.s32 %s9, 1
    %s17 = ssub.s32 %s9, %s16
    %p18 = scmp.eq.s32.totalorder %s17, 0
    %s20 = sadd.s32 %s19, 1
    %s21 = scalar_select %p18, %s19, %s20
    %p24 = pneg %p18
    %p25 = scmp.eq.s32.totalorder %s9, 1
    %p26 = por %p24, %p25
    %p27 = scmp.ne.s32.totalorder %s19, %s22
    %p28 = scmp.eq.s32.totalorder %s9, 0
    %p29 = por %p27, %p28
    %p30 = scmp.ne.s32.totalorder %s19, %s22
    %p31 = scmp.eq.s32.totalorder %s14, 1
    %p32 = por %p30, %p31
    %p33 = scmp.ne.s32.totalorder %s22, %s23
    %p34 = scmp.eq.s32.totalorder %s14, 0
    %p35 = por %p33, %p34
    %p36 = scmp.ne.s32.totalorder %s22, %s23
    %p37 = scmp.eq.s32.totalorder %s15, 1
    %p38 = por %p36, %p37
    %p40 = scmp.ne.s32.totalorder %s23, %s39
    %p41 = scmp.eq.s32.totalorder %s15, 0
    %p42 = por %p40, %p41
    %s44 = sadd.s32 %s43, 1
    %p47 = scmp.eq.s32.totalorder %s9, 1
    %p48 = scmp.ne.s32.totalorder %s43, %s45
    %p49 = scmp.eq.s32.totalorder %s9, 0
    %p50 = por %p48, %p49
    %p51 = scmp.ne.s32.totalorder %s43, %s45
    %p52 = scmp.eq.s32.totalorder %s14, 1
    %p53 = por %p51, %p52
    %p54 = scmp.ne.s32.totalorder %s45, %s46
    %p55 = scmp.eq.s32.totalorder %s14, 0
    %p56 = por %p54, %p55
    %p57 = scmp.ne.s32.totalorder %s45, %s46
    %p58 = scmp.eq.s32.totalorder %s15, 1
    %p59 = por %p57, %p58
    %p61 = scmp.ne.s32.totalorder %s46, %s60
    %p62 = scmp.eq.s32.totalorder %s15, 0
    %p63 = por %p61, %p62
    %s65 = sadd.s32 %s64, 1
    %p68 = scmp.eq.s32.totalorder %s9, 1
    %p69 = scmp.ne.s32.totalorder %s64, %s66
    %p70 = scmp.eq.s32.totalorder %s9, 0
    %p71 = por %p69, %p70
    %p72 = scmp.ne.s32.totalorder %s64, %s66
    %p73 = scmp.eq.s32.totalorder %s14, 1
    %p74 = por %p72, %p73
    %p75 = scmp.ne.s32.totalorder %s66, %s67
    %p76 = scmp.eq.s32.totalorder %s14, 0
    %p77 = por %p75, %p76
    %p78 = scmp.ne.s32.totalorder %s66, %s67
    %p79 = scmp.eq.s32.totalorder %s15, 1
    %p80 = por %p78, %p79
    %p82 = scmp.ne.s32.totalorder %s67, %s81
    %p83 = scmp.eq.s32.totalorder %s15, 0
    %p84 = por %p82, %p83
    %s85 = ssub.s32 %s9, %s16
    %p86 = scmp.eq.s32.totalorder %s85, 0
    %s88 = sadd.s32 %s87, 1
    %s89 = scalar_select %p86, %s87, %s88
    %p92 = pneg %p86
    %p93 = scmp.eq.s32.totalorder %s9, 1
    %p94 = por %p92, %p93
    %p95 = scmp.ne.s32.totalorder %s87, %s90
    %p96 = scmp.eq.s32.totalorder %s9, 0
    %p97 = por %p95, %p96
    %p98 = scmp.ne.s32.totalorder %s87, %s90
    %p99 = scmp.eq.s32.totalorder %s14, 1
    %p100 = por %p98, %p99
    %p101 = scmp.ne.s32.totalorder %s90, %s91
    %p102 = scmp.eq.s32.totalorder %s14, 0
    %p103 = por %p101, %p102
    %p104 = scmp.ne.s32.totalorder %s90, %s91
    %p105 = scmp.eq.s32.totalorder %s15, 1
    %p106 = por %p104, %p105
    %p108 = scmp.ne.s32.totalorder %s91, %s107
    %p109 = scmp.eq.s32.totalorder %s15, 0
    %p110 = por %p108, %p109
    %p111 = scmp.le.s32.totalorder 1, %s9
    %p112 = scmp.lt.s32.totalorder %s9, 3
    %p113 = pnand %p111, %p112
    %p114 = pneg %p113
    // Predicated region
    $region9: #{tpu_custom_call.1} parent=5 // pred_check
      _
    $region10: #{tpu_custom_call.1} parent=5 // pred_check_branch
      %116 = sbr.rel (%p113) target = $region12
    $region11: #{tpu_custom_call.1} parent=5 // pred_region
      %s117 = ssub.s32 %s9, 1
      // Predicated region
      $region13: #{tpu_custom_call.1} parent=11 // pred_check
        %p118 = pneg %p56
      $region14: #{tpu_custom_call.1} parent=11 // pred_check_branch
        %120 = sbr.rel (%p118) target = $region16
      $region15: #{tpu_custom_call.1} parent=11 // pred_region
        _
      $region16: #{tpu_custom_call.1} parent=11 // pred_fallthru
        _
      // Predicated region
      $region17: #{tpu_custom_call.1} parent=11 // pred_check
        %p121 = pneg %p77
      $region18: #{tpu_custom_call.1} parent=11 // pred_check_branch
        %123 = sbr.rel (%p121) target = $region20
      $region19: #{tpu_custom_call.1} parent=11 // pred_region
        _
      $region20: #{tpu_custom_call.1} parent=11 // pred_fallthru
        _
    $region12: #{tpu_custom_call.1} parent=5 // pred_fallthru
      _
    %p124 = scmp.lt.s32.totalorder %s9, 2
    // Predicated region
    $region21: #{tpu_custom_call.1} parent=5 // pred_check
      %p125 = pneg %p124
    $region22: #{tpu_custom_call.1} parent=5 // pred_check_branch
      %127 = sbr.rel (%p125) target = $region24
    $region23: #{tpu_custom_call.1} parent=5 // pred_region
      // Predicated region
      $region25: #{tpu_custom_call.1} parent=23 // pred_check
        %p128 = pneg %p29
      $region26: #{tpu_custom_call.1} parent=23 // pred_check_branch
        %130 = sbr.rel (%p128) target = $region28
      $region27: #{tpu_custom_call.1} parent=23 // pred_region
        %p131 = scmp.lt.s32.totalorder %s9, 1
        %s132 = scalar_select %p131, %s9, 1
        %s133 = smul.addr %s132, 32
        %s134 = smul.addr %s133, 8
        %s135 = scalar_lea.vmem %s0, %s134
      $region28: #{tpu_custom_call.1} parent=23 // pred_fallthru
        _
    $region24: #{tpu_custom_call.1} parent=5 // pred_fallthru
      _
    %p136 = scmp.le.s32.totalorder 1, %s9
    %p137 = scmp.lt.s32.totalorder %s9, 3
    %p138 = pnand %p136, %p137
    %p139 = pneg %p138
    // Predicated region
    $region29: #{tpu_custom_call.1} parent=5 // pred_check
      _
    $region30: #{tpu_custom_call.1} parent=5 // pred_check_branch
      %141 = sbr.rel (%p138) target = $region32
    $region31: #{tpu_custom_call.1} parent=5 // pred_region
      %s142 = ssub.s32 %s9, 1
      %p143 = scmp.lt.s32.totalorder %s14, 1
      %s144 = scalar_select %p143, %s14, 1
      %s145 = smul.addr %s144, 32
      %s146 = smul.addr %s145, 8
      %s147 = scalar_lea.vmem %s0, %s146
      %p148 = pneg %p35
      %p149 = pneg %p32
      %p150 = pneg %p56
      %p151 = pneg %p53
      %p152 = pneg %p77
      %p153 = pneg %p74
      %p154 = pneg %p103
      %p155 = pneg %p100
      %p156 = scmp.lt.s32.totalorder %s14, 1
      %s157 = scalar_select %p156, %s14, 1
      %s158 = smul.addr %s157, 8
      %s159 = smul.addr %s158, 8
      %s160 = scalar_lea.vmem %s3, %s159
      %p161 = scmp.lt.s32.totalorder %s14, 1
      %s162 = scalar_select %p161, %s14, 1
      %s163 = smul.addr %s162, 32
      %s164 = smul.addr %s163, 8
      %s165 = scalar_lea.vmem %s0, %s164
      %p166 = scmp.lt.s32.totalorder %s14, 1
      %s167 = scalar_select %p166, %s14, 1
      %s168 = smul.addr %s167, 8
      %s169 = smul.addr %s168, 8
      %s170 = scalar_lea.vmem %s3, %s169
      %vm171 = vcmask 23552
      %172 = vst.msk [vmem:[#allocation2] sm:$0xff] %vm171, 0.0
      %vm173 = vcmask 17408
      %174 = vst.msk [vmem:[#allocation2 + $0x8] sm:$0x3] %vm173, 0.0
      %175 = vst.msk [vmem:[#allocation2 + $0x10] sm:$0xff] %vm171, 0.0
      %176 = vst.msk [vmem:[#allocation2 + $0x18] sm:$0x3] %vm173, 0.0
      %177 = vst.msk [vmem:[#allocation2 + $0x20] sm:$0xff] %vm171, 0.0
      %178 = vst.msk [vmem:[#allocation2 + $0x28] sm:$0x3] %vm173, 0.0
      %179 = vst.msk [vmem:[#allocation2 + $0x30] sm:$0xff] %vm171, 0.0
      %180 = vst.msk [vmem:[#allocation2 + $0x38] sm:$0x3] %vm173, 0.0
      %181 = vst.msk [vmem:[#allocation2 + $0x40] sm:$0xff] %vm171, 0.0
      %182 = vst.msk [vmem:[#allocation2 + $0x48] sm:$0x3] %vm173, 0.0
      %183 = vst.msk [vmem:[#allocation2 + $0x50] sm:$0xff] %vm171, 0.0
      %184 = vst.msk [vmem:[#allocation2 + $0x58] sm:$0x3] %vm173, 0.0
      %185 = vst.msk [vmem:[#allocation2 + $0x60] sm:$0xff] %vm171, 0.0
      %186 = vst.msk [vmem:[#allocation2 + $0x68] sm:$0x3] %vm173, 0.0
      %187 = vst.msk [vmem:[#allocation2 + $0x70] sm:$0xff] %vm171, 0.0
      %188 = vst.msk [vmem:[#allocation2 + $0x78] sm:$0x3] %vm173, 0.0
      %189 = vst.msk [vmem:[#allocation2 + $0x80] sm:$0xff] %vm171, 0.0
      %190 = vst.msk [vmem:[#allocation2 + $0x88] sm:$0x3] %vm173, 0.0
      %191 = vst.msk [vmem:[#allocation2 + $0x90] sm:$0xff] %vm171, 0.0
      %192 = vst.msk [vmem:[#allocation2 + $0x98] sm:$0x3] %vm173, 0.0
      %193 = vst.msk [vmem:[#allocation2 + $0xa0] sm:$0xff] %vm171, 0.0
      %194 = vst.msk [vmem:[#allocation2 + $0xa8] sm:$0x3] %vm173, 0.0
      %195 = vst.msk [vmem:[#allocation2 + $0xb0] sm:$0xff] %vm171, 0.0
      %196 = vst.msk [vmem:[#allocation2 + $0xb8] sm:$0x3] %vm173, 0.0
      %197 = vst.msk [vmem:[#allocation2 + $0xc0] sm:$0xff] %vm171, 0.0
      %198 = vst.msk [vmem:[#allocation2 + $0xc8] sm:$0x3] %vm173, 0.0
      %199 = vst.msk [vmem:[#allocation2 + $0xd0] sm:$0xff] %vm171, 0.0
      %200 = vst.msk [vmem:[#allocation2 + $0xd8] sm:$0x3] %vm173, 0.0
      %201 = vst.msk [vmem:[#allocation2 + $0xe0] sm:$0xff] %vm171, 0.0
      %202 = vst.msk [vmem:[#allocation2 + $0xe8] sm:$0x3] %vm173, 0.0
      %203 = vst.msk [vmem:[#allocation2 + $0xf0] sm:$0xff] %vm171, 0.0
      %204 = vst.msk [vmem:[#allocation2 + $0xf8] sm:$0x3] %vm173, 0.0
      %205 = vst.msk [vmem:[#allocation2 + $0x100] sm:$0xff] %vm171, 0.0
      %206 = vst.msk [vmem:[#allocation2 + $0x108] sm:$0x3] %vm173, 0.0
      %207 = vst.msk [vmem:[#allocation2 + $0x110] sm:$0xff] %vm171, 0.0
      %208 = vst.msk [vmem:[#allocation2 + $0x118] sm:$0x3] %vm173, 0.0
      %209 = vst.msk [vmem:[#allocation2 + $0x120] sm:$0xff] %vm171, 0.0
      %210 = vst.msk [vmem:[#allocation2 + $0x128] sm:$0x3] %vm173, 0.0
      %211 = vst.msk [vmem:[#allocation2 + $0x130] sm:$0xff] %vm171, 0.0
      %212 = vst.msk [vmem:[#allocation2 + $0x138] sm:$0x3] %vm173, 0.0
      %213 = vst.msk [vmem:[#allocation2 + $0x140] sm:$0xff] %vm171, 0.0
      %214 = vst.msk [vmem:[#allocation2 + $0x148] sm:$0x3] %vm173, 0.0
      %215 = vst.msk [vmem:[#allocation2 + $0x150] sm:$0xff] %vm171, 0.0
      %216 = vst.msk [vmem:[#allocation2 + $0x158] sm:$0x3] %vm173, 0.0
      %217 = vst.msk [vmem:[#allocation2 + $0x160] sm:$0xff] %vm171, 0.0
      %218 = vst.msk [vmem:[#allocation2 + $0x168] sm:$0x3] %vm173, 0.0
      %219 = vst.msk [vmem:[#allocation2 + $0x170] sm:$0xff] %vm171, 0.0
      %220 = vst.msk [vmem:[#allocation2 + $0x178] sm:$0x3] %vm173, 0.0
      %221 = vst.msk [vmem:[#allocation2 + $0x180] sm:$0xff] %vm171, 0.0
      %222 = vst.msk [vmem:[#allocation2 + $0x188] sm:$0x3] %vm173, 0.0
      %223 = vst.msk [vmem:[#allocation2 + $0x190] sm:$0xff] %vm171, 0.0
      %224 = vst.msk [vmem:[#allocation2 + $0x198] sm:$0x3] %vm173, 0.0
      %225 = vst.msk [vmem:[#allocation2 + $0x1a0] sm:$0xff] %vm171, 0.0
      %226 = vst.msk [vmem:[#allocation2 + $0x1a8] sm:$0x3] %vm173, 0.0
      %227 = vst.msk [vmem:[#allocation2 + $0x1b0] sm:$0xff] %vm171, 0.0
      %228 = vst.msk [vmem:[#allocation2 + $0x1b8] sm:$0x3] %vm173, 0.0
      %229 = vst.msk [vmem:[#allocation2 + $0x1c0] sm:$0xff] %vm171, 0.0
      %230 = vst.msk [vmem:[#allocation2 + $0x1c8] sm:$0x3] %vm173, 0.0
      %231 = vst.msk [vmem:[#allocation2 + $0x1d0] sm:$0xff] %vm171, 0.0
      %232 = vst.msk [vmem:[#allocation2 + $0x1d8] sm:$0x3] %vm173, 0.0
      %233 = vst.msk [vmem:[#allocation2 + $0x1e0] sm:$0xff] %vm171, 0.0
      %234 = vst.msk [vmem:[#allocation2 + $0x1e8] sm:$0x3] %vm173, 0.0
      %235 = vst.msk [vmem:[#allocation2 + $0x1f0] sm:$0xff] %vm171, 0.0
      %236 = vst.msk [vmem:[#allocation2 + $0x1f8] sm:$0x3] %vm173, 0.0
      %237 = vst.msk [vmem:[#allocation2 + $0x200] sm:$0xff] %vm171, 0.0
      %238 = vst.msk [vmem:[#allocation2 + $0x208] sm:$0x3] %vm173, 0.0
      %239 = vst.msk [vmem:[#allocation2 + $0x210] sm:$0xff] %vm171, 0.0
      %240 = vst.msk [vmem:[#allocation2 + $0x218] sm:$0x3] %vm173, 0.0
      %241 = vst.msk [vmem:[#allocation2 + $0x220] sm:$0xff] %vm171, 0.0
      %242 = vst.msk [vmem:[#allocation2 + $0x228] sm:$0x3] %vm173, 0.0
      %243 = vst.msk [vmem:[#allocation2 + $0x230] sm:$0xff] %vm171, 0.0
      %244 = vst.msk [vmem:[#allocation2 + $0x238] sm:$0x3] %vm173, 0.0
      %v245 = vld [vmem:[%s165] sm:$0xff]
      %s246 = scalar_lea.vmem [#allocation2], 48
      %247 = vst.msk [vmem:[%s246] sm:$0xff] %vm171, %v245
      %v248 = vld [vmem:[%s165 + $0x8] sm:$0xff]
      %s249 = scalar_lea.vmem [#allocation2], 32
      %250 = vst.msk [vmem:[%s249 + $0x1] sm:$0xff] %vm171, %v248
      %v251 = vld [vmem:[%s165 + $0x10] sm:$0xff]
      %s252 = scalar_lea.vmem [#allocation2], 80
      %253 = vst.msk [vmem:[%s252] sm:$0xff] %vm171, %v251
      %v254 = vld [vmem:[%s165 + $0x18] sm:$0xff]
      %s255 = scalar_lea.vmem [#allocation2], 64
      %256 = vst.msk [vmem:[%s255 + $0x1] sm:$0xff] %vm171, %v254
      %v257 = vld [vmem:[%s165 + $0x20] sm:$0xff]
      %s258 = scalar_lea.vmem [#allocation2], 112
      %259 = vst.msk [vmem:[%s258] sm:$0xff] %vm171, %v257
      %v260 = vld [vmem:[%s165 + $0x28] sm:$0xff]
      %s261 = scalar_lea.vmem [#allocation2], 96
      %262 = vst.msk [vmem:[%s261 + $0x1] sm:$0xff] %vm171, %v260
      %v263 = vld [vmem:[%s165 + $0x30] sm:$0xff]
      %s264 = scalar_lea.vmem [#allocation2], 144
      %265 = vst.msk [vmem:[%s264] sm:$0xff] %vm171, %v263
      %v266 = vld [vmem:[%s165 + $0x38] sm:$0xff]
      %s267 = scalar_lea.vmem [#allocation2], 128
      %268 = vst.msk [vmem:[%s267 + $0x1] sm:$0xff] %vm171, %v266
      %v269 = vld [vmem:[%s165 + $0x40] sm:$0xff]
      %s270 = scalar_lea.vmem [#allocation2], 176
      %271 = vst.msk [vmem:[%s270] sm:$0xff] %vm171, %v269
      %v272 = vld [vmem:[%s165 + $0x48] sm:$0xff]
      %s273 = scalar_lea.vmem [#allocation2], 160
      %274 = vst.msk [vmem:[%s273 + $0x1] sm:$0xff] %vm171, %v272
      %v275 = vld [vmem:[%s165 + $0x50] sm:$0xff]
      %s276 = scalar_lea.vmem [#allocation2], 208
      %277 = vst.msk [vmem:[%s276] sm:$0xff] %vm171, %v275
      %v278 = vld [vmem:[%s165 + $0x58] sm:$0xff]
      %s279 = scalar_lea.vmem [#allocation2], 192
      %280 = vst.msk [vmem:[%s279 + $0x1] sm:$0xff] %vm171, %v278
      %v281 = vld [vmem:[%s165 + $0x60] sm:$0xff]
      %s282 = scalar_lea.vmem [#allocation2], 240
      %283 = vst.msk [vmem:[%s282] sm:$0xff] %vm171, %v281
      %v284 = vld [vmem:[%s165 + $0x68] sm:$0xff]
      %s285 = scalar_lea.vmem [#allocation2], 224
      %286 = vst.msk [vmem:[%s285 + $0x1] sm:$0xff] %vm171, %v284
      %v287 = vld [vmem:[%s165 + $0x70] sm:$0xff]
      %s288 = scalar_lea.vmem [#allocation2], 272
      %289 = vst.msk [vmem:[%s288] sm:$0xff] %vm171, %v287
      %v290 = vld [vmem:[%s165 + $0x78] sm:$0xff]
      %s291 = scalar_lea.vmem [#allocation2], 256
      %292 = vst.msk [vmem:[%s291 + $0x1] sm:$0xff] %vm171, %v290
      %v293 = vld [vmem:[%s165 + $0x80] sm:$0xff]
      %s294 = scalar_lea.vmem [#allocation2], 304
      %295 = vst.msk [vmem:[%s294] sm:$0xff] %vm171, %v293
      %v296 = vld [vmem:[%s165 + $0x88] sm:$0xff]
      %s297 = scalar_lea.vmem [#allocation2], 288
      %298 = vst.msk [vmem:[%s297 + $0x1] sm:$0xff] %vm171, %v296
      %v299 = vld [vmem:[%s165 + $0x90] sm:$0xff]
      %s300 = scalar_lea.vmem [#allocation2], 336
      %301 = vst.msk [vmem:[%s300] sm:$0xff] %vm171, %v299
      %v302 = vld [vmem:[%s165 + $0x98] sm:$0xff]
      %s303 = scalar_lea.vmem [#allocation2], 320
      %304 = vst.msk [vmem:[%s303 + $0x1] sm:$0xff] %vm171, %v302
      %v305 = vld [vmem:[%s165 + $0xa0] sm:$0xff]
      %s306 = scalar_lea.vmem [#allocation2], 368
      %307 = vst.msk [vmem:[%s306] sm:$0xff] %vm171, %v305
      %v308 = vld [vmem:[%s165 + $0xa8] sm:$0xff]
      %s309 = scalar_lea.vmem [#allocation2], 352
      %310 = vst.msk [vmem:[%s309 + $0x1] sm:$0xff] %vm171, %v308
      %v311 = vld [vmem:[%s165 + $0xb0] sm:$0xff]
      %s312 = scalar_lea.vmem [#allocation2], 400
      %313 = vst.msk [vmem:[%s312] sm:$0xff] %vm171, %v311
      %v314 = vld [vmem:[%s165 + $0xb8] sm:$0xff]
      %s315 = scalar_lea.vmem [#allocation2], 384
      %316 = vst.msk [vmem:[%s315 + $0x1] sm:$0xff] %vm171, %v314
      %v317 = vld [vmem:[%s165 + $0xc0] sm:$0xff]
      %s318 = scalar_lea.vmem [#allocation2], 432
      %319 = vst.msk [vmem:[%s318] sm:$0xff] %vm171, %v317
      %v320 = vld [vmem:[%s165 + $0xc8] sm:$0xff]
      %s321 = scalar_lea.vmem [#allocation2], 416
      %322 = vst.msk [vmem:[%s321 + $0x1] sm:$0xff] %vm171, %v320
      %v323 = vld [vmem:[%s165 + $0xd0] sm:$0xff]
      %s324 = scalar_lea.vmem [#allocation2], 464
      %325 = vst.msk [vmem:[%s324] sm:$0xff] %vm171, %v323
      %v326 = vld [vmem:[%s165 + $0xd8] sm:$0xff]
      %s327 = scalar_lea.vmem [#allocation2], 448
      %328 = vst.msk [vmem:[%s327 + $0x1] sm:$0xff] %vm171, %v326
      %v329 = vld [vmem:[%s165 + $0xe0] sm:$0xff]
      %s330 = scalar_lea.vmem [#allocation2], 496
      %331 = vst.msk [vmem:[%s330] sm:$0xff] %vm171, %v329
      %v332 = vld [vmem:[%s165 + $0xe8] sm:$0xff]
      %s333 = scalar_lea.vmem [#allocation2], 480
      %334 = vst.msk [vmem:[%s333 + $0x1] sm:$0xff] %vm171, %v332
      %v335 = vld [vmem:[%s165 + $0xf0] sm:$0xff]
      %s336 = scalar_lea.vmem [#allocation2], 528
      %337 = vst.msk [vmem:[%s336] sm:$0xff] %vm171, %v335
      %v338 = vld [vmem:[%s165 + $0xf8] sm:$0xff]
      %s339 = scalar_lea.vmem [#allocation2], 512
      %340 = vst.msk [vmem:[%s339 + $0x1] sm:$0xff] %vm171, %v338
      %v341 = vld [vmem:[%s1] sm:$0x7]
      %s342 = scalar_lea.vmem %s1, 4
      %v343 = vld [vmem:[%s342] sm:$0x7]
      %s344 = scalar_lea.vmem %s1, 8
      %v345 = vld [vmem:[%s344] sm:$0x7]
      %s346 = scalar_lea.vmem %s1, 12
      %v347 = vld [vmem:[%s346] sm:$0x7]
      %s348 = scalar_lea.vmem %s1, 16
      %v349 = vld [vmem:[%s348] sm:$0x7]
      %s350 = scalar_lea.vmem %s1, 20
      %v351 = vld [vmem:[%s350] sm:$0x7]
      %s352 = scalar_lea.vmem %s1, 24
      %v353 = vld [vmem:[%s352] sm:$0x7]
      %s354 = scalar_lea.vmem %s1, 28
      %v355 = vld [vmem:[%s354] sm:$0x7]
      %s356 = scalar_lea.vmem %s1, 32
      %v357 = vld [vmem:[%s356] sm:$0x7]
      %v358 = vld [vmem:[%s2] sm:$0x1]
      %v359 = vld [vmem:[#allocation2] sm:$0xff]
      %s360 = scalar_lea.vmem [#allocation2], 16
      %v361 = vld [vmem:[%s360] sm:$0xff]
      %v363 = vsel %vm171, %v361, 0
      %vm365 = vcmask 1042432
      %v367 = vsel %vm365, %v343, 0
      %369 = vmatprep.subr.mxu0 0.0
      %370 = vmatpush1.msra.mxu0 %v367
      %371 = vmatprep.subr.mxu0 0.0
      %372 = vmatpush1.msra.mxu0 0.0
      %373 = vmatprep.subr.mxu0 0.0
      %374 = vmatpush1.msra.mxu0 0.0
      %375 = vmatprep.subr.mxu0 0.0
      %376 = vmatpush1.msra.mxu0 0.0
      %377 = vmatprep.subr.mxu0 0.0
      %378 = vmatpush1.msra.mxu0 0.0
      %379 = vmatprep.subr.mxu0 0.0
      %380 = vmatpush1.msra.mxu0 0.0
      %381 = vmatprep.subr.mxu0 0.0
      %382 = vmatpush1.msra.mxu0 0.0
      %383 = vmatprep.subr.mxu0 0.0
      %384 = vmatpush1.msra.mxu0 0.0
      %385 = vmatprep.subr.mxu0 0.0
      %386 = vmatpush1.msra.mxu0 0.0
      %387 = vmatprep.subr.mxu0 0.0
      %388 = vmatpush1.msra.mxu0 0.0
      %389 = vmatprep.subr.mxu0 0.0
      %390 = vmatpush1.msra.mxu0 0.0
      %391 = vmatprep.subr.mxu0 0.0
      %392 = vmatpush1.msra.mxu0 0.0
      %393 = vmatprep.subr.mxu0 0.0
      %394 = vmatpush1.msra.mxu0 0.0
      %395 = vmatprep.subr.mxu0 0.0
      %396 = vmatpush1.msra.mxu0 0.0
      %397 = vmatprep.subr.mxu0 0.0
      %398 = vmatpush1.msra.mxu0 0.0
      %399 = vmatprep.subr.mxu0 0.0
      %400 = vmatpush1.msra.mxu0 0.0
      %401 = vmatprep.subr.mxu0 0.0
      %402 = vmatpush1.msra.mxu0 0.0
      %403 = vmatprep.subr.mxu0 0.0
      %404 = vmatpush1.msra.mxu0 0.0
      %405 = vmatprep.subr.mxu0 0.0
      %406 = vmatpush1.msra.mxu0 0.0
      %407 = vmatprep.subr.mxu0 0.0
      %408 = vmatpush1.msra.mxu0 0.0
      %409 = vmatprep.subr.mxu0 0.0
      %410 = vmatpush1.msra.mxu0 0.0
      %411 = vmatprep.subr.mxu0 0.0
      %412 = vmatpush1.msra.mxu0 0.0
      %413 = vmatprep.subr.mxu0 0.0
      %414 = vmatpush1.msra.mxu0 0.0
      %415 = vmatprep.subr.mxu0 0.0
      %416 = vmatpush1.msra.mxu0 0.0
      %417 = vmatprep.subr.mxu0 0.0
      %418 = vmatpush1.msra.mxu0 0.0
      %419 = vmatprep.subr.mxu0 0.0
      %420 = vmatpush1.msra.mxu0 0.0
      %421 = vmatprep.subr.mxu0 0.0
      %422 = vmatpush1.msra.mxu0 0.0
      %423 = vmatprep.subr.mxu0 0.0
      %424 = vmatpush1.msra.mxu0 0.0
      %425 = vmatprep.subr.mxu0 0.0
      %426 = vmatpush1.msra.mxu0 0.0
      %427 = vmatprep.subr.mxu0 0.0
      %428 = vmatpush1.msra.mxu0 0.0
      %429 = vmatprep.subr.mxu0 0.0
      %430 = vmatpush1.msra.mxu0 0.0
      %431 = vmatprep.subr.mxu0 0.0
      %432 = vmatpush1.msra.mxu0 0.0
      %433 = vmatprep.mubr.f32.mxu0 0.0
      %434 = vmatmul.mubr.f32.gmra.mrb[0].mxu0 %v363
      %v435 = vpop.f32.mrb[0].mxu0
      %v436 = vadd.f32 0.0, %v435
      %v437 = vpop.f32.mrb[0].mxu0
      %438 = vdwg.mxu0
      %v440 = vsel %vm171, %v359, 0
      %v443 = vsel %vm365, %v341, 0
      %445 = vmatprep.subr.mxu0 0.0
      %446 = vmatpush1.msra.mxu0 %v443
      %447 = vmatprep.subr.mxu0 0.0
      %448 = vmatpush1.msra.mxu0 0.0
      %449 = vmatprep.subr.mxu0 0.0
      %450 = vmatpush1.msra.mxu0 0.0
      %451 = vmatprep.subr.mxu0 0.0
      %452 = vmatpush1.msra.mxu0 0.0
      %453 = vmatprep.subr.mxu0 0.0
      %454 = vmatpush1.msra.mxu0 0.0
      %455 = vmatprep.subr.mxu0 0.0
      %456 = vmatpush1.msra.mxu0 0.0
      %457 = vmatprep.subr.mxu0 0.0
      %458 = vmatpush1.msra.mxu0 0.0
      %459 = vmatprep.subr.mxu0 0.0
      %460 = vmatpush1.msra.mxu0 0.0
      %461 = vmatprep.subr.mxu0 0.0
      %462 = vmatpush1.msra.mxu0 0.0
      %463 = vmatprep.subr.mxu0 0.0
      %464 = vmatpush1.msra.mxu0 0.0
      %465 = vmatprep.subr.mxu0 0.0
      %466 = vmatpush1.msra.mxu0 0.0
      %467 = vmatprep.subr.mxu0 0.0
      %468 = vmatpush1.msra.mxu0 0.0
      %469 = vmatprep.subr.mxu0 0.0
      %470 = vmatpush1.msra.mxu0 0.0
      %471 = vmatprep.subr.mxu0 0.0
      %472 = vmatpush1.msra.mxu0 0.0
      %473 = vmatprep.subr.mxu0 0.0
      %474 = vmatpush1.msra.mxu0 0.0
      %475 = vmatprep.subr.mxu0 0.0
      %476 = vmatpush1.msra.mxu0 0.0
      %477 = vmatprep.subr.mxu0 0.0
      %478 = vmatpush1.msra.mxu0 0.0
      %479 = vmatprep.subr.mxu0 0.0
      %480 = vmatpush1.msra.mxu0 0.0
      %481 = vmatprep.subr.mxu0 0.0
      %482 = vmatpush1.msra.mxu0 0.0
      %483 = vmatprep.subr.mxu0 0.0
      %484 = vmatpush1.msra.mxu0 0.0
      %485 = vmatprep.subr.mxu0 0.0
      %486 = vmatpush1.msra.mxu0 0.0
      %487 = vmatprep.subr.mxu0 0.0
      %488 = vmatpush1.msra.mxu0 0.0
      %489 = vmatprep.subr.mxu0 0.0
      %490 = vmatpush1.msra.mxu0 0.0
      %491 = vmatprep.subr.mxu0 0.0
      %492 = vmatpush1.msra.mxu0 0.0
      %493 = vmatprep.subr.mxu0 0.0
      %494 = vmatpush1.msra.mxu0 0.0
      %495 = vmatprep.subr.mxu0 0.0
      %496 = vmatpush1.msra.mxu0 0.0
      %497 = vmatprep.subr.mxu0 0.0
      %498 = vmatpush1.msra.mxu0 0.0
      %499 = vmatprep.subr.mxu0 0.0
      %500 = vmatpush1.msra.mxu0 0.0
      %501 = vmatprep.subr.mxu0 0.0
      %502 = vmatpush1.msra.mxu0 0.0
      %503 = vmatprep.subr.mxu0 0.0
      %504 = vmatpush1.msra.mxu0 0.0
      %505 = vmatprep.subr.mxu0 0.0
      %506 = vmatpush1.msra.mxu0 0.0
      %507 = vmatprep.subr.mxu0 0.0
      %508 = vmatpush1.msra.mxu0 0.0
      %509 = vmatprep.mubr.f32.mxu0 0.0
      %510 = vmatmul.mubr.f32.gmra.mrb[0].mxu0 %v440
      %v511 = vpop.f32.mrb[0].mxu0
      %v512 = vadd.f32 %v436, %v511
      %v513 = vpop.f32.mrb[0].mxu0
      %514 = vdwg.mxu0
      %v515 = vld [vmem:[#allocation2 + $0x1] sm:$0xff]
      %v517 = vsel %vm171, %v515, 0
      %v520 = vsel %vm365, %v345, 0
      %522 = vmatprep.subr.mxu0 0.0
      %523 = vmatpush1.msra.mxu0 %v520
      %524 = vmatprep.subr.mxu0 0.0
      %525 = vmatpush1.msra.mxu0 0.0
      %526 = vmatprep.subr.mxu0 0.0
      %527 = vmatpush1.msra.mxu0 0.0
      %528 = vmatprep.subr.mxu0 0.0
      %529 = vmatpush1.msra.mxu0 0.0
      %530 = vmatprep.subr.mxu0 0.0
      %531 = vmatpush1.msra.mxu0 0.0
      %532 = vmatprep.subr.mxu0 0.0
      %533 = vmatpush1.msra.mxu0 0.0
      %534 = vmatprep.subr.mxu0 0.0
      %535 = vmatpush1.msra.mxu0 0.0
      %536 = vmatprep.subr.mxu0 0.0
      %537 = vmatpush1.msra.mxu0 0.0
      %538 = vmatprep.subr.mxu0 0.0
      %539 = vmatpush1.msra.mxu0 0.0
      %540 = vmatprep.subr.mxu0 0.0
      %541 = vmatpush1.msra.mxu0 0.0
      %542 = vmatprep.subr.mxu0 0.0
      %543 = vmatpush1.msra.mxu0 0.0
      %544 = vmatprep.subr.mxu0 0.0
      %545 = vmatpush1.msra.mxu0 0.0
      %546 = vmatprep.subr.mxu0 0.0
      %547 = vmatpush1.msra.mxu0 0.0
      %548 = vmatprep.subr.mxu0 0.0
      %549 = vmatpush1.msra.mxu0 0.0
      %550 = vmatprep.subr.mxu0 0.0
      %551 = vmatpush1.msra.mxu0 0.0
      %552 = vmatprep.subr.mxu0 0.0
      %553 = vmatpush1.msra.mxu0 0.0
      %554 = vmatprep.subr.mxu0 0.0
      %555 = vmatpush1.msra.mxu0 0.0
      %556 = vmatprep.subr.mxu0 0.0
      %557 = vmatpush1.msra.mxu0 0.0
      %558 = vmatprep.subr.mxu0 0.0
      %559 = vmatpush1.msra.mxu0 0.0
      %560 = vmatprep.subr.mxu0 0.0
      %561 = vmatpush1.msra.mxu0 0.0
      %562 = vmatprep.subr.mxu0 0.0
      %563 = vmatpush1.msra.mxu0 0.0
      %564 = vmatprep.subr.mxu0 0.0
      %565 = vmatpush1.msra.mxu0 0.0
      %566 = vmatprep.subr.mxu0 0.0
      %567 = vmatpush1.msra.mxu0 0.0
      %568 = vmatprep.subr.mxu0 0.0
      %569 = vmatpush1.msra.mxu0 0.0
      %570 = vmatprep.subr.mxu0 0.0
      %571 = vmatpush1.msra.mxu0 0.0
      %572 = vmatprep.subr.mxu0 0.0
      %573 = vmatpush1.msra.mxu0 0.0
      %574 = vmatprep.subr.mxu0 0.0
      %575 = vmatpush1.msra.mxu0 0.0
      %576 = vmatprep.subr.mxu0 0.0
      %577 = vmatpush1.msra.mxu0 0.0
      %578 = vmatprep.subr.mxu0 0.0
      %579 = vmatpush1.msra.mxu0 0.0
      %580 = vmatprep.subr.mxu0 0.0
      %581 = vmatpush1.msra.mxu0 0.0
      %582 = vmatprep.subr.mxu0 0.0
      %583 = vmatpush1.msra.mxu0 0.0
      %584 = vmatprep.subr.mxu0 0.0
      %585 = vmatpush1.msra.mxu0 0.0
      %586 = vmatprep.mubr.f32.mxu0 0.0
      %587 = vmatmul.mubr.f32.gmra.mrb[0].mxu0 %v517
      %v588 = vpop.f32.mrb[0].mxu0
      %v589 = vadd.f32 0.0, %v588
      %v590 = vpop.f32.mrb[0].mxu0
      %591 = vdwg.mxu0
      %v592 = vadd.f32 %v512, %v589
      %v593 = vld [vmem:[%s249] sm:$0xff]
      %v595 = vsel %vm171, %v593, 0
      %v598 = vsel %vm365, %v347, 0
      %600 = vmatprep.subr.mxu0 0.0
      %601 = vmatpush1.msra.mxu0 %v598
      %602 = vmatprep.subr.mxu0 0.0
      %603 = vmatpush1.msra.mxu0 0.0
      %604 = vmatprep.subr.mxu0 0.0
      %605 = vmatpush1.msra.mxu0 0.0
      %606 = vmatprep.subr.mxu0 0.0
      %607 = vmatpush1.msra.mxu0 0.0
      %608 = vmatprep.subr.mxu0 0.0
      %609 = vmatpush1.msra.mxu0 0.0
      %610 = vmatprep.subr.mxu0 0.0
      %611 = vmatpush1.msra.mxu0 0.0
      %612 = vmatprep.subr.mxu0 0.0
      %613 = vmatpush1.msra.mxu0 0.0
      %614 = vmatprep.subr.mxu0 0.0
      %615 = vmatpush1.msra.mxu0 0.0
      %616 = vmatprep.subr.mxu0 0.0
      %617 = vmatpush1.msra.mxu0 0.0
      %618 = vmatprep.subr.mxu0 0.0
      %619 = vmatpush1.msra.mxu0 0.0
      %620 = vmatprep.subr.mxu0 0.0
      %621 = vmatpush1.msra.mxu0 0.0
      %622 = vmatprep.subr.mxu0 0.0
      %623 = vmatpush1.msra.mxu0 0.0
      %624 = vmatprep.subr.mxu0 0.0
      %625 = vmatpush1.msra.mxu0 0.0
      %626 = vmatprep.subr.mxu0 0.0
      %627 = vmatpush1.msra.mxu0 0.0
      %628 = vmatprep.subr.mxu0 0.0
      %629 = vmatpush1.msra.mxu0 0.0
      %630 = vmatprep.subr.mxu0 0.0
      %631 = vmatpush1.msra.mxu0 0.0
      %632 = vmatprep.subr.mxu0 0.0
      %633 = vmatpush1.msra.mxu0 0.0
      %634 = vmatprep.subr.mxu0 0.0
      %635 = vmatpush1.msra.mxu0 0.0
      %636 = vmatprep.subr.mxu0 0.0
      %637 = vmatpush1.msra.mxu0 0.0
      %638 = vmatprep.subr.mxu0 0.0
      %639 = vmatpush1.msra.mxu0 0.0
      %640 = vmatprep.subr.mxu0 0.0
      %641 = vmatpush1.msra.mxu0 0.0
      %642 = vmatprep.subr.mxu0 0.0
      %643 = vmatpush1.msra.mxu0 0.0
      %644 = vmatprep.subr.mxu0 0.0
      %645 = vmatpush1.msra.mxu0 0.0
      %646 = vmatprep.subr.mxu0 0.0
      %647 = vmatpush1.msra.mxu0 0.0
      %648 = vmatprep.subr.mxu0 0.0
      %649 = vmatpush1.msra.mxu0 0.0
      %650 = vmatprep.subr.mxu0 0.0
      %651 = vmatpush1.msra.mxu0 0.0
      %652 = vmatprep.subr.mxu0 0.0
      %653 = vmatpush1.msra.mxu0 0.0
      %654 = vmatprep.subr.mxu0 0.0
      %655 = vmatpush1.msra.mxu0 0.0
      %656 = vmatprep.subr.mxu0 0.0
      %657 = vmatpush1.msra.mxu0 0.0
      %658 = vmatprep.subr.mxu0 0.0
      %659 = vmatpush1.msra.mxu0 0.0
      %660 = vmatprep.subr.mxu0 0.0
      %661 = vmatpush1.msra.mxu0 0.0
      %662 = vmatprep.subr.mxu0 0.0
      %663 = vmatpush1.msra.mxu0 0.0
      %664 = vmatprep.mubr.f32.mxu0 0.0
      %665 = vmatmul.mubr.f32.gmra.mrb[0].mxu0 %v595
      %v666 = vpop.f32.mrb[0].mxu0
      %v667 = vadd.f32 0.0, %v666
      %v668 = vpop.f32.mrb[0].mxu0
      %669 = vdwg.mxu0
      %v670 = vadd.f32 %v592, %v667
      %v671 = vld [vmem:[%s246] sm:$0xff]
      %v673 = vsel %vm171, %v671, 0
      %v676 = vsel %vm365, %v349, 0
      %678 = vmatprep.subr.mxu0 0.0
      %679 = vmatpush1.msra.mxu0 %v676
      %680 = vmatprep.subr.mxu0 0.0
      %681 = vmatpush1.msra.mxu0 0.0
      %682 = vmatprep.subr.mxu0 0.0
      %683 = vmatpush1.msra.mxu0 0.0
      %684 = vmatprep.subr.mxu0 0.0
      %685 = vmatpush1.msra.mxu0 0.0
      %686 = vmatprep.subr.mxu0 0.0
      %687 = vmatpush1.msra.mxu0 0.0
      %688 = vmatprep.subr.mxu0 0.0
      %689 = vmatpush1.msra.mxu0 0.0
      %690 = vmatprep.subr.mxu0 0.0
      %691 = vmatpush1.msra.mxu0 0.0
      %692 = vmatprep.subr.mxu0 0.0
      %693 = vmatpush1.msra.mxu0 0.0
      %694 = vmatprep.subr.mxu0 0.0
      %695 = vmatpush1.msra.mxu0 0.0
      %696 = vmatprep.subr.mxu0 0.0
      %697 = vmatpush1.msra.mxu0 0.0
      %698 = vmatprep.subr.mxu0 0.0
      %699 = vmatpush1.msra.mxu0 0.0
      %700 = vmatprep.subr.mxu0 0.0
      %701 = vmatpush1.msra.mxu0 0.0
      %702 = vmatprep.subr.mxu0 0.0
      %703 = vmatpush1.msra.mxu0 0.0
      %704 = vmatprep.subr.mxu0 0.0
      %705 = vmatpush1.msra.mxu0 0.0
      %706 = vmatprep.subr.mxu0 0.0
      %707 = vmatpush1.msra.mxu0 0.0
      %708 = vmatprep.subr.mxu0 0.0
      %709 = vmatpush1.msra.mxu0 0.0
      %710 = vmatprep.subr.mxu0 0.0
      %711 = vmatpush1.msra.mxu0 0.0
      %712 = vmatprep.subr.mxu0 0.0
      %713 = vmatpush1.msra.mxu0 0.0
      %714 = vmatprep.subr.mxu0 0.0
      %715 = vmatpush1.msra.mxu0 0.0
      %716 = vmatprep.subr.mxu0 0.0
      %717 = vmatpush1.msra.mxu0 0.0
      %718 = vmatprep.subr.mxu0 0.0
      %719 = vmatpush1.msra.mxu0 0.0
      %720 = vmatprep.subr.mxu0 0.0
      %721 = vmatpush1.msra.mxu0 0.0
      %722 = vmatprep.subr.mxu0 0.0
      %723 = vmatpush1.msra.mxu0 0.0
      %724 = vmatprep.subr.mxu0 0.0
      %725 = vmatpush1.msra.mxu0 0.0
      %726 = vmatprep.subr.mxu0 0.0
      %727 = vmatpush1.msra.mxu0 0.0
      %728 = vmatprep.subr.mxu0 0.0
      %729 = vmatpush1.msra.mxu0 0.0
      %730 = vmatprep.subr.mxu0 0.0
      %731 = vmatpush1.msra.mxu0 0.0
      %732 = vmatprep.subr.mxu0 0.0
      %733 = vmatpush1.msra.mxu0 0.0
      %734 = vmatprep.subr.mxu0 0.0
      %735 = vmatpush1.msra.mxu0 0.0
      %736 = vmatprep.subr.mxu0 0.0
      %737 = vmatpush1.msra.mxu0 0.0
      %738 = vmatprep.subr.mxu0 0.0
      %739 = vmatpush1.msra.mxu0 0.0
      %740 = vmatprep.subr.mxu0 0.0
      %741 = vmatpush1.msra.mxu0 0.0
      %742 = vmatprep.mubr.f32.mxu0 0.0
      %743 = vmatmul.mubr.f32.gmra.mrb[0].mxu0 %v673
      %v744 = vpop.f32.mrb[0].mxu0
      %v745 = vadd.f32 0.0, %v744
      %v746 = vpop.f32.mrb[0].mxu0
      %747 = vdwg.mxu0
      %v748 = vadd.f32 %v670, %v745
      %v749 = vld [vmem:[%s249 + $0x1] sm:$0xff]
      %v751 = vsel %vm171, %v749, 0
      %v754 = vsel %vm365, %v351, 0
      %756 = vmatprep.subr.mxu0 0.0
      %757 = vmatpush1.msra.mxu0 %v754
      %758 = vmatprep.subr.mxu0 0.0
      %759 = vmatpush1.msra.mxu0 0.0
      %760 = vmatprep.subr.mxu0 0.0
      %761 = vmatpush1.msra.mxu0 0.0
      %762 = vmatprep.subr.mxu0 0.0
      %763 = vmatpush1.msra.mxu0 0.0
      %764 = vmatprep.subr.mxu0 0.0
      %765 = vmatpush1.msra.mxu0 0.0
      %766 = vmatprep.subr.mxu0 0.0
      %767 = vmatpush1.msra.mxu0 0.0
      %768 = vmatprep.subr.mxu0 0.0
      %769 = vmatpush1.msra.mxu0 0.0
      %770 = vmatprep.subr.mxu0 0.0
      %771 = vmatpush1.msra.mxu0 0.0
      %772 = vmatprep.subr.mxu0 0.0
      %773 = vmatpush1.msra.mxu0 0.0
      %774 = vmatprep.subr.mxu0 0.0
      %775 = vmatpush1.msra.mxu0 0.0
      %776 = vmatprep.subr.mxu0 0.0
      %777 = vmatpush1.msra.mxu0 0.0
      %778 = vmatprep.subr.mxu0 0.0
      %779 = vmatpush1.msra.mxu0 0.0
      %780 = vmatprep.subr.mxu0 0.0
      %781 = vmatpush1.msra.mxu0 0.0
      %782 = vmatprep.subr.mxu0 0.0
      %783 = vmatpush1.msra.mxu0 0.0
      %784 = vmatprep.subr.mxu0 0.0
      %785 = vmatpush1.msra.mxu0 0.0
      %786 = vmatprep.subr.mxu0 0.0
      %787 = vmatpush1.msra.mxu0 0.0
      %788 = vmatprep.subr.mxu0 0.0
      %789 = vmatpush1.msra.mxu0 0.0
      %790 = vmatprep.subr.mxu0 0.0
      %791 = vmatpush1.msra.mxu0 0.0
      %792 = vmatprep.subr.mxu0 0.0
      %793 = vmatpush1.msra.mxu0 0.0
      %794 = vmatprep.subr.mxu0 0.0
      %795 = vmatpush1.msra.mxu0 0.0
      %796 = vmatprep.subr.mxu0 0.0
      %797 = vmatpush1.msra.mxu0 0.0
      %798 = vmatprep.subr.mxu0 0.0
      %799 = vmatpush1.msra.mxu0 0.0
      %800 = vmatprep.subr.mxu0 0.0
      %801 = vmatpush1.msra.mxu0 0.0
      %802 = vmatprep.subr.mxu0 0.0
      %803 = vmatpush1.msra.mxu0 0.0
      %804 = vmatprep.subr.mxu0 0.0
      %805 = vmatpush1.msra.mxu0 0.0
      %806 = vmatprep.subr.mxu0 0.0
      %807 = vmatpush1.msra.mxu0 0.0
      %808 = vmatprep.subr.mxu0 0.0
      %809 = vmatpush1.msra.mxu0 0.0
      %810 = vmatprep.subr.mxu0 0.0
      %811 = vmatpush1.msra.mxu0 0.0
      %812 = vmatprep.subr.mxu0 0.0
      %813 = vmatpush1.msra.mxu0 0.0
      %814 = vmatprep.subr.mxu0 0.0
      %815 = vmatpush1.msra.mxu0 0.0
      %816 = vmatprep.subr.mxu0 0.0
      %817 = vmatpush1.msra.mxu0 0.0
      %818 = vmatprep.subr.mxu0 0.0
      %819 = vmatpush1.msra.mxu0 0.0
      %820 = vmatprep.mubr.f32.mxu0 0.0
      %821 = vmatmul.mubr.f32.gmra.mrb[0].mxu0 %v751
      %v822 = vpop.f32.mrb[0].mxu0
      %v823 = vadd.f32 0.0, %v822
      %v824 = vpop.f32.mrb[0].mxu0
      %825 = vdwg.mxu0
      %v826 = vadd.f32 %v748, %v823
      %v827 = vld [vmem:[%s255] sm:$0xff]
      %v829 = vsel %vm171, %v827, 0
      %v832 = vsel %vm365, %v353, 0
      %834 = vmatprep.subr.mxu0 0.0
      %835 = vmatpush1.msra.mxu0 %v832
      %836 = vmatprep.subr.mxu0 0.0
      %837 = vmatpush1.msra.mxu0 0.0
      %838 = vmatprep.subr.mxu0 0.0
      %839 = vmatpush1.msra.mxu0 0.0
      %840 = vmatprep.subr.mxu0 0.0
      %841 = vmatpush1.msra.mxu0 0.0
      %842 = vmatprep.subr.mxu0 0.0
      %843 = vmatpush1.msra.mxu0 0.0
      %844 = vmatprep.subr.mxu0 0.0
      %845 = vmatpush1.msra.mxu0 0.0
      %846 = vmatprep.subr.mxu0 0.0
      %847 = vmatpush1.msra.mxu0 0.0
      %848 = vmatprep.subr.mxu0 0.0
      %849 = vmatpush1.msra.mxu0 0.0
      %850 = vmatprep.subr.mxu0 0.0
      %851 = vmatpush1.msra.mxu0 0.0
      %852 = vmatprep.subr.mxu0 0.0
      %853 = vmatpush1.msra.mxu0 0.0
      %854 = vmatprep.subr.mxu0 0.0
      %855 = vmatpush1.msra.mxu0 0.0
      %856 = vmatprep.subr.mxu0 0.0
      %857 = vmatpush1.msra.mxu0 0.0
      %858 = vmatprep.subr.mxu0 0.0
      %859 = vmatpush1.msra.mxu0 0.0
      %860 = vmatprep.subr.mxu0 0.0
      %861 = vmatpush1.msra.mxu0 0.0
      %862 = vmatprep.subr.mxu0 0.0
      %863 = vmatpush1.msra.mxu0 0.0
      %864 = vmatprep.subr.mxu0 0.0
      %865 = vmatpush1.msra.mxu0 0.0
      %866 = vmatprep.subr.mxu0 0.0
      %867 = vmatpush1.msra.mxu0 0.0
      %868 = vmatprep.subr.mxu0 0.0
      %869 = vmatpush1.msra.mxu0 0.0
      %870 = vmatprep.subr.mxu0 0.0
      %871 = vmatpush1.msra.mxu0 0.0
      %872 = vmatprep.subr.mxu0 0.0
      %873 = vmatpush1.msra.mxu0 0.0
      %874 = vmatprep.subr.mxu0 0.0
      %875 = vmatpush1.msra.mxu0 0.0
      %876 = vmatprep.subr.mxu0 0.0
      %877 = vmatpush1.msra.mxu0 0.0
      %878 = vmatprep.subr.mxu0 0.0
      %879 = vmatpush1.msra.mxu0 0.0
      %880 = vmatprep.subr.mxu0 0.0
      %881 = vmatpush1.msra.mxu0 0.0
      %882 = vmatprep.subr.mxu0 0.0
      %883 = vmatpush1.msra.mxu0 0.0
      %884 = vmatprep.subr.mxu0 0.0
      %885 = vmatpush1.msra.mxu0 0.0
      %886 = vmatprep.subr.mxu0 0.0
      %887 = vmatpush1.msra.mxu0 0.0
      %888 = vmatprep.subr.mxu0 0.0
      %889 = vmatpush1.msra.mxu0 0.0
      %890 = vmatprep.subr.mxu0 0.0
      %891 = vmatpush1.msra.mxu0 0.0
      %892 = vmatprep.subr.mxu0 0.0
      %893 = vmatpush1.msra.mxu0 0.0
      %894 = vmatprep.subr.mxu0 0.0
      %895 = vmatpush1.msra.mxu0 0.0
      %896 = vmatprep.subr.mxu0 0.0
      %897 = vmatpush1.msra.mxu0 0.0
      %898 = vmatprep.mubr.f32.mxu0 0.0
      %899 = vmatmul.mubr.f32.gmra.mrb[0].mxu0 %v829
      %v900 = vpop.f32.mrb[0].mxu0
      %v901 = vadd.f32 0.0, %v900
      %v902 = vpop.f32.mrb[0].mxu0
      %903 = vdwg.mxu0
      %v904 = vadd.f32 %v826, %v901
      %v905 = vld [vmem:[%s252] sm:$0xff]
      %v907 = vsel %vm171, %v905, 0
      %v910 = vsel %vm365, %v355, 0
      %912 = vmatprep.subr.mxu0 0.0
      %913 = vmatpush1.msra.mxu0 %v910
      %914 = vmatprep.subr.mxu0 0.0
      %915 = vmatpush1.msra.mxu0 0.0
      %916 = vmatprep.subr.mxu0 0.0
      %917 = vmatpush1.msra.mxu0 0.0
      %918 = vmatprep.subr.mxu0 0.0
      %919 = vmatpush1.msra.mxu0 0.0
      %920 = vmatprep.subr.mxu0 0.0
      %921 = vmatpush1.msra.mxu0 0.0
      %922 = vmatprep.subr.mxu0 0.0
      %923 = vmatpush1.msra.mxu0 0.0
      %924 = vmatprep.subr.mxu0 0.0
      %925 = vmatpush1.msra.mxu0 0.0
      %926 = vmatprep.subr.mxu0 0.0
      %927 = vmatpush1.msra.mxu0 0.0
      %928 = vmatprep.subr.mxu0 0.0
      %929 = vmatpush1.msra.mxu0 0.0
      %930 = vmatprep.subr.mxu0 0.0
      %931 = vmatpush1.msra.mxu0 0.0
      %932 = vmatprep.subr.mxu0 0.0
      %933 = vmatpush1.msra.mxu0 0.0
      %934 = vmatprep.subr.mxu0 0.0
      %935 = vmatpush1.msra.mxu0 0.0
      %936 = vmatprep.subr.mxu0 0.0
      %937 = vmatpush1.msra.mxu0 0.0
      %938 = vmatprep.subr.mxu0 0.0
      %939 = vmatpush1.msra.mxu0 0.0
      %940 = vmatprep.subr.mxu0 0.0
      %941 = vmatpush1.msra.mxu0 0.0
      %942 = vmatprep.subr.mxu0 0.0
      %943 = vmatpush1.msra.mxu0 0.0
      %944 = vmatprep.subr.mxu0 0.0
      %945 = vmatpush1.msra.mxu0 0.0
      %946 = vmatprep.subr.mxu0 0.0
      %947 = vmatpush1.msra.mxu0 0.0
      %948 = vmatprep.subr.mxu0 0.0
      %949 = vmatpush1.msra.mxu0 0.0
      %950 = vmatprep.subr.mxu0 0.0
      %951 = vmatpush1.msra.mxu0 0.0
      %952 = vmatprep.subr.mxu0 0.0
      %953 = vmatpush1.msra.mxu0 0.0
      %954 = vmatprep.subr.mxu0 0.0
      %955 = vmatpush1.msra.mxu0 0.0
      %956 = vmatprep.subr.mxu0 0.0
      %957 = vmatpush1.msra.mxu0 0.0
      %958 = vmatprep.subr.mxu0 0.0
      %959 = vmatpush1.msra.mxu0 0.0
      %960 = vmatprep.subr.mxu0 0.0
      %961 = vmatpush1.msra.mxu0 0.0
      %962 = vmatprep.subr.mxu0 0.0
      %963 = vmatpush1.msra.mxu0 0.0
      %964 = vmatprep.subr.mxu0 0.0
      %965 = vmatpush1.msra.mxu0 0.0
      %966 = vmatprep.subr.mxu0 0.0
      %967 = vmatpush1.msra.mxu0 0.0
      %968 = vmatprep.subr.mxu0 0.0
      %969 = vmatpush1.msra.mxu0 0.0
      %970 = vmatprep.subr.mxu0 0.0
      %971 = vmatpush1.msra.mxu0 0.0
      %972 = vmatprep.subr.mxu0 0.0
      %973 = vmatpush1.msra.mxu0 0.0
      %974 = vmatprep.subr.mxu0 0.0
      %975 = vmatpush1.msra.mxu0 0.0
      %976 = vmatprep.mubr.f32.mxu0 0.0
      %977 = vmatmul.mubr.f32.gmra.mrb[0].mxu0 %v907
      %v978 = vpop.f32.mrb[0].mxu0
      %v979 = vadd.f32 0.0, %v978
      %v980 = vpop.f32.mrb[0].mxu0
      %981 = vdwg.mxu0
      %v982 = vadd.f32 %v904, %v979
      %v983 = vld [vmem:[%s255 + $0x1] sm:$0xff]
      %v985 = vsel %vm171, %v983, 0
      %v988 = vsel %vm365, %v357, 0
      %990 = vmatprep.subr.mxu0 0.0
      %991 = vmatpush1.msra.mxu0 %v988
      %992 = vmatprep.subr.mxu0 0.0
      %993 = vmatpush1.msra.mxu0 0.0
      %994 = vmatprep.subr.mxu0 0.0
      %995 = vmatpush1.msra.mxu0 0.0
      %996 = vmatprep.subr.mxu0 0.0
      %997 = vmatpush1.msra.mxu0 0.0
      %998 = vmatprep.subr.mxu0 0.0
      %999 = vmatpush1.msra.mxu0 0.0
      %1000 = vmatprep.subr.mxu0 0.0
      %1001 = vmatpush1.msra.mxu0 0.0
      %1002 = vmatprep.subr.mxu0 0.0
      %1003 = vmatpush1.msra.mxu0 0.0
      %1004 = vmatprep.subr.mxu0 0.0
      %1005 = vmatpush1.msra.mxu0 0.0
      %1006 = vmatprep.subr.mxu0 0.0
      %1007 = vmatpush1.msra.mxu0 0.0
      %1008 = vmatprep.subr.mxu0 0.0
      %1009 = vmatpush1.msra.mxu0 0.0
      %1010 = vmatprep.subr.mxu0 0.0
      %1011 = vmatpush1.msra.mxu0 0.0
      %1012 = vmatprep.subr.mxu0 0.0
      %1013 = vmatpush1.msra.mxu0 0.0
      %1014 = vmatprep.subr.mxu0 0.0
      %1015 = vmatpush1.msra.mxu0 0.0
      %1016 = vmatprep.subr.mxu0 0.0
      %1017 = vmatpush1.msra.mxu0 0.0
      %1018 = vmatprep.subr.mxu0 0.0
      %1019 = vmatpush1.msra.mxu0 0.0
      %1020 = vmatprep.subr.mxu0 0.0
      %1021 = vmatpush1.msra.mxu0 0.0
      %1022 = vmatprep.subr.mxu0 0.0
      %1023 = vmatpush1.msra.mxu0 0.0
      %1024 = vmatprep.subr.mxu0 0.0
      %1025 = vmatpush1.msra.mxu0 0.0
      %1026 = vmatprep.subr.mxu0 0.0
      %1027 = vmatpush1.msra.mxu0 0.0
      %1028 = vmatprep.subr.mxu0 0.0
      %1029 = vmatpush1.msra.mxu0 0.0
      %1030 = vmatprep.subr.mxu0 0.0
      %1031 = vmatpush1.msra.mxu0 0.0
      %1032 = vmatprep.subr.mxu0 0.0
      %1033 = vmatpush1.msra.mxu0 0.0
      %1034 = vmatprep.subr.mxu0 0.0
      %1035 = vmatpush1.msra.mxu0 0.0
      %1036 = vmatprep.subr.mxu0 0.0
      %1037 = vmatpush1.msra.mxu0 0.0
      %1038 = vmatprep.subr.mxu0 0.0
      %1039 = vmatpush1.msra.mxu0 0.0
      %1040 = vmatprep.subr.mxu0 0.0
      %1041 = vmatpush1.msra.mxu0 0.0
      %1042 = vmatprep.subr.mxu0 0.0
      %1043 = vmatpush1.msra.mxu0 0.0
      %1044 = vmatprep.subr.mxu0 0.0
      %1045 = vmatpush1.msra.mxu0 0.0
      %1046 = vmatprep.subr.mxu0 0.0
      %1047 = vmatpush1.msra.mxu0 0.0
      %1048 = vmatprep.subr.mxu0 0.0
      %1049 = vmatpush1.msra.mxu0 0.0
      %1050 = vmatprep.subr.mxu0 0.0
      %1051 = vmatpush1.msra.mxu0 0.0
      %1052 = vmatprep.subr.mxu0 0.0
      %1053 = vmatpush1.msra.mxu0 0.0
      %1054 = vmatprep.mubr.f32.mxu0 0.0
      %1055 = vmatmul.mubr.f32.gmra.mrb[0].mxu0 %v985
      %v1056 = vpop.f32.mrb[0].mxu0
      %v1057 = vadd.f32 0.0, %v1056
      %v1058 = vpop.f32.mrb[0].mxu0
      %1059 = vdwg.mxu0
      %v1060 = vadd.f32 %v982, %v1057
      %v1062 = vlaneseq
      %v1063 = vshrl.u32 %v1062, 7
      %v1064 = vsub.s32 0, %v1063
      %v1065 = vrot.slane %v358, %v1064
      %v1067 = vadd.f32 %v1060, %v1065
      %v1068 = vmax.f32 %v1067, 0.0
      %vm1069 = vcmask 64512
      %1070 = vst.msk [vmem:[%s170] sm:$0xff] %vm1069, %v1068
      %v1071 = vld [vmem:[%s255] sm:$0xff]
      %v1072 = vld [vmem:[%s252] sm:$0xff]
      %v1074 = vsel %vm171, %v1072, 0
      %1076 = vmatprep.subr.mxu0 0.0
      %1077 = vmatpush1.msra.mxu0 %v367
      %1078 = vmatprep.subr.mxu0 0.0
      %1079 = vmatpush1.msra.mxu0 0.0
      %1080 = vmatprep.subr.mxu0 0.0
      %1081 = vmatpush1.msra.mxu0 0.0
      %1082 = vmatprep.subr.mxu0 0.0
      %1083 = vmatpush1.msra.mxu0 0.0
      %1084 = vmatprep.subr.mxu0 0.0
      %1085 = vmatpush1.msra.mxu0 0.0
      %1086 = vmatprep.subr.mxu0 0.0
      %1087 = vmatpush1.msra.mxu0 0.0
      %1088 = vmatprep.subr.mxu0 0.0
      %1089 = vmatpush1.msra.mxu0 0.0
      %1090 = vmatprep.subr.mxu0 0.0
      %1091 = vmatpush1.msra.mxu0 0.0
      %1092 = vmatprep.subr.mxu0 0.0
      %1093 = vmatpush1.msra.mxu0 0.0
      %1094 = vmatprep.subr.mxu0 0.0
      %1095 = vmatpush1.msra.mxu0 0.0
      %1096 = vmatprep.subr.mxu0 0.0
      %1097 = vmatpush1.msra.mxu0 0.0
      %1098 = vmatprep.subr.mxu0 0.0
      %1099 = vmatpush1.msra.mxu0 0.0
      %1100 = vmatprep.subr.mxu0 0.0
      %1101 = vmatpush1.msra.mxu0 0.0
      %1102 = vmatprep.subr.mxu0 0.0
      %1103 = vmatpush1.msra.mxu0 0.0
      %1104 = vmatprep.subr.mxu0 0.0
      %1105 = vmatpush1.msra.mxu0 0.0
      %1106 = vmatprep.subr.mxu0 0.0
      %1107 = vmatpush1.msra.mxu0 0.0
      %1108 = vmatprep.subr.mxu0 0.0
      %1109 = vmatpush1.msra.mxu0 0.0
      %1110 = vmatprep.subr.mxu0 0.0
      %1111 = vmatpush1.msra.mxu0 0.0
      %1112 = vmatprep.subr.mxu0 0.0
      %1113 = vmatpush1.msra.mxu0 0.0
      %1114 = vmatprep.subr.mxu0 0.0
      %1115 = vmatpush1.msra.mxu0 0.0
      %1116 = vmatprep.subr.mxu0 0.0
      %1117 = vmatpush1.msra.mxu0 0.0
      %1118 = vmatprep.subr.mxu0 0.0
      %1119 = vmatpush1.msra.mxu0 0.0
      %1120 = vmatprep.subr.mxu0 0.0
      %1121 = vmatpush1.msra.mxu0 0.0
      %1122 = vmatprep.subr.mxu0 0.0
      %1123 = vmatpush1.msra.mxu0 0.0
      %1124 = vmatprep.subr.mxu0 0.0
      %1125 = vmatpush1.msra.mxu0 0.0
      %1126 = vmatprep.subr.mxu0 0.0
      %1127 = vmatpush1.msra.mxu0 0.0
      %1128 = vmatprep.subr.mxu0 0.0
      %1129 = vmatpush1.msra.mxu0 0.0
      %1130 = vmatprep.subr.mxu0 0.0
      %1131 = vmatpush1.msra.mxu0 0.0
      %1132 = vmatprep.subr.mxu0 0.0
      %1133 = vmatpush1.msra.mxu0 0.0
      %1134 = vmatprep.subr.mxu0 0.0
      %1135 = vmatpush1.msra.mxu0 0.0
      %1136 = vmatprep.subr.mxu0 0.0
      %1137 = vmatpush1.msra.mxu0 0.0
      %1138 = vmatprep.subr.mxu0 0.0
      %1139 = vmatpush1.msra.mxu0 0.0
      %1140 = vmatprep.mubr.f32.mxu0 0.0
      %1141 = vmatmul.mubr.f32.gmra.mrb[0].mxu0 %v1074
      %v1142 = vpop.f32.mrb[0].mxu0
      %v1143 = vadd.f32 0.0, %v1142
      %v1144 = vpop.f32.mrb[0].mxu0
      %1145 = vdwg.mxu0
      %v1147 = vsel %vm171, %v1071, 0
      %1149 = vmatprep.subr.mxu0 0.0
      %1150 = vmatpush1.msra.mxu0 %v443
      %1151 = vmatprep.subr.mxu0 0.0
      %1152 = vmatpush1.msra.mxu0 0.0
      %1153 = vmatprep.subr.mxu0 0.0
      %1154 = vmatpush1.msra.mxu0 0.0
      %1155 = vmatprep.subr.mxu0 0.0
      %1156 = vmatpush1.msra.mxu0 0.0
      %1157 = vmatprep.subr.mxu0 0.0
      %1158 = vmatpush1.msra.mxu0 0.0
      %1159 = vmatprep.subr.mxu0 0.0
      %1160 = vmatpush1.msra.mxu0 0.0
      %1161 = vmatprep.subr.mxu0 0.0
      %1162 = vmatpush1.msra.mxu0 0.0
      %1163 = vmatprep.subr.mxu0 0.0
      %1164 = vmatpush1.msra.mxu0 0.0
      %1165 = vmatprep.subr.mxu0 0.0
      %1166 = vmatpush1.msra.mxu0 0.0
      %1167 = vmatprep.subr.mxu0 0.0
      %1168 = vmatpush1.msra.mxu0 0.0
      %1169 = vmatprep.subr.mxu0 0.0
      %1170 = vmatpush1.msra.mxu0 0.0
      %1171 = vmatprep.subr.mxu0 0.0
      %1172 = vmatpush1.msra.mxu0 0.0
      %1173 = vmatprep.subr.mxu0 0.0
      %1174 = vmatpush1.msra.mxu0 0.0
      %1175 = vmatprep.subr.mxu0 0.0
      %1176 = vmatpush1.msra.mxu0 0.0
      %1177 = vmatprep.subr.mxu0 0.0
      %1178 = vmatpush1.msra.mxu0 0.0
      %1179 = vmatprep.subr.mxu0 0.0
      %1180 = vmatpush1.msra.mxu0 0.0
      %1181 = vmatprep.subr.mxu0 0.0
      %1182 = vmatpush1.msra.mxu0 0.0
      %1183 = vmatprep.subr.mxu0 0.0
      %1184 = vmatpush1.msra.mxu0 0.0
      %1185 = vmatprep.subr.mxu0 0.0
      %1186 = vmatpush1.msra.mxu0 0.0
      %1187 = vmatprep.subr.mxu0 0.0
      %1188 = vmatpush1.msra.mxu0 0.0
      %1189 = vmatprep.subr.mxu0 0.0
      %1190 = vmatpush1.msra.mxu0 0.0
      %1191 = vmatprep.subr.mxu0 0.0
      %1192 = vmatpush1.msra.mxu0 0.0
      %1193 = vmatprep.subr.mxu0 0.0
      %1194 = vmatpush1.msra.mxu0 0.0
      %1195 = vmatprep.subr.mxu0 0.0
      %1196 = vmatpush1.msra.mxu0 0.0
      %1197 = vmatprep.subr.mxu0 0.0
      %1198 = vmatpush1.msra.mxu0 0.0
      %1199 = vmatprep.subr.mxu0 0.0
      %1200 = vmatpush1.msra.mxu0 0.0
      %1201 = vmatprep.subr.mxu0 0.0
      %1202 = vmatpush1.msra.mxu0 0.0
      %1203 = vmatprep.subr.mxu0 0.0
      %1204 = vmatpush1.msra.mxu0 0.0
      %1205 = vmatprep.subr.mxu0 0.0
      %1206 = vmatpush1.msra.mxu0 0.0
      %1207 = vmatprep.subr.mxu0 0.0
      %1208 = vmatpush1.msra.mxu0 0.0
      %1209 = vmatprep.subr.mxu0 0.0
      %1210 = vmatpush1.msra.mxu0 0.0
      %1211 = vmatprep.subr.mxu0 0.0
      %1212 = vmatpush1.msra.mxu0 0.0
      %1213 = vmatprep.mubr.f32.mxu0 0.0
      %1214 = vmatmul.mubr.f32.gmra.mrb[0].mxu0 %v1147
      %v1215 = vpop.f32.mrb[0].mxu0
      %v1216 = vadd.f32 %v1143, %v1215
      %v1217 = vpop.f32.mrb[0].mxu0
      %1218 = vdwg.mxu0
      %v1219 = vld [vmem:[%s255 + $0x1] sm:$0xff]
      %v1221 = vsel %vm171, %v1219, 0
      %1223 = vmatprep.subr.mxu0 0.0
      %1224 = vmatpush1.msra.mxu0 %v520
      %1225 = vmatprep.subr.mxu0 0.0
      %1226 = vmatpush1.msra.mxu0 0.0
      %1227 = vmatprep.subr.mxu0 0.0
      %1228 = vmatpush1.msra.mxu0 0.0
      %1229 = vmatprep.subr.mxu0 0.0
      %1230 = vmatpush1.msra.mxu0 0.0
      %1231 = vmatprep.subr.mxu0 0.0
      %1232 = vmatpush1.msra.mxu0 0.0
      %1233 = vmatprep.subr.mxu0 0.0
      %1234 = vmatpush1.msra.mxu0 0.0
      %1235 = vmatprep.subr.mxu0 0.0
      %1236 = vmatpush1.msra.mxu0 0.0
      %1237 = vmatprep.subr.mxu0 0.0
      %1238 = vmatpush1.msra.mxu0 0.0
      %1239 = vmatprep.subr.mxu0 0.0
      %1240 = vmatpush1.msra.mxu0 0.0
      %1241 = vmatprep.subr.mxu0 0.0
      %1242 = vmatpush1.msra.mxu0 0.0
      %1243 = vmatprep.subr.mxu0 0.0
      %1244 = vmatpush1.msra.mxu0 0.0
      %1245 = vmatprep.subr.mxu0 0.0
      %1246 = vmatpush1.msra.mxu0 0.0
      %1247 = vmatprep.subr.mxu0 0.0
      %1248 = vmatpush1.msra.mxu0 0.0
      %1249 = vmatprep.subr.mxu0 0.0
      %1250 = vmatpush1.msra.mxu0 0.0
      %1251 = vmatprep.subr.mxu0 0.0
      %1252 = vmatpush1.msra.mxu0 0.0
      %1253 = vmatprep.subr.mxu0 0.0
      %1254 = vmatpush1.msra.mxu0 0.0
      %1255 = vmatprep.subr.mxu0 0.0
      %1256 = vmatpush1.msra.mxu0 0.0
      %1257 = vmatprep.subr.mxu0 0.0
      %1258 = vmatpush1.msra.mxu0 0.0
      %1259 = vmatprep.subr.mxu0 0.0
      %1260 = vmatpush1.msra.mxu0 0.0
      %1261 = vmatprep.subr.mxu0 0.0
      %1262 = vmatpush1.msra.mxu0 0.0
      %1263 = vmatprep.subr.mxu0 0.0
      %1264 = vmatpush1.msra.mxu0 0.0
      %1265 = vmatprep.subr.mxu0 0.0
      %1266 = vmatpush1.msra.mxu0 0.0
      %1267 = vmatprep.subr.mxu0 0.0
      %1268 = vmatpush1.msra.mxu0 0.0
      %1269 = vmatprep.subr.mxu0 0.0
      %1270 = vmatpush1.msra.mxu0 0.0
      %1271 = vmatprep.subr.mxu0 0.0
      %1272 = vmatpush1.msra.mxu0 0.0
      %1273 = vmatprep.subr.mxu0 0.0
      %1274 = vmatpush1.msra.mxu0 0.0
      %1275 = vmatprep.subr.mxu0 0.0
      %1276 = vmatpush1.msra.mxu0 0.0
      %1277 = vmatprep.subr.mxu0 0.0
      %1278 = vmatpush1.msra.mxu0 0.0
      %1279 = vmatprep.subr.mxu0 0.0
      %1280 = vmatpush1.msra.mxu0 0.0
      %1281 = vmatprep.subr.mxu0 0.0
      %1282 = vmatpush1.msra.mxu0 0.0
      %1283 = vmatprep.subr.mxu0 0.0
      %1284 = vmatpush1.msra.mxu0 0.0
      %1285 = vmatprep.subr.mxu0 0.0
      %1286 = vmatpush1.msra.mxu0 0.0
      %1287 = vmatprep.mubr.f32.mxu0 0.0
      %1288 = vmatmul.mubr.f32.gmra.mrb[0].mxu0 %v1221
      %v1289 = vpop.f32.mrb[0].mxu0
      %v1290 = vadd.f32 0.0, %v1289
      %v1291 = vpop.f32.mrb[0].mxu0
      %1292 = vdwg.mxu0
      %v1293 = vadd.f32 %v1216, %v1290
      %v1294 = vld [vmem:[%s261] sm:$0xff]
      %v1296 = vsel %vm171, %v1294, 0
      %1298 = vmatprep.subr.mxu0 0.0
      %1299 = vmatpush1.msra.mxu0 %v598
      %1300 = vmatprep.subr.mxu0 0.0
      %1301 = vmatpush1.msra.mxu0 0.0
      %1302 = vmatprep.subr.mxu0 0.0
      %1303 = vmatpush1.msra.mxu0 0.0
      %1304 = vmatprep.subr.mxu0 0.0
      %1305 = vmatpush1.msra.mxu0 0.0
      %1306 = vmatprep.subr.mxu0 0.0
      %1307 = vmatpush1.msra.mxu0 0.0
      %1308 = vmatprep.subr.mxu0 0.0
      %1309 = vmatpush1.msra.mxu0 0.0
      %1310 = vmatprep.subr.mxu0 0.0
      %1311 = vmatpush1.msra.mxu0 0.0
      %1312 = vmatprep.subr.mxu0 0.0
      %1313 = vmatpush1.msra.mxu0 0.0
      %1314 = vmatprep.subr.mxu0 0.0
      %1315 = vmatpush1.msra.mxu0 0.0
      %1316 = vmatprep.subr.mxu0 0.0
      %1317 = vmatpush1.msra.mxu0 0.0
      %1318 = vmatprep.subr.mxu0 0.0
      %1319 = vmatpush1.msra.mxu0 0.0
      %1320 = vmatprep.subr.mxu0 0.0
      %1321 = vmatpush1.msra.mxu0 0.0
      %1322 = vmatprep.subr.mxu0 0.0
      %1323 = vmatpush1.msra.mxu0 0.0
      %1324 = vmatprep.subr.mxu0 0.0
      %1325 = vmatpush1.msra.mxu0 0.0
      %1326 = vmatprep.subr.mxu0 0.0
      %1327 = vmatpush1.msra.mxu0 0.0
      %1328 = vmatprep.subr.mxu0 0.0
      %1329 = vmatpush1.msra.mxu0 0.0
      %1330 = vmatprep.subr.mxu0 0.0
      %1331 = vmatpush1.msra.mxu0 0.0
      %1332 = vmatprep.subr.mxu0 0.0
      %1333 = vmatpush1.msra.mxu0 0.0
      %1334 = vmatprep.subr.mxu0 0.0
      %1335 = vmatpush1.msra.mxu0 0.0
      %1336 = vmatprep.subr.mxu0 0.0
      %1337 = vmatpush1.msra.mxu0 0.0
      %1338 = vmatprep.subr.mxu0 0.0
      %1339 = vmatpush1.msra.mxu0 0.0
      %1340 = vmatprep.subr.mxu0 0.0
      %1341 = vmatpush1.msra.mxu0 0.0
      %1342 = vmatprep.subr.mxu0 0.0
      %1343 = vmatpush1.msra.mxu0 0.0
      %1344 = vmatprep.subr.mxu0 0.0
      %1345 = vmatpush1.msra.mxu0 0.0
      %1346 = vmatprep.subr.mxu0 0.0
      %1347 = vmatpush1.msra.mxu0 0.0
      %1348 = vmatprep.subr.mxu0 0.0
      %1349 = vmatpush1.msra.mxu0 0.0
      %1350 = vmatprep.subr.mxu0 0.0
      %1351 = vmatpush1.msra.mxu0 0.0
      %1352 = vmatprep.subr.mxu0 0.0
      %1353 = vmatpush1.msra.mxu0 0.0
      %1354 = vmatprep.subr.mxu0 0.0
      %1355 = vmatpush1.msra.mxu0 0.0
      %1356 = vmatprep.subr.mxu0 0.0
      %1357 = vmatpush1.msra.mxu0 0.0
      %1358 = vmatprep.subr.mxu0 0.0
      %1359 = vmatpush1.msra.mxu0 0.0
      %1360 = vmatprep.subr.mxu0 0.0
      %1361 = vmatpush1.msra.mxu0 0.0
      %1362 = vmatprep.mubr.f32.mxu0 0.0
      %1363 = vmatmul.mubr.f32.gmra.mrb[0].mxu0 %v1296
      %v1364 = vpop.f32.mrb[0].mxu0
      %v1365 = vadd.f32 0.0, %v1364
      %v1366 = vpop.f32.mrb[0].mxu0
      %1367 = vdwg.mxu0
      %v1368 = vadd.f32 %v1293, %v1365
      %v1369 = vld [vmem:[%s258] sm:$0xff]
      %v1371 = vsel %vm171, %v1369, 0
      %1373 = vmatprep.subr.mxu0 0.0
      %1374 = vmatpush1.msra.mxu0 %v676
      %1375 = vmatprep.subr.mxu0 0.0
      %1376 = vmatpush1.msra.mxu0 0.0
      %1377 = vmatprep.subr.mxu0 0.0
      %1378 = vmatpush1.msra.mxu0 0.0
      %1379 = vmatprep.subr.mxu0 0.0
      %1380 = vmatpush1.msra.mxu0 0.0
      %1381 = vmatprep.subr.mxu0 0.0
      %1382 = vmatpush1.msra.mxu0 0.0
      %1383 = vmatprep.subr.mxu0 0.0
      %1384 = vmatpush1.msra.mxu0 0.0
      %1385 = vmatprep.subr.mxu0 0.0
      %1386 = vmatpush1.msra.mxu0 0.0
      %1387 = vmatprep.subr.mxu0 0.0
      %1388 = vmatpush1.msra.mxu0 0.0
      %1389 = vmatprep.subr.mxu0 0.0
      %1390 = vmatpush1.msra.mxu0 0.0
      %1391 = vmatprep.subr.mxu0 0.0
      %1392 = vmatpush1.msra.mxu0 0.0
      %1393 = vmatprep.subr.mxu0 0.0
      %1394 = vmatpush1.msra.mxu0 0.0
      %1395 = vmatprep.subr.mxu0 0.0
      %1396 = vmatpush1.msra.mxu0 0.0
      %1397 = vmatprep.subr.mxu0 0.0
      %1398 = vmatpush1.msra.mxu0 0.0
      %1399 = vmatprep.subr.mxu0 0.0
      %1400 = vmatpush1.msra.mxu0 0.0
      %1401 = vmatprep.subr.mxu0 0.0
      %1402 = vmatpush1.msra.mxu0 0.0
      %1403 = vmatprep.subr.mxu0 0.0
      %1404 = vmatpush1.msra.mxu0 0.0
      %1405 = vmatprep.subr.mxu0 0.0
      %1406 = vmatpush1.msra.mxu0 0.0
      %1407 = vmatprep.subr.mxu0 0.0
      %1408 = vmatpush1.msra.mxu0 0.0
      %1409 = vmatprep.subr.mxu0 0.0
      %1410 = vmatpush1.msra.mxu0 0.0
      %1411 = vmatprep.subr.mxu0 0.0
      %1412 = vmatpush1.msra.mxu0 0.0
      %1413 = vmatprep.subr.mxu0 0.0
      %1414 = vmatpush1.msra.mxu0 0.0
      %1415 = vmatprep.subr.mxu0 0.0
      %1416 = vmatpush1.msra.mxu0 0.0
      %1417 = vmatprep.subr.mxu0 0.0
      %1418 = vmatpush1.msra.mxu0 0.0
      %1419 = vmatprep.subr.mxu0 0.0
      %1420 = vmatpush1.msra.mxu0 0.0
      %1421 = vmatprep.subr.mxu0 0.0
      %1422 = vmatpush1.msra.mxu0 0.0
      %1423 = vmatprep.subr.mxu0 0.0
      %1424 = vmatpush1.msra.mxu0 0.0
      %1425 = vmatprep.subr.mxu0 0.0
      %1426 = vmatpush1.msra.mxu0 0.0
      %1427 = vmatprep.subr.mxu0 0.0
      %1428 = vmatpush1.msra.mxu0 0.0
      %1429 = vmatprep.subr.mxu0 0.0
      %1430 = vmatpush1.msra.mxu0 0.0
      %1431 = vmatprep.subr.mxu0 0.0
      %1432 = vmatpush1.msra.mxu0 0.0
      %1433 = vmatprep.subr.mxu0 0.0
      %1434 = vmatpush1.msra.mxu0 0.0
      %1435 = vmatprep.subr.mxu0 0.0
      %1436 = vmatpush1.msra.mxu0 0.0
      %1437 = vmatprep.mubr.f32.mxu0 0.0
      %1438 = vmatmul.mubr.f32.gmra.mrb[0].mxu0 %v1371
      %v1439 = vpop.f32.mrb[0].mxu0
      %v1440 = vadd.f32 0.0, %v1439
      %v1441 = vpop.f32.mrb[0].mxu0
      %1442 = vdwg.mxu0
      %v1443 = vadd.f32 %v1368, %v1440
      %v1444 = vld [vmem:[%s261 + $0x1] sm:$0xff]
      %v1446 = vsel %vm171, %v1444, 0
      %1448 = vmatprep.subr.mxu0 0.0
      %1449 = vmatpush1.msra.mxu0 %v754
      %1450 = vmatprep.subr.mxu0 0.0
      %1451 = vmatpush1.msra.mxu0 0.0
      %1452 = vmatprep.subr.mxu0 0.0
      %1453 = vmatpush1.msra.mxu0 0.0
      %1454 = vmatprep.subr.mxu0 0.0
      %1455 = vmatpush1.msra.mxu0 0.0
      %1456 = vmatprep.subr.mxu0 0.0
      %1457 = vmatpush1.msra.mxu0 0.0
      %1458 = vmatprep.subr.mxu0 0.0
      %1459 = vmatpush1.msra.mxu0 0.0
      %1460 = vmatprep.subr.mxu0 0.0
      %1461 = vmatpush1.msra.mxu0 0.0
      %1462 = vmatprep.subr.mxu0 0.0
      %1463 = vmatpush1.msra.mxu0 0.0
      %1464 = vmatprep.subr.mxu0 0.0
      %1465 = vmatpush1.msra.mxu0 0.0
      %1466 = vmatprep.subr.mxu0 0.0
      %1467 = vmatpush1.msra.mxu0 0.0
      %1468 = vmatprep.subr.mxu0 0.0
      %1469 = vmatpush1.msra.mxu0 0.0
      %1470 = vmatprep.subr.mxu0 0.0
      %1471 = vmatpush1.msra.mxu0 0.0
      %1472 = vmatprep.subr.mxu0 0.0
      %1473 = vmatpush1.msra.mxu0 0.0
      %1474 = vmatprep.subr.mxu0 0.0
      %1475 = vmatpush1.msra.mxu0 0.0
      %1476 = vmatprep.subr.mxu0 0.0
      %1477 = vmatpush1.msra.mxu0 0.0
      %1478 = vmatprep.subr.mxu0 0.0
      %1479 = vmatpush1.msra.mxu0 0.0
      %1480 = vmatprep.subr.mxu0 0.0
      %1481 = vmatpush1.msra.mxu0 0.0
      %1482 = vmatprep.subr.mxu0 0.0
      %1483 = vmatpush1.msra.mxu0 0.0
      %1484 = vmatprep.subr.mxu0 0.0
      %1485 = vmatpush1.msra.mxu0 0.0
      %1486 = vmatprep.subr.mxu0 0.0
      %1487 = vmatpush1.msra.mxu0 0.0
      %1488 = vmatprep.subr.mxu0 0.0
      %1489 = vmatpush1.msra.mxu0 0.0
      %1490 = vmatprep.subr.mxu0 0.0
      %1491 = vmatpush1.msra.mxu0 0.0
      %1492 = vmatprep.subr.mxu0 0.0
      %1493 = vmatpush1.msra.mxu0 0.0
      %1494 = vmatprep.subr.mxu0 0.0
      %1495 = vmatpush1.msra.mxu0 0.0
      %1496 = vmatprep.subr.mxu0 0.0
      %1497 = vmatpush1.msra.mxu0 0.0
      %1498 = vmatprep.subr.mxu0 0.0
      %1499 = vmatpush1.msra.mxu0 0.0
      %1500 = vmatprep.subr.mxu0 0.0
      %1501 = vmatpush1.msra.mxu0 0.0
      %1502 = vmatprep.subr.mxu0 0.0
      %1503 = vmatpush1.msra.mxu0 0.0
      %1504 = vmatprep.subr.mxu0 0.0
      %1505 = vmatpush1.msra.mxu0 0.0
      %1506 = vmatprep.subr.mxu0 0.0
      %1507 = vmatpush1.msra.mxu0 0.0
      %1508 = vmatprep.subr.mxu0 0.0
      %1509 = vmatpush1.msra.mxu0 0.0
      %1510 = vmatprep.subr.mxu0 0.0
      %1511 = vmatpush1.msra.mxu0 0.0
      %1512 = vmatprep.mubr.f32.mxu0 0.0
      %1513 = vmatmul.mubr.f32.gmra.mrb[0].mxu0 %v1446
      %v1514 = vpop.f32.mrb[0].mxu0
      %v1515 = vadd.f32 0.0, %v1514
      %v1516 = vpop.f32.mrb[0].mxu0
      %1517 = vdwg.mxu0
      %v1518 = vadd.f32 %v1443, %v1515
      %v1519 = vld [vmem:[%s267] sm:$0xff]
      %v1521 = vsel %vm171, %v1519, 0
      %1523 = vmatprep.subr.mxu0 0.0
      %1524 = vmatpush1.msra.mxu0 %v832
      %1525 = vmatprep.subr.mxu0 0.0
      %1526 = vmatpush1.msra.mxu0 0.0
      %1527 = vmatprep.subr.mxu0 0.0
      %1528 = vmatpush1.msra.mxu0 0.0
      %1529 = vmatprep.subr.mxu0 0.0
      %1530 = vmatpush1.msra.mxu0 0.0
      %1531 = vmatprep.subr.mxu0 0.0
      %1532 = vmatpush1.msra.mxu0 0.0
      %1533 = vmatprep.subr.mxu0 0.0
      %1534 = vmatpush1.msra.mxu0 0.0
      %1535 = vmatprep.subr.mxu0 0.0
      %1536 = vmatpush1.msra.mxu0 0.0
      %1537 = vmatprep.subr.mxu0 0.0
      %1538 = vmatpush1.msra.mxu0 0.0
      %1539 = vmatprep.subr.mxu0 0.0
      %1540 = vmatpush1.msra.mxu0 0.0
      %1541 = vmatprep.subr.mxu0 0.0
      %1542 = vmatpush1.msra.mxu0 0.0
      %1543 = vmatprep.subr.mxu0 0.0
      %1544 = vmatpush1.msra.mxu0 0.0
      %1545 = vmatprep.subr.mxu0 0.0
      %1546 = vmatpush1.msra.mxu0 0.0
      %1547 = vmatprep.subr.mxu0 0.0
      %1548 = vmatpush1.msra.mxu0 0.0
      %1549 = vmatprep.subr.mxu0 0.0
      %1550 = vmatpush1.msra.mxu0 0.0
      %1551 = vmatprep.subr.mxu0 0.0
      %1552 = vmatpush1.msra.mxu0 0.0
      %1553 = vmatprep.subr.mxu0 0.0
      %1554 = vmatpush1.msra.mxu0 0.0
      %1555 = vmatprep.subr.mxu0 0.0
      %1556 = vmatpush1.msra.mxu0 0.0
      %1557 = vmatprep.subr.mxu0 0.0
      %1558 = vmatpush1.msra.mxu0 0.0
      %1559 = vmatprep.subr.mxu0 0.0
      %1560 = vmatpush1.msra.mxu0 0.0
      %1561 = vmatprep.subr.mxu0 0.0
      %1562 = vmatpush1.msra.mxu0 0.0
      %1563 = vmatprep.subr.mxu0 0.0
      %1564 = vmatpush1.msra.mxu0 0.0
      %1565 = vmatprep.subr.mxu0 0.0
      %1566 = vmatpush1.msra.mxu0 0.0
      %1567 = vmatprep.subr.mxu0 0.0
      %1568 = vmatpush1.msra.mxu0 0.0
      %1569 = vmatprep.subr.mxu0 0.0
      %1570 = vmatpush1.msra.mxu0 0.0
      %1571 = vmatprep.subr.mxu0 0.0
      %1572 = vmatpush1.msra.mxu0 0.0
      %1573 = vmatprep.subr.mxu0 0.0
      %1574 = vmatpush1.msra.mxu0 0.0
      %1575 = vmatprep.subr.mxu0 0.0
      %1576 = vmatpush1.msra.mxu0 0.0
      %1577 = vmatprep.subr.mxu0 0.0
      %1578 = vmatpush1.msra.mxu0 0.0
      %1579 = vmatprep.subr.mxu0 0.0
      %1580 = vmatpush1.msra.mxu0 0.0
      %1581 = vmatprep.subr.mxu0 0.0
      %1582 = vmatpush1.msra.mxu0 0.0
      %1583 = vmatprep.subr.mxu0 0.0
      %1584 = vmatpush1.msra.mxu0 0.0
      %1585 = vmatprep.subr.mxu0 0.0
      %1586 = vmatpush1.msra.mxu0 0.0
      %1587 = vmatprep.mubr.f32.mxu0 0.0
      %1588 = vmatmul.mubr.f32.gmra.mrb[0].mxu0 %v1521
      %v1589 = vpop.f32.mrb[0].mxu0
      %v1590 = vadd.f32 0.0, %v1589
      %v1591 = vpop.f32.mrb[0].mxu0
      %1592 = vdwg.mxu0
      %v1593 = vadd.f32 %v1518, %v1590
      %v1594 = vld [vmem:[%s264] sm:$0xff]
      %v1596 = vsel %vm171, %v1594, 0
      %1598 = vmatprep.subr.mxu0 0.0
      %1599 = vmatpush1.msra.mxu0 %v910
      %1600 = vmatprep.subr.mxu0 0.0
      %1601 = vmatpush1.msra.mxu0 0.0
      %1602 = vmatprep.subr.mxu0 0.0
      %1603 = vmatpush1.msra.mxu0 0.0
      %1604 = vmatprep.subr.mxu0 0.0
      %1605 = vmatpush1.msra.mxu0 0.0
      %1606 = vmatprep.subr.mxu0 0.0
      %1607 = vmatpush1.msra.mxu0 0.0
      %1608 = vmatprep.subr.mxu0 0.0
      %1609 = vmatpush1.msra.mxu0 0.0
      %1610 = vmatprep.subr.mxu0 0.0
      %1611 = vmatpush1.msra.mxu0 0.0
      %1612 = vmatprep.subr.mxu0 0.0
      %1613 = vmatpush1.msra.mxu0 0.0
      %1614 = vmatprep.subr.mxu0 0.0
      %1615 = vmatpush1.msra.mxu0 0.0
      %1616 = vmatprep.subr.mxu0 0.0
      %1617 = vmatpush1.msra.mxu0 0.0
      %1618 = vmatprep.subr.mxu0 0.0
      %1619 = vmatpush1.msra.mxu0 0.0
      %1620 = vmatprep.subr.mxu0 0.0
      %1621 = vmatpush1.msra.mxu0 0.0
      %1622 = vmatprep.subr.mxu0 0.0
      %1623 = vmatpush1.msra.mxu0 0.0
      %1624 = vmatprep.subr.mxu0 0.0
      %1625 = vmatpush1.msra.mxu0 0.0
      %1626 = vmatprep.subr.mxu0 0.0
      %1627 = vmatpush1.msra.mxu0 0.0
      %1628 = vmatprep.subr.mxu0 0.0
      %1629 = vmatpush1.msra.mxu0 0.0
      %1630 = vmatprep.subr.mxu0 0.0
      %1631 = vmatpush1.msra.mxu0 0.0
      %1632 = vmatprep.subr.mxu0 0.0
      %1633 = vmatpush1.msra.mxu0 0.0
      %1634 = vmatprep.subr.mxu0 0.0
      %1635 = vmatpush1.msra.mxu0 0.0
      %1636 = vmatprep.subr.mxu0 0.0
      %1637 = vmatpush1.msra.mxu0 0.0
      %1638 = vmatprep.subr.mxu0 0.0
      %1639 = vmatpush1.msra.mxu0 0.0
      %1640 = vmatprep.subr.mxu0 0.0
      %1641 = vmatpush1.msra.mxu0 0.0
      %1642 = vmatprep.subr.mxu0 0.0
      %1643 = vmatpush1.msra.mxu0 0.0
      %1644 = vmatprep.subr.mxu0 0.0
      %1645 = vmatpush1.msra.mxu0 0.0
      %1646 = vmatprep.subr.mxu0 0.0
      %1647 = vmatpush1.msra.mxu0 0.0
      %1648 = vmatprep.subr.mxu0 0.0
      %1649 = vmatpush1.msra.mxu0 0.0
      %1650 = vmatprep.subr.mxu0 0.0
      %1651 = vmatpush1.msra.mxu0 0.0
      %1652 = vmatprep.subr.mxu0 0.0
      %1653 = vmatpush1.msra.mxu0 0.0
      %1654 = vmatprep.subr.mxu0 0.0
      %1655 = vmatpush1.msra.mxu0 0.0
      %1656 = vmatprep.subr.mxu0 0.0
      %1657 = vmatpush1.msra.mxu0 0.0
      %1658 = vmatprep.subr.mxu0 0.0
      %1659 = vmatpush1.msra.mxu0 0.0
      %1660 = vmatprep.subr.mxu0 0.0
      %1661 = vmatpush1.msra.mxu0 0.0
      %1662 = vmatprep.mubr.f32.mxu0 0.0
      %1663 = vmatmul.mubr.f32.gmra.mrb[0].mxu0 %v1596
      %v1664 = vpop.f32.mrb[0].mxu0
      %v1665 = vadd.f32 0.0, %v1664
      %v1666 = vpop.f32.mrb[0].mxu0
      %1667 = vdwg.mxu0
      %v1668 = vadd.f32 %v1593, %v1665
      %v1669 = vld [vmem:[%s267 + $0x1] sm:$0xff]
      %v1671 = vsel %vm171, %v1669, 0
      %1673 = vmatprep.subr.mxu0 0.0
      %1674 = vmatpush1.msra.mxu0 %v988
      %1675 = vmatprep.subr.mxu0 0.0
      %1676 = vmatpush1.msra.mxu0 0.0
      %1677 = vmatprep.subr.mxu0 0.0
      %1678 = vmatpush1.msra.mxu0 0.0
      %1679 = vmatprep.subr.mxu0 0.0
      %1680 = vmatpush1.msra.mxu0 0.0
      %1681 = vmatprep.subr.mxu0 0.0
      %1682 = vmatpush1.msra.mxu0 0.0
      %1683 = vmatprep.subr.mxu0 0.0
      %1684 = vmatpush1.msra.mxu0 0.0
      %1685 = vmatprep.subr.mxu0 0.0
      %1686 = vmatpush1.msra.mxu0 0.0
      %1687 = vmatprep.subr.mxu0 0.0
      %1688 = vmatpush1.msra.mxu0 0.0
      %1689 = vmatprep.subr.mxu0 0.0
      %1690 = vmatpush1.msra.mxu0 0.0
      %1691 = vmatprep.subr.mxu0 0.0
      %1692 = vmatpush1.msra.mxu0 0.0
      %1693 = vmatprep.subr.mxu0 0.0
      %1694 = vmatpush1.msra.mxu0 0.0
      %1695 = vmatprep.subr.mxu0 0.0
      %1696 = vmatpush1.msra.mxu0 0.0
      %1697 = vmatprep.subr.mxu0 0.0
      %1698 = vmatpush1.msra.mxu0 0.0
      %1699 = vmatprep.subr.mxu0 0.0
      %1700 = vmatpush1.msra.mxu0 0.0
      %1701 = vmatprep.subr.mxu0 0.0
      %1702 = vmatpush1.msra.mxu0 0.0
      %1703 = vmatprep.subr.mxu0 0.0
      %1704 = vmatpush1.msra.mxu0 0.0
      %1705 = vmatprep.subr.mxu0 0.0
      %1706 = vmatpush1.msra.mxu0 0.0
      %1707 = vmatprep.subr.mxu0 0.0
      %1708 = vmatpush1.msra.mxu0 0.0
      %1709 = vmatprep.subr.mxu0 0.0
      %1710 = vmatpush1.msra.mxu0 0.0
      %1711 = vmatprep.subr.mxu0 0.0
      %1712 = vmatpush1.msra.mxu0 0.0
      %1713 = vmatprep.subr.mxu0 0.0
      %1714 = vmatpush1.msra.mxu0 0.0
      %1715 = vmatprep.subr.mxu0 0.0
      %1716 = vmatpush1.msra.mxu0 0.0
      %1717 = vmatprep.subr.mxu0 0.0
      %1718 = vmatpush1.msra.mxu0 0.0
      %1719 = vmatprep.subr.mxu0 0.0
      %1720 = vmatpush1.msra.mxu0 0.0
      %1721 = vmatprep.subr.mxu0 0.0
      %1722 = vmatpush1.msra.mxu0 0.0
      %1723 = vmatprep.subr.mxu0 0.0
      %1724 = vmatpush1.msra.mxu0 0.0
      %1725 = vmatprep.subr.mxu0 0.0
      %1726 = vmatpush1.msra.mxu0 0.0
      %1727 = vmatprep.subr.mxu0 0.0
      %1728 = vmatpush1.msra.mxu0 0.0
      %1729 = vmatprep.subr.mxu0 0.0
      %1730 = vmatpush1.msra.mxu0 0.0
      %1731 = vmatprep.subr.mxu0 0.0
      %1732 = vmatpush1.msra.mxu0 0.0
      %1733 = vmatprep.subr.mxu0 0.0
      %1734 = vmatpush1.msra.mxu0 0.0
      %1735 = vmatprep.subr.mxu0 0.0
      %1736 = vmatpush1.msra.mxu0 0.0
      %1737 = vmatprep.mubr.f32.mxu0 0.0
      %1738 = vmatmul.mubr.f32.gmra.mrb[0].mxu0 %v1671
      %v1739 = vpop.f32.mrb[0].mxu0
      %v1740 = vadd.f32 0.0, %v1739
      %v1741 = vpop.f32.mrb[0].mxu0
      %1742 = vdwg.mxu0
      %v1743 = vadd.f32 %v1668, %v1740
      %v1744 = vadd.f32 %v1743, %v1065
      %v1745 = vmax.f32 %v1744, 0.0
      %1746 = vst.msk [vmem:[%s170 + $0x8] sm:$0xff] %vm1069, %v1745
      %v1747 = vld [vmem:[%s267] sm:$0xff]
      %v1748 = vld [vmem:[%s264] sm:$0xff]
      %v1750 = vsel %vm171, %v1748, 0
      %1752 = vmatprep.subr.mxu0 0.0
      %1753 = vmatpush1.msra.mxu0 %v367
      %1754 = vmatprep.subr.mxu0 0.0
      %1755 = vmatpush1.msra.mxu0 0.0
      %1756 = vmatprep.subr.mxu0 0.0
      %1757 = vmatpush1.msra.mxu0 0.0
      %1758 = vmatprep.subr.mxu0 0.0
      %1759 = vmatpush1.msra.mxu0 0.0
      %1760 = vmatprep.subr.mxu0 0.0
      %1761 = vmatpush1.msra.mxu0 0.0
      %1762 = vmatprep.subr.mxu0 0.0
      %1763 = vmatpush1.msra.mxu0 0.0
      %1764 = vmatprep.subr.mxu0 0.0
      %1765 = vmatpush1.msra.mxu0 0.0
      %1766 = vmatprep.subr.mxu0 0.0
      %1767 = vmatpush1.msra.mxu0 0.0
      %1768 = vmatprep.subr.mxu0 0.0
      %1769 = vmatpush1.msra.mxu0 0.0
      %1770 = vmatprep.subr.mxu0 0.0
      %1771 = vmatpush1.msra.mxu0 0.0
      %1772 = vmatprep.subr.mxu0 0.0
      %1773 = vmatpush1.msra.mxu0 0.0
      %1774 = vmatprep.subr.mxu0 0.0
      %1775 = vmatpush1.msra.mxu0 0.0
      %1776 = vmatprep.subr.mxu0 0.0
      %1777 = vmatpush1.msra.mxu0 0.0
      %1778 = vmatprep.subr.mxu0 0.0
      %1779 = vmatpush1.msra.mxu0 0.0
      %1780 = vmatprep.subr.mxu0 0.0
      %1781 = vmatpush1.msra.mxu0 0.0
      %1782 = vmatprep.subr.mxu0 0.0
      %1783 = vmatpush1.msra.mxu0 0.0
      %1784 = vmatprep.subr.mxu0 0.0
      %1785 = vmatpush1.msra.mxu0 0.0
      %1786 = vmatprep.subr.mxu0 0.0
      %1787 = vmatpush1.msra.mxu0 0.0
      %1788 = vmatprep.subr.mxu0 0.0
      %1789 = vmatpush1.msra.mxu0 0.0
      %1790 = vmatprep.subr.mxu0 0.0
      %1791 = vmatpush1.msra.mxu0 0.0
      %1792 = vmatprep.subr.mxu0 0.0
      %1793 = vmatpush1.msra.mxu0 0.0
      %1794 = vmatprep.subr.mxu0 0.0
      %1795 = vmatpush1.msra.mxu0 0.0
      %1796 = vmatprep.subr.mxu0 0.0
      %1797 = vmatpush1.msra.mxu0 0.0
      %1798 = vmatprep.subr.mxu0 0.0
      %1799 = vmatpush1.msra.mxu0 0.0
      %1800 = vmatprep.subr.mxu0 0.0
      %1801 = vmatpush1.msra.mxu0 0.0
      %1802 = vmatprep.subr.mxu0 0.0
      %1803 = vmatpush1.msra.mxu0 0.0
      %1804 = vmatprep.subr.mxu0 0.0
      %1805 = vmatpush1.msra.mxu0 0.0
      %1806 = vmatprep.subr.mxu0 0.0
      %1807 = vmatpush1.msra.mxu0 0.0
      %1808 = vmatprep.subr.mxu0 0.0
      %1809 = vmatpush1.msra.mxu0 0.0
      %1810 = vmatprep.subr.mxu0 0.0
      %1811 = vmatpush1.msra.mxu0 0.0
      %1812 = vmatprep.subr.mxu0 0.0
      %1813 = vmatpush1.msra.mxu0 0.0
      %1814 = vmatprep.subr.mxu0 0.0
      %1815 = vmatpush1.msra.mxu0 0.0
      %1816 = vmatprep.mubr.f32.mxu0 0.0
      %1817 = vmatmul.mubr.f32.gmra.mrb[0].mxu0 %v1750
      %v1818 = vpop.f32.mrb[0].mxu0
      %v1819 = vadd.f32 0.0, %v1818
      %v1820 = vpop.f32.mrb[0].mxu0
      %1821 = vdwg.mxu0
      %v1823 = vsel %vm171, %v1747, 0
      %1825 = vmatprep.subr.mxu0 0.0
      %1826 = vmatpush1.msra.mxu0 %v443
      %1827 = vmatprep.subr.mxu0 0.0
      %1828 = vmatpush1.msra.mxu0 0.0
      %1829 = vmatprep.subr.mxu0 0.0
      %1830 = vmatpush1.msra.mxu0 0.0
      %1831 = vmatprep.subr.mxu0 0.0
      %1832 = vmatpush1.msra.mxu0 0.0
      %1833 = vmatprep.subr.mxu0 0.0
      %1834 = vmatpush1.msra.mxu0 0.0
      %1835 = vmatprep.subr.mxu0 0.0
      %1836 = vmatpush1.msra.mxu0 0.0
      %1837 = vmatprep.subr.mxu0 0.0
      %1838 = vmatpush1.msra.mxu0 0.0
      %1839 = vmatprep.subr.mxu0 0.0
      %1840 = vmatpush1.msra.mxu0 0.0
      %1841 = vmatprep.subr.mxu0 0.0
      %1842 = vmatpush1.msra.mxu0 0.0
      %1843 = vmatprep.subr.mxu0 0.0
      %1844 = vmatpush1.msra.mxu0 0.0
      %1845 = vmatprep.subr.mxu0 0.0
      %1846 = vmatpush1.msra.mxu0 0.0
      %1847 = vmatprep.subr.mxu0 0.0
      %1848 = vmatpush1.msra.mxu0 0.0
      %1849 = vmatprep.subr.mxu0 0.0
      %1850 = vmatpush1.msra.mxu0 0.0
      %1851 = vmatprep.subr.mxu0 0.0
      %1852 = vmatpush1.msra.mxu0 0.0
      %1853 = vmatprep.subr.mxu0 0.0
      %1854 = vmatpush1.msra.mxu0 0.0
      %1855 = vmatprep.subr.mxu0 0.0
      %1856 = vmatpush1.msra.mxu0 0.0
      %1857 = vmatprep.subr.mxu0 0.0
      %1858 = vmatpush1.msra.mxu0 0.0
      %1859 = vmatprep.subr.mxu0 0.0
      %1860 = vmatpush1.msra.mxu0 0.0
      %1861 = vmatprep.subr.mxu0 0.0
      %1862 = vmatpush1.msra.mxu0 0.0
      %1863 = vmatprep.subr.mxu0 0.0
      %1864 = vmatpush1.msra.mxu0 0.0
      %1865 = vmatprep.subr.mxu0 0.0
      %1866 = vmatpush1.msra.mxu0 0.0
      %1867 = vmatprep.subr.mxu0 0.0
      %1868 = vmatpush1.msra.mxu0 0.0
      %1869 = vmatprep.subr.mxu0 0.0
      %1870 = vmatpush1.msra.mxu0 0.0
      %1871 = vmatprep.subr.mxu0 0.0
      %1872 = vmatpush1.msra.mxu0 0.0
      %1873 = vmatprep.subr.mxu0 0.0
      %1874 = vmatpush1.msra.mxu0 0.0
      %1875 = vmatprep.subr.mxu0 0.0
      %1876 = vmatpush1.msra.mxu0 0.0
      %1877 = vmatprep.subr.mxu0 0.0
      %1878 = vmatpush1.msra.mxu0 0.0
      %1879 = vmatprep.subr.mxu0 0.0
      %1880 = vmatpush1.msra.mxu0 0.0
      %1881 = vmatprep.subr.mxu0 0.0
      %1882 = vmatpush1.msra.mxu0 0.0
      %1883 = vmatprep.subr.mxu0 0.0
      %1884 = vmatpush1.msra.mxu0 0.0
      %1885 = vmatprep.subr.mxu0 0.0
      %1886 = vmatpush1.msra.mxu0 0.0
      %1887 = vmatprep.subr.mxu0 0.0
      %1888 = vmatpush1.msra.mxu0 0.0
      %1889 = vmatprep.mubr.f32.mxu0 0.0
      %1890 = vmatmul.mubr.f32.gmra.mrb[0].mxu0 %v1823
      %v1891 = vpop.f32.mrb[0].mxu0
      %v1892 = vadd.f32 %v1819, %v1891
      %v1893 = vpop.f32.mrb[0].mxu0
      %1894 = vdwg.mxu0
      %v1895 = vld [vmem:[%s267 + $0x1] sm:$0xff]
      %v1897 = vsel %vm171, %v1895, 0
      %1899 = vmatprep.subr.mxu0 0.0
      %1900 = vmatpush1.msra.mxu0 %v520
      %1901 = vmatprep.subr.mxu0 0.0
      %1902 = vmatpush1.msra.mxu0 0.0
      %1903 = vmatprep.subr.mxu0 0.0
      %1904 = vmatpush1.msra.mxu0 0.0
      %1905 = vmatprep.subr.mxu0 0.0
      %1906 = vmatpush1.msra.mxu0 0.0
      %1907 = vmatprep.subr.mxu0 0.0
      %1908 = vmatpush1.msra.mxu0 0.0
      %1909 = vmatprep.subr.mxu0 0.0
      %1910 = vmatpush1.msra.mxu0 0.0
      %1911 = vmatprep.subr.mxu0 0.0
      %1912 = vmatpush1.msra.mxu0 0.0
      %1913 = vmatprep.subr.mxu0 0.0
      %1914 = vmatpush1.msra.mxu0 0.0
      %1915 = vmatprep.subr.mxu0 0.0
      %1916 = vmatpush1.msra.mxu0 0.0
      %1917 = vmatprep.subr.mxu0 0.0
      %1918 = vmatpush1.msra.mxu0 0.0
      %1919 = vmatprep.subr.mxu0 0.0
      %1920 = vmatpush1.msra.mxu0 0.0
      %1921 = vmatprep.subr.mxu0 0.0
      %1922 = vmatpush1.msra.mxu0 0.0
      %1923 = vmatprep.subr.mxu0 0.0
      %1924 = vmatpush1.msra.mxu0 0.0
      %1925 = vmatprep.subr.mxu0 0.0
      %1926 = vmatpush1.msra.mxu0 0.0
      %1927 = vmatprep.subr.mxu0 0.0
      %1928 = vmatpush1.msra.mxu0 0.0
      %1929 = vmatprep.subr.mxu0 0.0
      %1930 = vmatpush1.msra.mxu0 0.0
      %1931 = vmatprep.subr.mxu0 0.0
      %1932 = vmatpush1.msra.mxu0 0.0
      %1933 = vmatprep.subr.mxu0 0.0
      %1934 = vmatpush1.msra.mxu0 0.0
      %1935 = vmatprep.subr.mxu0 0.0
      %1936 = vmatpush1.msra.mxu0 0.0
      %1937 = vmatprep.subr.mxu0 0.0
      %1938 = vmatpush1.msra.mxu0 0.0
      %1939 = vmatprep.subr.mxu0 0.0
      %1940 = vmatpush1.msra.mxu0 0.0
      %1941 = vmatprep.subr.mxu0 0.0
      %1942 = vmatpush1.msra.mxu0 0.0
      %1943 = vmatprep.subr.mxu0 0.0
      %1944 = vmatpush1.msra.mxu0 0.0
      %1945 = vmatprep.subr.mxu0 0.0
      %1946 = vmatpush1.msra.mxu0 0.0
      %1947 = vmatprep.subr.mxu0 0.0
      %1948 = vmatpush1.msra.mxu0 0.0
      %1949 = vmatprep.subr.mxu0 0.0
      %1950 = vmatpush1.msra.mxu0 0.0
      %1951 = vmatprep.subr.mxu0 0.0
      %1952 = vmatpush1.msra.mxu0 0.0
      %1953 = vmatprep.subr.mxu0 0.0
      %1954 = vmatpush1.msra.mxu0 0.0
      %1955 = vmatprep.subr.mxu0 0.0
      %1956 = vmatpush1.msra.mxu0 0.0
      %1957 = vmatprep.subr.mxu0 0.0
      %1958 = vmatpush1.msra.mxu0 0.0
      %1959 = vmatprep.subr.mxu0 0.0
      %1960 = vmatpush1.msra.mxu0 0.0
      %1961 = vmatprep.subr.mxu0 0.0
      %1962 = vmatpush1.msra.mxu0 0.0
      %1963 = vmatprep.mubr.f32.mxu0 0.0
      %1964 = vmatmul.mubr.f32.gmra.mrb[0].mxu0 %v1897
      %v1965 = vpop.f32.mrb[0].mxu0
      %v1966 = vadd.f32 0.0, %v1965
      %v1967 = vpop.f32.mrb[0].mxu0
      %1968 = vdwg.mxu0
      %v1969 = vadd.f32 %v1892, %v1966
      %v1970 = vld [vmem:[%s273] sm:$0xff]
      %v1972 = vsel %vm171, %v1970, 0
      %1974 = vmatprep.subr.mxu0 0.0
      %1975 = vmatpush1.msra.mxu0 %v598
      %1976 = vmatprep.subr.mxu0 0.0
      %1977 = vmatpush1.msra.mxu0 0.0
      %1978 = vmatprep.subr.mxu0 0.0
      %1979 = vmatpush1.msra.mxu0 0.0
      %1980 = vmatprep.subr.mxu0 0.0
      %1981 = vmatpush1.msra.mxu0 0.0
      %1982 = vmatprep.subr.mxu0 0.0
      %1983 = vmatpush1.msra.mxu0 0.0
      %1984 = vmatprep.subr.mxu0 0.0
      %1985 = vmatpush1.msra.mxu0 0.0
      %1986 = vmatprep.subr.mxu0 0.0
      %1987 = vmatpush1.msra.mxu0 0.0
      %1988 = vmatprep.subr.mxu0 0.0
      %1989 = vmatpush1.msra.mxu0 0.0
      %1990 = vmatprep.subr.mxu0 0.0
      %1991 = vmatpush1.msra.mxu0 0.0
      %1992 = vmatprep.subr.mxu0 0.0
      %1993 = vmatpush1.msra.mxu0 0.0
      %1994 = vmatprep.subr.mxu0 0.0
      %1995 = vmatpush1.msra.mxu0 0.0
      %1996 = vmatprep.subr.mxu0 0.0
      %1997 = vmatpush1.msra.mxu0 0.0
      %1998 = vmatprep.subr.mxu0 0.0
      %1999 = vmatpush1.msra.mxu0 0.0
      %2000 = vmatprep.subr.mxu0 0.0
      %2001 = vmatpush1.msra.mxu0 0.0
      %2002 = vmatprep.subr.mxu0 0.0
      %2003 = vmatpush1.msra.mxu0 0.0
      %2004 = vmatprep.subr.mxu0 0.0
      %2005 = vmatpush1.msra.mxu0 0.0
      %2006 = vmatprep.subr.mxu0 0.0
      %2007 = vmatpush1.msra.mxu0 0.0
      %2008 = vmatprep.subr.mxu0 0.0
      %2009 = vmatpush1.msra.mxu0 0.0
      %2010 = vmatprep.subr.mxu0 0.0
      %2011 = vmatpush1.msra.mxu0 0.0
      %2012 = vmatprep.subr.mxu0 0.0
      %2013 = vmatpush1.msra.mxu0 0.0
      %2014 = vmatprep.subr.mxu0 0.0
      %2015 = vmatpush1.msra.mxu0 0.0
      %2016 = vmatprep.subr.mxu0 0.0
      %2017 = vmatpush1.msra.mxu0 0.0
      %2018 = vmatprep.subr.mxu0 0.0
      %2019 = vmatpush1.msra.mxu0 0.0
      %2020 = vmatprep.subr.mxu0 0.0
      %2021 = vmatpush1.msra.mxu0 0.0
      %2022 = vmatprep.subr.mxu0 0.0
      %2023 = vmatpush1.msra.mxu0 0.0
      %2024 = vmatprep.subr.mxu0 0.0
      %2025 = vmatpush1.msra.mxu0 0.0
      %2026 = vmatprep.subr.mxu0 0.0
      %2027 = vmatpush1.msra.mxu0 0.0
      %2028 = vmatprep.subr.mxu0 0.0
      %2029 = vmatpush1.msra.mxu0 0.0
      %2030 = vmatprep.subr.mxu0 0.0
      %2031 = vmatpush1.msra.mxu0 0.0
      %2032 = vmatprep.subr.mxu0 0.0
      %2033 = vmatpush1.msra.mxu0 0.0
      %2034 = vmatprep.subr.mxu0 0.0
      %2035 = vmatpush1.msra.mxu0 0.0
      %2036 = vmatprep.subr.mxu0 0.0
      %2037 = vmatpush1.msra.mxu0 0.0
      %2038 = vmatprep.mubr.f32.mxu0 0.0
      %2039 = vmatmul.mubr.f32.gmra.mrb[0].mxu0 %v1972
      %v2040 = vpop.f32.mrb[0].mxu0
      %v2041 = vadd.f32 0.0, %v2040
      %v2042 = vpop.f32.mrb[0].mxu0
      %2043 = vdwg.mxu0
      %v2044 = vadd.f32 %v1969, %v2041
      %v2045 = vld [vmem:[%s270] sm:$0xff]
      %v2047 = vsel %vm171, %v2045, 0
      %2049 = vmatprep.subr.mxu0 0.0
      %2050 = vmatpush1.msra.mxu0 %v676
      %2051 = vmatprep.subr.mxu0 0.0
      %2052 = vmatpush1.msra.mxu0 0.0
      %2053 = vmatprep.subr.mxu0 0.0
      %2054 = vmatpush1.msra.mxu0 0.0
      %2055 = vmatprep.subr.mxu0 0.0
      %2056 = vmatpush1.msra.mxu0 0.0
      %2057 = vmatprep.subr.mxu0 0.0
      %2058 = vmatpush1.msra.mxu0 0.0
      %2059 = vmatprep.subr.mxu0 0.0
      %2060 = vmatpush1.msra.mxu0 0.0
      %2061 = vmatprep.subr.mxu0 0.0
      %2062 = vmatpush1.msra.mxu0 0.0
      %2063 = vmatprep.subr.mxu0 0.0
      %2064 = vmatpush1.msra.mxu0 0.0
      %2065 = vmatprep.subr.mxu0 0.0
      %2066 = vmatpush1.msra.mxu0 0.0
      %2067 = vmatprep.subr.mxu0 0.0
      %2068 = vmatpush1.msra.mxu0 0.0
      %2069 = vmatprep.subr.mxu0 0.0
      %2070 = vmatpush1.msra.mxu0 0.0
      %2071 = vmatprep.subr.mxu0 0.0
      %2072 = vmatpush1.msra.mxu0 0.0
      %2073 = vmatprep.subr.mxu0 0.0
      %2074 = vmatpush1.msra.mxu0 0.0
      %2075 = vmatprep.subr.mxu0 0.0
      %2076 = vmatpush1.msra.mxu0 0.0
      %2077 = vmatprep.subr.mxu0 0.0
      %2078 = vmatpush1.msra.mxu0 0.0
      %2079 = vmatprep.subr.mxu0 0.0
      %2080 = vmatpush1.msra.mxu0 0.0
      %2081 = vmatprep.subr.mxu0 0.0
      %2082 = vmatpush1.msra.mxu0 0.0
      %2083 = vmatprep.subr.mxu0 0.0
      %2084 = vmatpush1.msra.mxu0 0.0
      %2085 = vmatprep.subr.mxu0 0.0
      %2086 = vmatpush1.msra.mxu0 0.0
      %2087 = vmatprep.subr.mxu0 0.0
      %2088 = vmatpush1.msra.mxu0 0.0
      %2089 = vmatprep.subr.mxu0 0.0
      %2090 = vmatpush1.msra.mxu0 0.0
      %2091 = vmatprep.subr.mxu0 0.0
      %2092 = vmatpush1.msra.mxu0 0.0
      %2093 = vmatprep.subr.mxu0 0.0
      %2094 = vmatpush1.msra.mxu0 0.0
      %2095 = vmatprep.subr.mxu0 0.0
      %2096 = vmatpush1.msra.mxu0 0.0
      %2097 = vmatprep.subr.mxu0 0.0
      %2098 = vmatpush1.msra.mxu0 0.0
      %2099 = vmatprep.subr.mxu0 0.0
      %2100 = vmatpush1.msra.mxu0 0.0
      %2101 = vmatprep.subr.mxu0 0.0
      %2102 = vmatpush1.msra.mxu0 0.0
      %2103 = vmatprep.subr.mxu0 0.0
      %2104 = vmatpush1.msra.mxu0 0.0
      %2105 = vmatprep.subr.mxu0 0.0
      %2106 = vmatpush1.msra.mxu0 0.0
      %2107 = vmatprep.subr.mxu0 0.0
      %2108 = vmatpush1.msra.mxu0 0.0
      %2109 = vmatprep.subr.mxu0 0.0
      %2110 = vmatpush1.msra.mxu0 0.0
      %2111 = vmatprep.subr.mxu0 0.0
      %2112 = vmatpush1.msra.mxu0 0.0
      %2113 = vmatprep.mubr.f32.mxu0 0.0
      %2114 = vmatmul.mubr.f32.gmra.mrb[0].mxu0 %v2047
      %v2115 = vpop.f32.mrb[0].mxu0
      %v2116 = vadd.f32 0.0, %v2115
      %v2117 = vpop.f32.mrb[0].mxu0
      %2118 = vdwg.mxu0
      %v2119 = vadd.f32 %v2044, %v2116
      %v2120 = vld [vmem:[%s273 + $0x1] sm:$0xff]
      %v2122 = vsel %vm171, %v2120, 0
      %2124 = vmatprep.subr.mxu0 0.0
      %2125 = vmatpush1.msra.mxu0 %v754
      %2126 = vmatprep.subr.mxu0 0.0
      %2127 = vmatpush1.msra.mxu0 0.0
      %2128 = vmatprep.subr.mxu0 0.0
      %2129 = vmatpush1.msra.mxu0 0.0
      %2130 = vmatprep.subr.mxu0 0.0
      %2131 = vmatpush1.msra.mxu0 0.0
      %2132 = vmatprep.subr.mxu0 0.0
      %2133 = vmatpush1.msra.mxu0 0.0
      %2134 = vmatprep.subr.mxu0 0.0
      %2135 = vmatpush1.msra.mxu0 0.0
      %2136 = vmatprep.subr.mxu0 0.0
      %2137 = vmatpush1.msra.mxu0 0.0
      %2138 = vmatprep.subr.mxu0 0.0
      %2139 = vmatpush1.msra.mxu0 0.0
      %2140 = vmatprep.subr.mxu0 0.0
      %2141 = vmatpush1.msra.mxu0 0.0
      %2142 = vmatprep.subr.mxu0 0.0
      %2143 = vmatpush1.msra.mxu0 0.0
      %2144 = vmatprep.subr.mxu0 0.0
      %2145 = vmatpush1.msra.mxu0 0.0
      %2146 = vmatprep.subr.mxu0 0.0
      %2147 = vmatpush1.msra.mxu0 0.0
      %2148 = vmatprep.subr.mxu0 0.0
      %2149 = vmatpush1.msra.mxu0 0.0
      %2150 = vmatprep.subr.mxu0 0.0
      %2151 = vmatpush1.msra.mxu0 0.0
      %2152 = vmatprep.subr.mxu0 0.0
      %2153 = vmatpush1.msra.mxu0 0.0
      %2154 = vmatprep.subr.mxu0 0.0
      %2155 = vmatpush1.msra.mxu0 0.0
      %2156 = vmatprep.subr.mxu0 0.0
      %2157 = vmatpush1.msra.mxu0 0.0
      %2158 = vmatprep.subr.mxu0 0.0
      %2159 = vmatpush1.msra.mxu0 0.0
      %2160 = vmatprep.subr.mxu0 0.0
      %2161 = vmatpush1.msra.mxu0 0.0
      %2162 = vmatprep.subr.mxu0 0.0
      %2163 = vmatpush1.msra.mxu0 0.0
      %2164 = vmatprep.subr.mxu0 0.0
      %2165 = vmatpush1.msra.mxu0 0.0
      %2166 = vmatprep.subr.mxu0 0.0
      %2167 = vmatpush1.msra.mxu0 0.0
      %2168 = vmatprep.subr.mxu0 0.0
      %2169 = vmatpush1.msra.mxu0 0.0
      %2170 = vmatprep.subr.mxu0 0.0
      %2171 = vmatpush1.msra.mxu0 0.0
      %2172 = vmatprep.subr.mxu0 0.0
      %2173 = vmatpush1.msra.mxu0 0.0
      %2174 = vmatprep.subr.mxu0 0.0
      %2175 = vmatpush1.msra.mxu0 0.0
      %2176 = vmatprep.subr.mxu0 0.0
      %2177 = vmatpush1.msra.mxu0 0.0
      %2178 = vmatprep.subr.mxu0 0.0
      %2179 = vmatpush1.msra.mxu0 0.0
      %2180 = vmatprep.subr.mxu0 0.0
      %2181 = vmatpush1.msra.mxu0 0.0
      %2182 = vmatprep.subr.mxu0 0.0
      %2183 = vmatpush1.msra.mxu0 0.0
      %2184 = vmatprep.subr.mxu0 0.0
      %2185 = vmatpush1.msra.mxu0 0.0
      %2186 = vmatprep.subr.mxu0 0.0
      %2187 = vmatpush1.msra.mxu0 0.0
      %2188 = vmatprep.mubr.f32.mxu0 0.0
      %2189 = vmatmul.mubr.f32.gmra.mrb[0].mxu0 %v2122
      %v2190 = vpop.f32.mrb[0].mxu0
      %v2191 = vadd.f32 0.0, %v2190
      %v2192 = vpop.f32.mrb[0].mxu0
      %2193 = vdwg.mxu0
      %v2194 = vadd.f32 %v2119, %v2191
      %v2195 = vld [vmem:[%s279] sm:$0xff]
      %v2197 = vsel %vm171, %v2195, 0
      %2199 = vmatprep.subr.mxu0 0.0
      %2200 = vmatpush1.msra.mxu0 %v832
      %2201 = vmatprep.subr.mxu0 0.0
      %2202 = vmatpush1.msra.mxu0 0.0
      %2203 = vmatprep.subr.mxu0 0.0
      %2204 = vmatpush1.msra.mxu0 0.0
      %2205 = vmatprep.subr.mxu0 0.0
      %2206 = vmatpush1.msra.mxu0 0.0
      %2207 = vmatprep.subr.mxu0 0.0
      %2208 = vmatpush1.msra.mxu0 0.0
      %2209 = vmatprep.subr.mxu0 0.0
      %2210 = vmatpush1.msra.mxu0 0.0
      %2211 = vmatprep.subr.mxu0 0.0
      %2212 = vmatpush1.msra.mxu0 0.0
      %2213 = vmatprep.subr.mxu0 0.0
      %2214 = vmatpush1.msra.mxu0 0.0
      %2215 = vmatprep.subr.mxu0 0.0
      %2216 = vmatpush1.msra.mxu0 0.0
      %2217 = vmatprep.subr.mxu0 0.0
      %2218 = vmatpush1.msra.mxu0 0.0
      %2219 = vmatprep.subr.mxu0 0.0
      %2220 = vmatpush1.msra.mxu0 0.0
      %2221 = vmatprep.subr.mxu0 0.0
      %2222 = vmatpush1.msra.mxu0 0.0
      %2223 = vmatprep.subr.mxu0 0.0
      %2224 = vmatpush1.msra.mxu0 0.0
      %2225 = vmatprep.subr.mxu0 0.0
      %2226 = vmatpush1.msra.mxu0 0.0
      %2227 = vmatprep.subr.mxu0 0.0
      %2228 = vmatpush1.msra.mxu0 0.0
      %2229 = vmatprep.subr.mxu0 0.0
      %2230 = vmatpush1.msra.mxu0 0.0
      %2231 = vmatprep.subr.mxu0 0.0
      %2232 = vmatpush1.msra.mxu0 0.0
      %2233 = vmatprep.subr.mxu0 0.0
      %2234 = vmatpush1.msra.mxu0 0.0
      %2235 = vmatprep.subr.mxu0 0.0
      %2236 = vmatpush1.msra.mxu0 0.0
      %2237 = vmatprep.subr.mxu0 0.0
      %2238 = vmatpush1.msra.mxu0 0.0
      %2239 = vmatprep.subr.mxu0 0.0
      %2240 = vmatpush1.msra.mxu0 0.0
      %2241 = vmatprep.subr.mxu0 0.0
      %2242 = vmatpush1.msra.mxu0 0.0
      %2243 = vmatprep.subr.mxu0 0.0
      %2244 = vmatpush1.msra.mxu0 0.0
      %2245 = vmatprep.subr.mxu0 0.0
      %2246 = vmatpush1.msra.mxu0 0.0
      %2247 = vmatprep.subr.mxu0 0.0
      %2248 = vmatpush1.msra.mxu0 0.0
      %2249 = vmatprep.subr.mxu0 0.0
      %2250 = vmatpush1.msra.mxu0 0.0
      %2251 = vmatprep.subr.mxu0 0.0
      %2252 = vmatpush1.msra.mxu0 0.0
      %2253 = vmatprep.subr.mxu0 0.0
      %2254 = vmatpush1.msra.mxu0 0.0
      %2255 = vmatprep.subr.mxu0 0.0
      %2256 = vmatpush1.msra.mxu0 0.0
      %2257 = vmatprep.subr.mxu0 0.0
      %2258 = vmatpush1.msra.mxu0 0.0
      %2259 = vmatprep.subr.mxu0 0.0
      %2260 = vmatpush1.msra.mxu0 0.0
      %2261 = vmatprep.subr.mxu0 0.0
      %2262 = vmatpush1.msra.mxu0 0.0
      %2263 = vmatprep.mubr.f32.mxu0 0.0
      %2264 = vmatmul.mubr.f32.gmra.mrb[0].mxu0 %v2197
      %v2265 = vpop.f32.mrb[0].mxu0
      %v2266 = vadd.f32 0.0, %v2265
      %v2267 = vpop.f32.mrb[0].mxu0
      %2268 = vdwg.mxu0
      %v2269 = vadd.f32 %v2194, %v2266
      %v2270 = vld [vmem:[%s276] sm:$0xff]
      %v2272 = vsel %vm171, %v2270, 0
      %2274 = vmatprep.subr.mxu0 0.0
      %2275 = vmatpush1.msra.mxu0 %v910
      %2276 = vmatprep.subr.mxu0 0.0
      %2277 = vmatpush1.msra.mxu0 0.0
      %2278 = vmatprep.subr.mxu0 0.0
      %2279 = vmatpush1.msra.mxu0 0.0
      %2280 = vmatprep.subr.mxu0 0.0
      %2281 = vmatpush1.msra.mxu0 0.0
      %2282 = vmatprep.subr.mxu0 0.0
      %2283 = vmatpush1.msra.mxu0 0.0
      %2284 = vmatprep.subr.mxu0 0.0
      %2285 = vmatpush1.msra.mxu0 0.0
      %2286 = vmatprep.subr.mxu0 0.0
      %2287 = vmatpush1.msra.mxu0 0.0
      %2288 = vmatprep.subr.mxu0 0.0
      %2289 = vmatpush1.msra.mxu0 0.0
      %2290 = vmatprep.subr.mxu0 0.0
      %2291 = vmatpush1.msra.mxu0 0.0
      %2292 = vmatprep.subr.mxu0 0.0
      %2293 = vmatpush1.msra.mxu0 0.0
      %2294 = vmatprep.subr.mxu0 0.0
      %2295 = vmatpush1.msra.mxu0 0.0
      %2296 = vmatprep.subr.mxu0 0.0
      %2297 = vmatpush1.msra.mxu0 0.0
      %2298 = vmatprep.subr.mxu0 0.0
      %2299 = vmatpush1.msra.mxu0 0.0
      %2300 = vmatprep.subr.mxu0 0.0
      %2301 = vmatpush1.msra.mxu0 0.0
      %2302 = vmatprep.subr.mxu0 0.0
      %2303 = vmatpush1.msra.mxu0 0.0
      %2304 = vmatprep.subr.mxu0 0.0
      %2305 = vmatpush1.msra.mxu0 0.0
      %2306 = vmatprep.subr.mxu0 0.0
      %2307 = vmatpush1.msra.mxu0 0.0
      %2308 = vmatprep.subr.mxu0 0.0
      %2309 = vmatpush1.msra.mxu0 0.0
      %2310 = vmatprep.subr.mxu0 0.0
      %2311 = vmatpush1.msra.mxu0 0.0
      %2312 = vmatprep.subr.mxu0 0.0
      %2313 = vmatpush1.msra.mxu0 0.0
      %2314 = vmatprep.subr.mxu0 0.0
      %2315 = vmatpush1.msra.mxu0 0.0
      %2316 = vmatprep.subr.mxu0 0.0
      %2317 = vmatpush1.msra.mxu0 0.0
      %2318 = vmatprep.subr.mxu0 0.0
      %2319 = vmatpush1.msra.mxu0 0.0
      %2320 = vmatprep.subr.mxu0 0.0
      %2321 = vmatpush1.msra.mxu0 0.0
      %2322 = vmatprep.subr.mxu0 0.0
      %2323 = vmatpush1.msra.mxu0 0.0
      %2324 = vmatprep.subr.mxu0 0.0
      %2325 = vmatpush1.msra.mxu0 0.0
      %2326 = vmatprep.subr.mxu0 0.0
      %2327 = vmatpush1.msra.mxu0 0.0
      %2328 = vmatprep.subr.mxu0 0.0
      %2329 = vmatpush1.msra.mxu0 0.0
      %2330 = vmatprep.subr.mxu0 0.0
      %2331 = vmatpush1.msra.mxu0 0.0
      %2332 = vmatprep.subr.mxu0 0.0
      %2333 = vmatpush1.msra.mxu0 0.0
      %2334 = vmatprep.subr.mxu0 0.0
      %2335 = vmatpush1.msra.mxu0 0.0
      %2336 = vmatprep.subr.mxu0 0.0
      %2337 = vmatpush1.msra.mxu0 0.0
      %2338 = vmatprep.mubr.f32.mxu0 0.0
      %2339 = vmatmul.mubr.f32.gmra.mrb[0].mxu0 %v2272
      %v2340 = vpop.f32.mrb[0].mxu0
      %v2341 = vadd.f32 0.0, %v2340
      %v2342 = vpop.f32.mrb[0].mxu0
      %2343 = vdwg.mxu0
      %v2344 = vadd.f32 %v2269, %v2341
      %v2345 = vld [vmem:[%s279 + $0x1] sm:$0xff]
      %v2347 = vsel %vm171, %v2345, 0
      %2349 = vmatprep.subr.mxu0 0.0
      %2350 = vmatpush1.msra.mxu0 %v988
      %2351 = vmatprep.subr.mxu0 0.0
      %2352 = vmatpush1.msra.mxu0 0.0
      %2353 = vmatprep.subr.mxu0 0.0
      %2354 = vmatpush1.msra.mxu0 0.0
      %2355 = vmatprep.subr.mxu0 0.0
      %2356 = vmatpush1.msra.mxu0 0.0
      %2357 = vmatprep.subr.mxu0 0.0
      %2358 = vmatpush1.msra.mxu0 0.0
      %2359 = vmatprep.subr.mxu0 0.0
      %2360 = vmatpush1.msra.mxu0 0.0
      %2361 = vmatprep.subr.mxu0 0.0
      %2362 = vmatpush1.msra.mxu0 0.0
      %2363 = vmatprep.subr.mxu0 0.0
      %2364 = vmatpush1.msra.mxu0 0.0
      %2365 = vmatprep.subr.mxu0 0.0
      %2366 = vmatpush1.msra.mxu0 0.0
      %2367 = vmatprep.subr.mxu0 0.0
      %2368 = vmatpush1.msra.mxu0 0.0
      %2369 = vmatprep.subr.mxu0 0.0
      %2370 = vmatpush1.msra.mxu0 0.0
      %2371 = vmatprep.subr.mxu0 0.0
      %2372 = vmatpush1.msra.mxu0 0.0
      %2373 = vmatprep.subr.mxu0 0.0
      %2374 = vmatpush1.msra.mxu0 0.0
      %2375 = vmatprep.subr.mxu0 0.0
      %2376 = vmatpush1.msra.mxu0 0.0
      %2377 = vmatprep.subr.mxu0 0.0
      %2378 = vmatpush1.msra.mxu0 0.0
      %2379 = vmatprep.subr.mxu0 0.0
      %2380 = vmatpush1.msra.mxu0 0.0
      %2381 = vmatprep.subr.mxu0 0.0
      %2382 = vmatpush1.msra.mxu0 0.0
      %2383 = vmatprep.subr.mxu0 0.0
      %2384 = vmatpush1.msra.mxu0 0.0
      %2385 = vmatprep.subr.mxu0 0.0
      %2386 = vmatpush1.msra.mxu0 0.0
      %2387 = vmatprep.subr.mxu0 0.0
      %2388 = vmatpush1.msra.mxu0 0.0
      %2389 = vmatprep.subr.mxu0 0.0
      %2390 = vmatpush1.msra.mxu0 0.0
      %2391 = vmatprep.subr.mxu0 0.0
      %2392 = vmatpush1.msra.mxu0 0.0
      %2393 = vmatprep.subr.mxu0 0.0
      %2394 = vmatpush1.msra.mxu0 0.0
      %2395 = vmatprep.subr.mxu0 0.0
      %2396 = vmatpush1.msra.mxu0 0.0
      %2397 = vmatprep.subr.mxu0 0.0
      %2398 = vmatpush1.msra.mxu0 0.0
      %2399 = vmatprep.subr.mxu0 0.0
      %2400 = vmatpush1.msra.mxu0 0.0
      %2401 = vmatprep.subr.mxu0 0.0
      %2402 = vmatpush1.msra.mxu0 0.0
      %2403 = vmatprep.subr.mxu0 0.0
      %2404 = vmatpush1.msra.mxu0 0.0
      %2405 = vmatprep.subr.mxu0 0.0
      %2406 = vmatpush1.msra.mxu0 0.0
      %2407 = vmatprep.subr.mxu0 0.0
      %2408 = vmatpush1.msra.mxu0 0.0
      %2409 = vmatprep.subr.mxu0 0.0
      %2410 = vmatpush1.msra.mxu0 0.0
      %2411 = vmatprep.subr.mxu0 0.0
      %2412 = vmatpush1.msra.mxu0 0.0
      %2413 = vmatprep.mubr.f32.mxu0 0.0
      %2414 = vmatmul.mubr.f32.gmra.mrb[0].mxu0 %v2347
      %v2415 = vpop.f32.mrb[0].mxu0
      %v2416 = vadd.f32 0.0, %v2415
      %v2417 = vpop.f32.mrb[0].mxu0
      %2418 = vdwg.mxu0
      %v2419 = vadd.f32 %v2344, %v2416
      %v2420 = vadd.f32 %v2419, %v1065
      %v2421 = vmax.f32 %v2420, 0.0
      %2422 = vst.msk [vmem:[%s170 + $0x10] sm:$0xff] %vm1069, %v2421
      %v2423 = vld [vmem:[%s279] sm:$0xff]
      %v2424 = vld [vmem:[%s276] sm:$0xff]
      %v2426 = vsel %vm171, %v2424, 0
      %2428 = vmatprep.subr.mxu0 0.0
      %2429 = vmatpush1.msra.mxu0 %v367
      %2430 = vmatprep.subr.mxu0 0.0
      %2431 = vmatpush1.msra.mxu0 0.0
      %2432 = vmatprep.subr.mxu0 0.0
      %2433 = vmatpush1.msra.mxu0 0.0
      %2434 = vmatprep.subr.mxu0 0.0
      %2435 = vmatpush1.msra.mxu0 0.0
      %2436 = vmatprep.subr.mxu0 0.0
      %2437 = vmatpush1.msra.mxu0 0.0
      %2438 = vmatprep.subr.mxu0 0.0
      %2439 = vmatpush1.msra.mxu0 0.0
      %2440 = vmatprep.subr.mxu0 0.0
      %2441 = vmatpush1.msra.mxu0 0.0
      %2442 = vmatprep.subr.mxu0 0.0
      %2443 = vmatpush1.msra.mxu0 0.0
      %2444 = vmatprep.subr.mxu0 0.0
      %2445 = vmatpush1.msra.mxu0 0.0
      %2446 = vmatprep.subr.mxu0 0.0
      %2447 = vmatpush1.msra.mxu0 0.0
      %2448 = vmatprep.subr.mxu0 0.0
      %2449 = vmatpush1.msra.mxu0 0.0
      %2450 = vmatprep.subr.mxu0 0.0
      %2451 = vmatpush1.msra.mxu0 0.0
      %2452 = vmatprep.subr.mxu0 0.0
      %2453 = vmatpush1.msra.mxu0 0.0
      %2454 = vmatprep.subr.mxu0 0.0
      %2455 = vmatpush1.msra.mxu0 0.0
      %2456 = vmatprep.subr.mxu0 0.0
      %2457 = vmatpush1.msra.mxu0 0.0
      %2458 = vmatprep.subr.mxu0 0.0
      %2459 = vmatpush1.msra.mxu0 0.0
      %2460 = vmatprep.subr.mxu0 0.0
      %2461 = vmatpush1.msra.mxu0 0.0
      %2462 = vmatprep.subr.mxu0 0.0
      %2463 = vmatpush1.msra.mxu0 0.0
      %2464 = vmatprep.subr.mxu0 0.0
      %2465 = vmatpush1.msra.mxu0 0.0
      %2466 = vmatprep.subr.mxu0 0.0
      %2467 = vmatpush1.msra.mxu0 0.0
      %2468 = vmatprep.subr.mxu0 0.0
      %2469 = vmatpush1.msra.mxu0 0.0
      %2470 = vmatprep.subr.mxu0 0.0
      %2471 = vmatpush1.msra.mxu0 0.0
      %2472 = vmatprep.subr.mxu0 0.0
      %2473 = vmatpush1.msra.mxu0 0.0
      %2474 = vmatprep.subr.mxu0 0.0
      %2475 = vmatpush1.msra.mxu0 0.0
      %2476 = vmatprep.subr.mxu0 0.0
      %2477 = vmatpush1.msra.mxu0 0.0
      %2478 = vmatprep.subr.mxu0 0.0
      %2479 = vmatpush1.msra.mxu0 0.0
      %2480 = vmatprep.subr.mxu0 0.0
      %2481 = vmatpush1.msra.mxu0 0.0
      %2482 = vmatprep.subr.mxu0 0.0
      %2483 = vmatpush1.msra.mxu0 0.0
      %2484 = vmatprep.subr.mxu0 0.0
      %2485 = vmatpush1.msra.mxu0 0.0
      %2486 = vmatprep.subr.mxu0 0.0
      %2487 = vmatpush1.msra.mxu0 0.0
      %2488 = vmatprep.subr.mxu0 0.0
      %2489 = vmatpush1.msra.mxu0 0.0
      %2490 = vmatprep.subr.mxu0 0.0
      %2491 = vmatpush1.msra.mxu0 0.0
      %2492 = vmatprep.mubr.f32.mxu0 0.0
      %2493 = vmatmul.mubr.f32.gmra.mrb[0].mxu0 %v2426
      %v2494 = vpop.f32.mrb[0].mxu0
      %v2495 = vadd.f32 0.0, %v2494
      %v2496 = vpop.f32.mrb[0].mxu0
      %2497 = vdwg.mxu0
      %v2499 = vsel %vm171, %v2423, 0
      %2501 = vmatprep.subr.mxu0 0.0
      %2502 = vmatpush1.msra.mxu0 %v443
      %2503 = vmatprep.subr.mxu0 0.0
      %2504 = vmatpush1.msra.mxu0 0.0
      %2505 = vmatprep.subr.mxu0 0.0
      %2506 = vmatpush1.msra.mxu0 0.0
      %2507 = vmatprep.subr.mxu0 0.0
      %2508 = vmatpush1.msra.mxu0 0.0
      %2509 = vmatprep.subr.mxu0 0.0
      %2510 = vmatpush1.msra.mxu0 0.0
      %2511 = vmatprep.subr.mxu0 0.0
      %2512 = vmatpush1.msra.mxu0 0.0
      %2513 = vmatprep.subr.mxu0 0.0
      %2514 = vmatpush1.msra.mxu0 0.0
      %2515 = vmatprep.subr.mxu0 0.0
      %2516 = vmatpush1.msra.mxu0 0.0
      %2517 = vmatprep.subr.mxu0 0.0
      %2518 = vmatpush1.msra.mxu0 0.0
      %2519 = vmatprep.subr.mxu0 0.0
      %2520 = vmatpush1.msra.mxu0 0.0
      %2521 = vmatprep.subr.mxu0 0.0
      %2522 = vmatpush1.msra.mxu0 0.0
      %2523 = vmatprep.subr.mxu0 0.0
      %2524 = vmatpush1.msra.mxu0 0.0
      %2525 = vmatprep.subr.mxu0 0.0
      %2526 = vmatpush1.msra.mxu0 0.0
      %2527 = vmatprep.subr.mxu0 0.0
      %2528 = vmatpush1.msra.mxu0 0.0
      %2529 = vmatprep.subr.mxu0 0.0
      %2530 = vmatpush1.msra.mxu0 0.0
      %2531 = vmatprep.subr.mxu0 0.0
      %2532 = vmatpush1.msra.mxu0 0.0
      %2533 = vmatprep.subr.mxu0 0.0
      %2534 = vmatpush1.msra.mxu0 0.0
      %2535 = vmatprep.subr.mxu0 0.0
      %2536 = vmatpush1.msra.mxu0 0.0
      %2537 = vmatprep.subr.mxu0 0.0
      %2538 = vmatpush1.msra.mxu0 0.0
      %2539 = vmatprep.subr.mxu0 0.0
      %2540 = vmatpush1.msra.mxu0 0.0
      %2541 = vmatprep.subr.mxu0 0.0
      %2542 = vmatpush1.msra.mxu0 0.0
      %2543 = vmatprep.subr.mxu0 0.0
      %2544 = vmatpush1.msra.mxu0 0.0
      %2545 = vmatprep.subr.mxu0 0.0
      %2546 = vmatpush1.msra.mxu0 0.0
      %2547 = vmatprep.subr.mxu0 0.0
      %2548 = vmatpush1.msra.mxu0 0.0
      %2549 = vmatprep.subr.mxu0 0.0
      %2550 = vmatpush1.msra.mxu0 0.0
      %2551 = vmatprep.subr.mxu0 0.0
      %2552 = vmatpush1.msra.mxu0 0.0
      %2553 = vmatprep.subr.mxu0 0.0
      %2554 = vmatpush1.msra.mxu0 0.0
      %2555 = vmatprep.subr.mxu0 0.0
      %2556 = vmatpush1.msra.mxu0 0.0
      %2557 = vmatprep.subr.mxu0 0.0
      %2558 = vmatpush1.msra.mxu0 0.0
      %2559 = vmatprep.subr.mxu0 0.0
      %2560 = vmatpush1.msra.mxu0 0.0
      %2561 = vmatprep.subr.mxu0 0.0
      %2562 = vmatpush1.msra.mxu0 0.0
      %2563 = vmatprep.subr.mxu0 0.0
      %2564 = vmatpush1.msra.mxu0 0.0
      %2565 = vmatprep.mubr.f32.mxu0 0.0
      %2566 = vmatmul.mubr.f32.gmra.mrb[0].mxu0 %v2499
      %v2567 = vpop.f32.mrb[0].mxu0
      %v2568 = vadd.f32 %v2495, %v2567
      %v2569 = vpop.f32.mrb[0].mxu0
      %2570 = vdwg.mxu0
      %v2571 = vld [vmem:[%s279 + $0x1] sm:$0xff]
      %v2573 = vsel %vm171, %v2571, 0
      %2575 = vmatprep.subr.mxu0 0.0
      %2576 = vmatpush1.msra.mxu0 %v520
      %2577 = vmatprep.subr.mxu0 0.0
      %2578 = vmatpush1.msra.mxu0 0.0
      %2579 = vmatprep.subr.mxu0 0.0
      %2580 = vmatpush1.msra.mxu0 0.0
      %2581 = vmatprep.subr.mxu0 0.0
      %2582 = vmatpush1.msra.mxu0 0.0
      %2583 = vmatprep.subr.mxu0 0.0
      %2584 = vmatpush1.msra.mxu0 0.0
      %2585 = vmatprep.subr.mxu0 0.0
      %2586 = vmatpush1.msra.mxu0 0.0
      %2587 = vmatprep.subr.mxu0 0.0
      %2588 = vmatpush1.msra.mxu0 0.0
      %2589 = vmatprep.subr.mxu0 0.0
      %2590 = vmatpush1.msra.mxu0 0.0
      %2591 = vmatprep.subr.mxu0 0.0
      %2592 = vmatpush1.msra.mxu0 0.0
      %2593 = vmatprep.subr.mxu0 0.0
      %2594 = vmatpush1.msra.mxu0 0.0
      %2595 = vmatprep.subr.mxu0 0.0
      %2596 = vmatpush1.msra.mxu0 0.0
      %2597 = vmatprep.subr.mxu0 0.0
      %2598 = vmatpush1.msra.mxu0 0.0
      %2599 = vmatprep.subr.mxu0 0.0
      %2600 = vmatpush1.msra.mxu0 0.0
      %2601 = vmatprep.subr.mxu0 0.0
      %2602 = vmatpush1.msra.mxu0 0.0
      %2603 = vmatprep.subr.mxu0 0.0
      %2604 = vmatpush1.msra.mxu0 0.0
      %2605 = vmatprep.subr.mxu0 0.0
      %2606 = vmatpush1.msra.mxu0 0.0
      %2607 = vmatprep.subr.mxu0 0.0
      %2608 = vmatpush1.msra.mxu0 0.0
      %2609 = vmatprep.subr.mxu0 0.0
      %2610 = vmatpush1.msra.mxu0 0.0
      %2611 = vmatprep.subr.mxu0 0.0
      %2612 = vmatpush1.msra.mxu0 0.0
      %2613 = vmatprep.subr.mxu0 0.0
      %2614 = vmatpush1.msra.mxu0 0.0
      %2615 = vmatprep.subr.mxu0 0.0
      %2616 = vmatpush1.msra.mxu0 0.0
      %2617 = vmatprep.subr.mxu0 0.0
      %2618 = vmatpush1.msra.mxu0 0.0
      %2619 = vmatprep.subr.mxu0 0.0
      %2620 = vmatpush1.msra.mxu0 0.0
      %2621 = vmatprep.subr.mxu0 0.0
      %2622 = vmatpush1.msra.mxu0 0.0
      %2623 = vmatprep.subr.mxu0 0.0
      %2624 = vmatpush1.msra.mxu0 0.0
      %2625 = vmatprep.subr.mxu0 0.0
      %2626 = vmatpush1.msra.mxu0 0.0
      %2627 = vmatprep.subr.mxu0 0.0
      %2628 = vmatpush1.msra.mxu0 0.0
      %2629 = vmatprep.subr.mxu0 0.0
      %2630 = vmatpush1.msra.mxu0 0.0
      %2631 = vmatprep.subr.mxu0 0.0
      %2632 = vmatpush1.msra.mxu0 0.0
      %2633 = vmatprep.subr.mxu0 0.0
      %2634 = vmatpush1.msra.mxu0 0.0
      %2635 = vmatprep.subr.mxu0 0.0
      %2636 = vmatpush1.msra.mxu0 0.0
      %2637 = vmatprep.subr.mxu0 0.0
      %2638 = vmatpush1.msra.mxu0 0.0
      %2639 = vmatprep.mubr.f32.mxu0 0.0
      %2640 = vmatmul.mubr.f32.gmra.mrb[0].mxu0 %v2573
      %v2641 = vpop.f32.mrb[0].mxu0
      %v2642 = vadd.f32 0.0, %v2641
      %v2643 = vpop.f32.mrb[0].mxu0
      %2644 = vdwg.mxu0
      %v2645 = vadd.f32 %v2568, %v2642
      %v2646 = vld [vmem:[%s285] sm:$0xff]
      %v2648 = vsel %vm171, %v2646, 0
      %2650 = vmatprep.subr.mxu0 0.0
      %2651 = vmatpush1.msra.mxu0 %v598
      %2652 = vmatprep.subr.mxu0 0.0
      %2653 = vmatpush1.msra.mxu0 0.0
      %2654 = vmatprep.subr.mxu0 0.0
      %2655 = vmatpush1.msra.mxu0 0.0
      %2656 = vmatprep.subr.mxu0 0.0
      %2657 = vmatpush1.msra.mxu0 0.0
      %2658 = vmatprep.subr.mxu0 0.0
      %2659 = vmatpush1.msra.mxu0 0.0
      %2660 = vmatprep.subr.mxu0 0.0
      %2661 = vmatpush1.msra.mxu0 0.0
      %2662 = vmatprep.subr.mxu0 0.0
      %2663 = vmatpush1.msra.mxu0 0.0
      %2664 = vmatprep.subr.mxu0 0.0
      %2665 = vmatpush1.msra.mxu0 0.0
      %2666 = vmatprep.subr.mxu0 0.0
      %2667 = vmatpush1.msra.mxu0 0.0
      %2668 = vmatprep.subr.mxu0 0.0
      %2669 = vmatpush1.msra.mxu0 0.0
      %2670 = vmatprep.subr.mxu0 0.0
      %2671 = vmatpush1.msra.mxu0 0.0
      %2672 = vmatprep.subr.mxu0 0.0
      %2673 = vmatpush1.msra.mxu0 0.0
      %2674 = vmatprep.subr.mxu0 0.0
      %2675 = vmatpush1.msra.mxu0 0.0
      %2676 = vmatprep.subr.mxu0 0.0
      %2677 = vmatpush1.msra.mxu0 0.0
      %2678 = vmatprep.subr.mxu0 0.0
      %2679 = vmatpush1.msra.mxu0 0.0
      %2680 = vmatprep.subr.mxu0 0.0
      %2681 = vmatpush1.msra.mxu0 0.0
      %2682 = vmatprep.subr.mxu0 0.0
      %2683 = vmatpush1.msra.mxu0 0.0
      %2684 = vmatprep.subr.mxu0 0.0
      %2685 = vmatpush1.msra.mxu0 0.0
      %2686 = vmatprep.subr.mxu0 0.0
      %2687 = vmatpush1.msra.mxu0 0.0
      %2688 = vmatprep.subr.mxu0 0.0
      %2689 = vmatpush1.msra.mxu0 0.0
      %2690 = vmatprep.subr.mxu0 0.0
      %2691 = vmatpush1.msra.mxu0 0.0
      %2692 = vmatprep.subr.mxu0 0.0
      %2693 = vmatpush1.msra.mxu0 0.0
      %2694 = vmatprep.subr.mxu0 0.0
      %2695 = vmatpush1.msra.mxu0 0.0
      %2696 = vmatprep.subr.mxu0 0.0
      %2697 = vmatpush1.msra.mxu0 0.0
      %2698 = vmatprep.subr.mxu0 0.0
      %2699 = vmatpush1.msra.mxu0 0.0
      %2700 = vmatprep.subr.mxu0 0.0
      %2701 = vmatpush1.msra.mxu0 0.0
      %2702 = vmatprep.subr.mxu0 0.0
      %2703 = vmatpush1.msra.mxu0 0.0
      %2704 = vmatprep.subr.mxu0 0.0
      %2705 = vmatpush1.msra.mxu0 0.0
      %2706 = vmatprep.subr.mxu0 0.0
      %2707 = vmatpush1.msra.mxu0 0.0
      %2708 = vmatprep.subr.mxu0 0.0
      %2709 = vmatpush1.msra.mxu0 0.0
      %2710 = vmatprep.subr.mxu0 0.0
      %2711 = vmatpush1.msra.mxu0 0.0
      %2712 = vmatprep.subr.mxu0 0.0
      %2713 = vmatpush1.msra.mxu0 0.0
      %2714 = vmatprep.mubr.f32.mxu0 0.0
      %2715 = vmatmul.mubr.f32.gmra.mrb[0].mxu0 %v2648
      %v2716 = vpop.f32.mrb[0].mxu0
      %v2717 = vadd.f32 0.0, %v2716
      %v2718 = vpop.f32.mrb[0].mxu0
      %2719 = vdwg.mxu0
      %v2720 = vadd.f32 %v2645, %v2717
      %v2721 = vld [vmem:[%s282] sm:$0xff]
      %v2723 = vsel %vm171, %v2721, 0
      %2725 = vmatprep.subr.mxu0 0.0
      %2726 = vmatpush1.msra.mxu0 %v676
      %2727 = vmatprep.subr.mxu0 0.0
      %2728 = vmatpush1.msra.mxu0 0.0
      %2729 = vmatprep.subr.mxu0 0.0
      %2730 = vmatpush1.msra.mxu0 0.0
      %2731 = vmatprep.subr.mxu0 0.0
      %2732 = vmatpush1.msra.mxu0 0.0
      %2733 = vmatprep.subr.mxu0 0.0
      %2734 = vmatpush1.msra.mxu0 0.0
      %2735 = vmatprep.subr.mxu0 0.0
      %2736 = vmatpush1.msra.mxu0 0.0
      %2737 = vmatprep.subr.mxu0 0.0
      %2738 = vmatpush1.msra.mxu0 0.0
      %2739 = vmatprep.subr.mxu0 0.0
      %2740 = vmatpush1.msra.mxu0 0.0
      %2741 = vmatprep.subr.mxu0 0.0
      %2742 = vmatpush1.msra.mxu0 0.0
      %2743 = vmatprep.subr.mxu0 0.0
      %2744 = vmatpush1.msra.mxu0 0.0
      %2745 = vmatprep.subr.mxu0 0.0
      %2746 = vmatpush1.msra.mxu0 0.0
      %2747 = vmatprep.subr.mxu0 0.0
      %2748 = vmatpush1.msra.mxu0 0.0
      %2749 = vmatprep.subr.mxu0 0.0
      %2750 = vmatpush1.msra.mxu0 0.0
      %2751 = vmatprep.subr.mxu0 0.0
      %2752 = vmatpush1.msra.mxu0 0.0
      %2753 = vmatprep.subr.mxu0 0.0
      %2754 = vmatpush1.msra.mxu0 0.0
      %2755 = vmatprep.subr.mxu0 0.0
      %2756 = vmatpush1.msra.mxu0 0.0
      %2757 = vmatprep.subr.mxu0 0.0
      %2758 = vmatpush1.msra.mxu0 0.0
      %2759 = vmatprep.subr.mxu0 0.0
      %2760 = vmatpush1.msra.mxu0 0.0
      %2761 = vmatprep.subr.mxu0 0.0
      %2762 = vmatpush1.msra.mxu0 0.0
      %2763 = vmatprep.subr.mxu0 0.0
      %2764 = vmatpush1.msra.mxu0 0.0
      %2765 = vmatprep.subr.mxu0 0.0
      %2766 = vmatpush1.msra.mxu0 0.0
      %2767 = vmatprep.subr.mxu0 0.0
      %2768 = vmatpush1.msra.mxu0 0.0
      %2769 = vmatprep.subr.mxu0 0.0
      %2770 = vmatpush1.msra.mxu0 0.0
      %2771 = vmatprep.subr.mxu0 0.0
      %2772 = vmatpush1.msra.mxu0 0.0
      %2773 = vmatprep.subr.mxu0 0.0
      %2774 = vmatpush1.msra.mxu0 0.0
      %2775 = vmatprep.subr.mxu0 0.0
      %2776 = vmatpush1.msra.mxu0 0.0
      %2777 = vmatprep.subr.mxu0 0.0
      %2778 = vmatpush1.msra.mxu0 0.0
      %2779 = vmatprep.subr.mxu0 0.0
      %2780 = vmatpush1.msra.mxu0 0.0
      %2781 = vmatprep.subr.mxu0 0.0
      %2782 = vmatpush1.msra.mxu0 0.0
      %2783 = vmatprep.subr.mxu0 0.0
      %2784 = vmatpush1.msra.mxu0 0.0
      %2785 = vmatprep.subr.mxu0 0.0
      %2786 = vmatpush1.msra.mxu0 0.0
      %2787 = vmatprep.subr.mxu0 0.0
      %2788 = vmatpush1.msra.mxu0 0.0
      %2789 = vmatprep.mubr.f32.mxu0 0.0
      %2790 = vmatmul.mubr.f32.gmra.mrb[0].mxu0 %v2723
      %v2791 = vpop.f32.mrb[0].mxu0
      %v2792 = vadd.f32 0.0, %v2791
      %v2793 = vpop.f32.mrb[0].mxu0
      %2794 = vdwg.mxu0
      %v2795 = vadd.f32 %v2720, %v2792
      %v2796 = vld [vmem:[%s285 + $0x1] sm:$0xff]
      %v2798 = vsel %vm171, %v2796, 0
      %2800 = vmatprep.subr.mxu0 0.0
      %2801 = vmatpush1.msra.mxu0 %v754
      %2802 = vmatprep.subr.mxu0 0.0
      %2803 = vmatpush1.msra.mxu0 0.0
      %2804 = vmatprep.subr.mxu0 0.0
      %2805 = vmatpush1.msra.mxu0 0.0
      %2806 = vmatprep.subr.mxu0 0.0
      %2807 = vmatpush1.msra.mxu0 0.0
      %2808 = vmatprep.subr.mxu0 0.0
      %2809 = vmatpush1.msra.mxu0 0.0
      %2810 = vmatprep.subr.mxu0 0.0
      %2811 = vmatpush1.msra.mxu0 0.0
      %2812 = vmatprep.subr.mxu0 0.0
      %2813 = vmatpush1.msra.mxu0 0.0
      %2814 = vmatprep.subr.mxu0 0.0
      %2815 = vmatpush1.msra.mxu0 0.0
      %2816 = vmatprep.subr.mxu0 0.0
      %2817 = vmatpush1.msra.mxu0 0.0
      %2818 = vmatprep.subr.mxu0 0.0
      %2819 = vmatpush1.msra.mxu0 0.0
      %2820 = vmatprep.subr.mxu0 0.0
      %2821 = vmatpush1.msra.mxu0 0.0
      %2822 = vmatprep.subr.mxu0 0.0
      %2823 = vmatpush1.msra.mxu0 0.0
      %2824 = vmatprep.subr.mxu0 0.0
      %2825 = vmatpush1.msra.mxu0 0.0
      %2826 = vmatprep.subr.mxu0 0.0
      %2827 = vmatpush1.msra.mxu0 0.0
      %2828 = vmatprep.subr.mxu0 0.0
      %2829 = vmatpush1.msra.mxu0 0.0
      %2830 = vmatprep.subr.mxu0 0.0
      %2831 = vmatpush1.msra.mxu0 0.0
      %2832 = vmatprep.subr.mxu0 0.0
      %2833 = vmatpush1.msra.mxu0 0.0
      %2834 = vmatprep.subr.mxu0 0.0
      %2835 = vmatpush1.msra.mxu0 0.0
      %2836 = vmatprep.subr.mxu0 0.0
      %2837 = vmatpush1.msra.mxu0 0.0
      %2838 = vmatprep.subr.mxu0 0.0
      %2839 = vmatpush1.msra.mxu0 0.0
      %2840 = vmatprep.subr.mxu0 0.0
      %2841 = vmatpush1.msra.mxu0 0.0
      %2842 = vmatprep.subr.mxu0 0.0
      %2843 = vmatpush1.msra.mxu0 0.0
      %2844 = vmatprep.subr.mxu0 0.0
      %2845 = vmatpush1.msra.mxu0 0.0
      %2846 = vmatprep.subr.mxu0 0.0
      %2847 = vmatpush1.msra.mxu0 0.0
      %2848 = vmatprep.subr.mxu0 0.0
      %2849 = vmatpush1.msra.mxu0 0.0
      %2850 = vmatprep.subr.mxu0 0.0
      %2851 = vmatpush1.msra.mxu0 0.0
      %2852 = vmatprep.subr.mxu0 0.0
      %2853 = vmatpush1.msra.mxu0 0.0
      %2854 = vmatprep.subr.mxu0 0.0
      %2855 = vmatpush1.msra.mxu0 0.0
      %2856 = vmatprep.subr.mxu0 0.0
      %2857 = vmatpush1.msra.mxu0 0.0
      %2858 = vmatprep.subr.mxu0 0.0
      %2859 = vmatpush1.msra.mxu0 0.0
      %2860 = vmatprep.subr.mxu0 0.0
      %2861 = vmatpush1.msra.mxu0 0.0
      %2862 = vmatprep.subr.mxu0 0.0
      %2863 = vmatpush1.msra.mxu0 0.0
      %2864 = vmatprep.mubr.f32.mxu0 0.0
      %2865 = vmatmul.mubr.f32.gmra.mrb[0].mxu0 %v2798
      %v2866 = vpop.f32.mrb[0].mxu0
      %v2867 = vadd.f32 0.0, %v2866
      %v2868 = vpop.f32.mrb[0].mxu0
      %2869 = vdwg.mxu0
      %v2870 = vadd.f32 %v2795, %v2867
      %v2871 = vld [vmem:[%s291] sm:$0xff]
      %v2873 = vsel %vm171, %v2871, 0
      %2875 = vmatprep.subr.mxu0 0.0
      %2876 = vmatpush1.msra.mxu0 %v832
      %2877 = vmatprep.subr.mxu0 0.0
      %2878 = vmatpush1.msra.mxu0 0.0
      %2879 = vmatprep.subr.mxu0 0.0
      %2880 = vmatpush1.msra.mxu0 0.0
      %2881 = vmatprep.subr.mxu0 0.0
      %2882 = vmatpush1.msra.mxu0 0.0
      %2883 = vmatprep.subr.mxu0 0.0
      %2884 = vmatpush1.msra.mxu0 0.0
      %2885 = vmatprep.subr.mxu0 0.0
      %2886 = vmatpush1.msra.mxu0 0.0
      %2887 = vmatprep.subr.mxu0 0.0
      %2888 = vmatpush1.msra.mxu0 0.0
      %2889 = vmatprep.subr.mxu0 0.0
      %2890 = vmatpush1.msra.mxu0 0.0
      %2891 = vmatprep.subr.mxu0 0.0
      %2892 = vmatpush1.msra.mxu0 0.0
      %2893 = vmatprep.subr.mxu0 0.0
      %2894 = vmatpush1.msra.mxu0 0.0
      %2895 = vmatprep.subr.mxu0 0.0
      %2896 = vmatpush1.msra.mxu0 0.0
      %2897 = vmatprep.subr.mxu0 0.0
      %2898 = vmatpush1.msra.mxu0 0.0
      %2899 = vmatprep.subr.mxu0 0.0
      %2900 = vmatpush1.msra.mxu0 0.0
      %2901 = vmatprep.subr.mxu0 0.0
      %2902 = vmatpush1.msra.mxu0 0.0
      %2903 = vmatprep.subr.mxu0 0.0
      %2904 = vmatpush1.msra.mxu0 0.0
      %2905 = vmatprep.subr.mxu0 0.0
      %2906 = vmatpush1.msra.mxu0 0.0
      %2907 = vmatprep.subr.mxu0 0.0
      %2908 = vmatpush1.msra.mxu0 0.0
      %2909 = vmatprep.subr.mxu0 0.0
      %2910 = vmatpush1.msra.mxu0 0.0
      %2911 = vmatprep.subr.mxu0 0.0
      %2912 = vmatpush1.msra.mxu0 0.0
      %2913 = vmatprep.subr.mxu0 0.0
      %2914 = vmatpush1.msra.mxu0 0.0
      %2915 = vmatprep.subr.mxu0 0.0
      %2916 = vmatpush1.msra.mxu0 0.0
      %2917 = vmatprep.subr.mxu0 0.0
      %2918 = vmatpush1.msra.mxu0 0.0
      %2919 = vmatprep.subr.mxu0 0.0
      %2920 = vmatpush1.msra.mxu0 0.0
      %2921 = vmatprep.subr.mxu0 0.0
      %2922 = vmatpush1.msra.mxu0 0.0
      %2923 = vmatprep.subr.mxu0 0.0
      %2924 = vmatpush1.msra.mxu0 0.0
      %2925 = vmatprep.subr.mxu0 0.0
      %2926 = vmatpush1.msra.mxu0 0.0
      %2927 = vmatprep.subr.mxu0 0.0
      %2928 = vmatpush1.msra.mxu0 0.0
      %2929 = vmatprep.subr.mxu0 0.0
      %2930 = vmatpush1.msra.mxu0 0.0
      %2931 = vmatprep.subr.mxu0 0.0
      %2932 = vmatpush1.msra.mxu0 0.0
      %2933 = vmatprep.subr.mxu0 0.0
      %2934 = vmatpush1.msra.mxu0 0.0
      %2935 = vmatprep.subr.mxu0 0.0
      %2936 = vmatpush1.msra.mxu0 0.0
      %2937 = vmatprep.subr.mxu0 0.0
      %2938 = vmatpush1.msra.mxu0 0.0
      %2939 = vmatprep.mubr.f32.mxu0 0.0
      %2940 = vmatmul.mubr.f32.gmra.mrb[0].mxu0 %v2873
      %v2941 = vpop.f32.mrb[0].mxu0
      %v2942 = vadd.f32 0.0, %v2941
      %v2943 = vpop.f32.mrb[0].mxu0
      %2944 = vdwg.mxu0
      %v2945 = vadd.f32 %v2870, %v2942
      %v2946 = vld [vmem:[%s288] sm:$0xff]
      %v2948 = vsel %vm171, %v2946, 0
      %2950 = vmatprep.subr.mxu0 0.0
      %2951 = vmatpush1.msra.mxu0 %v910
      %2952 = vmatprep.subr.mxu0 0.0
      %2953 = vmatpush1.msra.mxu0 0.0
      %2954 = vmatprep.subr.mxu0 0.0
      %2955 = vmatpush1.msra.mxu0 0.0
      %2956 = vmatprep.subr.mxu0 0.0
      %2957 = vmatpush1.msra.mxu0 0.0
      %2958 = vmatprep.subr.mxu0 0.0
      %2959 = vmatpush1.msra.mxu0 0.0
      %2960 = vmatprep.subr.mxu0 0.0
      %2961 = vmatpush1.msra.mxu0 0.0
      %2962 = vmatprep.subr.mxu0 0.0
      %2963 = vmatpush1.msra.mxu0 0.0
      %2964 = vmatprep.subr.mxu0 0.0
      %2965 = vmatpush1.msra.mxu0 0.0
      %2966 = vmatprep.subr.mxu0 0.0
      %2967 = vmatpush1.msra.mxu0 0.0
      %2968 = vmatprep.subr.mxu0 0.0
      %2969 = vmatpush1.msra.mxu0 0.0
      %2970 = vmatprep.subr.mxu0 0.0
      %2971 = vmatpush1.msra.mxu0 0.0
      %2972 = vmatprep.subr.mxu0 0.0
      %2973 = vmatpush1.msra.mxu0 0.0
      %2974 = vmatprep.subr.mxu0 0.0
      %2975 = vmatpush1.msra.mxu0 0.0
      %2976 = vmatprep.subr.mxu0 0.0
      %2977 = vmatpush1.msra.mxu0 0.0
      %2978 = vmatprep.subr.mxu0 0.0
      %2979 = vmatpush1.msra.mxu0 0.0
      %2980 = vmatprep.subr.mxu0 0.0
      %2981 = vmatpush1.msra.mxu0 0.0
      %2982 = vmatprep.subr.mxu0 0.0
      %2983 = vmatpush1.msra.mxu0 0.0
      %2984 = vmatprep.subr.mxu0 0.0
      %2985 = vmatpush1.msra.mxu0 0.0
      %2986 = vmatprep.subr.mxu0 0.0
      %2987 = vmatpush1.msra.mxu0 0.0
      %2988 = vmatprep.subr.mxu0 0.0
      %2989 = vmatpush1.msra.mxu0 0.0
      %2990 = vmatprep.subr.mxu0 0.0
      %2991 = vmatpush1.msra.mxu0 0.0
      %2992 = vmatprep.subr.mxu0 0.0
      %2993 = vmatpush1.msra.mxu0 0.0
      %2994 = vmatprep.subr.mxu0 0.0
      %2995 = vmatpush1.msra.mxu0 0.0
      %2996 = vmatprep.subr.mxu0 0.0
      %2997 = vmatpush1.msra.mxu0 0.0
      %2998 = vmatprep.subr.mxu0 0.0
      %2999 = vmatpush1.msra.mxu0 0.0
      %3000 = vmatprep.subr.mxu0 0.0
      %3001 = vmatpush1.msra.mxu0 0.0
      %3002 = vmatprep.subr.mxu0 0.0
      %3003 = vmatpush1.msra.mxu0 0.0
      %3004 = vmatprep.subr.mxu0 0.0
      %3005 = vmatpush1.msra.mxu0 0.0
      %3006 = vmatprep.subr.mxu0 0.0
      %3007 = vmatpush1.msra.mxu0 0.0
      %3008 = vmatprep.subr.mxu0 0.0
      %3009 = vmatpush1.msra.mxu0 0.0
      %3010 = vmatprep.subr.mxu0 0.0
      %3011 = vmatpush1.msra.mxu0 0.0
      %3012 = vmatprep.subr.mxu0 0.0
      %3013 = vmatpush1.msra.mxu0 0.0
      %3014 = vmatprep.mubr.f32.mxu0 0.0
      %3015 = vmatmul.mubr.f32.gmra.mrb[0].mxu0 %v2948
      %v3016 = vpop.f32.mrb[0].mxu0
      %v3017 = vadd.f32 0.0, %v3016
      %v3018 = vpop.f32.mrb[0].mxu0
      %3019 = vdwg.mxu0
      %v3020 = vadd.f32 %v2945, %v3017
      %v3021 = vld [vmem:[%s291 + $0x1] sm:$0xff]
      %v3023 = vsel %vm171, %v3021, 0
      %3025 = vmatprep.subr.mxu0 0.0
      %3026 = vmatpush1.msra.mxu0 %v988
      %3027 = vmatprep.subr.mxu0 0.0
      %3028 = vmatpush1.msra.mxu0 0.0
      %3029 = vmatprep.subr.mxu0 0.0
      %3030 = vmatpush1.msra.mxu0 0.0
      %3031 = vmatprep.subr.mxu0 0.0
      %3032 = vmatpush1.msra.mxu0 0.0
      %3033 = vmatprep.subr.mxu0 0.0
      %3034 = vmatpush1.msra.mxu0 0.0
      %3035 = vmatprep.subr.mxu0 0.0
      %3036 = vmatpush1.msra.mxu0 0.0
      %3037 = vmatprep.subr.mxu0 0.0
      %3038 = vmatpush1.msra.mxu0 0.0
      %3039 = vmatprep.subr.mxu0 0.0
      %3040 = vmatpush1.msra.mxu0 0.0
      %3041 = vmatprep.subr.mxu0 0.0
      %3042 = vmatpush1.msra.mxu0 0.0
      %3043 = vmatprep.subr.mxu0 0.0
      %3044 = vmatpush1.msra.mxu0 0.0
      %3045 = vmatprep.subr.mxu0 0.0
      %3046 = vmatpush1.msra.mxu0 0.0
      %3047 = vmatprep.subr.mxu0 0.0
      %3048 = vmatpush1.msra.mxu0 0.0
      %3049 = vmatprep.subr.mxu0 0.0
      %3050 = vmatpush1.msra.mxu0 0.0
      %3051 = vmatprep.subr.mxu0 0.0
      %3052 = vmatpush1.msra.mxu0 0.0
      %3053 = vmatprep.subr.mxu0 0.0
      %3054 = vmatpush1.msra.mxu0 0.0
      %3055 = vmatprep.subr.mxu0 0.0
      %3056 = vmatpush1.msra.mxu0 0.0
      %3057 = vmatprep.subr.mxu0 0.0
      %3058 = vmatpush1.msra.mxu0 0.0
      %3059 = vmatprep.subr.mxu0 0.0
      %3060 = vmatpush1.msra.mxu0 0.0
      %3061 = vmatprep.subr.mxu0 0.0
      %3062 = vmatpush1.msra.mxu0 0.0
      %3063 = vmatprep.subr.mxu0 0.0
      %3064 = vmatpush1.msra.mxu0 0.0
      %3065 = vmatprep.subr.mxu0 0.0
      %3066 = vmatpush1.msra.mxu0 0.0
      %3067 = vmatprep.subr.mxu0 0.0
      %3068 = vmatpush1.msra.mxu0 0.0
      %3069 = vmatprep.subr.mxu0 0.0
      %3070 = vmatpush1.msra.mxu0 0.0
      %3071 = vmatprep.subr.mxu0 0.0
      %3072 = vmatpush1.msra.mxu0 0.0
      %3073 = vmatprep.subr.mxu0 0.0
      %3074 = vmatpush1.msra.mxu0 0.0
      %3075 = vmatprep.subr.mxu0 0.0
      %3076 = vmatpush1.msra.mxu0 0.0
      %3077 = vmatprep.subr.mxu0 0.0
      %3078 = vmatpush1.msra.mxu0 0.0
      %3079 = vmatprep.subr.mxu0 0.0
      %3080 = vmatpush1.msra.mxu0 0.0
      %3081 = vmatprep.subr.mxu0 0.0
      %3082 = vmatpush1.msra.mxu0 0.0
      %3083 = vmatprep.subr.mxu0 0.0
      %3084 = vmatpush1.msra.mxu0 0.0
      %3085 = vmatprep.subr.mxu0 0.0
      %3086 = vmatpush1.msra.mxu0 0.0
      %3087 = vmatprep.subr.mxu0 0.0
      %3088 = vmatpush1.msra.mxu0 0.0
      %3089 = vmatprep.mubr.f32.mxu0 0.0
      %3090 = vmatmul.mubr.f32.gmra.mrb[0].mxu0 %v3023
      %v3091 = vpop.f32.mrb[0].mxu0
      %v3092 = vadd.f32 0.0, %v3091
      %v3093 = vpop.f32.mrb[0].mxu0
      %3094 = vdwg.mxu0
      %v3095 = vadd.f32 %v3020, %v3092
      %v3096 = vadd.f32 %v3095, %v1065
      %v3097 = vmax.f32 %v3096, 0.0
      %3098 = vst.msk [vmem:[%s170 + $0x18] sm:$0xff] %vm1069, %v3097
      %v3099 = vld [vmem:[%s291] sm:$0xff]
      %v3100 = vld [vmem:[%s288] sm:$0xff]
      %v3102 = vsel %vm171, %v3100, 0
      %3104 = vmatprep.subr.mxu0 0.0
      %3105 = vmatpush1.msra.mxu0 %v367
      %3106 = vmatprep.subr.mxu0 0.0
      %3107 = vmatpush1.msra.mxu0 0.0
      %3108 = vmatprep.subr.mxu0 0.0
      %3109 = vmatpush1.msra.mxu0 0.0
      %3110 = vmatprep.subr.mxu0 0.0
      %3111 = vmatpush1.msra.mxu0 0.0
      %3112 = vmatprep.subr.mxu0 0.0
      %3113 = vmatpush1.msra.mxu0 0.0
      %3114 = vmatprep.subr.mxu0 0.0
      %3115 = vmatpush1.msra.mxu0 0.0
      %3116 = vmatprep.subr.mxu0 0.0
      %3117 = vmatpush1.msra.mxu0 0.0
      %3118 = vmatprep.subr.mxu0 0.0
      %3119 = vmatpush1.msra.mxu0 0.0
      %3120 = vmatprep.subr.mxu0 0.0
      %3121 = vmatpush1.msra.mxu0 0.0
      %3122 = vmatprep.subr.mxu0 0.0
      %3123 = vmatpush1.msra.mxu0 0.0
      %3124 = vmatprep.subr.mxu0 0.0
      %3125 = vmatpush1.msra.mxu0 0.0
      %3126 = vmatprep.subr.mxu0 0.0
      %3127 = vmatpush1.msra.mxu0 0.0
      %3128 = vmatprep.subr.mxu0 0.0
      %3129 = vmatpush1.msra.mxu0 0.0
      %3130 = vmatprep.subr.mxu0 0.0
      %3131 = vmatpush1.msra.mxu0 0.0
      %3132 = vmatprep.subr.mxu0 0.0
      %3133 = vmatpush1.msra.mxu0 0.0
      %3134 = vmatprep.subr.mxu0 0.0
      %3135 = vmatpush1.msra.mxu0 0.0
      %3136 = vmatprep.subr.mxu0 0.0
      %3137 = vmatpush1.msra.mxu0 0.0
      %3138 = vmatprep.subr.mxu0 0.0
      %3139 = vmatpush1.msra.mxu0 0.0
      %3140 = vmatprep.subr.mxu0 0.0
      %3141 = vmatpush1.msra.mxu0 0.0
      %3142 = vmatprep.subr.mxu0 0.0
      %3143 = vmatpush1.msra.mxu0 0.0
      %3144 = vmatprep.subr.mxu0 0.0
      %3145 = vmatpush1.msra.mxu0 0.0
      %3146 = vmatprep.subr.mxu0 0.0
      %3147 = vmatpush1.msra.mxu0 0.0
      %3148 = vmatprep.subr.mxu0 0.0
      %3149 = vmatpush1.msra.mxu0 0.0
      %3150 = vmatprep.subr.mxu0 0.0
      %3151 = vmatpush1.msra.mxu0 0.0
      %3152 = vmatprep.subr.mxu0 0.0
      %3153 = vmatpush1.msra.mxu0 0.0
      %3154 = vmatprep.subr.mxu0 0.0
      %3155 = vmatpush1.msra.mxu0 0.0
      %3156 = vmatprep.subr.mxu0 0.0
      %3157 = vmatpush1.msra.mxu0 0.0
      %3158 = vmatprep.subr.mxu0 0.0
      %3159 = vmatpush1.msra.mxu0 0.0
      %3160 = vmatprep.subr.mxu0 0.0
      %3161 = vmatpush1.msra.mxu0 0.0
      %3162 = vmatprep.subr.mxu0 0.0
      %3163 = vmatpush1.msra.mxu0 0.0
      %3164 = vmatprep.subr.mxu0 0.0
      %3165 = vmatpush1.msra.mxu0 0.0
      %3166 = vmatprep.subr.mxu0 0.0
      %3167 = vmatpush1.msra.mxu0 0.0
      %3168 = vmatprep.mubr.f32.mxu0 0.0
      %3169 = vmatmul.mubr.f32.gmra.mrb[0].mxu0 %v3102
      %v3170 = vpop.f32.mrb[0].mxu0
      %v3171 = vadd.f32 0.0, %v3170
      %v3172 = vpop.f32.mrb[0].mxu0
      %3173 = vdwg.mxu0
      %v3175 = vsel %vm171, %v3099, 0
      %3177 = vmatprep.subr.mxu0 0.0
      %3178 = vmatpush1.msra.mxu0 %v443
      %3179 = vmatprep.subr.mxu0 0.0
      %3180 = vmatpush1.msra.mxu0 0.0
      %3181 = vmatprep.subr.mxu0 0.0
      %3182 = vmatpush1.msra.mxu0 0.0
      %3183 = vmatprep.subr.mxu0 0.0
      %3184 = vmatpush1.msra.mxu0 0.0
      %3185 = vmatprep.subr.mxu0 0.0
      %3186 = vmatpush1.msra.mxu0 0.0
      %3187 = vmatprep.subr.mxu0 0.0
      %3188 = vmatpush1.msra.mxu0 0.0
      %3189 = vmatprep.subr.mxu0 0.0
      %3190 = vmatpush1.msra.mxu0 0.0
      %3191 = vmatprep.subr.mxu0 0.0
      %3192 = vmatpush1.msra.mxu0 0.0
      %3193 = vmatprep.subr.mxu0 0.0
      %3194 = vmatpush1.msra.mxu0 0.0
      %3195 = vmatprep.subr.mxu0 0.0
      %3196 = vmatpush1.msra.mxu0 0.0
      %3197 = vmatprep.subr.mxu0 0.0
      %3198 = vmatpush1.msra.mxu0 0.0
      %3199 = vmatprep.subr.mxu0 0.0
      %3200 = vmatpush1.msra.mxu0 0.0
      %3201 = vmatprep.subr.mxu0 0.0
      %3202 = vmatpush1.msra.mxu0 0.0
      %3203 = vmatprep.subr.mxu0 0.0
      %3204 = vmatpush1.msra.mxu0 0.0
      %3205 = vmatprep.subr.mxu0 0.0
      %3206 = vmatpush1.msra.mxu0 0.0
      %3207 = vmatprep.subr.mxu0 0.0
      %3208 = vmatpush1.msra.mxu0 0.0
      %3209 = vmatprep.subr.mxu0 0.0
      %3210 = vmatpush1.msra.mxu0 0.0
      %3211 = vmatprep.subr.mxu0 0.0
      %3212 = vmatpush1.msra.mxu0 0.0
      %3213 = vmatprep.subr.mxu0 0.0
      %3214 = vmatpush1.msra.mxu0 0.0
      %3215 = vmatprep.subr.mxu0 0.0
      %3216 = vmatpush1.msra.mxu0 0.0
      %3217 = vmatprep.subr.mxu0 0.0
      %3218 = vmatpush1.msra.mxu0 0.0
      %3219 = vmatprep.subr.mxu0 0.0
      %3220 = vmatpush1.msra.mxu0 0.0
      %3221 = vmatprep.subr.mxu0 0.0
      %3222 = vmatpush1.msra.mxu0 0.0
      %3223 = vmatprep.subr.mxu0 0.0
      %3224 = vmatpush1.msra.mxu0 0.0
      %3225 = vmatprep.subr.mxu0 0.0
      %3226 = vmatpush1.msra.mxu0 0.0
      %3227 = vmatprep.subr.mxu0 0.0
      %3228 = vmatpush1.msra.mxu0 0.0
      %3229 = vmatprep.subr.mxu0 0.0
      %3230 = vmatpush1.msra.mxu0 0.0
      %3231 = vmatprep.subr.mxu0 0.0
      %3232 = vmatpush1.msra.mxu0 0.0
      %3233 = vmatprep.subr.mxu0 0.0
      %3234 = vmatpush1.msra.mxu0 0.0
      %3235 = vmatprep.subr.mxu0 0.0
      %3236 = vmatpush1.msra.mxu0 0.0
      %3237 = vmatprep.subr.mxu0 0.0
      %3238 = vmatpush1.msra.mxu0 0.0
      %3239 = vmatprep.subr.mxu0 0.0
      %3240 = vmatpush1.msra.mxu0 0.0
      %3241 = vmatprep.mubr.f32.mxu0 0.0
      %3242 = vmatmul.mubr.f32.gmra.mrb[0].mxu0 %v3175
      %v3243 = vpop.f32.mrb[0].mxu0
      %v3244 = vadd.f32 %v3171, %v3243
      %v3245 = vpop.f32.mrb[0].mxu0
      %3246 = vdwg.mxu0
      %v3247 = vld [vmem:[%s291 + $0x1] sm:$0xff]
      %v3249 = vsel %vm171, %v3247, 0
      %3251 = vmatprep.subr.mxu0 0.0
      %3252 = vmatpush1.msra.mxu0 %v520
      %3253 = vmatprep.subr.mxu0 0.0
      %3254 = vmatpush1.msra.mxu0 0.0
      %3255 = vmatprep.subr.mxu0 0.0
      %3256 = vmatpush1.msra.mxu0 0.0
      %3257 = vmatprep.subr.mxu0 0.0
      %3258 = vmatpush1.msra.mxu0 0.0
      %3259 = vmatprep.subr.mxu0 0.0
      %3260 = vmatpush1.msra.mxu0 0.0
      %3261 = vmatprep.subr.mxu0 0.0
      %3262 = vmatpush1.msra.mxu0 0.0
      %3263 = vmatprep.subr.mxu0 0.0
      %3264 = vmatpush1.msra.mxu0 0.0
      %3265 = vmatprep.subr.mxu0 0.0
      %3266 = vmatpush1.msra.mxu0 0.0
      %3267 = vmatprep.subr.mxu0 0.0
      %3268 = vmatpush1.msra.mxu0 0.0
      %3269 = vmatprep.subr.mxu0 0.0
      %3270 = vmatpush1.msra.mxu0 0.0
      %3271 = vmatprep.subr.mxu0 0.0
      %3272 = vmatpush1.msra.mxu0 0.0
      %3273 = vmatprep.subr.mxu0 0.0
      %3274 = vmatpush1.msra.mxu0 0.0
      %3275 = vmatprep.subr.mxu0 0.0
      %3276 = vmatpush1.msra.mxu0 0.0
      %3277 = vmatprep.subr.mxu0 0.0
      %3278 = vmatpush1.msra.mxu0 0.0
      %3279 = vmatprep.subr.mxu0 0.0
      %3280 = vmatpush1.msra.mxu0 0.0
      %3281 = vmatprep.subr.mxu0 0.0
      %3282 = vmatpush1.msra.mxu0 0.0
      %3283 = vmatprep.subr.mxu0 0.0
      %3284 = vmatpush1.msra.mxu0 0.0
      %3285 = vmatprep.subr.mxu0 0.0
      %3286 = vmatpush1.msra.mxu0 0.0
      %3287 = vmatprep.subr.mxu0 0.0
      %3288 = vmatpush1.msra.mxu0 0.0
      %3289 = vmatprep.subr.mxu0 0.0
      %3290 = vmatpush1.msra.mxu0 0.0
      %3291 = vmatprep.subr.mxu0 0.0
      %3292 = vmatpush1.msra.mxu0 0.0
      %3293 = vmatprep.subr.mxu0 0.0
      %3294 = vmatpush1.msra.mxu0 0.0
      %3295 = vmatprep.subr.mxu0 0.0
      %3296 = vmatpush1.msra.mxu0 0.0
      %3297 = vmatprep.subr.mxu0 0.0
      %3298 = vmatpush1.msra.mxu0 0.0
      %3299 = vmatprep.subr.mxu0 0.0
      %3300 = vmatpush1.msra.mxu0 0.0
      %3301 = vmatprep.subr.mxu0 0.0
      %3302 = vmatpush1.msra.mxu0 0.0
      %3303 = vmatprep.subr.mxu0 0.0
      %3304 = vmatpush1.msra.mxu0 0.0
      %3305 = vmatprep.subr.mxu0 0.0
      %3306 = vmatpush1.msra.mxu0 0.0
      %3307 = vmatprep.subr.mxu0 0.0
      %3308 = vmatpush1.msra.mxu0 0.0
      %3309 = vmatprep.subr.mxu0 0.0
      %3310 = vmatpush1.msra.mxu0 0.0
      %3311 = vmatprep.subr.mxu0 0.0
      %3312 = vmatpush1.msra.mxu0 0.0
      %3313 = vmatprep.subr.mxu0 0.0
      %3314 = vmatpush1.msra.mxu0 0.0
      %3315 = vmatprep.mubr.f32.mxu0 0.0
      %3316 = vmatmul.mubr.f32.gmra.mrb[0].mxu0 %v3249
      %v3317 = vpop.f32.mrb[0].mxu0
      %v3318 = vadd.f32 0.0, %v3317
      %v3319 = vpop.f32.mrb[0].mxu0
      %3320 = vdwg.mxu0
      %v3321 = vadd.f32 %v3244, %v3318
      %v3322 = vld [vmem:[%s297] sm:$0xff]
      %v3324 = vsel %vm171, %v3322, 0
      %3326 = vmatprep.subr.mxu0 0.0
      %3327 = vmatpush1.msra.mxu0 %v598
      %3328 = vmatprep.subr.mxu0 0.0
      %3329 = vmatpush1.msra.mxu0 0.0
      %3330 = vmatprep.subr.mxu0 0.0
      %3331 = vmatpush1.msra.mxu0 0.0
      %3332 = vmatprep.subr.mxu0 0.0
      %3333 = vmatpush1.msra.mxu0 0.0
      %3334 = vmatprep.subr.mxu0 0.0
      %3335 = vmatpush1.msra.mxu0 0.0
      %3336 = vmatprep.subr.mxu0 0.0
      %3337 = vmatpush1.msra.mxu0 0.0
      %3338 = vmatprep.subr.mxu0 0.0
      %3339 = vmatpush1.msra.mxu0 0.0
      %3340 = vmatprep.subr.mxu0 0.0
      %3341 = vmatpush1.msra.mxu0 0.0
      %3342 = vmatprep.subr.mxu0 0.0
      %3343 = vmatpush1.msra.mxu0 0.0
      %3344 = vmatprep.subr.mxu0 0.0
      %3345 = vmatpush1.msra.mxu0 0.0
      %3346 = vmatprep.subr.mxu0 0.0
      %3347 = vmatpush1.msra.mxu0 0.0
      %3348 = vmatprep.subr.mxu0 0.0
      %3349 = vmatpush1.msra.mxu0 0.0
      %3350 = vmatprep.subr.mxu0 0.0
      %3351 = vmatpush1.msra.mxu0 0.0
      %3352 = vmatprep.subr.mxu0 0.0
      %3353 = vmatpush1.msra.mxu0 0.0
      %3354 = vmatprep.subr.mxu0 0.0
      %3355 = vmatpush1.msra.mxu0 0.0
      %3356 = vmatprep.subr.mxu0 0.0
      %3357 = vmatpush1.msra.mxu0 0.0
      %3358 = vmatprep.subr.mxu0 0.0
      %3359 = vmatpush1.msra.mxu0 0.0
      %3360 = vmatprep.subr.mxu0 0.0
      %3361 = vmatpush1.msra.mxu0 0.0
      %3362 = vmatprep.subr.mxu0 0.0
      %3363 = vmatpush1.msra.mxu0 0.0
      %3364 = vmatprep.subr.mxu0 0.0
      %3365 = vmatpush1.msra.mxu0 0.0
      %3366 = vmatprep.subr.mxu0 0.0
      %3367 = vmatpush1.msra.mxu0 0.0
      %3368 = vmatprep.subr.mxu0 0.0
      %3369 = vmatpush1.msra.mxu0 0.0
      %3370 = vmatprep.subr.mxu0 0.0
      %3371 = vmatpush1.msra.mxu0 0.0
      %3372 = vmatprep.subr.mxu0 0.0
      %3373 = vmatpush1.msra.mxu0 0.0
      %3374 = vmatprep.subr.mxu0 0.0
      %3375 = vmatpush1.msra.mxu0 0.0
      %3376 = vmatprep.subr.mxu0 0.0
      %3377 = vmatpush1.msra.mxu0 0.0
      %3378 = vmatprep.subr.mxu0 0.0
      %3379 = vmatpush1.msra.mxu0 0.0
      %3380 = vmatprep.subr.mxu0 0.0
      %3381 = vmatpush1.msra.mxu0 0.0
      %3382 = vmatprep.subr.mxu0 0.0
      %3383 = vmatpush1.msra.mxu0 0.0
      %3384 = vmatprep.subr.mxu0 0.0
      %3385 = vmatpush1.msra.mxu0 0.0
      %3386 = vmatprep.subr.mxu0 0.0
      %3387 = vmatpush1.msra.mxu0 0.0
      %3388 = vmatprep.subr.mxu0 0.0
      %3389 = vmatpush1.msra.mxu0 0.0
      %3390 = vmatprep.mubr.f32.mxu0 0.0
      %3391 = vmatmul.mubr.f32.gmra.mrb[0].mxu0 %v3324
      %v3392 = vpop.f32.mrb[0].mxu0
      %v3393 = vadd.f32 0.0, %v3392
      %v3394 = vpop.f32.mrb[0].mxu0
      %3395 = vdwg.mxu0
      %v3396 = vadd.f32 %v3321, %v3393
      %v3397 = vld [vmem:[%s294] sm:$0xff]
      %v3399 = vsel %vm171, %v3397, 0
      %3401 = vmatprep.subr.mxu0 0.0
      %3402 = vmatpush1.msra.mxu0 %v676
      %3403 = vmatprep.subr.mxu0 0.0
      %3404 = vmatpush1.msra.mxu0 0.0
      %3405 = vmatprep.subr.mxu0 0.0
      %3406 = vmatpush1.msra.mxu0 0.0
      %3407 = vmatprep.subr.mxu0 0.0
      %3408 = vmatpush1.msra.mxu0 0.0
      %3409 = vmatprep.subr.mxu0 0.0
      %3410 = vmatpush1.msra.mxu0 0.0
      %3411 = vmatprep.subr.mxu0 0.0
      %3412 = vmatpush1.msra.mxu0 0.0
      %3413 = vmatprep.subr.mxu0 0.0
      %3414 = vmatpush1.msra.mxu0 0.0
      %3415 = vmatprep.subr.mxu0 0.0
      %3416 = vmatpush1.msra.mxu0 0.0
      %3417 = vmatprep.subr.mxu0 0.0
      %3418 = vmatpush1.msra.mxu0 0.0
      %3419 = vmatprep.subr.mxu0 0.0
      %3420 = vmatpush1.msra.mxu0 0.0
      %3421 = vmatprep.subr.mxu0 0.0
      %3422 = vmatpush1.msra.mxu0 0.0
      %3423 = vmatprep.subr.mxu0 0.0
      %3424 = vmatpush1.msra.mxu0 0.0
      %3425 = vmatprep.subr.mxu0 0.0
      %3426 = vmatpush1.msra.mxu0 0.0
      %3427 = vmatprep.subr.mxu0 0.0
      %3428 = vmatpush1.msra.mxu0 0.0
      %3429 = vmatprep.subr.mxu0 0.0
      %3430 = vmatpush1.msra.mxu0 0.0
      %3431 = vmatprep.subr.mxu0 0.0
      %3432 = vmatpush1.msra.mxu0 0.0
      %3433 = vmatprep.subr.mxu0 0.0
      %3434 = vmatpush1.msra.mxu0 0.0
      %3435 = vmatprep.subr.mxu0 0.0
      %3436 = vmatpush1.msra.mxu0 0.0
      %3437 = vmatprep.subr.mxu0 0.0
      %3438 = vmatpush1.msra.mxu0 0.0
      %3439 = vmatprep.subr.mxu0 0.0
      %3440 = vmatpush1.msra.mxu0 0.0
      %3441 = vmatprep.subr.mxu0 0.0
      %3442 = vmatpush1.msra.mxu0 0.0
      %3443 = vmatprep.subr.mxu0 0.0
      %3444 = vmatpush1.msra.mxu0 0.0
      %3445 = vmatprep.subr.mxu0 0.0
      %3446 = vmatpush1.msra.mxu0 0.0
      %3447 = vmatprep.subr.mxu0 0.0
      %3448 = vmatpush1.msra.mxu0 0.0
      %3449 = vmatprep.subr.mxu0 0.0
      %3450 = vmatpush1.msra.mxu0 0.0
      %3451 = vmatprep.subr.mxu0 0.0
      %3452 = vmatpush1.msra.mxu0 0.0
      %3453 = vmatprep.subr.mxu0 0.0
      %3454 = vmatpush1.msra.mxu0 0.0
      %3455 = vmatprep.subr.mxu0 0.0
      %3456 = vmatpush1.msra.mxu0 0.0
      %3457 = vmatprep.subr.mxu0 0.0
      %3458 = vmatpush1.msra.mxu0 0.0
      %3459 = vmatprep.subr.mxu0 0.0
      %3460 = vmatpush1.msra.mxu0 0.0
      %3461 = vmatprep.subr.mxu0 0.0
      %3462 = vmatpush1.msra.mxu0 0.0
      %3463 = vmatprep.subr.mxu0 0.0
      %3464 = vmatpush1.msra.mxu0 0.0
      %3465 = vmatprep.mubr.f32.mxu0 0.0
      %3466 = vmatmul.mubr.f32.gmra.mrb[0].mxu0 %v3399
      %v3467 = vpop.f32.mrb[0].mxu0
      %v3468 = vadd.f32 0.0, %v3467
      %v3469 = vpop.f32.mrb[0].mxu0
      %3470 = vdwg.mxu0
      %v3471 = vadd.f32 %v3396, %v3468
      %v3472 = vld [vmem:[%s297 + $0x1] sm:$0xff]
      %v3474 = vsel %vm171, %v3472, 0
      %3476 = vmatprep.subr.mxu0 0.0
      %3477 = vmatpush1.msra.mxu0 %v754
      %3478 = vmatprep.subr.mxu0 0.0
      %3479 = vmatpush1.msra.mxu0 0.0
      %3480 = vmatprep.subr.mxu0 0.0
      %3481 = vmatpush1.msra.mxu0 0.0
      %3482 = vmatprep.subr.mxu0 0.0
      %3483 = vmatpush1.msra.mxu0 0.0
      %3484 = vmatprep.subr.mxu0 0.0
      %3485 = vmatpush1.msra.mxu0 0.0
      %3486 = vmatprep.subr.mxu0 0.0
      %3487 = vmatpush1.msra.mxu0 0.0
      %3488 = vmatprep.subr.mxu0 0.0
      %3489 = vmatpush1.msra.mxu0 0.0
      %3490 = vmatprep.subr.mxu0 0.0
      %3491 = vmatpush1.msra.mxu0 0.0
      %3492 = vmatprep.subr.mxu0 0.0
      %3493 = vmatpush1.msra.mxu0 0.0
      %3494 = vmatprep.subr.mxu0 0.0
      %3495 = vmatpush1.msra.mxu0 0.0
      %3496 = vmatprep.subr.mxu0 0.0
      %3497 = vmatpush1.msra.mxu0 0.0
      %3498 = vmatprep.subr.mxu0 0.0
      %3499 = vmatpush1.msra.mxu0 0.0
      %3500 = vmatprep.subr.mxu0 0.0
      %3501 = vmatpush1.msra.mxu0 0.0
      %3502 = vmatprep.subr.mxu0 0.0
      %3503 = vmatpush1.msra.mxu0 0.0
      %3504 = vmatprep.subr.mxu0 0.0
      %3505 = vmatpush1.msra.mxu0 0.0
      %3506 = vmatprep.subr.mxu0 0.0
      %3507 = vmatpush1.msra.mxu0 0.0
      %3508 = vmatprep.subr.mxu0 0.0
      %3509 = vmatpush1.msra.mxu0 0.0
      %3510 = vmatprep.subr.mxu0 0.0
      %3511 = vmatpush1.msra.mxu0 0.0
      %3512 = vmatprep.subr.mxu0 0.0
      %3513 = vmatpush1.msra.mxu0 0.0
      %3514 = vmatprep.subr.mxu0 0.0
      %3515 = vmatpush1.msra.mxu0 0.0
      %3516 = vmatprep.subr.mxu0 0.0
      %3517 = vmatpush1.msra.mxu0 0.0
      %3518 = vmatprep.subr.mxu0 0.0
      %3519 = vmatpush1.msra.mxu0 0.0
      %3520 = vmatprep.subr.mxu0 0.0
      %3521 = vmatpush1.msra.mxu0 0.0
      %3522 = vmatprep.subr.mxu0 0.0
      %3523 = vmatpush1.msra.mxu0 0.0
      %3524 = vmatprep.subr.mxu0 0.0
      %3525 = vmatpush1.msra.mxu0 0.0
      %3526 = vmatprep.subr.mxu0 0.0
      %3527 = vmatpush1.msra.mxu0 0.0
      %3528 = vmatprep.subr.mxu0 0.0
      %3529 = vmatpush1.msra.mxu0 0.0
      %3530 = vmatprep.subr.mxu0 0.0
      %3531 = vmatpush1.msra.mxu0 0.0
      %3532 = vmatprep.subr.mxu0 0.0
      %3533 = vmatpush1.msra.mxu0 0.0
      %3534 = vmatprep.subr.mxu0 0.0
      %3535 = vmatpush1.msra.mxu0 0.0
      %3536 = vmatprep.subr.mxu0 0.0
      %3537 = vmatpush1.msra.mxu0 0.0
      %3538 = vmatprep.subr.mxu0 0.0
      %3539 = vmatpush1.msra.mxu0 0.0
      %3540 = vmatprep.mubr.f32.mxu0 0.0
      %3541 = vmatmul.mubr.f32.gmra.mrb[0].mxu0 %v3474
      %v3542 = vpop.f32.mrb[0].mxu0
      %v3543 = vadd.f32 0.0, %v3542
      %v3544 = vpop.f32.mrb[0].mxu0
      %3545 = vdwg.mxu0
      %v3546 = vadd.f32 %v3471, %v3543
      %v3547 = vld [vmem:[%s303] sm:$0xff]
      %v3549 = vsel %vm171, %v3547, 0
      %3551 = vmatprep.subr.mxu0 0.0
      %3552 = vmatpush1.msra.mxu0 %v832
      %3553 = vmatprep.subr.mxu0 0.0
      %3554 = vmatpush1.msra.mxu0 0.0
      %3555 = vmatprep.subr.mxu0 0.0
      %3556 = vmatpush1.msra.mxu0 0.0
      %3557 = vmatprep.subr.mxu0 0.0
      %3558 = vmatpush1.msra.mxu0 0.0
      %3559 = vmatprep.subr.mxu0 0.0
      %3560 = vmatpush1.msra.mxu0 0.0
      %3561 = vmatprep.subr.mxu0 0.0
      %3562 = vmatpush1.msra.mxu0 0.0
      %3563 = vmatprep.subr.mxu0 0.0
      %3564 = vmatpush1.msra.mxu0 0.0
      %3565 = vmatprep.subr.mxu0 0.0
      %3566 = vmatpush1.msra.mxu0 0.0
      %3567 = vmatprep.subr.mxu0 0.0
      %3568 = vmatpush1.msra.mxu0 0.0
      %3569 = vmatprep.subr.mxu0 0.0
      %3570 = vmatpush1.msra.mxu0 0.0
      %3571 = vmatprep.subr.mxu0 0.0
      %3572 = vmatpush1.msra.mxu0 0.0
      %3573 = vmatprep.subr.mxu0 0.0
      %3574 = vmatpush1.msra.mxu0 0.0
      %3575 = vmatprep.subr.mxu0 0.0
      %3576 = vmatpush1.msra.mxu0 0.0
      %3577 = vmatprep.subr.mxu0 0.0
      %3578 = vmatpush1.msra.mxu0 0.0
      %3579 = vmatprep.subr.mxu0 0.0
      %3580 = vmatpush1.msra.mxu0 0.0
      %3581 = vmatprep.subr.mxu0 0.0
      %3582 = vmatpush1.msra.mxu0 0.0
      %3583 = vmatprep.subr.mxu0 0.0
      %3584 = vmatpush1.msra.mxu0 0.0
      %3585 = vmatprep.subr.mxu0 0.0
      %3586 = vmatpush1.msra.mxu0 0.0
      %3587 = vmatprep.subr.mxu0 0.0
      %3588 = vmatpush1.msra.mxu0 0.0
      %3589 = vmatprep.subr.mxu0 0.0
      %3590 = vmatpush1.msra.mxu0 0.0
      %3591 = vmatprep.subr.mxu0 0.0
      %3592 = vmatpush1.msra.mxu0 0.0
      %3593 = vmatprep.subr.mxu0 0.0
      %3594 = vmatpush1.msra.mxu0 0.0
      %3595 = vmatprep.subr.mxu0 0.0
      %3596 = vmatpush1.msra.mxu0 0.0
      %3597 = vmatprep.subr.mxu0 0.0
      %3598 = vmatpush1.msra.mxu0 0.0
      %3599 = vmatprep.subr.mxu0 0.0
      %3600 = vmatpush1.msra.mxu0 0.0
      %3601 = vmatprep.subr.mxu0 0.0
      %3602 = vmatpush1.msra.mxu0 0.0
      %3603 = vmatprep.subr.mxu0 0.0
      %3604 = vmatpush1.msra.mxu0 0.0
      %3605 = vmatprep.subr.mxu0 0.0
      %3606 = vmatpush1.msra.mxu0 0.0
      %3607 = vmatprep.subr.mxu0 0.0
      %3608 = vmatpush1.msra.mxu0 0.0
      %3609 = vmatprep.subr.mxu0 0.0
      %3610 = vmatpush1.msra.mxu0 0.0
      %3611 = vmatprep.subr.mxu0 0.0
      %3612 = vmatpush1.msra.mxu0 0.0
      %3613 = vmatprep.subr.mxu0 0.0
      %3614 = vmatpush1.msra.mxu0 0.0
      %3615 = vmatprep.mubr.f32.mxu0 0.0
      %3616 = vmatmul.mubr.f32.gmra.mrb[0].mxu0 %v3549
      %v3617 = vpop.f32.mrb[0].mxu0
      %v3618 = vadd.f32 0.0, %v3617
      %v3619 = vpop.f32.mrb[0].mxu0
      %3620 = vdwg.mxu0
      %v3621 = vadd.f32 %v3546, %v3618
      %v3622 = vld [vmem:[%s300] sm:$0xff]
      %v3624 = vsel %vm171, %v3622, 0
      %3626 = vmatprep.subr.mxu0 0.0
      %3627 = vmatpush1.msra.mxu0 %v910
      %3628 = vmatprep.subr.mxu0 0.0
      %3629 = vmatpush1.msra.mxu0 0.0
      %3630 = vmatprep.subr.mxu0 0.0
      %3631 = vmatpush1.msra.mxu0 0.0
      %3632 = vmatprep.subr.mxu0 0.0
      %3633 = vmatpush1.msra.mxu0 0.0
      %3634 = vmatprep.subr.mxu0 0.0
      %3635 = vmatpush1.msra.mxu0 0.0
      %3636 = vmatprep.subr.mxu0 0.0
      %3637 = vmatpush1.msra.mxu0 0.0
      %3638 = vmatprep.subr.mxu0 0.0
      %3639 = vmatpush1.msra.mxu0 0.0
      %3640 = vmatprep.subr.mxu0 0.0
      %3641 = vmatpush1.msra.mxu0 0.0
      %3642 = vmatprep.subr.mxu0 0.0
      %3643 = vmatpush1.msra.mxu0 0.0
      %3644 = vmatprep.subr.mxu0 0.0
      %3645 = vmatpush1.msra.mxu0 0.0
      %3646 = vmatprep.subr.mxu0 0.0
      %3647 = vmatpush1.msra.mxu0 0.0
      %3648 = vmatprep.subr.mxu0 0.0
      %3649 = vmatpush1.msra.mxu0 0.0
      %3650 = vmatprep.subr.mxu0 0.0
      %3651 = vmatpush1.msra.mxu0 0.0
      %3652 = vmatprep.subr.mxu0 0.0
      %3653 = vmatpush1.msra.mxu0 0.0
      %3654 = vmatprep.subr.mxu0 0.0
      %3655 = vmatpush1.msra.mxu0 0.0
      %3656 = vmatprep.subr.mxu0 0.0
      %3657 = vmatpush1.msra.mxu0 0.0
      %3658 = vmatprep.subr.mxu0 0.0
      %3659 = vmatpush1.msra.mxu0 0.0
      %3660 = vmatprep.subr.mxu0 0.0
      %3661 = vmatpush1.msra.mxu0 0.0
      %3662 = vmatprep.subr.mxu0 0.0
      %3663 = vmatpush1.msra.mxu0 0.0
      %3664 = vmatprep.subr.mxu0 0.0
      %3665 = vmatpush1.msra.mxu0 0.0
      %3666 = vmatprep.subr.mxu0 0.0
      %3667 = vmatpush1.msra.mxu0 0.0
      %3668 = vmatprep.subr.mxu0 0.0
      %3669 = vmatpush1.msra.mxu0 0.0
      %3670 = vmatprep.subr.mxu0 0.0
      %3671 = vmatpush1.msra.mxu0 0.0
      %3672 = vmatprep.subr.mxu0 0.0
      %3673 = vmatpush1.msra.mxu0 0.0
      %3674 = vmatprep.subr.mxu0 0.0
      %3675 = vmatpush1.msra.mxu0 0.0
      %3676 = vmatprep.subr.mxu0 0.0
      %3677 = vmatpush1.msra.mxu0 0.0
      %3678 = vmatprep.subr.mxu0 0.0
      %3679 = vmatpush1.msra.mxu0 0.0
      %3680 = vmatprep.subr.mxu0 0.0
      %3681 = vmatpush1.msra.mxu0 0.0
      %3682 = vmatprep.subr.mxu0 0.0
      %3683 = vmatpush1.msra.mxu0 0.0
      %3684 = vmatprep.subr.mxu0 0.0
      %3685 = vmatpush1.msra.mxu0 0.0
      %3686 = vmatprep.subr.mxu0 0.0
      %3687 = vmatpush1.msra.mxu0 0.0
      %3688 = vmatprep.subr.mxu0 0.0
      %3689 = vmatpush1.msra.mxu0 0.0
      %3690 = vmatprep.mubr.f32.mxu0 0.0
      %3691 = vmatmul.mubr.f32.gmra.mrb[0].mxu0 %v3624
      %v3692 = vpop.f32.mrb[0].mxu0
      %v3693 = vadd.f32 0.0, %v3692
      %v3694 = vpop.f32.mrb[0].mxu0
      %3695 = vdwg.mxu0
      %v3696 = vadd.f32 %v3621, %v3693
      %v3697 = vld [vmem:[%s303 + $0x1] sm:$0xff]
      %v3699 = vsel %vm171, %v3697, 0
      %3701 = vmatprep.subr.mxu0 0.0
      %3702 = vmatpush1.msra.mxu0 %v988
      %3703 = vmatprep.subr.mxu0 0.0
      %3704 = vmatpush1.msra.mxu0 0.0
      %3705 = vmatprep.subr.mxu0 0.0
      %3706 = vmatpush1.msra.mxu0 0.0
      %3707 = vmatprep.subr.mxu0 0.0
      %3708 = vmatpush1.msra.mxu0 0.0
      %3709 = vmatprep.subr.mxu0 0.0
      %3710 = vmatpush1.msra.mxu0 0.0
      %3711 = vmatprep.subr.mxu0 0.0
      %3712 = vmatpush1.msra.mxu0 0.0
      %3713 = vmatprep.subr.mxu0 0.0
      %3714 = vmatpush1.msra.mxu0 0.0
      %3715 = vmatprep.subr.mxu0 0.0
      %3716 = vmatpush1.msra.mxu0 0.0
      %3717 = vmatprep.subr.mxu0 0.0
      %3718 = vmatpush1.msra.mxu0 0.0
      %3719 = vmatprep.subr.mxu0 0.0
      %3720 = vmatpush1.msra.mxu0 0.0
      %3721 = vmatprep.subr.mxu0 0.0
      %3722 = vmatpush1.msra.mxu0 0.0
      %3723 = vmatprep.subr.mxu0 0.0
      %3724 = vmatpush1.msra.mxu0 0.0
      %3725 = vmatprep.subr.mxu0 0.0
      %3726 = vmatpush1.msra.mxu0 0.0
      %3727 = vmatprep.subr.mxu0 0.0
      %3728 = vmatpush1.msra.mxu0 0.0
      %3729 = vmatprep.subr.mxu0 0.0
      %3730 = vmatpush1.msra.mxu0 0.0
      %3731 = vmatprep.subr.mxu0 0.0
      %3732 = vmatpush1.msra.mxu0 0.0
      %3733 = vmatprep.subr.mxu0 0.0
      %3734 = vmatpush1.msra.mxu0 0.0
      %3735 = vmatprep.subr.mxu0 0.0
      %3736 = vmatpush1.msra.mxu0 0.0
      %3737 = vmatprep.subr.mxu0 0.0
      %3738 = vmatpush1.msra.mxu0 0.0
      %3739 = vmatprep.subr.mxu0 0.0
      %3740 = vmatpush1.msra.mxu0 0.0
      %3741 = vmatprep.subr.mxu0 0.0
      %3742 = vmatpush1.msra.mxu0 0.0
      %3743 = vmatprep.subr.mxu0 0.0
      %3744 = vmatpush1.msra.mxu0 0.0
      %3745 = vmatprep.subr.mxu0 0.0
      %3746 = vmatpush1.msra.mxu0 0.0
      %3747 = vmatprep.subr.mxu0 0.0
      %3748 = vmatpush1.msra.mxu0 0.0
      %3749 = vmatprep.subr.mxu0 0.0
      %3750 = vmatpush1.msra.mxu0 0.0
      %3751 = vmatprep.subr.mxu0 0.0
      %3752 = vmatpush1.msra.mxu0 0.0
      %3753 = vmatprep.subr.mxu0 0.0
      %3754 = vmatpush1.msra.mxu0 0.0
      %3755 = vmatprep.subr.mxu0 0.0
      %3756 = vmatpush1.msra.mxu0 0.0
      %3757 = vmatprep.subr.mxu0 0.0
      %3758 = vmatpush1.msra.mxu0 0.0
      %3759 = vmatprep.subr.mxu0 0.0
      %3760 = vmatpush1.msra.mxu0 0.0
      %3761 = vmatprep.subr.mxu0 0.0
      %3762 = vmatpush1.msra.mxu0 0.0
      %3763 = vmatprep.subr.mxu0 0.0
      %3764 = vmatpush1.msra.mxu0 0.0
      %3765 = vmatprep.mubr.f32.mxu0 0.0
      %3766 = vmatmul.mubr.f32.gmra.mrb[0].mxu0 %v3699
      %v3767 = vpop.f32.mrb[0].mxu0
      %v3768 = vadd.f32 0.0, %v3767
      %v3769 = vpop.f32.mrb[0].mxu0
      %3770 = vdwg.mxu0
      %v3771 = vadd.f32 %v3696, %v3768
      %v3772 = vadd.f32 %v3771, %v1065
      %v3773 = vmax.f32 %v3772, 0.0
      %3774 = vst.msk [vmem:[%s170 + $0x20] sm:$0xff] %vm1069, %v3773
      %v3775 = vld [vmem:[%s303] sm:$0xff]
      %v3776 = vld [vmem:[%s300] sm:$0xff]
      %v3778 = vsel %vm171, %v3776, 0
      %3780 = vmatprep.subr.mxu0 0.0
      %3781 = vmatpush1.msra.mxu0 %v367
      %3782 = vmatprep.subr.mxu0 0.0
      %3783 = vmatpush1.msra.mxu0 0.0
      %3784 = vmatprep.subr.mxu0 0.0
      %3785 = vmatpush1.msra.mxu0 0.0
      %3786 = vmatprep.subr.mxu0 0.0
      %3787 = vmatpush1.msra.mxu0 0.0
      %3788 = vmatprep.subr.mxu0 0.0
      %3789 = vmatpush1.msra.mxu0 0.0
      %3790 = vmatprep.subr.mxu0 0.0
      %3791 = vmatpush1.msra.mxu0 0.0
      %3792 = vmatprep.subr.mxu0 0.0
      %3793 = vmatpush1.msra.mxu0 0.0
      %3794 = vmatprep.subr.mxu0 0.0
      %3795 = vmatpush1.msra.mxu0 0.0
      %3796 = vmatprep.subr.mxu0 0.0
      %3797 = vmatpush1.msra.mxu0 0.0
      %3798 = vmatprep.subr.mxu0 0.0
      %3799 = vmatpush1.msra.mxu0 0.0
      %3800 = vmatprep.subr.mxu0 0.0
      %3801 = vmatpush1.msra.mxu0 0.0
      %3802 = vmatprep.subr.mxu0 0.0
      %3803 = vmatpush1.msra.mxu0 0.0
      %3804 = vmatprep.subr.mxu0 0.0
      %3805 = vmatpush1.msra.mxu0 0.0
      %3806 = vmatprep.subr.mxu0 0.0
      %3807 = vmatpush1.msra.mxu0 0.0
      %3808 = vmatprep.subr.mxu0 0.0
      %3809 = vmatpush1.msra.mxu0 0.0
      %3810 = vmatprep.subr.mxu0 0.0
      %3811 = vmatpush1.msra.mxu0 0.0
      %3812 = vmatprep.subr.mxu0 0.0
      %3813 = vmatpush1.msra.mxu0 0.0
      %3814 = vmatprep.subr.mxu0 0.0
      %3815 = vmatpush1.msra.mxu0 0.0
      %3816 = vmatprep.subr.mxu0 0.0
      %3817 = vmatpush1.msra.mxu0 0.0
      %3818 = vmatprep.subr.mxu0 0.0
      %3819 = vmatpush1.msra.mxu0 0.0
      %3820 = vmatprep.subr.mxu0 0.0
      %3821 = vmatpush1.msra.mxu0 0.0
      %3822 = vmatprep.subr.mxu0 0.0
      %3823 = vmatpush1.msra.mxu0 0.0
      %3824 = vmatprep.subr.mxu0 0.0
      %3825 = vmatpush1.msra.mxu0 0.0
      %3826 = vmatprep.subr.mxu0 0.0
      %3827 = vmatpush1.msra.mxu0 0.0
      %3828 = vmatprep.subr.mxu0 0.0
      %3829 = vmatpush1.msra.mxu0 0.0
      %3830 = vmatprep.subr.mxu0 0.0
      %3831 = vmatpush1.msra.mxu0 0.0
      %3832 = vmatprep.subr.mxu0 0.0
      %3833 = vmatpush1.msra.mxu0 0.0
      %3834 = vmatprep.subr.mxu0 0.0
      %3835 = vmatpush1.msra.mxu0 0.0
      %3836 = vmatprep.subr.mxu0 0.0
      %3837 = vmatpush1.msra.mxu0 0.0
      %3838 = vmatprep.subr.mxu0 0.0
      %3839 = vmatpush1.msra.mxu0 0.0
      %3840 = vmatprep.subr.mxu0 0.0
      %3841 = vmatpush1.msra.mxu0 0.0
      %3842 = vmatprep.subr.mxu0 0.0
      %3843 = vmatpush1.msra.mxu0 0.0
      %3844 = vmatprep.mubr.f32.mxu0 0.0
      %3845 = vmatmul.mubr.f32.gmra.mrb[0].mxu0 %v3778
      %v3846 = vpop.f32.mrb[0].mxu0
      %v3847 = vadd.f32 0.0, %v3846
      %v3848 = vpop.f32.mrb[0].mxu0
      %3849 = vdwg.mxu0
      %v3851 = vsel %vm171, %v3775, 0
      %3853 = vmatprep.subr.mxu0 0.0
      %3854 = vmatpush1.msra.mxu0 %v443
      %3855 = vmatprep.subr.mxu0 0.0
      %3856 = vmatpush1.msra.mxu0 0.0
      %3857 = vmatprep.subr.mxu0 0.0
      %3858 = vmatpush1.msra.mxu0 0.0
      %3859 = vmatprep.subr.mxu0 0.0
      %3860 = vmatpush1.msra.mxu0 0.0
      %3861 = vmatprep.subr.mxu0 0.0
      %3862 = vmatpush1.msra.mxu0 0.0
      %3863 = vmatprep.subr.mxu0 0.0
      %3864 = vmatpush1.msra.mxu0 0.0
      %3865 = vmatprep.subr.mxu0 0.0
      %3866 = vmatpush1.msra.mxu0 0.0
      %3867 = vmatprep.subr.mxu0 0.0
      %3868 = vmatpush1.msra.mxu0 0.0
      %3869 = vmatprep.subr.mxu0 0.0
      %3870 = vmatpush1.msra.mxu0 0.0
      %3871 = vmatprep.subr.mxu0 0.0
      %3872 = vmatpush1.msra.mxu0 0.0
      %3873 = vmatprep.subr.mxu0 0.0
      %3874 = vmatpush1.msra.mxu0 0.0
      %3875 = vmatprep.subr.mxu0 0.0
      %3876 = vmatpush1.msra.mxu0 0.0
      %3877 = vmatprep.subr.mxu0 0.0
      %3878 = vmatpush1.msra.mxu0 0.0
      %3879 = vmatprep.subr.mxu0 0.0
      %3880 = vmatpush1.msra.mxu0 0.0
      %3881 = vmatprep.subr.mxu0 0.0
      %3882 = vmatpush1.msra.mxu0 0.0
      %3883 = vmatprep.subr.mxu0 0.0
      %3884 = vmatpush1.msra.mxu0 0.0
      %3885 = vmatprep.subr.mxu0 0.0
      %3886 = vmatpush1.msra.mxu0 0.0
      %3887 = vmatprep.subr.mxu0 0.0
      %3888 = vmatpush1.msra.mxu0 0.0
      %3889 = vmatprep.subr.mxu0 0.0
      %3890 = vmatpush1.msra.mxu0 0.0
      %3891 = vmatprep.subr.mxu0 0.0
      %3892 = vmatpush1.msra.mxu0 0.0
      %3893 = vmatprep.subr.mxu0 0.0
      %3894 = vmatpush1.msra.mxu0 0.0
      %3895 = vmatprep.subr.mxu0 0.0
      %3896 = vmatpush1.msra.mxu0 0.0
      %3897 = vmatprep.subr.mxu0 0.0
      %3898 = vmatpush1.msra.mxu0 0.0
      %3899 = vmatprep.subr.mxu0 0.0
      %3900 = vmatpush1.msra.mxu0 0.0
      %3901 = vmatprep.subr.mxu0 0.0
      %3902 = vmatpush1.msra.mxu0 0.0
      %3903 = vmatprep.subr.mxu0 0.0
      %3904 = vmatpush1.msra.mxu0 0.0
      %3905 = vmatprep.subr.mxu0 0.0
      %3906 = vmatpush1.msra.mxu0 0.0
      %3907 = vmatprep.subr.mxu0 0.0
      %3908 = vmatpush1.msra.mxu0 0.0
      %3909 = vmatprep.subr.mxu0 0.0
      %3910 = vmatpush1.msra.mxu0 0.0
      %3911 = vmatprep.subr.mxu0 0.0
      %3912 = vmatpush1.msra.mxu0 0.0
      %3913 = vmatprep.subr.mxu0 0.0
      %3914 = vmatpush1.msra.mxu0 0.0
      %3915 = vmatprep.subr.mxu0 0.0
      %3916 = vmatpush1.msra.mxu0 0.0
      %3917 = vmatprep.mubr.f32.mxu0 0.0
      %3918 = vmatmul.mubr.f32.gmra.mrb[0].mxu0 %v3851
      %v3919 = vpop.f32.mrb[0].mxu0
      %v3920 = vadd.f32 %v3847, %v3919
      %v3921 = vpop.f32.mrb[0].mxu0
      %3922 = vdwg.mxu0
      %v3923 = vld [vmem:[%s303 + $0x1] sm:$0xff]
      %v3925 = vsel %vm171, %v3923, 0
      %3927 = vmatprep.subr.mxu0 0.0
      %3928 = vmatpush1.msra.mxu0 %v520
      %3929 = vmatprep.subr.mxu0 0.0
      %3930 = vmatpush1.msra.mxu0 0.0
      %3931 = vmatprep.subr.mxu0 0.0
      %3932 = vmatpush1.msra.mxu0 0.0
      %3933 = vmatprep.subr.mxu0 0.0
      %3934 = vmatpush1.msra.mxu0 0.0
      %3935 = vmatprep.subr.mxu0 0.0
      %3936 = vmatpush1.msra.mxu0 0.0
      %3937 = vmatprep.subr.mxu0 0.0
      %3938 = vmatpush1.msra.mxu0 0.0
      %3939 = vmatprep.subr.mxu0 0.0
      %3940 = vmatpush1.msra.mxu0 0.0
      %3941 = vmatprep.subr.mxu0 0.0
      %3942 = vmatpush1.msra.mxu0 0.0
      %3943 = vmatprep.subr.mxu0 0.0
      %3944 = vmatpush1.msra.mxu0 0.0
      %3945 = vmatprep.subr.mxu0 0.0
      %3946 = vmatpush1.msra.mxu0 0.0
      %3947 = vmatprep.subr.mxu0 0.0
      %3948 = vmatpush1.msra.mxu0 0.0
      %3949 = vmatprep.subr.mxu0 0.0
      %3950 = vmatpush1.msra.mxu0 0.0
      %3951 = vmatprep.subr.mxu0 0.0
      %3952 = vmatpush1.msra.mxu0 0.0
      %3953 = vmatprep.subr.mxu0 0.0
      %3954 = vmatpush1.msra.mxu0 0.0
      %3955 = vmatprep.subr.mxu0 0.0
      %3956 = vmatpush1.msra.mxu0 0.0
      %3957 = vmatprep.subr.mxu0 0.0
      %3958 = vmatpush1.msra.mxu0 0.0
      %3959 = vmatprep.subr.mxu0 0.0
      %3960 = vmatpush1.msra.mxu0 0.0
      %3961 = vmatprep.subr.mxu0 0.0
      %3962 = vmatpush1.msra.mxu0 0.0
      %3963 = vmatprep.subr.mxu0 0.0
      %3964 = vmatpush1.msra.mxu0 0.0
      %3965 = vmatprep.subr.mxu0 0.0
      %3966 = vmatpush1.msra.mxu0 0.0
      %3967 = vmatprep.subr.mxu0 0.0
      %3968 = vmatpush1.msra.mxu0 0.0
      %3969 = vmatprep.subr.mxu0 0.0
      %3970 = vmatpush1.msra.mxu0 0.0
      %3971 = vmatprep.subr.mxu0 0.0
      %3972 = vmatpush1.msra.mxu0 0.0
      %3973 = vmatprep.subr.mxu0 0.0
      %3974 = vmatpush1.msra.mxu0 0.0
      %3975 = vmatprep.subr.mxu0 0.0
      %3976 = vmatpush1.msra.mxu0 0.0
      %3977 = vmatprep.subr.mxu0 0.0
      %3978 = vmatpush1.msra.mxu0 0.0
      %3979 = vmatprep.subr.mxu0 0.0
      %3980 = vmatpush1.msra.mxu0 0.0
      %3981 = vmatprep.subr.mxu0 0.0
      %3982 = vmatpush1.msra.mxu0 0.0
      %3983 = vmatprep.subr.mxu0 0.0
      %3984 = vmatpush1.msra.mxu0 0.0
      %3985 = vmatprep.subr.mxu0 0.0
      %3986 = vmatpush1.msra.mxu0 0.0
      %3987 = vmatprep.subr.mxu0 0.0
      %3988 = vmatpush1.msra.mxu0 0.0
      %3989 = vmatprep.subr.mxu0 0.0
      %3990 = vmatpush1.msra.mxu0 0.0
      %3991 = vmatprep.mubr.f32.mxu0 0.0
      %3992 = vmatmul.mubr.f32.gmra.mrb[0].mxu0 %v3925
      %v3993 = vpop.f32.mrb[0].mxu0
      %v3994 = vadd.f32 0.0, %v3993
      %v3995 = vpop.f32.mrb[0].mxu0
      %3996 = vdwg.mxu0
      %v3997 = vadd.f32 %v3920, %v3994
      %v3998 = vld [vmem:[%s309] sm:$0xff]
      %v4000 = vsel %vm171, %v3998, 0
      %4002 = vmatprep.subr.mxu0 0.0
      %4003 = vmatpush1.msra.mxu0 %v598
      %4004 = vmatprep.subr.mxu0 0.0
      %4005 = vmatpush1.msra.mxu0 0.0
      %4006 = vmatprep.subr.mxu0 0.0
      %4007 = vmatpush1.msra.mxu0 0.0
      %4008 = vmatprep.subr.mxu0 0.0
      %4009 = vmatpush1.msra.mxu0 0.0
      %4010 = vmatprep.subr.mxu0 0.0
      %4011 = vmatpush1.msra.mxu0 0.0
      %4012 = vmatprep.subr.mxu0 0.0
      %4013 = vmatpush1.msra.mxu0 0.0
      %4014 = vmatprep.subr.mxu0 0.0
      %4015 = vmatpush1.msra.mxu0 0.0
      %4016 = vmatprep.subr.mxu0 0.0
      %4017 = vmatpush1.msra.mxu0 0.0
      %4018 = vmatprep.subr.mxu0 0.0
      %4019 = vmatpush1.msra.mxu0 0.0
      %4020 = vmatprep.subr.mxu0 0.0
      %4021 = vmatpush1.msra.mxu0 0.0
      %4022 = vmatprep.subr.mxu0 0.0
      %4023 = vmatpush1.msra.mxu0 0.0
      %4024 = vmatprep.subr.mxu0 0.0
      %4025 = vmatpush1.msra.mxu0 0.0
      %4026 = vmatprep.subr.mxu0 0.0
      %4027 = vmatpush1.msra.mxu0 0.0
      %4028 = vmatprep.subr.mxu0 0.0
      %4029 = vmatpush1.msra.mxu0 0.0
      %4030 = vmatprep.subr.mxu0 0.0
      %4031 = vmatpush1.msra.mxu0 0.0
      %4032 = vmatprep.subr.mxu0 0.0
      %4033 = vmatpush1.msra.mxu0 0.0
      %4034 = vmatprep.subr.mxu0 0.0
      %4035 = vmatpush1.msra.mxu0 0.0
      %4036 = vmatprep.subr.mxu0 0.0
      %4037 = vmatpush1.msra.mxu0 0.0
      %4038 = vmatprep.subr.mxu0 0.0
      %4039 = vmatpush1.msra.mxu0 0.0
      %4040 = vmatprep.subr.mxu0 0.0
      %4041 = vmatpush1.msra.mxu0 0.0
      %4042 = vmatprep.subr.mxu0 0.0
      %4043 = vmatpush1.msra.mxu0 0.0
      %4044 = vmatprep.subr.mxu0 0.0
      %4045 = vmatpush1.msra.mxu0 0.0
      %4046 = vmatprep.subr.mxu0 0.0
      %4047 = vmatpush1.msra.mxu0 0.0
      %4048 = vmatprep.subr.mxu0 0.0
      %4049 = vmatpush1.msra.mxu0 0.0
      %4050 = vmatprep.subr.mxu0 0.0
      %4051 = vmatpush1.msra.mxu0 0.0
      %4052 = vmatprep.subr.mxu0 0.0
      %4053 = vmatpush1.msra.mxu0 0.0
      %4054 = vmatprep.subr.mxu0 0.0
      %4055 = vmatpush1.msra.mxu0 0.0
      %4056 = vmatprep.subr.mxu0 0.0
      %4057 = vmatpush1.msra.mxu0 0.0
      %4058 = vmatprep.subr.mxu0 0.0
      %4059 = vmatpush1.msra.mxu0 0.0
      %4060 = vmatprep.subr.mxu0 0.0
      %4061 = vmatpush1.msra.mxu0 0.0
      %4062 = vmatprep.subr.mxu0 0.0
      %4063 = vmatpush1.msra.mxu0 0.0
      %4064 = vmatprep.subr.mxu0 0.0
      %4065 = vmatpush1.msra.mxu0 0.0
      %4066 = vmatprep.mubr.f32.mxu0 0.0
      %4067 = vmatmul.mubr.f32.gmra.mrb[0].mxu0 %v4000
      %v4068 = vpop.f32.mrb[0].mxu0
      %v4069 = vadd.f32 0.0, %v4068
      %v4070 = vpop.f32.mrb[0].mxu0
      %4071 = vdwg.mxu0
      %v4072 = vadd.f32 %v3997, %v4069
      %v4073 = vld [vmem:[%s306] sm:$0xff]
      %v4075 = vsel %vm171, %v4073, 0
      %4077 = vmatprep.subr.mxu0 0.0
      %4078 = vmatpush1.msra.mxu0 %v676
      %4079 = vmatprep.subr.mxu0 0.0
      %4080 = vmatpush1.msra.mxu0 0.0
      %4081 = vmatprep.subr.mxu0 0.0
      %4082 = vmatpush1.msra.mxu0 0.0
      %4083 = vmatprep.subr.mxu0 0.0
      %4084 = vmatpush1.msra.mxu0 0.0
      %4085 = vmatprep.subr.mxu0 0.0
      %4086 = vmatpush1.msra.mxu0 0.0
      %4087 = vmatprep.subr.mxu0 0.0
      %4088 = vmatpush1.msra.mxu0 0.0
      %4089 = vmatprep.subr.mxu0 0.0
      %4090 = vmatpush1.msra.mxu0 0.0
      %4091 = vmatprep.subr.mxu0 0.0
      %4092 = vmatpush1.msra.mxu0 0.0
      %4093 = vmatprep.subr.mxu0 0.0
      %4094 = vmatpush1.msra.mxu0 0.0
      %4095 = vmatprep.subr.mxu0 0.0
      %4096 = vmatpush1.msra.mxu0 0.0
      %4097 = vmatprep.subr.mxu0 0.0
      %4098 = vmatpush1.msra.mxu0 0.0
      %4099 = vmatprep.subr.mxu0 0.0
      %4100 = vmatpush1.msra.mxu0 0.0
      %4101 = vmatprep.subr.mxu0 0.0
      %4102 = vmatpush1.msra.mxu0 0.0
      %4103 = vmatprep.subr.mxu0 0.0
      %4104 = vmatpush1.msra.mxu0 0.0
      %4105 = vmatprep.subr.mxu0 0.0
      %4106 = vmatpush1.msra.mxu0 0.0
      %4107 = vmatprep.subr.mxu0 0.0
      %4108 = vmatpush1.msra.mxu0 0.0
      %4109 = vmatprep.subr.mxu0 0.0
      %4110 = vmatpush1.msra.mxu0 0.0
      %4111 = vmatprep.subr.mxu0 0.0
      %4112 = vmatpush1.msra.mxu0 0.0
      %4113 = vmatprep.subr.mxu0 0.0
      %4114 = vmatpush1.msra.mxu0 0.0
      %4115 = vmatprep.subr.mxu0 0.0
      %4116 = vmatpush1.msra.mxu0 0.0
      %4117 = vmatprep.subr.mxu0 0.0
      %4118 = vmatpush1.msra.mxu0 0.0
      %4119 = vmatprep.subr.mxu0 0.0
      %4120 = vmatpush1.msra.mxu0 0.0
      %4121 = vmatprep.subr.mxu0 0.0
      %4122 = vmatpush1.msra.mxu0 0.0
      %4123 = vmatprep.subr.mxu0 0.0
      %4124 = vmatpush1.msra.mxu0 0.0
      %4125 = vmatprep.subr.mxu0 0.0
      %4126 = vmatpush1.msra.mxu0 0.0
      %4127 = vmatprep.subr.mxu0 0.0
      %4128 = vmatpush1.msra.mxu0 0.0
      %4129 = vmatprep.subr.mxu0 0.0
      %4130 = vmatpush1.msra.mxu0 0.0
      %4131 = vmatprep.subr.mxu0 0.0
      %4132 = vmatpush1.msra.mxu0 0.0
      %4133 = vmatprep.subr.mxu0 0.0
      %4134 = vmatpush1.msra.mxu0 0.0
      %4135 = vmatprep.subr.mxu0 0.0
      %4136 = vmatpush1.msra.mxu0 0.0
      %4137 = vmatprep.subr.mxu0 0.0
      %4138 = vmatpush1.msra.mxu0 0.0
      %4139 = vmatprep.subr.mxu0 0.0
      %4140 = vmatpush1.msra.mxu0 0.0
      %4141 = vmatprep.mubr.f32.mxu0 0.0
      %4142 = vmatmul.mubr.f32.gmra.mrb[0].mxu0 %v4075
      %v4143 = vpop.f32.mrb[0].mxu0
      %v4144 = vadd.f32 0.0, %v4143
      %v4145 = vpop.f32.mrb[0].mxu0
      %4146 = vdwg.mxu0
      %v4147 = vadd.f32 %v4072, %v4144
      %v4148 = vld [vmem:[%s309 + $0x1] sm:$0xff]
      %v4150 = vsel %vm171, %v4148, 0
      %4152 = vmatprep.subr.mxu0 0.0
      %4153 = vmatpush1.msra.mxu0 %v754
      %4154 = vmatprep.subr.mxu0 0.0
      %4155 = vmatpush1.msra.mxu0 0.0
      %4156 = vmatprep.subr.mxu0 0.0
      %4157 = vmatpush1.msra.mxu0 0.0
      %4158 = vmatprep.subr.mxu0 0.0
      %4159 = vmatpush1.msra.mxu0 0.0
      %4160 = vmatprep.subr.mxu0 0.0
      %4161 = vmatpush1.msra.mxu0 0.0
      %4162 = vmatprep.subr.mxu0 0.0
      %4163 = vmatpush1.msra.mxu0 0.0
      %4164 = vmatprep.subr.mxu0 0.0
      %4165 = vmatpush1.msra.mxu0 0.0
      %4166 = vmatprep.subr.mxu0 0.0
      %4167 = vmatpush1.msra.mxu0 0.0
      %4168 = vmatprep.subr.mxu0 0.0
      %4169 = vmatpush1.msra.mxu0 0.0
      %4170 = vmatprep.subr.mxu0 0.0
      %4171 = vmatpush1.msra.mxu0 0.0
      %4172 = vmatprep.subr.mxu0 0.0
      %4173 = vmatpush1.msra.mxu0 0.0
      %4174 = vmatprep.subr.mxu0 0.0
      %4175 = vmatpush1.msra.mxu0 0.0
      %4176 = vmatprep.subr.mxu0 0.0
      %4177 = vmatpush1.msra.mxu0 0.0
      %4178 = vmatprep.subr.mxu0 0.0
      %4179 = vmatpush1.msra.mxu0 0.0
      %4180 = vmatprep.subr.mxu0 0.0
      %4181 = vmatpush1.msra.mxu0 0.0
      %4182 = vmatprep.subr.mxu0 0.0
      %4183 = vmatpush1.msra.mxu0 0.0
      %4184 = vmatprep.subr.mxu0 0.0
      %4185 = vmatpush1.msra.mxu0 0.0
      %4186 = vmatprep.subr.mxu0 0.0
      %4187 = vmatpush1.msra.mxu0 0.0
      %4188 = vmatprep.subr.mxu0 0.0
      %4189 = vmatpush1.msra.mxu0 0.0
      %4190 = vmatprep.subr.mxu0 0.0
      %4191 = vmatpush1.msra.mxu0 0.0
      %4192 = vmatprep.subr.mxu0 0.0
      %4193 = vmatpush1.msra.mxu0 0.0
      %4194 = vmatprep.subr.mxu0 0.0
      %4195 = vmatpush1.msra.mxu0 0.0
      %4196 = vmatprep.subr.mxu0 0.0
      %4197 = vmatpush1.msra.mxu0 0.0
      %4198 = vmatprep.subr.mxu0 0.0
      %4199 = vmatpush1.msra.mxu0 0.0
      %4200 = vmatprep.subr.mxu0 0.0
      %4201 = vmatpush1.msra.mxu0 0.0
      %4202 = vmatprep.subr.mxu0 0.0
      %4203 = vmatpush1.msra.mxu0 0.0
      %4204 = vmatprep.subr.mxu0 0.0
      %4205 = vmatpush1.msra.mxu0 0.0
      %4206 = vmatprep.subr.mxu0 0.0
      %4207 = vmatpush1.msra.mxu0 0.0
      %4208 = vmatprep.subr.mxu0 0.0
      %4209 = vmatpush1.msra.mxu0 0.0
      %4210 = vmatprep.subr.mxu0 0.0
      %4211 = vmatpush1.msra.mxu0 0.0
      %4212 = vmatprep.subr.mxu0 0.0
      %4213 = vmatpush1.msra.mxu0 0.0
      %4214 = vmatprep.subr.mxu0 0.0
      %4215 = vmatpush1.msra.mxu0 0.0
      %4216 = vmatprep.mubr.f32.mxu0 0.0
      %4217 = vmatmul.mubr.f32.gmra.mrb[0].mxu0 %v4150
      %v4218 = vpop.f32.mrb[0].mxu0
      %v4219 = vadd.f32 0.0, %v4218
      %v4220 = vpop.f32.mrb[0].mxu0
      %4221 = vdwg.mxu0
      %v4222 = vadd.f32 %v4147, %v4219
      %v4223 = vld [vmem:[%s315] sm:$0xff]
      %v4225 = vsel %vm171, %v4223, 0
      %4227 = vmatprep.subr.mxu0 0.0
      %4228 = vmatpush1.msra.mxu0 %v832
      %4229 = vmatprep.subr.mxu0 0.0
      %4230 = vmatpush1.msra.mxu0 0.0
      %4231 = vmatprep.subr.mxu0 0.0
      %4232 = vmatpush1.msra.mxu0 0.0
      %4233 = vmatprep.subr.mxu0 0.0
      %4234 = vmatpush1.msra.mxu0 0.0
      %4235 = vmatprep.subr.mxu0 0.0
      %4236 = vmatpush1.msra.mxu0 0.0
      %4237 = vmatprep.subr.mxu0 0.0
      %4238 = vmatpush1.msra.mxu0 0.0
      %4239 = vmatprep.subr.mxu0 0.0
      %4240 = vmatpush1.msra.mxu0 0.0
      %4241 = vmatprep.subr.mxu0 0.0
      %4242 = vmatpush1.msra.mxu0 0.0
      %4243 = vmatprep.subr.mxu0 0.0
      %4244 = vmatpush1.msra.mxu0 0.0
      %4245 = vmatprep.subr.mxu0 0.0
      %4246 = vmatpush1.msra.mxu0 0.0
      %4247 = vmatprep.subr.mxu0 0.0
      %4248 = vmatpush1.msra.mxu0 0.0
      %4249 = vmatprep.subr.mxu0 0.0
      %4250 = vmatpush1.msra.mxu0 0.0
      %4251 = vmatprep.subr.mxu0 0.0
      %4252 = vmatpush1.msra.mxu0 0.0
      %4253 = vmatprep.subr.mxu0 0.0
      %4254 = vmatpush1.msra.mxu0 0.0
      %4255 = vmatprep.subr.mxu0 0.0
      %4256 = vmatpush1.msra.mxu0 0.0
      %4257 = vmatprep.subr.mxu0 0.0
      %4258 = vmatpush1.msra.mxu0 0.0
      %4259 = vmatprep.subr.mxu0 0.0
      %4260 = vmatpush1.msra.mxu0 0.0
      %4261 = vmatprep.subr.mxu0 0.0
      %4262 = vmatpush1.msra.mxu0 0.0
      %4263 = vmatprep.subr.mxu0 0.0
      %4264 = vmatpush1.msra.mxu0 0.0
      %4265 = vmatprep.subr.mxu0 0.0
      %4266 = vmatpush1.msra.mxu0 0.0
      %4267 = vmatprep.subr.mxu0 0.0
      %4268 = vmatpush1.msra.mxu0 0.0
      %4269 = vmatprep.subr.mxu0 0.0
      %4270 = vmatpush1.msra.mxu0 0.0
      %4271 = vmatprep.subr.mxu0 0.0
      %4272 = vmatpush1.msra.mxu0 0.0
      %4273 = vmatprep.subr.mxu0 0.0
      %4274 = vmatpush1.msra.mxu0 0.0
      %4275 = vmatprep.subr.mxu0 0.0
      %4276 = vmatpush1.msra.mxu0 0.0
      %4277 = vmatprep.subr.mxu0 0.0
      %4278 = vmatpush1.msra.mxu0 0.0
      %4279 = vmatprep.subr.mxu0 0.0
      %4280 = vmatpush1.msra.mxu0 0.0
      %4281 = vmatprep.subr.mxu0 0.0
      %4282 = vmatpush1.msra.mxu0 0.0
      %4283 = vmatprep.subr.mxu0 0.0
      %4284 = vmatpush1.msra.mxu0 0.0
      %4285 = vmatprep.subr.mxu0 0.0
      %4286 = vmatpush1.msra.mxu0 0.0
      %4287 = vmatprep.subr.mxu0 0.0
      %4288 = vmatpush1.msra.mxu0 0.0
      %4289 = vmatprep.subr.mxu0 0.0
      %4290 = vmatpush1.msra.mxu0 0.0
      %4291 = vmatprep.mubr.f32.mxu0 0.0
      %4292 = vmatmul.mubr.f32.gmra.mrb[0].mxu0 %v4225
      %v4293 = vpop.f32.mrb[0].mxu0
      %v4294 = vadd.f32 0.0, %v4293
      %v4295 = vpop.f32.mrb[0].mxu0
      %4296 = vdwg.mxu0
      %v4297 = vadd.f32 %v4222, %v4294
      %v4298 = vld [vmem:[%s312] sm:$0xff]
      %v4300 = vsel %vm171, %v4298, 0
      %4302 = vmatprep.subr.mxu0 0.0
      %4303 = vmatpush1.msra.mxu0 %v910
      %4304 = vmatprep.subr.mxu0 0.0
      %4305 = vmatpush1.msra.mxu0 0.0
      %4306 = vmatprep.subr.mxu0 0.0
      %4307 = vmatpush1.msra.mxu0 0.0
      %4308 = vmatprep.subr.mxu0 0.0
      %4309 = vmatpush1.msra.mxu0 0.0
      %4310 = vmatprep.subr.mxu0 0.0
      %4311 = vmatpush1.msra.mxu0 0.0
      %4312 = vmatprep.subr.mxu0 0.0
      %4313 = vmatpush1.msra.mxu0 0.0
      %4314 = vmatprep.subr.mxu0 0.0
      %4315 = vmatpush1.msra.mxu0 0.0
      %4316 = vmatprep.subr.mxu0 0.0
      %4317 = vmatpush1.msra.mxu0 0.0
      %4318 = vmatprep.subr.mxu0 0.0
      %4319 = vmatpush1.msra.mxu0 0.0
      %4320 = vmatprep.subr.mxu0 0.0
      %4321 = vmatpush1.msra.mxu0 0.0
      %4322 = vmatprep.subr.mxu0 0.0
      %4323 = vmatpush1.msra.mxu0 0.0
      %4324 = vmatprep.subr.mxu0 0.0
      %4325 = vmatpush1.msra.mxu0 0.0
      %4326 = vmatprep.subr.mxu0 0.0
      %4327 = vmatpush1.msra.mxu0 0.0
      %4328 = vmatprep.subr.mxu0 0.0
      %4329 = vmatpush1.msra.mxu0 0.0
      %4330 = vmatprep.subr.mxu0 0.0
      %4331 = vmatpush1.msra.mxu0 0.0
      %4332 = vmatprep.subr.mxu0 0.0
      %4333 = vmatpush1.msra.mxu0 0.0
      %4334 = vmatprep.subr.mxu0 0.0
      %4335 = vmatpush1.msra.mxu0 0.0
      %4336 = vmatprep.subr.mxu0 0.0
      %4337 = vmatpush1.msra.mxu0 0.0
      %4338 = vmatprep.subr.mxu0 0.0
      %4339 = vmatpush1.msra.mxu0 0.0
      %4340 = vmatprep.subr.mxu0 0.0
      %4341 = vmatpush1.msra.mxu0 0.0
      %4342 = vmatprep.subr.mxu0 0.0
      %4343 = vmatpush1.msra.mxu0 0.0
      %4344 = vmatprep.subr.mxu0 0.0
      %4345 = vmatpush1.msra.mxu0 0.0
      %4346 = vmatprep.subr.mxu0 0.0
      %4347 = vmatpush1.msra.mxu0 0.0
      %4348 = vmatprep.subr.mxu0 0.0
      %4349 = vmatpush1.msra.mxu0 0.0
      %4350 = vmatprep.subr.mxu0 0.0
      %4351 = vmatpush1.msra.mxu0 0.0
      %4352 = vmatprep.subr.mxu0 0.0
      %4353 = vmatpush1.msra.mxu0 0.0
      %4354 = vmatprep.subr.mxu0 0.0
      %4355 = vmatpush1.msra.mxu0 0.0
      %4356 = vmatprep.subr.mxu0 0.0
      %4357 = vmatpush1.msra.mxu0 0.0
      %4358 = vmatprep.subr.mxu0 0.0
      %4359 = vmatpush1.msra.mxu0 0.0
      %4360 = vmatprep.subr.mxu0 0.0
      %4361 = vmatpush1.msra.mxu0 0.0
      %4362 = vmatprep.subr.mxu0 0.0
      %4363 = vmatpush1.msra.mxu0 0.0
      %4364 = vmatprep.subr.mxu0 0.0
      %4365 = vmatpush1.msra.mxu0 0.0
      %4366 = vmatprep.mubr.f32.mxu0 0.0
      %4367 = vmatmul.mubr.f32.gmra.mrb[0].mxu0 %v4300
      %v4368 = vpop.f32.mrb[0].mxu0
      %v4369 = vadd.f32 0.0, %v4368
      %v4370 = vpop.f32.mrb[0].mxu0
      %4371 = vdwg.mxu0
      %v4372 = vadd.f32 %v4297, %v4369
      %v4373 = vld [vmem:[%s315 + $0x1] sm:$0xff]
      %v4375 = vsel %vm171, %v4373, 0
      %4377 = vmatprep.subr.mxu0 0.0
      %4378 = vmatpush1.msra.mxu0 %v988
      %4379 = vmatprep.subr.mxu0 0.0
      %4380 = vmatpush1.msra.mxu0 0.0
      %4381 = vmatprep.subr.mxu0 0.0
      %4382 = vmatpush1.msra.mxu0 0.0
      %4383 = vmatprep.subr.mxu0 0.0
      %4384 = vmatpush1.msra.mxu0 0.0
      %4385 = vmatprep.subr.mxu0 0.0
      %4386 = vmatpush1.msra.mxu0 0.0
      %4387 = vmatprep.subr.mxu0 0.0
      %4388 = vmatpush1.msra.mxu0 0.0
      %4389 = vmatprep.subr.mxu0 0.0
      %4390 = vmatpush1.msra.mxu0 0.0
      %4391 = vmatprep.subr.mxu0 0.0
      %4392 = vmatpush1.msra.mxu0 0.0
      %4393 = vmatprep.subr.mxu0 0.0
      %4394 = vmatpush1.msra.mxu0 0.0
      %4395 = vmatprep.subr.mxu0 0.0
      %4396 = vmatpush1.msra.mxu0 0.0
      %4397 = vmatprep.subr.mxu0 0.0
      %4398 = vmatpush1.msra.mxu0 0.0
      %4399 = vmatprep.subr.mxu0 0.0
      %4400 = vmatpush1.msra.mxu0 0.0
      %4401 = vmatprep.subr.mxu0 0.0
      %4402 = vmatpush1.msra.mxu0 0.0
      %4403 = vmatprep.subr.mxu0 0.0
      %4404 = vmatpush1.msra.mxu0 0.0
      %4405 = vmatprep.subr.mxu0 0.0
      %4406 = vmatpush1.msra.mxu0 0.0
      %4407 = vmatprep.subr.mxu0 0.0
      %4408 = vmatpush1.msra.mxu0 0.0
      %4409 = vmatprep.subr.mxu0 0.0
      %4410 = vmatpush1.msra.mxu0 0.0
      %4411 = vmatprep.subr.mxu0 0.0
      %4412 = vmatpush1.msra.mxu0 0.0
      %4413 = vmatprep.subr.mxu0 0.0
      %4414 = vmatpush1.msra.mxu0 0.0
      %4415 = vmatprep.subr.mxu0 0.0
      %4416 = vmatpush1.msra.mxu0 0.0
      %4417 = vmatprep.subr.mxu0 0.0
      %4418 = vmatpush1.msra.mxu0 0.0
      %4419 = vmatprep.subr.mxu0 0.0
      %4420 = vmatpush1.msra.mxu0 0.0
      %4421 = vmatprep.subr.mxu0 0.0
      %4422 = vmatpush1.msra.mxu0 0.0
      %4423 = vmatprep.subr.mxu0 0.0
      %4424 = vmatpush1.msra.mxu0 0.0
      %4425 = vmatprep.subr.mxu0 0.0
      %4426 = vmatpush1.msra.mxu0 0.0
      %4427 = vmatprep.subr.mxu0 0.0
      %4428 = vmatpush1.msra.mxu0 0.0
      %4429 = vmatprep.subr.mxu0 0.0
      %4430 = vmatpush1.msra.mxu0 0.0
      %4431 = vmatprep.subr.mxu0 0.0
      %4432 = vmatpush1.msra.mxu0 0.0
      %4433 = vmatprep.subr.mxu0 0.0
      %4434 = vmatpush1.msra.mxu0 0.0
      %4435 = vmatprep.subr.mxu0 0.0
      %4436 = vmatpush1.msra.mxu0 0.0
      %4437 = vmatprep.subr.mxu0 0.0
      %4438 = vmatpush1.msra.mxu0 0.0
      %4439 = vmatprep.subr.mxu0 0.0
      %4440 = vmatpush1.msra.mxu0 0.0
      %4441 = vmatprep.mubr.f32.mxu0 0.0
      %4442 = vmatmul.mubr.f32.gmra.mrb[0].mxu0 %v4375
      %v4443 = vpop.f32.mrb[0].mxu0
      %v4444 = vadd.f32 0.0, %v4443
      %v4445 = vpop.f32.mrb[0].mxu0
      %4446 = vdwg.mxu0
      %v4447 = vadd.f32 %v4372, %v4444
      %v4448 = vadd.f32 %v4447, %v1065
      %v4449 = vmax.f32 %v4448, 0.0
      %4450 = vst.msk [vmem:[%s170 + $0x28] sm:$0xff] %vm1069, %v4449
      %v4451 = vld [vmem:[%s315] sm:$0xff]
      %v4452 = vld [vmem:[%s312] sm:$0xff]
      %v4454 = vsel %vm171, %v4452, 0
      %4456 = vmatprep.subr.mxu0 0.0
      %4457 = vmatpush1.msra.mxu0 %v367
      %4458 = vmatprep.subr.mxu0 0.0
      %4459 = vmatpush1.msra.mxu0 0.0
      %4460 = vmatprep.subr.mxu0 0.0
      %4461 = vmatpush1.msra.mxu0 0.0
      %4462 = vmatprep.subr.mxu0 0.0
      %4463 = vmatpush1.msra.mxu0 0.0
      %4464 = vmatprep.subr.mxu0 0.0
      %4465 = vmatpush1.msra.mxu0 0.0
      %4466 = vmatprep.subr.mxu0 0.0
      %4467 = vmatpush1.msra.mxu0 0.0
      %4468 = vmatprep.subr.mxu0 0.0
      %4469 = vmatpush1.msra.mxu0 0.0
      %4470 = vmatprep.subr.mxu0 0.0
      %4471 = vmatpush1.msra.mxu0 0.0
      %4472 = vmatprep.subr.mxu0 0.0
      %4473 = vmatpush1.msra.mxu0 0.0
      %4474 = vmatprep.subr.mxu0 0.0
      %4475 = vmatpush1.msra.mxu0 0.0
      %4476 = vmatprep.subr.mxu0 0.0
      %4477 = vmatpush1.msra.mxu0 0.0
      %4478 = vmatprep.subr.mxu0 0.0
      %4479 = vmatpush1.msra.mxu0 0.0
      %4480 = vmatprep.subr.mxu0 0.0
      %4481 = vmatpush1.msra.mxu0 0.0
      %4482 = vmatprep.subr.mxu0 0.0
      %4483 = vmatpush1.msra.mxu0 0.0
      %4484 = vmatprep.subr.mxu0 0.0
      %4485 = vmatpush1.msra.mxu0 0.0
      %4486 = vmatprep.subr.mxu0 0.0
      %4487 = vmatpush1.msra.mxu0 0.0
      %4488 = vmatprep.subr.mxu0 0.0
      %4489 = vmatpush1.msra.mxu0 0.0
      %4490 = vmatprep.subr.mxu0 0.0
      %4491 = vmatpush1.msra.mxu0 0.0
      %4492 = vmatprep.subr.mxu0 0.0
      %4493 = vmatpush1.msra.mxu0 0.0
      %4494 = vmatprep.subr.mxu0 0.0
      %4495 = vmatpush1.msra.mxu0 0.0
      %4496 = vmatprep.subr.mxu0 0.0
      %4497 = vmatpush1.msra.mxu0 0.0
      %4498 = vmatprep.subr.mxu0 0.0
      %4499 = vmatpush1.msra.mxu0 0.0
      %4500 = vmatprep.subr.mxu0 0.0
      %4501 = vmatpush1.msra.mxu0 0.0
      %4502 = vmatprep.subr.mxu0 0.0
      %4503 = vmatpush1.msra.mxu0 0.0
      %4504 = vmatprep.subr.mxu0 0.0
      %4505 = vmatpush1.msra.mxu0 0.0
      %4506 = vmatprep.subr.mxu0 0.0
      %4507 = vmatpush1.msra.mxu0 0.0
      %4508 = vmatprep.subr.mxu0 0.0
      %4509 = vmatpush1.msra.mxu0 0.0
      %4510 = vmatprep.subr.mxu0 0.0
      %4511 = vmatpush1.msra.mxu0 0.0
      %4512 = vmatprep.subr.mxu0 0.0
      %4513 = vmatpush1.msra.mxu0 0.0
      %4514 = vmatprep.subr.mxu0 0.0
      %4515 = vmatpush1.msra.mxu0 0.0
      %4516 = vmatprep.subr.mxu0 0.0
      %4517 = vmatpush1.msra.mxu0 0.0
      %4518 = vmatprep.subr.mxu0 0.0
      %4519 = vmatpush1.msra.mxu0 0.0
      %4520 = vmatprep.mubr.f32.mxu0 0.0
      %4521 = vmatmul.mubr.f32.gmra.mrb[0].mxu0 %v4454
      %v4522 = vpop.f32.mrb[0].mxu0
      %v4523 = vadd.f32 0.0, %v4522
      %v4524 = vpop.f32.mrb[0].mxu0
      %4525 = vdwg.mxu0
      %v4527 = vsel %vm171, %v4451, 0
      %4529 = vmatprep.subr.mxu0 0.0
      %4530 = vmatpush1.msra.mxu0 %v443
      %4531 = vmatprep.subr.mxu0 0.0
      %4532 = vmatpush1.msra.mxu0 0.0
      %4533 = vmatprep.subr.mxu0 0.0
      %4534 = vmatpush1.msra.mxu0 0.0
      %4535 = vmatprep.subr.mxu0 0.0
      %4536 = vmatpush1.msra.mxu0 0.0
      %4537 = vmatprep.subr.mxu0 0.0
      %4538 = vmatpush1.msra.mxu0 0.0
      %4539 = vmatprep.subr.mxu0 0.0
      %4540 = vmatpush1.msra.mxu0 0.0
      %4541 = vmatprep.subr.mxu0 0.0
      %4542 = vmatpush1.msra.mxu0 0.0
      %4543 = vmatprep.subr.mxu0 0.0
      %4544 = vmatpush1.msra.mxu0 0.0
      %4545 = vmatprep.subr.mxu0 0.0
      %4546 = vmatpush1.msra.mxu0 0.0
      %4547 = vmatprep.subr.mxu0 0.0
      %4548 = vmatpush1.msra.mxu0 0.0
      %4549 = vmatprep.subr.mxu0 0.0
      %4550 = vmatpush1.msra.mxu0 0.0
      %4551 = vmatprep.subr.mxu0 0.0
      %4552 = vmatpush1.msra.mxu0 0.0
      %4553 = vmatprep.subr.mxu0 0.0
      %4554 = vmatpush1.msra.mxu0 0.0
      %4555 = vmatprep.subr.mxu0 0.0
      %4556 = vmatpush1.msra.mxu0 0.0
      %4557 = vmatprep.subr.mxu0 0.0
      %4558 = vmatpush1.msra.mxu0 0.0
      %4559 = vmatprep.subr.mxu0 0.0
      %4560 = vmatpush1.msra.mxu0 0.0
      %4561 = vmatprep.subr.mxu0 0.0
      %4562 = vmatpush1.msra.mxu0 0.0
      %4563 = vmatprep.subr.mxu0 0.0
      %4564 = vmatpush1.msra.mxu0 0.0
      %4565 = vmatprep.subr.mxu0 0.0
      %4566 = vmatpush1.msra.mxu0 0.0
      %4567 = vmatprep.subr.mxu0 0.0
      %4568 = vmatpush1.msra.mxu0 0.0
      %4569 = vmatprep.subr.mxu0 0.0
      %4570 = vmatpush1.msra.mxu0 0.0
      %4571 = vmatprep.subr.mxu0 0.0
      %4572 = vmatpush1.msra.mxu0 0.0
      %4573 = vmatprep.subr.mxu0 0.0
      %4574 = vmatpush1.msra.mxu0 0.0
      %4575 = vmatprep.subr.mxu0 0.0
      %4576 = vmatpush1.msra.mxu0 0.0
      %4577 = vmatprep.subr.mxu0 0.0
      %4578 = vmatpush1.msra.mxu0 0.0
      %4579 = vmatprep.subr.mxu0 0.0
      %4580 = vmatpush1.msra.mxu0 0.0
      %4581 = vmatprep.subr.mxu0 0.0
      %4582 = vmatpush1.msra.mxu0 0.0
      %4583 = vmatprep.subr.mxu0 0.0
      %4584 = vmatpush1.msra.mxu0 0.0
      %4585 = vmatprep.subr.mxu0 0.0
      %4586 = vmatpush1.msra.mxu0 0.0
      %4587 = vmatprep.subr.mxu0 0.0
      %4588 = vmatpush1.msra.mxu0 0.0
      %4589 = vmatprep.subr.mxu0 0.0
      %4590 = vmatpush1.msra.mxu0 0.0
      %4591 = vmatprep.subr.mxu0 0.0
      %4592 = vmatpush1.msra.mxu0 0.0
      %4593 = vmatprep.mubr.f32.mxu0 0.0
      %4594 = vmatmul.mubr.f32.gmra.mrb[0].mxu0 %v4527
      %v4595 = vpop.f32.mrb[0].mxu0
      %v4596 = vadd.f32 %v4523, %v4595
      %v4597 = vpop.f32.mrb[0].mxu0
      %4598 = vdwg.mxu0
      %v4599 = vld [vmem:[%s315 + $0x1] sm:$0xff]
      %v4601 = vsel %vm171, %v4599, 0
      %4603 = vmatprep.subr.mxu0 0.0
      %4604 = vmatpush1.msra.mxu0 %v520
      %4605 = vmatprep.subr.mxu0 0.0
      %4606 = vmatpush1.msra.mxu0 0.0
      %4607 = vmatprep.subr.mxu0 0.0
      %4608 = vmatpush1.msra.mxu0 0.0
      %4609 = vmatprep.subr.mxu0 0.0
      %4610 = vmatpush1.msra.mxu0 0.0
      %4611 = vmatprep.subr.mxu0 0.0
      %4612 = vmatpush1.msra.mxu0 0.0
      %4613 = vmatprep.subr.mxu0 0.0
      %4614 = vmatpush1.msra.mxu0 0.0
      %4615 = vmatprep.subr.mxu0 0.0
      %4616 = vmatpush1.msra.mxu0 0.0
      %4617 = vmatprep.subr.mxu0 0.0
      %4618 = vmatpush1.msra.mxu0 0.0
      %4619 = vmatprep.subr.mxu0 0.0
      %4620 = vmatpush1.msra.mxu0 0.0
      %4621 = vmatprep.subr.mxu0 0.0
      %4622 = vmatpush1.msra.mxu0 0.0
      %4623 = vmatprep.subr.mxu0 0.0
      %4624 = vmatpush1.msra.mxu0 0.0
      %4625 = vmatprep.subr.mxu0 0.0
      %4626 = vmatpush1.msra.mxu0 0.0
      %4627 = vmatprep.subr.mxu0 0.0
      %4628 = vmatpush1.msra.mxu0 0.0
      %4629 = vmatprep.subr.mxu0 0.0
      %4630 = vmatpush1.msra.mxu0 0.0
      %4631 = vmatprep.subr.mxu0 0.0
      %4632 = vmatpush1.msra.mxu0 0.0
      %4633 = vmatprep.subr.mxu0 0.0
      %4634 = vmatpush1.msra.mxu0 0.0
      %4635 = vmatprep.subr.mxu0 0.0
      %4636 = vmatpush1.msra.mxu0 0.0
      %4637 = vmatprep.subr.mxu0 0.0
      %4638 = vmatpush1.msra.mxu0 0.0
      %4639 = vmatprep.subr.mxu0 0.0
      %4640 = vmatpush1.msra.mxu0 0.0
      %4641 = vmatprep.subr.mxu0 0.0
      %4642 = vmatpush1.msra.mxu0 0.0
      %4643 = vmatprep.subr.mxu0 0.0
      %4644 = vmatpush1.msra.mxu0 0.0
      %4645 = vmatprep.subr.mxu0 0.0
      %4646 = vmatpush1.msra.mxu0 0.0
      %4647 = vmatprep.subr.mxu0 0.0
      %4648 = vmatpush1.msra.mxu0 0.0
      %4649 = vmatprep.subr.mxu0 0.0
      %4650 = vmatpush1.msra.mxu0 0.0
      %4651 = vmatprep.subr.mxu0 0.0
      %4652 = vmatpush1.msra.mxu0 0.0
      %4653 = vmatprep.subr.mxu0 0.0
      %4654 = vmatpush1.msra.mxu0 0.0
      %4655 = vmatprep.subr.mxu0 0.0
      %4656 = vmatpush1.msra.mxu0 0.0
      %4657 = vmatprep.subr.mxu0 0.0
      %4658 = vmatpush1.msra.mxu0 0.0
      %4659 = vmatprep.subr.mxu0 0.0
      %4660 = vmatpush1.msra.mxu0 0.0
      %4661 = vmatprep.subr.mxu0 0.0
      %4662 = vmatpush1.msra.mxu0 0.0
      %4663 = vmatprep.subr.mxu0 0.0
      %4664 = vmatpush1.msra.mxu0 0.0
      %4665 = vmatprep.subr.mxu0 0.0
      %4666 = vmatpush1.msra.mxu0 0.0
      %4667 = vmatprep.mubr.f32.mxu0 0.0
      %4668 = vmatmul.mubr.f32.gmra.mrb[0].mxu0 %v4601
      %v4669 = vpop.f32.mrb[0].mxu0
      %v4670 = vadd.f32 0.0, %v4669
      %v4671 = vpop.f32.mrb[0].mxu0
      %4672 = vdwg.mxu0
      %v4673 = vadd.f32 %v4596, %v4670
      %v4674 = vld [vmem:[%s321] sm:$0xff]
      %v4676 = vsel %vm171, %v4674, 0
      %4678 = vmatprep.subr.mxu0 0.0
      %4679 = vmatpush1.msra.mxu0 %v598
      %4680 = vmatprep.subr.mxu0 0.0
      %4681 = vmatpush1.msra.mxu0 0.0
      %4682 = vmatprep.subr.mxu0 0.0
      %4683 = vmatpush1.msra.mxu0 0.0
      %4684 = vmatprep.subr.mxu0 0.0
      %4685 = vmatpush1.msra.mxu0 0.0
      %4686 = vmatprep.subr.mxu0 0.0
      %4687 = vmatpush1.msra.mxu0 0.0
      %4688 = vmatprep.subr.mxu0 0.0
      %4689 = vmatpush1.msra.mxu0 0.0
      %4690 = vmatprep.subr.mxu0 0.0
      %4691 = vmatpush1.msra.mxu0 0.0
      %4692 = vmatprep.subr.mxu0 0.0
      %4693 = vmatpush1.msra.mxu0 0.0
      %4694 = vmatprep.subr.mxu0 0.0
      %4695 = vmatpush1.msra.mxu0 0.0
      %4696 = vmatprep.subr.mxu0 0.0
      %4697 = vmatpush1.msra.mxu0 0.0
      %4698 = vmatprep.subr.mxu0 0.0
      %4699 = vmatpush1.msra.mxu0 0.0
      %4700 = vmatprep.subr.mxu0 0.0
      %4701 = vmatpush1.msra.mxu0 0.0
      %4702 = vmatprep.subr.mxu0 0.0
      %4703 = vmatpush1.msra.mxu0 0.0
      %4704 = vmatprep.subr.mxu0 0.0
      %4705 = vmatpush1.msra.mxu0 0.0
      %4706 = vmatprep.subr.mxu0 0.0
      %4707 = vmatpush1.msra.mxu0 0.0
      %4708 = vmatprep.subr.mxu0 0.0
      %4709 = vmatpush1.msra.mxu0 0.0
      %4710 = vmatprep.subr.mxu0 0.0
      %4711 = vmatpush1.msra.mxu0 0.0
      %4712 = vmatprep.subr.mxu0 0.0
      %4713 = vmatpush1.msra.mxu0 0.0
      %4714 = vmatprep.subr.mxu0 0.0
      %4715 = vmatpush1.msra.mxu0 0.0
      %4716 = vmatprep.subr.mxu0 0.0
      %4717 = vmatpush1.msra.mxu0 0.0
      %4718 = vmatprep.subr.mxu0 0.0
      %4719 = vmatpush1.msra.mxu0 0.0
      %4720 = vmatprep.subr.mxu0 0.0
      %4721 = vmatpush1.msra.mxu0 0.0
      %4722 = vmatprep.subr.mxu0 0.0
      %4723 = vmatpush1.msra.mxu0 0.0
      %4724 = vmatprep.subr.mxu0 0.0
      %4725 = vmatpush1.msra.mxu0 0.0
      %4726 = vmatprep.subr.mxu0 0.0
      %4727 = vmatpush1.msra.mxu0 0.0
      %4728 = vmatprep.subr.mxu0 0.0
      %4729 = vmatpush1.msra.mxu0 0.0
      %4730 = vmatprep.subr.mxu0 0.0
      %4731 = vmatpush1.msra.mxu0 0.0
      %4732 = vmatprep.subr.mxu0 0.0
      %4733 = vmatpush1.msra.mxu0 0.0
      %4734 = vmatprep.subr.mxu0 0.0
      %4735 = vmatpush1.msra.mxu0 0.0
      %4736 = vmatprep.subr.mxu0 0.0
      %4737 = vmatpush1.msra.mxu0 0.0
      %4738 = vmatprep.subr.mxu0 0.0
      %4739 = vmatpush1.msra.mxu0 0.0
      %4740 = vmatprep.subr.mxu0 0.0
      %4741 = vmatpush1.msra.mxu0 0.0
      %4742 = vmatprep.mubr.f32.mxu0 0.0
      %4743 = vmatmul.mubr.f32.gmra.mrb[0].mxu0 %v4676
      %v4744 = vpop.f32.mrb[0].mxu0
      %v4745 = vadd.f32 0.0, %v4744
      %v4746 = vpop.f32.mrb[0].mxu0
      %4747 = vdwg.mxu0
      %v4748 = vadd.f32 %v4673, %v4745
      %v4749 = vld [vmem:[%s318] sm:$0xff]
      %v4751 = vsel %vm171, %v4749, 0
      %4753 = vmatprep.subr.mxu0 0.0
      %4754 = vmatpush1.msra.mxu0 %v676
      %4755 = vmatprep.subr.mxu0 0.0
      %4756 = vmatpush1.msra.mxu0 0.0
      %4757 = vmatprep.subr.mxu0 0.0
      %4758 = vmatpush1.msra.mxu0 0.0
      %4759 = vmatprep.subr.mxu0 0.0
      %4760 = vmatpush1.msra.mxu0 0.0
      %4761 = vmatprep.subr.mxu0 0.0
      %4762 = vmatpush1.msra.mxu0 0.0
      %4763 = vmatprep.subr.mxu0 0.0
      %4764 = vmatpush1.msra.mxu0 0.0
      %4765 = vmatprep.subr.mxu0 0.0
      %4766 = vmatpush1.msra.mxu0 0.0
      %4767 = vmatprep.subr.mxu0 0.0
      %4768 = vmatpush1.msra.mxu0 0.0
      %4769 = vmatprep.subr.mxu0 0.0
      %4770 = vmatpush1.msra.mxu0 0.0
      %4771 = vmatprep.subr.mxu0 0.0
      %4772 = vmatpush1.msra.mxu0 0.0
      %4773 = vmatprep.subr.mxu0 0.0
      %4774 = vmatpush1.msra.mxu0 0.0
      %4775 = vmatprep.subr.mxu0 0.0
      %4776 = vmatpush1.msra.mxu0 0.0
      %4777 = vmatprep.subr.mxu0 0.0
      %4778 = vmatpush1.msra.mxu0 0.0
      %4779 = vmatprep.subr.mxu0 0.0
      %4780 = vmatpush1.msra.mxu0 0.0
      %4781 = vmatprep.subr.mxu0 0.0
      %4782 = vmatpush1.msra.mxu0 0.0
      %4783 = vmatprep.subr.mxu0 0.0
      %4784 = vmatpush1.msra.mxu0 0.0
      %4785 = vmatprep.subr.mxu0 0.0
      %4786 = vmatpush1.msra.mxu0 0.0
      %4787 = vmatprep.subr.mxu0 0.0
      %4788 = vmatpush1.msra.mxu0 0.0
      %4789 = vmatprep.subr.mxu0 0.0
      %4790 = vmatpush1.msra.mxu0 0.0
      %4791 = vmatprep.subr.mxu0 0.0
      %4792 = vmatpush1.msra.mxu0 0.0
      %4793 = vmatprep.subr.mxu0 0.0
      %4794 = vmatpush1.msra.mxu0 0.0
      %4795 = vmatprep.subr.mxu0 0.0
      %4796 = vmatpush1.msra.mxu0 0.0
      %4797 = vmatprep.subr.mxu0 0.0
      %4798 = vmatpush1.msra.mxu0 0.0
      %4799 = vmatprep.subr.mxu0 0.0
      %4800 = vmatpush1.msra.mxu0 0.0
      %4801 = vmatprep.subr.mxu0 0.0
      %4802 = vmatpush1.msra.mxu0 0.0
      %4803 = vmatprep.subr.mxu0 0.0
      %4804 = vmatpush1.msra.mxu0 0.0
      %4805 = vmatprep.subr.mxu0 0.0
      %4806 = vmatpush1.msra.mxu0 0.0
      %4807 = vmatprep.subr.mxu0 0.0
      %4808 = vmatpush1.msra.mxu0 0.0
      %4809 = vmatprep.subr.mxu0 0.0
      %4810 = vmatpush1.msra.mxu0 0.0
      %4811 = vmatprep.subr.mxu0 0.0
      %4812 = vmatpush1.msra.mxu0 0.0
      %4813 = vmatprep.subr.mxu0 0.0
      %4814 = vmatpush1.msra.mxu0 0.0
      %4815 = vmatprep.subr.mxu0 0.0
      %4816 = vmatpush1.msra.mxu0 0.0
      %4817 = vmatprep.mubr.f32.mxu0 0.0
      %4818 = vmatmul.mubr.f32.gmra.mrb[0].mxu0 %v4751
      %v4819 = vpop.f32.mrb[0].mxu0
      %v4820 = vadd.f32 0.0, %v4819
      %v4821 = vpop.f32.mrb[0].mxu0
      %4822 = vdwg.mxu0
      %v4823 = vadd.f32 %v4748, %v4820
      %v4824 = vld [vmem:[%s321 + $0x1] sm:$0xff]
      %v4826 = vsel %vm171, %v4824, 0
      %4828 = vmatprep.subr.mxu0 0.0
      %4829 = vmatpush1.msra.mxu0 %v754
      %4830 = vmatprep.subr.mxu0 0.0
      %4831 = vmatpush1.msra.mxu0 0.0
      %4832 = vmatprep.subr.mxu0 0.0
      %4833 = vmatpush1.msra.mxu0 0.0
      %4834 = vmatprep.subr.mxu0 0.0
      %4835 = vmatpush1.msra.mxu0 0.0
      %4836 = vmatprep.subr.mxu0 0.0
      %4837 = vmatpush1.msra.mxu0 0.0
      %4838 = vmatprep.subr.mxu0 0.0
      %4839 = vmatpush1.msra.mxu0 0.0
      %4840 = vmatprep.subr.mxu0 0.0
      %4841 = vmatpush1.msra.mxu0 0.0
      %4842 = vmatprep.subr.mxu0 0.0
      %4843 = vmatpush1.msra.mxu0 0.0
      %4844 = vmatprep.subr.mxu0 0.0
      %4845 = vmatpush1.msra.mxu0 0.0
      %4846 = vmatprep.subr.mxu0 0.0
      %4847 = vmatpush1.msra.mxu0 0.0
      %4848 = vmatprep.subr.mxu0 0.0
      %4849 = vmatpush1.msra.mxu0 0.0
      %4850 = vmatprep.subr.mxu0 0.0
      %4851 = vmatpush1.msra.mxu0 0.0
      %4852 = vmatprep.subr.mxu0 0.0
      %4853 = vmatpush1.msra.mxu0 0.0
      %4854 = vmatprep.subr.mxu0 0.0
      %4855 = vmatpush1.msra.mxu0 0.0
      %4856 = vmatprep.subr.mxu0 0.0
      %4857 = vmatpush1.msra.mxu0 0.0
      %4858 = vmatprep.subr.mxu0 0.0
      %4859 = vmatpush1.msra.mxu0 0.0
      %4860 = vmatprep.subr.mxu0 0.0
      %4861 = vmatpush1.msra.mxu0 0.0
      %4862 = vmatprep.subr.mxu0 0.0
      %4863 = vmatpush1.msra.mxu0 0.0
      %4864 = vmatprep.subr.mxu0 0.0
      %4865 = vmatpush1.msra.mxu0 0.0
      %4866 = vmatprep.subr.mxu0 0.0
      %4867 = vmatpush1.msra.mxu0 0.0
      %4868 = vmatprep.subr.mxu0 0.0
      %4869 = vmatpush1.msra.mxu0 0.0
      %4870 = vmatprep.subr.mxu0 0.0
      %4871 = vmatpush1.msra.mxu0 0.0
      %4872 = vmatprep.subr.mxu0 0.0
      %4873 = vmatpush1.msra.mxu0 0.0
      %4874 = vmatprep.subr.mxu0 0.0
      %4875 = vmatpush1.msra.mxu0 0.0
      %4876 = vmatprep.subr.mxu0 0.0
      %4877 = vmatpush1.msra.mxu0 0.0
      %4878 = vmatprep.subr.mxu0 0.0
      %4879 = vmatpush1.msra.mxu0 0.0
      %4880 = vmatprep.subr.mxu0 0.0
      %4881 = vmatpush1.msra.mxu0 0.0
      %4882 = vmatprep.subr.mxu0 0.0
      %4883 = vmatpush1.msra.mxu0 0.0
      %4884 = vmatprep.subr.mxu0 0.0
      %4885 = vmatpush1.msra.mxu0 0.0
      %4886 = vmatprep.subr.mxu0 0.0
      %4887 = vmatpush1.msra.mxu0 0.0
      %4888 = vmatprep.subr.mxu0 0.0
      %4889 = vmatpush1.msra.mxu0 0.0
      %4890 = vmatprep.subr.mxu0 0.0
      %4891 = vmatpush1.msra.mxu0 0.0
      %4892 = vmatprep.mubr.f32.mxu0 0.0
      %4893 = vmatmul.mubr.f32.gmra.mrb[0].mxu0 %v4826
      %v4894 = vpop.f32.mrb[0].mxu0
      %v4895 = vadd.f32 0.0, %v4894
      %v4896 = vpop.f32.mrb[0].mxu0
      %4897 = vdwg.mxu0
      %v4898 = vadd.f32 %v4823, %v4895
      %v4899 = vld [vmem:[%s327] sm:$0xff]
      %v4901 = vsel %vm171, %v4899, 0
      %4903 = vmatprep.subr.mxu0 0.0
      %4904 = vmatpush1.msra.mxu0 %v832
      %4905 = vmatprep.subr.mxu0 0.0
      %4906 = vmatpush1.msra.mxu0 0.0
      %4907 = vmatprep.subr.mxu0 0.0
      %4908 = vmatpush1.msra.mxu0 0.0
      %4909 = vmatprep.subr.mxu0 0.0
      %4910 = vmatpush1.msra.mxu0 0.0
      %4911 = vmatprep.subr.mxu0 0.0
      %4912 = vmatpush1.msra.mxu0 0.0
      %4913 = vmatprep.subr.mxu0 0.0
      %4914 = vmatpush1.msra.mxu0 0.0
      %4915 = vmatprep.subr.mxu0 0.0
      %4916 = vmatpush1.msra.mxu0 0.0
      %4917 = vmatprep.subr.mxu0 0.0
      %4918 = vmatpush1.msra.mxu0 0.0
      %4919 = vmatprep.subr.mxu0 0.0
      %4920 = vmatpush1.msra.mxu0 0.0
      %4921 = vmatprep.subr.mxu0 0.0
      %4922 = vmatpush1.msra.mxu0 0.0
      %4923 = vmatprep.subr.mxu0 0.0
      %4924 = vmatpush1.msra.mxu0 0.0
      %4925 = vmatprep.subr.mxu0 0.0
      %4926 = vmatpush1.msra.mxu0 0.0
      %4927 = vmatprep.subr.mxu0 0.0
      %4928 = vmatpush1.msra.mxu0 0.0
      %4929 = vmatprep.subr.mxu0 0.0
      %4930 = vmatpush1.msra.mxu0 0.0
      %4931 = vmatprep.subr.mxu0 0.0
      %4932 = vmatpush1.msra.mxu0 0.0
      %4933 = vmatprep.subr.mxu0 0.0
      %4934 = vmatpush1.msra.mxu0 0.0
      %4935 = vmatprep.subr.mxu0 0.0
      %4936 = vmatpush1.msra.mxu0 0.0
      %4937 = vmatprep.subr.mxu0 0.0
      %4938 = vmatpush1.msra.mxu0 0.0
      %4939 = vmatprep.subr.mxu0 0.0
      %4940 = vmatpush1.msra.mxu0 0.0
      %4941 = vmatprep.subr.mxu0 0.0
      %4942 = vmatpush1.msra.mxu0 0.0
      %4943 = vmatprep.subr.mxu0 0.0
      %4944 = vmatpush1.msra.mxu0 0.0
      %4945 = vmatprep.subr.mxu0 0.0
      %4946 = vmatpush1.msra.mxu0 0.0
      %4947 = vmatprep.subr.mxu0 0.0
      %4948 = vmatpush1.msra.mxu0 0.0
      %4949 = vmatprep.subr.mxu0 0.0
      %4950 = vmatpush1.msra.mxu0 0.0
      %4951 = vmatprep.subr.mxu0 0.0
      %4952 = vmatpush1.msra.mxu0 0.0
      %4953 = vmatprep.subr.mxu0 0.0
      %4954 = vmatpush1.msra.mxu0 0.0
      %4955 = vmatprep.subr.mxu0 0.0
      %4956 = vmatpush1.msra.mxu0 0.0
      %4957 = vmatprep.subr.mxu0 0.0
      %4958 = vmatpush1.msra.mxu0 0.0
      %4959 = vmatprep.subr.mxu0 0.0
      %4960 = vmatpush1.msra.mxu0 0.0
      %4961 = vmatprep.subr.mxu0 0.0
      %4962 = vmatpush1.msra.mxu0 0.0
      %4963 = vmatprep.subr.mxu0 0.0
      %4964 = vmatpush1.msra.mxu0 0.0
      %4965 = vmatprep.subr.mxu0 0.0
      %4966 = vmatpush1.msra.mxu0 0.0
      %4967 = vmatprep.mubr.f32.mxu0 0.0
      %4968 = vmatmul.mubr.f32.gmra.mrb[0].mxu0 %v4901
      %v4969 = vpop.f32.mrb[0].mxu0
      %v4970 = vadd.f32 0.0, %v4969
      %v4971 = vpop.f32.mrb[0].mxu0
      %4972 = vdwg.mxu0
      %v4973 = vadd.f32 %v4898, %v4970
      %v4974 = vld [vmem:[%s324] sm:$0xff]
      %v4976 = vsel %vm171, %v4974, 0
      %4978 = vmatprep.subr.mxu0 0.0
      %4979 = vmatpush1.msra.mxu0 %v910
      %4980 = vmatprep.subr.mxu0 0.0
      %4981 = vmatpush1.msra.mxu0 0.0
      %4982 = vmatprep.subr.mxu0 0.0
      %4983 = vmatpush1.msra.mxu0 0.0
      %4984 = vmatprep.subr.mxu0 0.0
      %4985 = vmatpush1.msra.mxu0 0.0
      %4986 = vmatprep.subr.mxu0 0.0
      %4987 = vmatpush1.msra.mxu0 0.0
      %4988 = vmatprep.subr.mxu0 0.0
      %4989 = vmatpush1.msra.mxu0 0.0
      %4990 = vmatprep.subr.mxu0 0.0
      %4991 = vmatpush1.msra.mxu0 0.0
      %4992 = vmatprep.subr.mxu0 0.0
      %4993 = vmatpush1.msra.mxu0 0.0
      %4994 = vmatprep.subr.mxu0 0.0
      %4995 = vmatpush1.msra.mxu0 0.0
      %4996 = vmatprep.subr.mxu0 0.0
      %4997 = vmatpush1.msra.mxu0 0.0
      %4998 = vmatprep.subr.mxu0 0.0
      %4999 = vmatpush1.msra.mxu0 0.0
      %5000 = vmatprep.subr.mxu0 0.0
      %5001 = vmatpush1.msra.mxu0 0.0
      %5002 = vmatprep.subr.mxu0 0.0
      %5003 = vmatpush1.msra.mxu0 0.0
      %5004 = vmatprep.subr.mxu0 0.0
      %5005 = vmatpush1.msra.mxu0 0.0
      %5006 = vmatprep.subr.mxu0 0.0
      %5007 = vmatpush1.msra.mxu0 0.0
      %5008 = vmatprep.subr.mxu0 0.0
      %5009 = vmatpush1.msra.mxu0 0.0
      %5010 = vmatprep.subr.mxu0 0.0
      %5011 = vmatpush1.msra.mxu0 0.0
      %5012 = vmatprep.subr.mxu0 0.0
      %5013 = vmatpush1.msra.mxu0 0.0
      %5014 = vmatprep.subr.mxu0 0.0
      %5015 = vmatpush1.msra.mxu0 0.0
      %5016 = vmatprep.subr.mxu0 0.0
      %5017 = vmatpush1.msra.mxu0 0.0
      %5018 = vmatprep.subr.mxu0 0.0
      %5019 = vmatpush1.msra.mxu0 0.0
      %5020 = vmatprep.subr.mxu0 0.0
      %5021 = vmatpush1.msra.mxu0 0.0
      %5022 = vmatprep.subr.mxu0 0.0
      %5023 = vmatpush1.msra.mxu0 0.0
      %5024 = vmatprep.subr.mxu0 0.0
      %5025 = vmatpush1.msra.mxu0 0.0
      %5026 = vmatprep.subr.mxu0 0.0
      %5027 = vmatpush1.msra.mxu0 0.0
      %5028 = vmatprep.subr.mxu0 0.0
      %5029 = vmatpush1.msra.mxu0 0.0
      %5030 = vmatprep.subr.mxu0 0.0
      %5031 = vmatpush1.msra.mxu0 0.0
      %5032 = vmatprep.subr.mxu0 0.0
      %5033 = vmatpush1.msra.mxu0 0.0
      %5034 = vmatprep.subr.mxu0 0.0
      %5035 = vmatpush1.msra.mxu0 0.0
      %5036 = vmatprep.subr.mxu0 0.0
      %5037 = vmatpush1.msra.mxu0 0.0
      %5038 = vmatprep.subr.mxu0 0.0
      %5039 = vmatpush1.msra.mxu0 0.0
      %5040 = vmatprep.subr.mxu0 0.0
      %5041 = vmatpush1.msra.mxu0 0.0
      %5042 = vmatprep.mubr.f32.mxu0 0.0
      %5043 = vmatmul.mubr.f32.gmra.mrb[0].mxu0 %v4976
      %v5044 = vpop.f32.mrb[0].mxu0
      %v5045 = vadd.f32 0.0, %v5044
      %v5046 = vpop.f32.mrb[0].mxu0
      %5047 = vdwg.mxu0
      %v5048 = vadd.f32 %v4973, %v5045
      %v5049 = vld [vmem:[%s327 + $0x1] sm:$0xff]
      %v5051 = vsel %vm171, %v5049, 0
      %5053 = vmatprep.subr.mxu0 0.0
      %5054 = vmatpush1.msra.mxu0 %v988
      %5055 = vmatprep.subr.mxu0 0.0
      %5056 = vmatpush1.msra.mxu0 0.0
      %5057 = vmatprep.subr.mxu0 0.0
      %5058 = vmatpush1.msra.mxu0 0.0
      %5059 = vmatprep.subr.mxu0 0.0
      %5060 = vmatpush1.msra.mxu0 0.0
      %5061 = vmatprep.subr.mxu0 0.0
      %5062 = vmatpush1.msra.mxu0 0.0
      %5063 = vmatprep.subr.mxu0 0.0
      %5064 = vmatpush1.msra.mxu0 0.0
      %5065 = vmatprep.subr.mxu0 0.0
      %5066 = vmatpush1.msra.mxu0 0.0
      %5067 = vmatprep.subr.mxu0 0.0
      %5068 = vmatpush1.msra.mxu0 0.0
      %5069 = vmatprep.subr.mxu0 0.0
      %5070 = vmatpush1.msra.mxu0 0.0
      %5071 = vmatprep.subr.mxu0 0.0
      %5072 = vmatpush1.msra.mxu0 0.0
      %5073 = vmatprep.subr.mxu0 0.0
      %5074 = vmatpush1.msra.mxu0 0.0
      %5075 = vmatprep.subr.mxu0 0.0
      %5076 = vmatpush1.msra.mxu0 0.0
      %5077 = vmatprep.subr.mxu0 0.0
      %5078 = vmatpush1.msra.mxu0 0.0
      %5079 = vmatprep.subr.mxu0 0.0
      %5080 = vmatpush1.msra.mxu0 0.0
      %5081 = vmatprep.subr.mxu0 0.0
      %5082 = vmatpush1.msra.mxu0 0.0
      %5083 = vmatprep.subr.mxu0 0.0
      %5084 = vmatpush1.msra.mxu0 0.0
      %5085 = vmatprep.subr.mxu0 0.0
      %5086 = vmatpush1.msra.mxu0 0.0
      %5087 = vmatprep.subr.mxu0 0.0
      %5088 = vmatpush1.msra.mxu0 0.0
      %5089 = vmatprep.subr.mxu0 0.0
      %5090 = vmatpush1.msra.mxu0 0.0
      %5091 = vmatprep.subr.mxu0 0.0
      %5092 = vmatpush1.msra.mxu0 0.0
      %5093 = vmatprep.subr.mxu0 0.0
      %5094 = vmatpush1.msra.mxu0 0.0
      %5095 = vmatprep.subr.mxu0 0.0
      %5096 = vmatpush1.msra.mxu0 0.0
      %5097 = vmatprep.subr.mxu0 0.0
      %5098 = vmatpush1.msra.mxu0 0.0
      %5099 = vmatprep.subr.mxu0 0.0
      %5100 = vmatpush1.msra.mxu0 0.0
      %5101 = vmatprep.subr.mxu0 0.0
      %5102 = vmatpush1.msra.mxu0 0.0
      %5103 = vmatprep.subr.mxu0 0.0
      %5104 = vmatpush1.msra.mxu0 0.0
      %5105 = vmatprep.subr.mxu0 0.0
      %5106 = vmatpush1.msra.mxu0 0.0
      %5107 = vmatprep.subr.mxu0 0.0
      %5108 = vmatpush1.msra.mxu0 0.0
      %5109 = vmatprep.subr.mxu0 0.0
      %5110 = vmatpush1.msra.mxu0 0.0
      %5111 = vmatprep.subr.mxu0 0.0
      %5112 = vmatpush1.msra.mxu0 0.0
      %5113 = vmatprep.subr.mxu0 0.0
      %5114 = vmatpush1.msra.mxu0 0.0
      %5115 = vmatprep.subr.mxu0 0.0
      %5116 = vmatpush1.msra.mxu0 0.0
      %5117 = vmatprep.mubr.f32.mxu0 0.0
      %5118 = vmatmul.mubr.f32.gmra.mrb[0].mxu0 %v5051
      %v5119 = vpop.f32.mrb[0].mxu0
      %v5120 = vadd.f32 0.0, %v5119
      %v5121 = vpop.f32.mrb[0].mxu0
      %5122 = vdwg.mxu0
      %v5123 = vadd.f32 %v5048, %v5120
      %v5124 = vadd.f32 %v5123, %v1065
      %v5125 = vmax.f32 %v5124, 0.0
      %5126 = vst.msk [vmem:[%s170 + $0x30] sm:$0xff] %vm1069, %v5125
      %v5127 = vld [vmem:[%s327] sm:$0xff]
      %v5128 = vld [vmem:[%s324] sm:$0xff]
      %v5130 = vsel %vm171, %v5128, 0
      %5132 = vmatprep.subr.mxu0 0.0
      %5133 = vmatpush1.msra.mxu0 %v367
      %5134 = vmatprep.subr.mxu0 0.0
      %5135 = vmatpush1.msra.mxu0 0.0
      %5136 = vmatprep.subr.mxu0 0.0
      %5137 = vmatpush1.msra.mxu0 0.0
      %5138 = vmatprep.subr.mxu0 0.0
      %5139 = vmatpush1.msra.mxu0 0.0
      %5140 = vmatprep.subr.mxu0 0.0
      %5141 = vmatpush1.msra.mxu0 0.0
      %5142 = vmatprep.subr.mxu0 0.0
      %5143 = vmatpush1.msra.mxu0 0.0
      %5144 = vmatprep.subr.mxu0 0.0
      %5145 = vmatpush1.msra.mxu0 0.0
      %5146 = vmatprep.subr.mxu0 0.0
      %5147 = vmatpush1.msra.mxu0 0.0
      %5148 = vmatprep.subr.mxu0 0.0
      %5149 = vmatpush1.msra.mxu0 0.0
      %5150 = vmatprep.subr.mxu0 0.0
      %5151 = vmatpush1.msra.mxu0 0.0
      %5152 = vmatprep.subr.mxu0 0.0
      %5153 = vmatpush1.msra.mxu0 0.0
      %5154 = vmatprep.subr.mxu0 0.0
      %5155 = vmatpush1.msra.mxu0 0.0
      %5156 = vmatprep.subr.mxu0 0.0
      %5157 = vmatpush1.msra.mxu0 0.0
      %5158 = vmatprep.subr.mxu0 0.0
      %5159 = vmatpush1.msra.mxu0 0.0
      %5160 = vmatprep.subr.mxu0 0.0
      %5161 = vmatpush1.msra.mxu0 0.0
      %5162 = vmatprep.subr.mxu0 0.0
      %5163 = vmatpush1.msra.mxu0 0.0
      %5164 = vmatprep.subr.mxu0 0.0
      %5165 = vmatpush1.msra.mxu0 0.0
      %5166 = vmatprep.subr.mxu0 0.0
      %5167 = vmatpush1.msra.mxu0 0.0
      %5168 = vmatprep.subr.mxu0 0.0
      %5169 = vmatpush1.msra.mxu0 0.0
      %5170 = vmatprep.subr.mxu0 0.0
      %5171 = vmatpush1.msra.mxu0 0.0
      %5172 = vmatprep.subr.mxu0 0.0
      %5173 = vmatpush1.msra.mxu0 0.0
      %5174 = vmatprep.subr.mxu0 0.0
      %5175 = vmatpush1.msra.mxu0 0.0
      %5176 = vmatprep.subr.mxu0 0.0
      %5177 = vmatpush1.msra.mxu0 0.0
      %5178 = vmatprep.subr.mxu0 0.0
      %5179 = vmatpush1.msra.mxu0 0.0
      %5180 = vmatprep.subr.mxu0 0.0
      %5181 = vmatpush1.msra.mxu0 0.0
      %5182 = vmatprep.subr.mxu0 0.0
      %5183 = vmatpush1.msra.mxu0 0.0
      %5184 = vmatprep.subr.mxu0 0.0
      %5185 = vmatpush1.msra.mxu0 0.0
      %5186 = vmatprep.subr.mxu0 0.0
      %5187 = vmatpush1.msra.mxu0 0.0
      %5188 = vmatprep.subr.mxu0 0.0
      %5189 = vmatpush1.msra.mxu0 0.0
      %5190 = vmatprep.subr.mxu0 0.0
      %5191 = vmatpush1.msra.mxu0 0.0
      %5192 = vmatprep.subr.mxu0 0.0
      %5193 = vmatpush1.msra.mxu0 0.0
      %5194 = vmatprep.subr.mxu0 0.0
      %5195 = vmatpush1.msra.mxu0 0.0
      %5196 = vmatprep.mubr.f32.mxu0 0.0
      %5197 = vmatmul.mubr.f32.gmra.mrb[0].mxu0 %v5130
      %v5198 = vpop.f32.mrb[0].mxu0
      %v5199 = vadd.f32 0.0, %v5198
      %v5200 = vpop.f32.mrb[0].mxu0
      %5201 = vdwg.mxu0
      %v5203 = vsel %vm171, %v5127, 0
      %5205 = vmatprep.subr.mxu0 0.0
      %5206 = vmatpush1.msra.mxu0 %v443
      %5207 = vmatprep.subr.mxu0 0.0
      %5208 = vmatpush1.msra.mxu0 0.0
      %5209 = vmatprep.subr.mxu0 0.0
      %5210 = vmatpush1.msra.mxu0 0.0
      %5211 = vmatprep.subr.mxu0 0.0
      %5212 = vmatpush1.msra.mxu0 0.0
      %5213 = vmatprep.subr.mxu0 0.0
      %5214 = vmatpush1.msra.mxu0 0.0
      %5215 = vmatprep.subr.mxu0 0.0
      %5216 = vmatpush1.msra.mxu0 0.0
      %5217 = vmatprep.subr.mxu0 0.0
      %5218 = vmatpush1.msra.mxu0 0.0
      %5219 = vmatprep.subr.mxu0 0.0
      %5220 = vmatpush1.msra.mxu0 0.0
      %5221 = vmatprep.subr.mxu0 0.0
      %5222 = vmatpush1.msra.mxu0 0.0
      %5223 = vmatprep.subr.mxu0 0.0
      %5224 = vmatpush1.msra.mxu0 0.0
      %5225 = vmatprep.subr.mxu0 0.0
      %5226 = vmatpush1.msra.mxu0 0.0
      %5227 = vmatprep.subr.mxu0 0.0
      %5228 = vmatpush1.msra.mxu0 0.0
      %5229 = vmatprep.subr.mxu0 0.0
      %5230 = vmatpush1.msra.mxu0 0.0
      %5231 = vmatprep.subr.mxu0 0.0
      %5232 = vmatpush1.msra.mxu0 0.0
      %5233 = vmatprep.subr.mxu0 0.0
      %5234 = vmatpush1.msra.mxu0 0.0
      %5235 = vmatprep.subr.mxu0 0.0
      %5236 = vmatpush1.msra.mxu0 0.0
      %5237 = vmatprep.subr.mxu0 0.0
      %5238 = vmatpush1.msra.mxu0 0.0
      %5239 = vmatprep.subr.mxu0 0.0
      %5240 = vmatpush1.msra.mxu0 0.0
      %5241 = vmatprep.subr.mxu0 0.0
      %5242 = vmatpush1.msra.mxu0 0.0
      %5243 = vmatprep.subr.mxu0 0.0
      %5244 = vmatpush1.msra.mxu0 0.0
      %5245 = vmatprep.subr.mxu0 0.0
      %5246 = vmatpush1.msra.mxu0 0.0
      %5247 = vmatprep.subr.mxu0 0.0
      %5248 = vmatpush1.msra.mxu0 0.0
      %5249 = vmatprep.subr.mxu0 0.0
      %5250 = vmatpush1.msra.mxu0 0.0
      %5251 = vmatprep.subr.mxu0 0.0
      %5252 = vmatpush1.msra.mxu0 0.0
      %5253 = vmatprep.subr.mxu0 0.0
      %5254 = vmatpush1.msra.mxu0 0.0
      %5255 = vmatprep.subr.mxu0 0.0
      %5256 = vmatpush1.msra.mxu0 0.0
      %5257 = vmatprep.subr.mxu0 0.0
      %5258 = vmatpush1.msra.mxu0 0.0
      %5259 = vmatprep.subr.mxu0 0.0
      %5260 = vmatpush1.msra.mxu0 0.0
      %5261 = vmatprep.subr.mxu0 0.0
      %5262 = vmatpush1.msra.mxu0 0.0
      %5263 = vmatprep.subr.mxu0 0.0
      %5264 = vmatpush1.msra.mxu0 0.0
      %5265 = vmatprep.subr.mxu0 0.0
      %5266 = vmatpush1.msra.mxu0 0.0
      %5267 = vmatprep.subr.mxu0 0.0
      %5268 = vmatpush1.msra.mxu0 0.0
      %5269 = vmatprep.mubr.f32.mxu0 0.0
      %5270 = vmatmul.mubr.f32.gmra.mrb[0].mxu0 %v5203
      %v5271 = vpop.f32.mrb[0].mxu0
      %v5272 = vadd.f32 %v5199, %v5271
      %v5273 = vpop.f32.mrb[0].mxu0
      %5274 = vdwg.mxu0
      %v5275 = vld [vmem:[%s327 + $0x1] sm:$0xff]
      %v5277 = vsel %vm171, %v5275, 0
      %5279 = vmatprep.subr.mxu0 0.0
      %5280 = vmatpush1.msra.mxu0 %v520
      %5281 = vmatprep.subr.mxu0 0.0
      %5282 = vmatpush1.msra.mxu0 0.0
      %5283 = vmatprep.subr.mxu0 0.0
      %5284 = vmatpush1.msra.mxu0 0.0
      %5285 = vmatprep.subr.mxu0 0.0
      %5286 = vmatpush1.msra.mxu0 0.0
      %5287 = vmatprep.subr.mxu0 0.0
      %5288 = vmatpush1.msra.mxu0 0.0
      %5289 = vmatprep.subr.mxu0 0.0
      %5290 = vmatpush1.msra.mxu0 0.0
      %5291 = vmatprep.subr.mxu0 0.0
      %5292 = vmatpush1.msra.mxu0 0.0
      %5293 = vmatprep.subr.mxu0 0.0
      %5294 = vmatpush1.msra.mxu0 0.0
      %5295 = vmatprep.subr.mxu0 0.0
      %5296 = vmatpush1.msra.mxu0 0.0
      %5297 = vmatprep.subr.mxu0 0.0
      %5298 = vmatpush1.msra.mxu0 0.0
      %5299 = vmatprep.subr.mxu0 0.0
      %5300 = vmatpush1.msra.mxu0 0.0
      %5301 = vmatprep.subr.mxu0 0.0
      %5302 = vmatpush1.msra.mxu0 0.0
      %5303 = vmatprep.subr.mxu0 0.0
      %5304 = vmatpush1.msra.mxu0 0.0
      %5305 = vmatprep.subr.mxu0 0.0
      %5306 = vmatpush1.msra.mxu0 0.0
      %5307 = vmatprep.subr.mxu0 0.0
      %5308 = vmatpush1.msra.mxu0 0.0
      %5309 = vmatprep.subr.mxu0 0.0
      %5310 = vmatpush1.msra.mxu0 0.0
      %5311 = vmatprep.subr.mxu0 0.0
      %5312 = vmatpush1.msra.mxu0 0.0
      %5313 = vmatprep.subr.mxu0 0.0
      %5314 = vmatpush1.msra.mxu0 0.0
      %5315 = vmatprep.subr.mxu0 0.0
      %5316 = vmatpush1.msra.mxu0 0.0
      %5317 = vmatprep.subr.mxu0 0.0
      %5318 = vmatpush1.msra.mxu0 0.0
      %5319 = vmatprep.subr.mxu0 0.0
      %5320 = vmatpush1.msra.mxu0 0.0
      %5321 = vmatprep.subr.mxu0 0.0
      %5322 = vmatpush1.msra.mxu0 0.0
      %5323 = vmatprep.subr.mxu0 0.0
      %5324 = vmatpush1.msra.mxu0 0.0
      %5325 = vmatprep.subr.mxu0 0.0
      %5326 = vmatpush1.msra.mxu0 0.0
      %5327 = vmatprep.subr.mxu0 0.0
      %5328 = vmatpush1.msra.mxu0 0.0
      %5329 = vmatprep.subr.mxu0 0.0
      %5330 = vmatpush1.msra.mxu0 0.0
      %5331 = vmatprep.subr.mxu0 0.0
      %5332 = vmatpush1.msra.mxu0 0.0
      %5333 = vmatprep.subr.mxu0 0.0
      %5334 = vmatpush1.msra.mxu0 0.0
      %5335 = vmatprep.subr.mxu0 0.0
      %5336 = vmatpush1.msra.mxu0 0.0
      %5337 = vmatprep.subr.mxu0 0.0
      %5338 = vmatpush1.msra.mxu0 0.0
      %5339 = vmatprep.subr.mxu0 0.0
      %5340 = vmatpush1.msra.mxu0 0.0
      %5341 = vmatprep.subr.mxu0 0.0
      %5342 = vmatpush1.msra.mxu0 0.0
      %5343 = vmatprep.mubr.f32.mxu0 0.0
      %5344 = vmatmul.mubr.f32.gmra.mrb[0].mxu0 %v5277
      %v5345 = vpop.f32.mrb[0].mxu0
      %v5346 = vadd.f32 0.0, %v5345
      %v5347 = vpop.f32.mrb[0].mxu0
      %5348 = vdwg.mxu0
      %v5349 = vadd.f32 %v5272, %v5346
      %v5350 = vld [vmem:[%s333] sm:$0xff]
      %v5352 = vsel %vm171, %v5350, 0
      %5354 = vmatprep.subr.mxu0 0.0
      %5355 = vmatpush1.msra.mxu0 %v598
      %5356 = vmatprep.subr.mxu0 0.0
      %5357 = vmatpush1.msra.mxu0 0.0
      %5358 = vmatprep.subr.mxu0 0.0
      %5359 = vmatpush1.msra.mxu0 0.0
      %5360 = vmatprep.subr.mxu0 0.0
      %5361 = vmatpush1.msra.mxu0 0.0
      %5362 = vmatprep.subr.mxu0 0.0
      %5363 = vmatpush1.msra.mxu0 0.0
      %5364 = vmatprep.subr.mxu0 0.0
      %5365 = vmatpush1.msra.mxu0 0.0
      %5366 = vmatprep.subr.mxu0 0.0
      %5367 = vmatpush1.msra.mxu0 0.0
      %5368 = vmatprep.subr.mxu0 0.0
      %5369 = vmatpush1.msra.mxu0 0.0
      %5370 = vmatprep.subr.mxu0 0.0
      %5371 = vmatpush1.msra.mxu0 0.0
      %5372 = vmatprep.subr.mxu0 0.0
      %5373 = vmatpush1.msra.mxu0 0.0
      %5374 = vmatprep.subr.mxu0 0.0
      %5375 = vmatpush1.msra.mxu0 0.0
      %5376 = vmatprep.subr.mxu0 0.0
      %5377 = vmatpush1.msra.mxu0 0.0
      %5378 = vmatprep.subr.mxu0 0.0
      %5379 = vmatpush1.msra.mxu0 0.0
      %5380 = vmatprep.subr.mxu0 0.0
      %5381 = vmatpush1.msra.mxu0 0.0
      %5382 = vmatprep.subr.mxu0 0.0
      %5383 = vmatpush1.msra.mxu0 0.0
      %5384 = vmatprep.subr.mxu0 0.0
      %5385 = vmatpush1.msra.mxu0 0.0
      %5386 = vmatprep.subr.mxu0 0.0
      %5387 = vmatpush1.msra.mxu0 0.0
      %5388 = vmatprep.subr.mxu0 0.0
      %5389 = vmatpush1.msra.mxu0 0.0
      %5390 = vmatprep.subr.mxu0 0.0
      %5391 = vmatpush1.msra.mxu0 0.0
      %5392 = vmatprep.subr.mxu0 0.0
      %5393 = vmatpush1.msra.mxu0 0.0
      %5394 = vmatprep.subr.mxu0 0.0
      %5395 = vmatpush1.msra.mxu0 0.0
      %5396 = vmatprep.subr.mxu0 0.0
      %5397 = vmatpush1.msra.mxu0 0.0
      %5398 = vmatprep.subr.mxu0 0.0
      %5399 = vmatpush1.msra.mxu0 0.0
      %5400 = vmatprep.subr.mxu0 0.0
      %5401 = vmatpush1.msra.mxu0 0.0
      %5402 = vmatprep.subr.mxu0 0.0
      %5403 = vmatpush1.msra.mxu0 0.0
      %5404 = vmatprep.subr.mxu0 0.0
      %5405 = vmatpush1.msra.mxu0 0.0
      %5406 = vmatprep.subr.mxu0 0.0
      %5407 = vmatpush1.msra.mxu0 0.0
      %5408 = vmatprep.subr.mxu0 0.0
      %5409 = vmatpush1.msra.mxu0 0.0
      %5410 = vmatprep.subr.mxu0 0.0
      %5411 = vmatpush1.msra.mxu0 0.0
      %5412 = vmatprep.subr.mxu0 0.0
      %5413 = vmatpush1.msra.mxu0 0.0
      %5414 = vmatprep.subr.mxu0 0.0
      %5415 = vmatpush1.msra.mxu0 0.0
      %5416 = vmatprep.subr.mxu0 0.0
      %5417 = vmatpush1.msra.mxu0 0.0
      %5418 = vmatprep.mubr.f32.mxu0 0.0
      %5419 = vmatmul.mubr.f32.gmra.mrb[0].mxu0 %v5352
      %v5420 = vpop.f32.mrb[0].mxu0
      %v5421 = vadd.f32 0.0, %v5420
      %v5422 = vpop.f32.mrb[0].mxu0
      %5423 = vdwg.mxu0
      %v5424 = vadd.f32 %v5349, %v5421
      %v5425 = vld [vmem:[%s330] sm:$0xff]
      %v5427 = vsel %vm171, %v5425, 0
      %5429 = vmatprep.subr.mxu0 0.0
      %5430 = vmatpush1.msra.mxu0 %v676
      %5431 = vmatprep.subr.mxu0 0.0
      %5432 = vmatpush1.msra.mxu0 0.0
      %5433 = vmatprep.subr.mxu0 0.0
      %5434 = vmatpush1.msra.mxu0 0.0
      %5435 = vmatprep.subr.mxu0 0.0
      %5436 = vmatpush1.msra.mxu0 0.0
      %5437 = vmatprep.subr.mxu0 0.0
      %5438 = vmatpush1.msra.mxu0 0.0
      %5439 = vmatprep.subr.mxu0 0.0
      %5440 = vmatpush1.msra.mxu0 0.0
      %5441 = vmatprep.subr.mxu0 0.0
      %5442 = vmatpush1.msra.mxu0 0.0
      %5443 = vmatprep.subr.mxu0 0.0
      %5444 = vmatpush1.msra.mxu0 0.0
      %5445 = vmatprep.subr.mxu0 0.0
      %5446 = vmatpush1.msra.mxu0 0.0
      %5447 = vmatprep.subr.mxu0 0.0
      %5448 = vmatpush1.msra.mxu0 0.0
      %5449 = vmatprep.subr.mxu0 0.0
      %5450 = vmatpush1.msra.mxu0 0.0
      %5451 = vmatprep.subr.mxu0 0.0
      %5452 = vmatpush1.msra.mxu0 0.0
      %5453 = vmatprep.subr.mxu0 0.0
      %5454 = vmatpush1.msra.mxu0 0.0
      %5455 = vmatprep.subr.mxu0 0.0
      %5456 = vmatpush1.msra.mxu0 0.0
      %5457 = vmatprep.subr.mxu0 0.0
      %5458 = vmatpush1.msra.mxu0 0.0
      %5459 = vmatprep.subr.mxu0 0.0
      %5460 = vmatpush1.msra.mxu0 0.0
      %5461 = vmatprep.subr.mxu0 0.0
      %5462 = vmatpush1.msra.mxu0 0.0
      %5463 = vmatprep.subr.mxu0 0.0
      %5464 = vmatpush1.msra.mxu0 0.0
      %5465 = vmatprep.subr.mxu0 0.0
      %5466 = vmatpush1.msra.mxu0 0.0
      %5467 = vmatprep.subr.mxu0 0.0
      %5468 = vmatpush1.msra.mxu0 0.0
      %5469 = vmatprep.subr.mxu0 0.0
      %5470 = vmatpush1.msra.mxu0 0.0
      %5471 = vmatprep.subr.mxu0 0.0
      %5472 = vmatpush1.msra.mxu0 0.0
      %5473 = vmatprep.subr.mxu0 0.0
      %5474 = vmatpush1.msra.mxu0 0.0
      %5475 = vmatprep.subr.mxu0 0.0
      %5476 = vmatpush1.msra.mxu0 0.0
      %5477 = vmatprep.subr.mxu0 0.0
      %5478 = vmatpush1.msra.mxu0 0.0
      %5479 = vmatprep.subr.mxu0 0.0
      %5480 = vmatpush1.msra.mxu0 0.0
      %5481 = vmatprep.subr.mxu0 0.0
      %5482 = vmatpush1.msra.mxu0 0.0
      %5483 = vmatprep.subr.mxu0 0.0
      %5484 = vmatpush1.msra.mxu0 0.0
      %5485 = vmatprep.subr.mxu0 0.0
      %5486 = vmatpush1.msra.mxu0 0.0
      %5487 = vmatprep.subr.mxu0 0.0
      %5488 = vmatpush1.msra.mxu0 0.0
      %5489 = vmatprep.subr.mxu0 0.0
      %5490 = vmatpush1.msra.mxu0 0.0
      %5491 = vmatprep.subr.mxu0 0.0
      %5492 = vmatpush1.msra.mxu0 0.0
      %5493 = vmatprep.mubr.f32.mxu0 0.0
      %5494 = vmatmul.mubr.f32.gmra.mrb[0].mxu0 %v5427
      %v5495 = vpop.f32.mrb[0].mxu0
      %v5496 = vadd.f32 0.0, %v5495
      %v5497 = vpop.f32.mrb[0].mxu0
      %5498 = vdwg.mxu0
      %v5499 = vadd.f32 %v5424, %v5496
      %v5500 = vld [vmem:[%s333 + $0x1] sm:$0xff]
      %v5502 = vsel %vm171, %v5500, 0
      %5504 = vmatprep.subr.mxu0 0.0
      %5505 = vmatpush1.msra.mxu0 %v754
      %5506 = vmatprep.subr.mxu0 0.0
      %5507 = vmatpush1.msra.mxu0 0.0
      %5508 = vmatprep.subr.mxu0 0.0
      %5509 = vmatpush1.msra.mxu0 0.0
      %5510 = vmatprep.subr.mxu0 0.0
      %5511 = vmatpush1.msra.mxu0 0.0
      %5512 = vmatprep.subr.mxu0 0.0
      %5513 = vmatpush1.msra.mxu0 0.0
      %5514 = vmatprep.subr.mxu0 0.0
      %5515 = vmatpush1.msra.mxu0 0.0
      %5516 = vmatprep.subr.mxu0 0.0
      %5517 = vmatpush1.msra.mxu0 0.0
      %5518 = vmatprep.subr.mxu0 0.0
      %5519 = vmatpush1.msra.mxu0 0.0
      %5520 = vmatprep.subr.mxu0 0.0
      %5521 = vmatpush1.msra.mxu0 0.0
      %5522 = vmatprep.subr.mxu0 0.0
      %5523 = vmatpush1.msra.mxu0 0.0
      %5524 = vmatprep.subr.mxu0 0.0
      %5525 = vmatpush1.msra.mxu0 0.0
      %5526 = vmatprep.subr.mxu0 0.0
      %5527 = vmatpush1.msra.mxu0 0.0
      %5528 = vmatprep.subr.mxu0 0.0
      %5529 = vmatpush1.msra.mxu0 0.0
      %5530 = vmatprep.subr.mxu0 0.0
      %5531 = vmatpush1.msra.mxu0 0.0
      %5532 = vmatprep.subr.mxu0 0.0
      %5533 = vmatpush1.msra.mxu0 0.0
      %5534 = vmatprep.subr.mxu0 0.0
      %5535 = vmatpush1.msra.mxu0 0.0
      %5536 = vmatprep.subr.mxu0 0.0
      %5537 = vmatpush1.msra.mxu0 0.0
      %5538 = vmatprep.subr.mxu0 0.0
      %5539 = vmatpush1.msra.mxu0 0.0
      %5540 = vmatprep.subr.mxu0 0.0
      %5541 = vmatpush1.msra.mxu0 0.0
      %5542 = vmatprep.subr.mxu0 0.0
      %5543 = vmatpush1.msra.mxu0 0.0
      %5544 = vmatprep.subr.mxu0 0.0
      %5545 = vmatpush1.msra.mxu0 0.0
      %5546 = vmatprep.subr.mxu0 0.0
      %5547 = vmatpush1.msra.mxu0 0.0
      %5548 = vmatprep.subr.mxu0 0.0
      %5549 = vmatpush1.msra.mxu0 0.0
      %5550 = vmatprep.subr.mxu0 0.0
      %5551 = vmatpush1.msra.mxu0 0.0
      %5552 = vmatprep.subr.mxu0 0.0
      %5553 = vmatpush1.msra.mxu0 0.0
      %5554 = vmatprep.subr.mxu0 0.0
      %5555 = vmatpush1.msra.mxu0 0.0
      %5556 = vmatprep.subr.mxu0 0.0
      %5557 = vmatpush1.msra.mxu0 0.0
      %5558 = vmatprep.subr.mxu0 0.0
      %5559 = vmatpush1.msra.mxu0 0.0
      %5560 = vmatprep.subr.mxu0 0.0
      %5561 = vmatpush1.msra.mxu0 0.0
      %5562 = vmatprep.subr.mxu0 0.0
      %5563 = vmatpush1.msra.mxu0 0.0
      %5564 = vmatprep.subr.mxu0 0.0
      %5565 = vmatpush1.msra.mxu0 0.0
      %5566 = vmatprep.subr.mxu0 0.0
      %5567 = vmatpush1.msra.mxu0 0.0
      %5568 = vmatprep.mubr.f32.mxu0 0.0
      %5569 = vmatmul.mubr.f32.gmra.mrb[0].mxu0 %v5502
      %v5570 = vpop.f32.mrb[0].mxu0
      %v5571 = vadd.f32 0.0, %v5570
      %v5572 = vpop.f32.mrb[0].mxu0
      %5573 = vdwg.mxu0
      %v5574 = vadd.f32 %v5499, %v5571
      %v5575 = vld [vmem:[%s339] sm:$0xff]
      %v5577 = vsel %vm171, %v5575, 0
      %5579 = vmatprep.subr.mxu0 0.0
      %5580 = vmatpush1.msra.mxu0 %v832
      %5581 = vmatprep.subr.mxu0 0.0
      %5582 = vmatpush1.msra.mxu0 0.0
      %5583 = vmatprep.subr.mxu0 0.0
      %5584 = vmatpush1.msra.mxu0 0.0
      %5585 = vmatprep.subr.mxu0 0.0
      %5586 = vmatpush1.msra.mxu0 0.0
      %5587 = vmatprep.subr.mxu0 0.0
      %5588 = vmatpush1.msra.mxu0 0.0
      %5589 = vmatprep.subr.mxu0 0.0
      %5590 = vmatpush1.msra.mxu0 0.0
      %5591 = vmatprep.subr.mxu0 0.0
      %5592 = vmatpush1.msra.mxu0 0.0
      %5593 = vmatprep.subr.mxu0 0.0
      %5594 = vmatpush1.msra.mxu0 0.0
      %5595 = vmatprep.subr.mxu0 0.0
      %5596 = vmatpush1.msra.mxu0 0.0
      %5597 = vmatprep.subr.mxu0 0.0
      %5598 = vmatpush1.msra.mxu0 0.0
      %5599 = vmatprep.subr.mxu0 0.0
      %5600 = vmatpush1.msra.mxu0 0.0
      %5601 = vmatprep.subr.mxu0 0.0
      %5602 = vmatpush1.msra.mxu0 0.0
      %5603 = vmatprep.subr.mxu0 0.0
      %5604 = vmatpush1.msra.mxu0 0.0
      %5605 = vmatprep.subr.mxu0 0.0
      %5606 = vmatpush1.msra.mxu0 0.0
      %5607 = vmatprep.subr.mxu0 0.0
      %5608 = vmatpush1.msra.mxu0 0.0
      %5609 = vmatprep.subr.mxu0 0.0
      %5610 = vmatpush1.msra.mxu0 0.0
      %5611 = vmatprep.subr.mxu0 0.0
      %5612 = vmatpush1.msra.mxu0 0.0
      %5613 = vmatprep.subr.mxu0 0.0
      %5614 = vmatpush1.msra.mxu0 0.0
      %5615 = vmatprep.subr.mxu0 0.0
      %5616 = vmatpush1.msra.mxu0 0.0
      %5617 = vmatprep.subr.mxu0 0.0
      %5618 = vmatpush1.msra.mxu0 0.0
      %5619 = vmatprep.subr.mxu0 0.0
      %5620 = vmatpush1.msra.mxu0 0.0
      %5621 = vmatprep.subr.mxu0 0.0
      %5622 = vmatpush1.msra.mxu0 0.0
      %5623 = vmatprep.subr.mxu0 0.0
      %5624 = vmatpush1.msra.mxu0 0.0
      %5625 = vmatprep.subr.mxu0 0.0
      %5626 = vmatpush1.msra.mxu0 0.0
      %5627 = vmatprep.subr.mxu0 0.0
      %5628 = vmatpush1.msra.mxu0 0.0
      %5629 = vmatprep.subr.mxu0 0.0
      %5630 = vmatpush1.msra.mxu0 0.0
      %5631 = vmatprep.subr.mxu0 0.0
      %5632 = vmatpush1.msra.mxu0 0.0
      %5633 = vmatprep.subr.mxu0 0.0
      %5634 = vmatpush1.msra.mxu0 0.0
      %5635 = vmatprep.subr.mxu0 0.0
      %5636 = vmatpush1.msra.mxu0 0.0
      %5637 = vmatprep.subr.mxu0 0.0
      %5638 = vmatpush1.msra.mxu0 0.0
      %5639 = vmatprep.subr.mxu0 0.0
      %5640 = vmatpush1.msra.mxu0 0.0
      %5641 = vmatprep.subr.mxu0 0.0
      %5642 = vmatpush1.msra.mxu0 0.0
      %5643 = vmatprep.mubr.f32.mxu0 0.0
      %5644 = vmatmul.mubr.f32.gmra.mrb[0].mxu0 %v5577
      %v5645 = vpop.f32.mrb[0].mxu0
      %v5646 = vadd.f32 0.0, %v5645
      %v5647 = vpop.f32.mrb[0].mxu0
      %5648 = vdwg.mxu0
      %v5649 = vadd.f32 %v5574, %v5646
      %v5650 = vld [vmem:[%s336] sm:$0xff]
      %v5652 = vsel %vm171, %v5650, 0
      %5654 = vmatprep.subr.mxu0 0.0
      %5655 = vmatpush1.msra.mxu0 %v910
      %5656 = vmatprep.subr.mxu0 0.0
      %5657 = vmatpush1.msra.mxu0 0.0
      %5658 = vmatprep.subr.mxu0 0.0
      %5659 = vmatpush1.msra.mxu0 0.0
      %5660 = vmatprep.subr.mxu0 0.0
      %5661 = vmatpush1.msra.mxu0 0.0
      %5662 = vmatprep.subr.mxu0 0.0
      %5663 = vmatpush1.msra.mxu0 0.0
      %5664 = vmatprep.subr.mxu0 0.0
      %5665 = vmatpush1.msra.mxu0 0.0
      %5666 = vmatprep.subr.mxu0 0.0
      %5667 = vmatpush1.msra.mxu0 0.0
      %5668 = vmatprep.subr.mxu0 0.0
      %5669 = vmatpush1.msra.mxu0 0.0
      %5670 = vmatprep.subr.mxu0 0.0
      %5671 = vmatpush1.msra.mxu0 0.0
      %5672 = vmatprep.subr.mxu0 0.0
      %5673 = vmatpush1.msra.mxu0 0.0
      %5674 = vmatprep.subr.mxu0 0.0
      %5675 = vmatpush1.msra.mxu0 0.0
      %5676 = vmatprep.subr.mxu0 0.0
      %5677 = vmatpush1.msra.mxu0 0.0
      %5678 = vmatprep.subr.mxu0 0.0
      %5679 = vmatpush1.msra.mxu0 0.0
      %5680 = vmatprep.subr.mxu0 0.0
      %5681 = vmatpush1.msra.mxu0 0.0
      %5682 = vmatprep.subr.mxu0 0.0
      %5683 = vmatpush1.msra.mxu0 0.0
      %5684 = vmatprep.subr.mxu0 0.0
      %5685 = vmatpush1.msra.mxu0 0.0
      %5686 = vmatprep.subr.mxu0 0.0
      %5687 = vmatpush1.msra.mxu0 0.0
      %5688 = vmatprep.subr.mxu0 0.0
      %5689 = vmatpush1.msra.mxu0 0.0
      %5690 = vmatprep.subr.mxu0 0.0
      %5691 = vmatpush1.msra.mxu0 0.0
      %5692 = vmatprep.subr.mxu0 0.0
      %5693 = vmatpush1.msra.mxu0 0.0
      %5694 = vmatprep.subr.mxu0 0.0
      %5695 = vmatpush1.msra.mxu0 0.0
      %5696 = vmatprep.subr.mxu0 0.0
      %5697 = vmatpush1.msra.mxu0 0.0
      %5698 = vmatprep.subr.mxu0 0.0
      %5699 = vmatpush1.msra.mxu0 0.0
      %5700 = vmatprep.subr.mxu0 0.0
      %5701 = vmatpush1.msra.mxu0 0.0
      %5702 = vmatprep.subr.mxu0 0.0
      %5703 = vmatpush1.msra.mxu0 0.0
      %5704 = vmatprep.subr.mxu0 0.0
      %5705 = vmatpush1.msra.mxu0 0.0
      %5706 = vmatprep.subr.mxu0 0.0
      %5707 = vmatpush1.msra.mxu0 0.0
      %5708 = vmatprep.subr.mxu0 0.0
      %5709 = vmatpush1.msra.mxu0 0.0
      %5710 = vmatprep.subr.mxu0 0.0
      %5711 = vmatpush1.msra.mxu0 0.0
      %5712 = vmatprep.subr.mxu0 0.0
      %5713 = vmatpush1.msra.mxu0 0.0
      %5714 = vmatprep.subr.mxu0 0.0
      %5715 = vmatpush1.msra.mxu0 0.0
      %5716 = vmatprep.subr.mxu0 0.0
      %5717 = vmatpush1.msra.mxu0 0.0
      %5718 = vmatprep.mubr.f32.mxu0 0.0
      %5719 = vmatmul.mubr.f32.gmra.mrb[0].mxu0 %v5652
      %v5720 = vpop.f32.mrb[0].mxu0
      %v5721 = vadd.f32 0.0, %v5720
      %v5722 = vpop.f32.mrb[0].mxu0
      %5723 = vdwg.mxu0
      %v5724 = vadd.f32 %v5649, %v5721
      %v5725 = vld [vmem:[%s339 + $0x1] sm:$0xff]
      %v5727 = vsel %vm171, %v5725, 0
      %5729 = vmatprep.subr.mxu0 0.0
      %5730 = vmatpush1.msra.mxu0 %v988
      %5731 = vmatprep.subr.mxu0 0.0
      %5732 = vmatpush1.msra.mxu0 0.0
      %5733 = vmatprep.subr.mxu0 0.0
      %5734 = vmatpush1.msra.mxu0 0.0
      %5735 = vmatprep.subr.mxu0 0.0
      %5736 = vmatpush1.msra.mxu0 0.0
      %5737 = vmatprep.subr.mxu0 0.0
      %5738 = vmatpush1.msra.mxu0 0.0
      %5739 = vmatprep.subr.mxu0 0.0
      %5740 = vmatpush1.msra.mxu0 0.0
      %5741 = vmatprep.subr.mxu0 0.0
      %5742 = vmatpush1.msra.mxu0 0.0
      %5743 = vmatprep.subr.mxu0 0.0
      %5744 = vmatpush1.msra.mxu0 0.0
      %5745 = vmatprep.subr.mxu0 0.0
      %5746 = vmatpush1.msra.mxu0 0.0
      %5747 = vmatprep.subr.mxu0 0.0
      %5748 = vmatpush1.msra.mxu0 0.0
      %5749 = vmatprep.subr.mxu0 0.0
      %5750 = vmatpush1.msra.mxu0 0.0
      %5751 = vmatprep.subr.mxu0 0.0
      %5752 = vmatpush1.msra.mxu0 0.0
      %5753 = vmatprep.subr.mxu0 0.0
      %5754 = vmatpush1.msra.mxu0 0.0
      %5755 = vmatprep.subr.mxu0 0.0
      %5756 = vmatpush1.msra.mxu0 0.0
      %5757 = vmatprep.subr.mxu0 0.0
      %5758 = vmatpush1.msra.mxu0 0.0
      %5759 = vmatprep.subr.mxu0 0.0
      %5760 = vmatpush1.msra.mxu0 0.0
      %5761 = vmatprep.subr.mxu0 0.0
      %5762 = vmatpush1.msra.mxu0 0.0
      %5763 = vmatprep.subr.mxu0 0.0
      %5764 = vmatpush1.msra.mxu0 0.0
      %5765 = vmatprep.subr.mxu0 0.0
      %5766 = vmatpush1.msra.mxu0 0.0
      %5767 = vmatprep.subr.mxu0 0.0
      %5768 = vmatpush1.msra.mxu0 0.0
      %5769 = vmatprep.subr.mxu0 0.0
      %5770 = vmatpush1.msra.mxu0 0.0
      %5771 = vmatprep.subr.mxu0 0.0
      %5772 = vmatpush1.msra.mxu0 0.0
      %5773 = vmatprep.subr.mxu0 0.0
      %5774 = vmatpush1.msra.mxu0 0.0
      %5775 = vmatprep.subr.mxu0 0.0
      %5776 = vmatpush1.msra.mxu0 0.0
      %5777 = vmatprep.subr.mxu0 0.0
      %5778 = vmatpush1.msra.mxu0 0.0
      %5779 = vmatprep.subr.mxu0 0.0
      %5780 = vmatpush1.msra.mxu0 0.0
      %5781 = vmatprep.subr.mxu0 0.0
      %5782 = vmatpush1.msra.mxu0 0.0
      %5783 = vmatprep.subr.mxu0 0.0
      %5784 = vmatpush1.msra.mxu0 0.0
      %5785 = vmatprep.subr.mxu0 0.0
      %5786 = vmatpush1.msra.mxu0 0.0
      %5787 = vmatprep.subr.mxu0 0.0
      %5788 = vmatpush1.msra.mxu0 0.0
      %5789 = vmatprep.subr.mxu0 0.0
      %5790 = vmatpush1.msra.mxu0 0.0
      %5791 = vmatprep.subr.mxu0 0.0
      %5792 = vmatpush1.msra.mxu0 0.0
      %5793 = vmatprep.mubr.f32.mxu0 0.0
      %5794 = vmatmul.mubr.f32.gmra.mrb[0].mxu0 %v5727
      %v5795 = vpop.f32.mrb[0].mxu0
      %v5796 = vadd.f32 0.0, %v5795
      %v5797 = vpop.f32.mrb[0].mxu0
      %5798 = vdwg.mxu0
      %v5799 = vadd.f32 %v5724, %v5796
      %v5800 = vadd.f32 %v5799, %v1065
      %v5801 = vmax.f32 %v5800, 0.0
      %5802 = vst.msk [vmem:[%s170 + $0x38] sm:$0xff] %vm1069, %v5801
      %p5803 = scmp.lt.s32.totalorder %s14, 1
      %s5804 = scalar_select %p5803, %s14, 1
      %s5805 = smul.addr %s5804, 8
      %s5806 = smul.addr %s5805, 8
      %s5807 = scalar_lea.vmem %s3, %s5806
      // Predicated region
      $region33: #{tpu_custom_call.1} parent=31 // pred_check
        %p5808 = pneg %p100
      $region34: #{tpu_custom_call.1} parent=31 // pred_check_branch
        %5810 = sbr.rel (%p5808) target = $region36
      $region35: #{tpu_custom_call.1} parent=31 // pred_region
        _
      $region36: #{tpu_custom_call.1} parent=31 // pred_fallthru
        _
    $region32: #{tpu_custom_call.1} parent=5 // pred_fallthru
      _
    %p5811 = scmp.le.s32.totalorder 2, %s9
    // Predicated region
    $region37: #{tpu_custom_call.1} parent=5 // pred_check
      %p5812 = pneg %p5811
    $region38: #{tpu_custom_call.1} parent=5 // pred_check_branch
      %5814 = sbr.rel (%p5812) target = $region40
    $region39: #{tpu_custom_call.1} parent=5 // pred_region
      %s5815 = ssub.s32 %s9, 2
      // Predicated region
      $region41: #{tpu_custom_call.1} parent=39 // pred_check
        %p5816 = pneg %p106
      $region42: #{tpu_custom_call.1} parent=39 // pred_check_branch
        %5818 = sbr.rel (%p5816) target = $region44
      $region43: #{tpu_custom_call.1} parent=39 // pred_region
        %p5819 = scmp.lt.s32.totalorder %s15, 1
        %s5820 = scalar_select %p5819, %s15, 1
        %s5821 = smul.addr %s5820, 8
        %s5822 = smul.addr %s5821, 8
        %s5823 = scalar_lea.vmem %s3, %s5822
      $region44: #{tpu_custom_call.1} parent=39 // pred_fallthru
        _
    $region40: #{tpu_custom_call.1} parent=5 // pred_fallthru
      _
  $region6: #{tpu_custom_call.1} parent=0 // loop_footer
    %s13 = sadd.s32 1, %s9
  $region7: #{tpu_custom_call.1} parent=0 // loop_footer_branch
    %8 = sbr.rel target = $region3
  $region8: #{tpu_custom_call.1} parent=0 // loop_exit
    _

</llo_original>
